<compile_context>
chip_gen: v6e
topology: v6e:2x2x1
jax: 0.10.0
libtpu: 0.0.40
codegen_flags: <defaults>
</compile_context>

<pallas_src>
import math

import jax
import jax.numpy as jnp
from jax.experimental import pallas as pl
from jax.experimental.pallas import tpu as pltpu

# ---------------- model hyper-parameters (small, consistent with the module) ----
B = 2          # batch
S = 8          # target sequence length (embeddings)
SE = 8         # source sequence length (encoded)
D = 32         # d_model
H = 4          # heads
DK = D // H    # per-head dim
FF = 2048      # FeedForward middle_dim (module default)
FF_CHUNK = 512 # hidden-dim chunk size for the feed-forward matmuls
LN_EPS = 1e-5  # torch nn.LayerNorm default

# lane offsets inside the packed slabs
# attn_w columns : [wq1|wk1|wv1|wc1|wq2|wk2|wv2|wc2]
# vec    columns : [bq1|bk1|bv1|bc1|bq2|bk2|bv2|bc2|b2|gamma|beta]
QKV1_OFF, C1_OFF = 0 * D, 3 * D
Q2_OFF, KV2_OFF, C2_OFF = 4 * D, 5 * D, 7 * D
B2_OFF, GAMMA_OFF, BETA_OFF = 8 * D, 9 * D, 10 * D


def decoder_layer_kernel(
    x_ref,        # (B*S, D)   f32  embeddings, batch-folded
    enc_ref,      # (B*SE, D)  f32  encoder output, batch-folded
    masks_ref,    # (2, B, S)  f32  additive masks: [0]=target, [1]=source
    attn_w_ref,   # (D, 8*D)   f32  packed attention weights
    vec_ref,      # (1, 11*D)  f32  packed biases + gamma + beta
    b1_ref,       # (1, FF)    f32  fc1 bias
    w1_hbm,       # (D, FF)    bf16 fc1 weight (HBM, memory_space=ANY)
    w2_hbm,       # (FF, D)    bf16 fc2 weight (HBM, memory_space=ANY)
    out_ref,      # (B*S, D)   f32
    w1_vmem,      # (D, FF)    bf16 scratch
    w2_vmem,      # (FF, D)    bf16 scratch
    dma_sem,      # (2,)       DMA semaphores
):
    # ---- kick off the big FF-weight DMAs; they overlap with the attention work ----
    w1_cp = pltpu.make_async_copy(w1_hbm, w1_vmem, dma_sem.at[0])
    w2_cp = pltpu.make_async_copy(w2_hbm, w2_vmem, dma_sem.at[1])
    w1_cp.start()
    w2_cp.start()

    x = x_ref[...]                      # (B*S, D)
    enc = enc_ref[...]                  # (B*SE, D)
    tadd = masks_ref[0]                 # (B, S)   additive: 0 keep / -1e9 masked
    sadd = masks_ref[1]                 # (B, SE)

    # hoisted gamma/beta broadcasts, shared by all three LayerNorm calls
    g_b = jnp.broadcast_to(vec_ref[:, GAMMA_OFF:GAMMA_OFF + D], (B * S, D))
    bt_b = jnp.broadcast_to(vec_ref[:, BETA_OFF:BETA_OFF + D], (B * S, D))

    def layernorm(h):
        mu = jnp.mean(h, axis=-1, keepdims=True)
        c = h - mu
        var = jnp.mean(c * c, axis=-1, keepdims=True)
        return c * jax.lax.rsqrt(var + LN_EPS) * g_b + bt_b

    inv_sqrt_dk = 1.0 / math.sqrt(DK)

    def to_heads(t2d, sk):
        # (B*sk, H*DK) -> (B*H, sk, DK): one layout transform feeding batched einsums
        return t2d.reshape(B, sk, H, DK).swapaxes(1, 2).reshape(B * H, sk, DK)

    def attend(q2d, k2d, v2d, sk, mask_add):
        # q2d (B*S, D) pre-scaled by 1/sqrt(dk); k2d/v2d (B*sk, D); mask_add (B, sk)
        qh = to_heads(q2d, S)
        kh = to_heads(k2d, sk)
        vh = to_heads(v2d, sk)
        scores = jnp.einsum("nqd,nkd->nqk", qh, kh,
                            preferred_element_type=jnp.float32)     # (B*H, S, sk)
        m = jnp.broadcast_to(mask_add[:, None, None, :], (B, H, 1, sk))
        scores = scores + m.reshape(B * H, 1, sk)
        scores = scores - jnp.max(scores, axis=-1, keepdims=True)
        p = jnp.exp(scores)
        p = p / jnp.sum(p, axis=-1, keepdims=True)                   # exact normalization
        ctx = jnp.einsum("nqk,nkd->nqd", p, vh,
                         preferred_element_type=jnp.float32)         # (B*H, S, DK)
        return ctx.reshape(B, H, S, DK).swapaxes(1, 2).reshape(B * S, D)

    # ---------------- self attention + residual + LN ----------------
    qkv1 = (
        jnp.dot(x, attn_w_ref[:, QKV1_OFF:QKV1_OFF + 3 * D],
                preferred_element_type=jnp.float32)
        + vec_ref[:, QKV1_OFF:QKV1_OFF + 3 * D]
    )                                                                # (B*S, 3D)
    ctx1 = attend(qkv1[:, 0:D] * inv_sqrt_dk,
                  qkv1[:, D:2 * D], qkv1[:, 2 * D:3 * D], S, tadd)
    self_out = (
        jnp.dot(ctx1, attn_w_ref[:, C1_OFF:C1_OFF + D],
                preferred_element_type=jnp.float32)
        + vec_ref[:, C1_OFF:C1_OFF + D]
    )
    query = layernorm(self_out + x)

    # ---------------- cross attention + residual + LN ----------------
    q2 = (
        jnp.dot(query, attn_w_ref[:, Q2_OFF:Q2_OFF + D],
                preferred_element_type=jnp.float32)
        + vec_ref[:, Q2_OFF:Q2_OFF + D]
    ) * inv_sqrt_dk
    kv2 = (
        jnp.dot(enc, attn_w_ref[:, KV2_OFF:KV2_OFF + 2 * D],
                preferred_element_type=jnp.float32)
        + vec_ref[:, KV2_OFF:KV2_OFF + 2 * D]
    )                                                                # (B*SE, 2D)
    ctx2 = attend(q2, kv2[:, 0:D], kv2[:, D:2 * D], SE, sadd)
    cross_out = (
        jnp.dot(ctx2, attn_w_ref[:, C2_OFF:C2_OFF + D],
                preferred_element_type=jnp.float32)
        + vec_ref[:, C2_OFF:C2_OFF + D]
    )
    interacted = layernorm(cross_out + query)

    # ---------------- feed forward + residual + LN ----------------
    # the FF weights have been streaming during attention; only now block on them
    w1_cp.wait()
    w2_cp.wait()

    x_bf = interacted.astype(jnp.bfloat16)   # bf16 only at the matmul boundary

    def ff_chunk(c, acc):
        off = pl.multiple_of(c * FF_CHUNK, FF_CHUNK)
        w1c = w1_vmem[:, pl.ds(off, FF_CHUNK)]            # (D, FC)  bf16
        b1c = b1_ref[:, pl.ds(off, FF_CHUNK)]             # (1, FC)  f32
        h = jnp.dot(x_bf, w1c, preferred_element_type=jnp.float32) + b1c
        h = jnp.maximum(h, 0.0).astype(jnp.bfloat16)
        w2c = w2_vmem[pl.ds(off, FF_CHUNK), :]            # (FC, D)  bf16
        return acc + jnp.dot(h, w2c, preferred_element_type=jnp.float32)

    ff_out = jax.lax.fori_loop(0, FF // FF_CHUNK, ff_chunk,
                               jnp.zeros((B * S, D), jnp.float32), unroll=True)
    ff_out = ff_out + vec_ref[:, B2_OFF:B2_OFF + D]
    decoded = layernorm(ff_out + interacted)

    out_ref[...] = decoded.astype(out_ref.dtype)


def decoder_layer(embeddings, encoded, src_mask, tgt_mask, params):
    """embeddings: (B,S,D) f32, encoded: (B,SE,D) f32,
    src_mask: (B,1,SE) f32, tgt_mask: (B,1,S) f32 (1 = keep, 0 = masked)."""
    (wq1, bq1, wk1, bk1, wv1, bv1, wc1, bc1,
     wq2, bq2, wk2, bk2, wv2, bv2, wc2, bc2,
     w1, b1, w2, b2, gamma, beta) = params
    assert S == SE  # mask stacking below assumes equal source/target lengths

    # pack the eight (D,D) attention weights into a single lane-dense slab
    attn_w = jnp.concatenate([wq1, wk1, wv1, wc1, wq2, wk2, wv2, wc2], axis=1)  # (D, 8D)
    # pack all per-feature vectors (biases + gamma/beta) into one row
    vec = jnp.concatenate([bq1, bk1, bv1, bc1, bq2, bk2, bv2, bc2,
                           b2, gamma, beta], axis=1)                             # (1, 11D)

    # additive masks (0 keep / -1e9 masked), stacked into one input
    tadd = (tgt_mask[:, 0, :] - 1.0) * 1.0e9   # (B, S)
    sadd = (src_mask[:, 0, :] - 1.0) * 1.0e9   # (B, SE)
    masks = jnp.stack([tadd, sadd], axis=0)    # (2, B, S)

    # batch-folded activations
    x2d = embeddings.reshape(B * S, D)
    enc2d = encoded.reshape(B * SE, D)

    # FF weights in bf16 (halves the dominant HBM traffic); streamed in-kernel
    w1_bf = w1.astype(jnp.bfloat16)
    w2_bf = w2.astype(jnp.bfloat16)

    vmem = pl.BlockSpec(memory_space=pltpu.MemorySpace.VMEM)
    hbm = pl.BlockSpec(memory_space=pl.ANY)

    out2d = pl.pallas_call(
        decoder_layer_kernel,
        out_shape=jax.ShapeDtypeStruct((B * S, D), jnp.float32),
        in_specs=[vmem, vmem, vmem, vmem, vmem, vmem, hbm, hbm],
        out_specs=vmem,
        scratch_shapes=[
            pltpu.VMEM((D, FF), jnp.bfloat16),
            pltpu.VMEM((FF, D), jnp.bfloat16),
            pltpu.SemaphoreType.DMA((2,)),
        ],
    )(x2d, enc2d, masks, attn_w, vec, b1, w1_bf, w2_bf)
    return out2d.reshape(B, S, D)


# ------------------------------ pure-JAX reference ------------------------------
def reference(embeddings, encoded, src_mask, tgt_mask, params):
    (wq1, bq1, wk1, bk1, wv1, bv1, wc1, bc1,
     wq2, bq2, wk2, bk2, wv2, bv2, wc2, bc2,
     w1, b1, w2, b2, gamma, beta) = params

    def ln(h):
        mu = jnp.mean(h, axis=-1, keepdims=True)
        var = jnp.mean((h - mu) ** 2, axis=-1, keepdims=True)
        return (h - mu) / jnp.sqrt(var + LN_EPS) * gamma[0] + beta[0]

    def mha(q_in, kv_in, mask, wq, bq, wk, bk, wv, bv, wc, bc):
        q = q_in @ wq + bq[0]
        k = kv_in @ wk + bk[0]
        v = kv_in @ wv + bv[0]
        bq_, sq, _ = q.shape
        sk = k.shape[1]
        q = q.reshape(bq_, sq, H, DK).transpose(0, 2, 1, 3)
        k = k.reshape(bq_, sk, H, DK).transpose(0, 2, 1, 3)
        v = v.reshape(bq_, sk, H, DK).transpose(0, 2, 1, 3)
        scores = jnp.einsum("bhqd,bhkd->bhqk", q, k) / math.sqrt(DK)
        scores = jnp.where(mask[:, None, :, :] == 0.0, -1.0e9, scores)
        w = jax.nn.softmax(scores, axis=-1)
        ctx = jnp.einsum("bhqk,bhkd->bhqd", w, v)
        ctx = ctx.transpose(0, 2, 1, 3).reshape(bq_, sq, H * DK)
        return ctx @ wc + bc[0]

    self_out = mha(embeddings, embeddings, tgt_mask,
                   wq1, bq1, wk1, bk1, wv1, bv1, wc1, bc1)
    query = ln(self_out + embeddings)
    cross_out = mha(query, encoded, src_mask,
                    wq2, bq2, wk2, bk2, wv2, bv2, wc2, bc2)
    interacted = ln(cross_out + query)
    h = jax.nn.relu(interacted @ w1 + b1[0])
    ff_out = h @ w2 + b2[0]
    return ln(ff_out + interacted)


if __name__ == "__main__":
    key = jax.random.PRNGKey(0)
    keys = jax.random.split(key, 32)

    def lin(k, fan_in, fan_out):
        # deterministic init roughly matching nn.Linear's uniform(-1/sqrt(in), 1/sqrt(in))
        lim = 1.0 / math.sqrt(fan_in)
        kw, kb = jax.random.split(k)
        w = jax.random.uniform(kw, (fan_in, fan_out), jnp.float32, -lim, lim)
        b = jax.random.uniform(kb, (1, fan_out), jnp.float32, -lim, lim)
        return w, b

    # self-attention linears
    wq1, bq1 = lin(keys[0], D, D)
    wk1, bk1 = lin(keys[1], D, D)
    wv1, bv1 = lin(keys[2], D, D)
    wc1, bc1 = lin(keys[3], D, D)
    # cross-attention linears
    wq2, bq2 = lin(keys[4], D, D)
    wk2, bk2 = lin(keys[5], D, D)
    wv2, bv2 = lin(keys[6], D, D)
    wc2, bc2 = lin(keys[7], D, D)
    # feed-forward
    w1, b1 = lin(keys[8], D, FF)
    w2, b2 = lin(keys[9], FF, D)
    # shared layernorm (gamma=1, beta=0 like torch default)
    gamma = jnp.ones((1, D), jnp.float32)
    beta = jnp.zeros((1, D), jnp.float32)

    params = (wq1, bq1, wk1, bk1, wv1, bv1, wc1, bc1,
              wq2, bq2, wk2, bk2, wv2, bv2, wc2, bc2,
              w1, b1, w2, b2, gamma, beta)

    embeddings = jax.random.normal(keys[10], (B, S, D), jnp.float32)
    encoded = jax.random.normal(keys[11], (B, SE, D), jnp.float32)
    # masks: (B, 1, seq) float32, 1.0 = keep, 0.0 = masked; ensure position 0 kept
    tgt_mask = jnp.ones((B, 1, S), jnp.float32)
    src_mask = (jax.random.uniform(keys[12], (B, 1, SE)) > 0.3).astype(jnp.float32)
    src_mask = src_mask.at[:, :, 0].set(1.0)

    out = decoder_layer(embeddings, encoded, src_mask, tgt_mask, params)
    out = jax.block_until_ready(out)

    ref = reference(embeddings, encoded, src_mask, tgt_mask, params)
    assert out.shape == (B, S, D)
    assert bool(jnp.all(jnp.isfinite(out)))
    # Tolerance covers the bf16 feed-forward weights/LHS (MXU bf16 with f32
    # accumulation) compared against the pure-f32 reference; the attention path
    # stays f32 and the softmax normalization is exact.
    assert jnp.allclose(out, ref, atol=5e-2, rtol=5e-2), (
        float(jnp.max(jnp.abs(out - ref)))
    )
    print("KERNEL_OK")
</pallas_src>

<mosaic_0001>
module attributes {stable_mosaic.version = 11 : i64} {
  func.func @decoder_layer_kernel(%arg0: memref<16x32xf32, #tpu.memory_space<vmem>>, %arg1: memref<16x32xf32, #tpu.memory_space<vmem>>, %arg2: memref<2x2x8xf32, #tpu.memory_space<vmem>>, %arg3: memref<32x256xf32, #tpu.memory_space<vmem>>, %arg4: memref<1x352xf32, #tpu.memory_space<vmem>>, %arg5: memref<1x2048xf32, #tpu.memory_space<vmem>>, %arg6: memref<32x2048xbf16, #tpu.memory_space<any>>, %arg7: memref<2048x32xbf16, #tpu.memory_space<any>>, %arg8: memref<16x32xf32, #tpu.memory_space<vmem>>, %arg9: memref<32x2048xbf16, #tpu.memory_space<vmem>>, %arg10: memref<2048x32xbf16, #tpu.memory_space<vmem>>, %arg11: memref<2x!tpu.dma_semaphore, #tpu.memory_space<semaphore_mem>>) attributes {dimension_semantics = [], scalar_prefetch = 0 : i64, scratch_operands = 3 : i64, tpu.core_type = #tpu.core_type<tc>} {
    %c0_i32 = arith.constant 0 : i32
    %0 = tpu.memref_slice %arg11[%c0_i32] : memref<2x!tpu.dma_semaphore, #tpu.memory_space<semaphore_mem>> -> memref<1x!tpu.dma_semaphore, #tpu.memory_space<semaphore_mem>>
    %1 = tpu.memref_squeeze %0 : memref<1x!tpu.dma_semaphore, #tpu.memory_space<semaphore_mem>> -> memref<!tpu.dma_semaphore, #tpu.memory_space<semaphore_mem>>
    tpu.enqueue_dma source(%arg6 : memref<32x2048xbf16, #tpu.memory_space<any>>) target(%arg9 : memref<32x2048xbf16, #tpu.memory_space<vmem>>) target_semaphore(%1 : memref<!tpu.dma_semaphore, #tpu.memory_space<semaphore_mem>>)
    %c1_i32 = arith.constant 1 : i32
    %2 = tpu.memref_slice %arg11[%c1_i32] : memref<2x!tpu.dma_semaphore, #tpu.memory_space<semaphore_mem>> -> memref<1x!tpu.dma_semaphore, #tpu.memory_space<semaphore_mem>>
    %3 = tpu.memref_squeeze %2 : memref<1x!tpu.dma_semaphore, #tpu.memory_space<semaphore_mem>> -> memref<!tpu.dma_semaphore, #tpu.memory_space<semaphore_mem>>
    tpu.enqueue_dma source(%arg7 : memref<2048x32xbf16, #tpu.memory_space<any>>) target(%arg10 : memref<2048x32xbf16, #tpu.memory_space<vmem>>) target_semaphore(%3 : memref<!tpu.dma_semaphore, #tpu.memory_space<semaphore_mem>>)
    %c0 = arith.constant 0 : index
    %c0_0 = arith.constant 0 : index
    %4 = vector.load %arg0[%c0, %c0_0] : memref<16x32xf32, #tpu.memory_space<vmem>>, vector<16x32xf32>
    %c0_1 = arith.constant 0 : index
    %c0_2 = arith.constant 0 : index
    %5 = vector.load %arg1[%c0_1, %c0_2] : memref<16x32xf32, #tpu.memory_space<vmem>>, vector<16x32xf32>
    %c0_3 = arith.constant 0 : index
    %c0_4 = arith.constant 0 : index
    %c0_5 = arith.constant 0 : index
    %6 = vector.load %arg2[%c0_3, %c0_4, %c0_5] : memref<2x2x8xf32, #tpu.memory_space<vmem>>, vector<1x2x8xf32>
    %7 = vector.shape_cast %6 : vector<1x2x8xf32> to vector<2x8xf32>
    %c1 = arith.constant 1 : index
    %c0_6 = arith.constant 0 : index
    %c0_7 = arith.constant 0 : index
    %8 = vector.load %arg2[%c1, %c0_6, %c0_7] : memref<2x2x8xf32, #tpu.memory_space<vmem>>, vector<1x2x8xf32>
    %9 = vector.shape_cast %8 : vector<1x2x8xf32> to vector<2x8xf32>
    %c0_8 = arith.constant 0 : index
    %c288 = arith.constant 288 : index
    %10 = vector.load %arg4[%c0_8, %c288] : memref<1x352xf32, #tpu.memory_space<vmem>>, vector<1x32xf32>
    %11 = vector.shape_cast %10 : vector<1x32xf32> to vector<1x32xf32>
    %12 = vector.broadcast %11 : vector<1x32xf32> to vector<16x32xf32>
    %c0_9 = arith.constant 0 : index
    %c320 = arith.constant 320 : index
    %13 = vector.load %arg4[%c0_9, %c320] : memref<1x352xf32, #tpu.memory_space<vmem>>, vector<1x32xf32>
    %14 = vector.shape_cast %13 : vector<1x32xf32> to vector<1x32xf32>
    %15 = vector.broadcast %14 : vector<1x32xf32> to vector<16x32xf32>
    %c0_10 = arith.constant 0 : index
    %c0_11 = arith.constant 0 : index
    %16 = vector.load %arg3[%c0_10, %c0_11] : memref<32x256xf32, #tpu.memory_space<vmem>>, vector<32x96xf32>
    %cst = arith.constant dense<0.000000e+00> : vector<16x96xf32>
    %17 = tpu.matmul %4, %16, %cst {dimension_numbers = #tpu.dot_dimension_numbers<[1], [0], [0], [1], [0, 0, 1, 1], [], []>} : vector<16x32xf32>, vector<32x96xf32>, vector<16x96xf32> -> vector<16x96xf32>
    %c0_12 = arith.constant 0 : index
    %c0_13 = arith.constant 0 : index
    %18 = vector.load %arg4[%c0_12, %c0_13] : memref<1x352xf32, #tpu.memory_space<vmem>>, vector<1x96xf32>
    %19 = vector.broadcast %18 : vector<1x96xf32> to vector<16x96xf32>
    %20 = arith.addf %17, %19 : vector<16x96xf32>
    %21 = vector.extract_strided_slice %20 {offsets = [0, 0], sizes = [16, 32], strides = [1, 1]} : vector<16x96xf32> to vector<16x32xf32>
    %cst_14 = arith.constant 0.353553385 : f32
    %22 = vector.broadcast %cst_14 : f32 to vector<16x32xf32>
    %23 = arith.mulf %21, %22 : vector<16x32xf32>
    %24 = vector.extract_strided_slice %20 {offsets = [0, 32], sizes = [16, 32], strides = [1, 1]} : vector<16x96xf32> to vector<16x32xf32>
    %25 = vector.extract_strided_slice %20 {offsets = [0, 64], sizes = [16, 32], strides = [1, 1]} : vector<16x96xf32> to vector<16x32xf32>
    %26 = vector.shape_cast %23 : vector<16x32xf32> to vector<2x8x4x8xf32>
    %27 = tpu.transpose %26, [0, 2, 1, 3] : vector<2x8x4x8xf32> -> vector<2x4x8x8xf32>
    %28 = vector.shape_cast %27 : vector<2x4x8x8xf32> to vector<8x8x8xf32>
    %29 = vector.shape_cast %24 : vector<16x32xf32> to vector<2x8x4x8xf32>
    %30 = tpu.transpose %29, [0, 2, 1, 3] : vector<2x8x4x8xf32> -> vector<2x4x8x8xf32>
    %31 = vector.shape_cast %30 : vector<2x4x8x8xf32> to vector<8x8x8xf32>
    %32 = vector.shape_cast %25 : vector<16x32xf32> to vector<2x8x4x8xf32>
    %33 = tpu.transpose %32, [0, 2, 1, 3] : vector<2x8x4x8xf32> -> vector<2x4x8x8xf32>
    %34 = vector.shape_cast %33 : vector<2x4x8x8xf32> to vector<8x8x8xf32>
    "tpu.trace_start"() <{level = 10 : i32, message = "nqd,nkd->nqk"}> : () -> ()
    %cst_15 = arith.constant dense<0.000000e+00> : vector<8x8x8xf32>
    %35 = tpu.matmul %28, %31, %cst_15 {dimension_numbers = #tpu.dot_dimension_numbers<[2], [2], [1], [1], [0, 0, 0, 1, 1, 1], [0], [0]>} : vector<8x8x8xf32>, vector<8x8x8xf32>, vector<8x8x8xf32> -> vector<8x8x8xf32>
    "tpu.trace_stop"() : () -> ()
    %36 = vector.shape_cast %7 : vector<2x8xf32> to vector<2x1x1x8xf32>
    %37 = vector.shape_cast %36 : vector<2x1x1x8xf32> to vector<2x1x1x8xf32>
    %38 = vector.broadcast %37 : vector<2x1x1x8xf32> to vector<2x4x1x8xf32>
    %39 = vector.shape_cast %38 : vector<2x4x1x8xf32> to vector<8x1x8xf32>
    %40 = vector.broadcast %39 : vector<8x1x8xf32> to vector<8x8x8xf32>
    %41 = arith.addf %35, %40 : vector<8x8x8xf32>
    %cst_16 = arith.constant dense<0xFF800000> : vector<8x8xf32>
    %42 = vector.multi_reduction <maximumf>, %41, %cst_16 [2] : vector<8x8x8xf32> to vector<8x8xf32>
    %43 = vector.shape_cast %42 : vector<8x8xf32> to vector<8x8x1xf32>
    %44 = vector.broadcast %43 : vector<8x8x1xf32> to vector<8x8x8xf32>
    %45 = arith.subf %41, %44 : vector<8x8x8xf32>
    %46 = math.exp %45 : vector<8x8x8xf32>
    %cst_17 = arith.constant dense<0.000000e+00> : vector<8x8xf32>
    %47 = vector.multi_reduction <add>, %46, %cst_17 [2] : vector<8x8x8xf32> to vector<8x8xf32>
    %48 = vector.shape_cast %47 : vector<8x8xf32> to vector<8x8x1xf32>
    %49 = vector.broadcast %48 : vector<8x8x1xf32> to vector<8x8x8xf32>
    %50 = arith.divf %46, %49 : vector<8x8x8xf32>
    "tpu.trace_start"() <{level = 10 : i32, message = "nqk,nkd->nqd"}> : () -> ()
    %cst_18 = arith.constant dense<0.000000e+00> : vector<8x8x8xf32>
    %51 = tpu.matmul %50, %34, %cst_18 {dimension_numbers = #tpu.dot_dimension_numbers<[2], [1], [1], [2], [0, 0, 0, 1, 1, 2], [0], [0]>} : vector<8x8x8xf32>, vector<8x8x8xf32>, vector<8x8x8xf32> -> vector<8x8x8xf32>
    "tpu.trace_stop"() : () -> ()
    %52 = vector.shape_cast %51 : vector<8x8x8xf32> to vector<2x4x8x8xf32>
    %53 = tpu.transpose %52, [0, 2, 1, 3] : vector<2x4x8x8xf32> -> vector<2x8x4x8xf32>
    %54 = vector.shape_cast %53 : vector<2x8x4x8xf32> to vector<16x32xf32>
    %c0_19 = arith.constant 0 : index
    %c96 = arith.constant 96 : index
    %55 = vector.load %arg3[%c0_19, %c96] : memref<32x256xf32, #tpu.memory_space<vmem>>, vector<32x32xf32>
    %cst_20 = arith.constant dense<0.000000e+00> : vector<16x32xf32>
    %56 = tpu.matmul %54, %55, %cst_20 {dimension_numbers = #tpu.dot_dimension_numbers<[1], [0], [0], [1], [0, 0, 1, 1], [], []>} : vector<16x32xf32>, vector<32x32xf32>, vector<16x32xf32> -> vector<16x32xf32>
    %c0_21 = arith.constant 0 : index
    %c96_22 = arith.constant 96 : index
    %57 = vector.load %arg4[%c0_21, %c96_22] : memref<1x352xf32, #tpu.memory_space<vmem>>, vector<1x32xf32>
    %58 = vector.broadcast %57 : vector<1x32xf32> to vector<16x32xf32>
    %59 = arith.addf %56, %58 : vector<16x32xf32>
    %60 = arith.addf %59, %4 : vector<16x32xf32>
    %cst_23 = arith.constant dense<0.000000e+00> : vector<16xf32>
    %61 = vector.multi_reduction <add>, %60, %cst_23 [1] : vector<16x32xf32> to vector<16xf32>
    %62 = vector.shape_cast %61 : vector<16xf32> to vector<16x1xf32>
    %cst_24 = arith.constant 3.200000e+01 : f32
    %63 = vector.broadcast %cst_24 : f32 to vector<16x1xf32>
    %64 = arith.divf %62, %63 : vector<16x1xf32>
    %65 = vector.broadcast %64 : vector<16x1xf32> to vector<16x32xf32>
    %66 = arith.subf %60, %65 : vector<16x32xf32>
    %67 = arith.mulf %66, %66 : vector<16x32xf32>
    %cst_25 = arith.constant dense<0.000000e+00> : vector<16xf32>
    %68 = vector.multi_reduction <add>, %67, %cst_25 [1] : vector<16x32xf32> to vector<16xf32>
    %69 = vector.shape_cast %68 : vector<16xf32> to vector<16x1xf32>
    %cst_26 = arith.constant 3.200000e+01 : f32
    %70 = vector.broadcast %cst_26 : f32 to vector<16x1xf32>
    %71 = arith.divf %69, %70 : vector<16x1xf32>
    %cst_27 = arith.constant 9.99999974E-6 : f32
    %72 = vector.broadcast %cst_27 : f32 to vector<16x1xf32>
    %73 = arith.addf %71, %72 : vector<16x1xf32>
    %74 = math.rsqrt %73 : vector<16x1xf32>
    %75 = vector.broadcast %74 : vector<16x1xf32> to vector<16x32xf32>
    %76 = arith.mulf %66, %75 : vector<16x32xf32>
    %77 = arith.mulf %76, %12 : vector<16x32xf32>
    %78 = arith.addf %77, %15 : vector<16x32xf32>
    %c0_28 = arith.constant 0 : index
    %c128 = arith.constant 128 : index
    %79 = vector.load %arg3[%c0_28, %c128] : memref<32x256xf32, #tpu.memory_space<vmem>>, vector<32x32xf32>
    %cst_29 = arith.constant dense<0.000000e+00> : vector<16x32xf32>
    %80 = tpu.matmul %78, %79, %cst_29 {dimension_numbers = #tpu.dot_dimension_numbers<[1], [0], [0], [1], [0, 0, 1, 1], [], []>} : vector<16x32xf32>, vector<32x32xf32>, vector<16x32xf32> -> vector<16x32xf32>
    %c0_30 = arith.constant 0 : index
    %c128_31 = arith.constant 128 : index
    %81 = vector.load %arg4[%c0_30, %c128_31] : memref<1x352xf32, #tpu.memory_space<vmem>>, vector<1x32xf32>
    %82 = vector.broadcast %81 : vector<1x32xf32> to vector<16x32xf32>
    %83 = arith.addf %80, %82 : vector<16x32xf32>
    %cst_32 = arith.constant 0.353553385 : f32
    %84 = vector.broadcast %cst_32 : f32 to vector<16x32xf32>
    %85 = arith.mulf %83, %84 : vector<16x32xf32>
    %c0_33 = arith.constant 0 : index
    %c160 = arith.constant 160 : index
    %86 = vector.load %arg3[%c0_33, %c160] : memref<32x256xf32, #tpu.memory_space<vmem>>, vector<32x64xf32>
    %cst_34 = arith.constant dense<0.000000e+00> : vector<16x64xf32>
    %87 = tpu.matmul %5, %86, %cst_34 {dimension_numbers = #tpu.dot_dimension_numbers<[1], [0], [0], [1], [0, 0, 1, 1], [], []>} : vector<16x32xf32>, vector<32x64xf32>, vector<16x64xf32> -> vector<16x64xf32>
    %c0_35 = arith.constant 0 : index
    %c160_36 = arith.constant 160 : index
    %88 = vector.load %arg4[%c0_35, %c160_36] : memref<1x352xf32, #tpu.memory_space<vmem>>, vector<1x64xf32>
    %89 = vector.broadcast %88 : vector<1x64xf32> to vector<16x64xf32>
    %90 = arith.addf %87, %89 : vector<16x64xf32>
    %91 = vector.extract_strided_slice %90 {offsets = [0, 0], sizes = [16, 32], strides = [1, 1]} : vector<16x64xf32> to vector<16x32xf32>
    %92 = vector.extract_strided_slice %90 {offsets = [0, 32], sizes = [16, 32], strides = [1, 1]} : vector<16x64xf32> to vector<16x32xf32>
    %93 = vector.shape_cast %85 : vector<16x32xf32> to vector<2x8x4x8xf32>
    %94 = tpu.transpose %93, [0, 2, 1, 3] : vector<2x8x4x8xf32> -> vector<2x4x8x8xf32>
    %95 = vector.shape_cast %94 : vector<2x4x8x8xf32> to vector<8x8x8xf32>
    %96 = vector.shape_cast %91 : vector<16x32xf32> to vector<2x8x4x8xf32>
    %97 = tpu.transpose %96, [0, 2, 1, 3] : vector<2x8x4x8xf32> -> vector<2x4x8x8xf32>
    %98 = vector.shape_cast %97 : vector<2x4x8x8xf32> to vector<8x8x8xf32>
    %99 = vector.shape_cast %92 : vector<16x32xf32> to vector<2x8x4x8xf32>
    %100 = tpu.transpose %99, [0, 2, 1, 3] : vector<2x8x4x8xf32> -> vector<2x4x8x8xf32>
    %101 = vector.shape_cast %100 : vector<2x4x8x8xf32> to vector<8x8x8xf32>
    "tpu.trace_start"() <{level = 10 : i32, message = "nqd,nkd->nqk"}> : () -> ()
    %cst_37 = arith.constant dense<0.000000e+00> : vector<8x8x8xf32>
    %102 = tpu.matmul %95, %98, %cst_37 {dimension_numbers = #tpu.dot_dimension_numbers<[2], [2], [1], [1], [0, 0, 0, 1, 1, 1], [0], [0]>} : vector<8x8x8xf32>, vector<8x8x8xf32>, vector<8x8x8xf32> -> vector<8x8x8xf32>
    "tpu.trace_stop"() : () -> ()
    %103 = vector.shape_cast %9 : vector<2x8xf32> to vector<2x1x1x8xf32>
    %104 = vector.shape_cast %103 : vector<2x1x1x8xf32> to vector<2x1x1x8xf32>
    %105 = vector.broadcast %104 : vector<2x1x1x8xf32> to vector<2x4x1x8xf32>
    %106 = vector.shape_cast %105 : vector<2x4x1x8xf32> to vector<8x1x8xf32>
    %107 = vector.broadcast %106 : vector<8x1x8xf32> to vector<8x8x8xf32>
    %108 = arith.addf %102, %107 : vector<8x8x8xf32>
    %cst_38 = arith.constant dense<0xFF800000> : vector<8x8xf32>
    %109 = vector.multi_reduction <maximumf>, %108, %cst_38 [2] : vector<8x8x8xf32> to vector<8x8xf32>
    %110 = vector.shape_cast %109 : vector<8x8xf32> to vector<8x8x1xf32>
    %111 = vector.broadcast %110 : vector<8x8x1xf32> to vector<8x8x8xf32>
    %112 = arith.subf %108, %111 : vector<8x8x8xf32>
    %113 = math.exp %112 : vector<8x8x8xf32>
    %cst_39 = arith.constant dense<0.000000e+00> : vector<8x8xf32>
    %114 = vector.multi_reduction <add>, %113, %cst_39 [2] : vector<8x8x8xf32> to vector<8x8xf32>
    %115 = vector.shape_cast %114 : vector<8x8xf32> to vector<8x8x1xf32>
    %116 = vector.broadcast %115 : vector<8x8x1xf32> to vector<8x8x8xf32>
    %117 = arith.divf %113, %116 : vector<8x8x8xf32>
    "tpu.trace_start"() <{level = 10 : i32, message = "nqk,nkd->nqd"}> : () -> ()
    %cst_40 = arith.constant dense<0.000000e+00> : vector<8x8x8xf32>
    %118 = tpu.matmul %117, %101, %cst_40 {dimension_numbers = #tpu.dot_dimension_numbers<[2], [1], [1], [2], [0, 0, 0, 1, 1, 2], [0], [0]>} : vector<8x8x8xf32>, vector<8x8x8xf32>, vector<8x8x8xf32> -> vector<8x8x8xf32>
    "tpu.trace_stop"() : () -> ()
    %119 = vector.shape_cast %118 : vector<8x8x8xf32> to vector<2x4x8x8xf32>
    %120 = tpu.transpose %119, [0, 2, 1, 3] : vector<2x4x8x8xf32> -> vector<2x8x4x8xf32>
    %121 = vector.shape_cast %120 : vector<2x8x4x8xf32> to vector<16x32xf32>
    %c0_41 = arith.constant 0 : index
    %c224 = arith.constant 224 : index
    %122 = vector.load %arg3[%c0_41, %c224] : memref<32x256xf32, #tpu.memory_space<vmem>>, vector<32x32xf32>
    %cst_42 = arith.constant dense<0.000000e+00> : vector<16x32xf32>
    %123 = tpu.matmul %121, %122, %cst_42 {dimension_numbers = #tpu.dot_dimension_numbers<[1], [0], [0], [1], [0, 0, 1, 1], [], []>} : vector<16x32xf32>, vector<32x32xf32>, vector<16x32xf32> -> vector<16x32xf32>
    %c0_43 = arith.constant 0 : index
    %c224_44 = arith.constant 224 : index
    %124 = vector.load %arg4[%c0_43, %c224_44] : memref<1x352xf32, #tpu.memory_space<vmem>>, vector<1x32xf32>
    %125 = vector.broadcast %124 : vector<1x32xf32> to vector<16x32xf32>
    %126 = arith.addf %123, %125 : vector<16x32xf32>
    %127 = arith.addf %126, %78 : vector<16x32xf32>
    %cst_45 = arith.constant dense<0.000000e+00> : vector<16xf32>
    %128 = vector.multi_reduction <add>, %127, %cst_45 [1] : vector<16x32xf32> to vector<16xf32>
    %129 = vector.shape_cast %128 : vector<16xf32> to vector<16x1xf32>
    %cst_46 = arith.constant 3.200000e+01 : f32
    %130 = vector.broadcast %cst_46 : f32 to vector<16x1xf32>
    %131 = arith.divf %129, %130 : vector<16x1xf32>
    %132 = vector.broadcast %131 : vector<16x1xf32> to vector<16x32xf32>
    %133 = arith.subf %127, %132 : vector<16x32xf32>
    %134 = arith.mulf %133, %133 : vector<16x32xf32>
    %cst_47 = arith.constant dense<0.000000e+00> : vector<16xf32>
    %135 = vector.multi_reduction <add>, %134, %cst_47 [1] : vector<16x32xf32> to vector<16xf32>
    %136 = vector.shape_cast %135 : vector<16xf32> to vector<16x1xf32>
    %cst_48 = arith.constant 3.200000e+01 : f32
    %137 = vector.broadcast %cst_48 : f32 to vector<16x1xf32>
    %138 = arith.divf %136, %137 : vector<16x1xf32>
    %cst_49 = arith.constant 9.99999974E-6 : f32
    %139 = vector.broadcast %cst_49 : f32 to vector<16x1xf32>
    %140 = arith.addf %138, %139 : vector<16x1xf32>
    %141 = math.rsqrt %140 : vector<16x1xf32>
    %142 = vector.broadcast %141 : vector<16x1xf32> to vector<16x32xf32>
    %143 = arith.mulf %133, %142 : vector<16x32xf32>
    %144 = arith.mulf %143, %12 : vector<16x32xf32>
    %145 = arith.addf %144, %15 : vector<16x32xf32>
    %c0_i32_50 = arith.constant 0 : i32
    %146 = tpu.memref_slice %arg11[%c0_i32_50] : memref<2x!tpu.dma_semaphore, #tpu.memory_space<semaphore_mem>> -> memref<1x!tpu.dma_semaphore, #tpu.memory_space<semaphore_mem>>
    %147 = tpu.memref_squeeze %146 : memref<1x!tpu.dma_semaphore, #tpu.memory_space<semaphore_mem>> -> memref<!tpu.dma_semaphore, #tpu.memory_space<semaphore_mem>>
    tpu.wait_dma2 semaphore(%147 : memref<!tpu.dma_semaphore, #tpu.memory_space<semaphore_mem>>) src(%arg6 : memref<32x2048xbf16, #tpu.memory_space<any>>) dst(%arg9 : memref<32x2048xbf16, #tpu.memory_space<vmem>>)
    %c1_i32_51 = arith.constant 1 : i32
    %148 = tpu.memref_slice %arg11[%c1_i32_51] : memref<2x!tpu.dma_semaphore, #tpu.memory_space<semaphore_mem>> -> memref<1x!tpu.dma_semaphore, #tpu.memory_space<semaphore_mem>>
    %149 = tpu.memref_squeeze %148 : memref<1x!tpu.dma_semaphore, #tpu.memory_space<semaphore_mem>> -> memref<!tpu.dma_semaphore, #tpu.memory_space<semaphore_mem>>
    tpu.wait_dma2 semaphore(%149 : memref<!tpu.dma_semaphore, #tpu.memory_space<semaphore_mem>>) src(%arg7 : memref<2048x32xbf16, #tpu.memory_space<any>>) dst(%arg10 : memref<2048x32xbf16, #tpu.memory_space<vmem>>)
    %150 = arith.truncf %145 : vector<16x32xf32> to vector<16x32xbf16>
    %cst_52 = arith.constant 0.000000e+00 : f32
    %151 = vector.broadcast %cst_52 : f32 to vector<16x32xf32>
    %c0_i32_53 = arith.constant 0 : i32
    %c512_i32 = arith.constant 512 : i32
    %152 = arith.muli %c0_i32_53, %c512_i32 : i32
    %153 = tpu.assume_multiple %152, 512 : i32
    %c0_54 = arith.constant 0 : index
    %154 = arith.index_cast %153 : i32 to index
    %155 = vector.load %arg9[%c0_54, %154] : memref<32x2048xbf16, #tpu.memory_space<vmem>>, vector<32x512xbf16>
    %c0_55 = arith.constant 0 : index
    %156 = arith.index_cast %153 : i32 to index
    %157 = vector.load %arg5[%c0_55, %156] : memref<1x2048xf32, #tpu.memory_space<vmem>>, vector<1x512xf32>
    %cst_56 = arith.constant dense<0.000000e+00> : vector<16x512xf32>
    %158 = tpu.matmul %150, %155, %cst_56 {dimension_numbers = #tpu.dot_dimension_numbers<[1], [0], [0], [1], [0, 0, 1, 1], [], []>} : vector<16x32xbf16>, vector<32x512xbf16>, vector<16x512xf32> -> vector<16x512xf32>
    %159 = vector.broadcast %157 : vector<1x512xf32> to vector<16x512xf32>
    %160 = arith.addf %158, %159 : vector<16x512xf32>
    %cst_57 = arith.constant 0.000000e+00 : f32
    %161 = vector.broadcast %cst_57 : f32 to vector<16x512xf32>
    %162 = arith.maximumf %160, %161 : vector<16x512xf32>
    %163 = arith.truncf %162 : vector<16x512xf32> to vector<16x512xbf16>
    %164 = arith.index_cast %153 : i32 to index
    %c0_58 = arith.constant 0 : index
    %165 = vector.load %arg10[%164, %c0_58] : memref<2048x32xbf16, #tpu.memory_space<vmem>>, vector<512x32xbf16>
    %cst_59 = arith.constant dense<0.000000e+00> : vector<16x32xf32>
    %166 = tpu.matmul %163, %165, %cst_59 {dimension_numbers = #tpu.dot_dimension_numbers<[1], [0], [0], [1], [0, 0, 1, 1], [], []>} : vector<16x512xbf16>, vector<512x32xbf16>, vector<16x32xf32> -> vector<16x32xf32>
    %167 = arith.addf %151, %166 : vector<16x32xf32>
    %c1_i32_60 = arith.constant 1 : i32
    %c512_i32_61 = arith.constant 512 : i32
    %168 = arith.muli %c1_i32_60, %c512_i32_61 : i32
    %169 = tpu.assume_multiple %168, 512 : i32
    %c0_62 = arith.constant 0 : index
    %170 = arith.index_cast %169 : i32 to index
    %171 = vector.load %arg9[%c0_62, %170] : memref<32x2048xbf16, #tpu.memory_space<vmem>>, vector<32x512xbf16>
    %c0_63 = arith.constant 0 : index
    %172 = arith.index_cast %169 : i32 to index
    %173 = vector.load %arg5[%c0_63, %172] : memref<1x2048xf32, #tpu.memory_space<vmem>>, vector<1x512xf32>
    %cst_64 = arith.constant dense<0.000000e+00> : vector<16x512xf32>
    %174 = tpu.matmul %150, %171, %cst_64 {dimension_numbers = #tpu.dot_dimension_numbers<[1], [0], [0], [1], [0, 0, 1, 1], [], []>} : vector<16x32xbf16>, vector<32x512xbf16>, vector<16x512xf32> -> vector<16x512xf32>
    %175 = vector.broadcast %173 : vector<1x512xf32> to vector<16x512xf32>
    %176 = arith.addf %174, %175 : vector<16x512xf32>
    %cst_65 = arith.constant 0.000000e+00 : f32
    %177 = vector.broadcast %cst_65 : f32 to vector<16x512xf32>
    %178 = arith.maximumf %176, %177 : vector<16x512xf32>
    %179 = arith.truncf %178 : vector<16x512xf32> to vector<16x512xbf16>
    %180 = arith.index_cast %169 : i32 to index
    %c0_66 = arith.constant 0 : index
    %181 = vector.load %arg10[%180, %c0_66] : memref<2048x32xbf16, #tpu.memory_space<vmem>>, vector<512x32xbf16>
    %cst_67 = arith.constant dense<0.000000e+00> : vector<16x32xf32>
    %182 = tpu.matmul %179, %181, %cst_67 {dimension_numbers = #tpu.dot_dimension_numbers<[1], [0], [0], [1], [0, 0, 1, 1], [], []>} : vector<16x512xbf16>, vector<512x32xbf16>, vector<16x32xf32> -> vector<16x32xf32>
    %183 = arith.addf %167, %182 : vector<16x32xf32>
    %c2_i32 = arith.constant 2 : i32
    %c512_i32_68 = arith.constant 512 : i32
    %184 = arith.muli %c2_i32, %c512_i32_68 : i32
    %185 = tpu.assume_multiple %184, 512 : i32
    %c0_69 = arith.constant 0 : index
    %186 = arith.index_cast %185 : i32 to index
    %187 = vector.load %arg9[%c0_69, %186] : memref<32x2048xbf16, #tpu.memory_space<vmem>>, vector<32x512xbf16>
    %c0_70 = arith.constant 0 : index
    %188 = arith.index_cast %185 : i32 to index
    %189 = vector.load %arg5[%c0_70, %188] : memref<1x2048xf32, #tpu.memory_space<vmem>>, vector<1x512xf32>
    %cst_71 = arith.constant dense<0.000000e+00> : vector<16x512xf32>
    %190 = tpu.matmul %150, %187, %cst_71 {dimension_numbers = #tpu.dot_dimension_numbers<[1], [0], [0], [1], [0, 0, 1, 1], [], []>} : vector<16x32xbf16>, vector<32x512xbf16>, vector<16x512xf32> -> vector<16x512xf32>
    %191 = vector.broadcast %189 : vector<1x512xf32> to vector<16x512xf32>
    %192 = arith.addf %190, %191 : vector<16x512xf32>
    %cst_72 = arith.constant 0.000000e+00 : f32
    %193 = vector.broadcast %cst_72 : f32 to vector<16x512xf32>
    %194 = arith.maximumf %192, %193 : vector<16x512xf32>
    %195 = arith.truncf %194 : vector<16x512xf32> to vector<16x512xbf16>
    %196 = arith.index_cast %185 : i32 to index
    %c0_73 = arith.constant 0 : index
    %197 = vector.load %arg10[%196, %c0_73] : memref<2048x32xbf16, #tpu.memory_space<vmem>>, vector<512x32xbf16>
    %cst_74 = arith.constant dense<0.000000e+00> : vector<16x32xf32>
    %198 = tpu.matmul %195, %197, %cst_74 {dimension_numbers = #tpu.dot_dimension_numbers<[1], [0], [0], [1], [0, 0, 1, 1], [], []>} : vector<16x512xbf16>, vector<512x32xbf16>, vector<16x32xf32> -> vector<16x32xf32>
    %199 = arith.addf %183, %198 : vector<16x32xf32>
    %c3_i32 = arith.constant 3 : i32
    %c512_i32_75 = arith.constant 512 : i32
    %200 = arith.muli %c3_i32, %c512_i32_75 : i32
    %201 = tpu.assume_multiple %200, 512 : i32
    %c0_76 = arith.constant 0 : index
    %202 = arith.index_cast %201 : i32 to index
    %203 = vector.load %arg9[%c0_76, %202] : memref<32x2048xbf16, #tpu.memory_space<vmem>>, vector<32x512xbf16>
    %c0_77 = arith.constant 0 : index
    %204 = arith.index_cast %201 : i32 to index
    %205 = vector.load %arg5[%c0_77, %204] : memref<1x2048xf32, #tpu.memory_space<vmem>>, vector<1x512xf32>
    %cst_78 = arith.constant dense<0.000000e+00> : vector<16x512xf32>
    %206 = tpu.matmul %150, %203, %cst_78 {dimension_numbers = #tpu.dot_dimension_numbers<[1], [0], [0], [1], [0, 0, 1, 1], [], []>} : vector<16x32xbf16>, vector<32x512xbf16>, vector<16x512xf32> -> vector<16x512xf32>
    %207 = vector.broadcast %205 : vector<1x512xf32> to vector<16x512xf32>
    %208 = arith.addf %206, %207 : vector<16x512xf32>
    %cst_79 = arith.constant 0.000000e+00 : f32
    %209 = vector.broadcast %cst_79 : f32 to vector<16x512xf32>
    %210 = arith.maximumf %208, %209 : vector<16x512xf32>
    %211 = arith.truncf %210 : vector<16x512xf32> to vector<16x512xbf16>
    %212 = arith.index_cast %201 : i32 to index
    %c0_80 = arith.constant 0 : index
    %213 = vector.load %arg10[%212, %c0_80] : memref<2048x32xbf16, #tpu.memory_space<vmem>>, vector<512x32xbf16>
    %cst_81 = arith.constant dense<0.000000e+00> : vector<16x32xf32>
    %214 = tpu.matmul %211, %213, %cst_81 {dimension_numbers = #tpu.dot_dimension_numbers<[1], [0], [0], [1], [0, 0, 1, 1], [], []>} : vector<16x512xbf16>, vector<512x32xbf16>, vector<16x32xf32> -> vector<16x32xf32>
    %215 = arith.addf %199, %214 : vector<16x32xf32>
    %c4_i32 = arith.constant 4 : i32
    %c0_82 = arith.constant 0 : index
    %c256 = arith.constant 256 : index
    %216 = vector.load %arg4[%c0_82, %c256] : memref<1x352xf32, #tpu.memory_space<vmem>>, vector<1x32xf32>
    %217 = vector.broadcast %216 : vector<1x32xf32> to vector<16x32xf32>
    %218 = arith.addf %215, %217 : vector<16x32xf32>
    %219 = arith.addf %218, %145 : vector<16x32xf32>
    %cst_83 = arith.constant dense<0.000000e+00> : vector<16xf32>
    %220 = vector.multi_reduction <add>, %219, %cst_83 [1] : vector<16x32xf32> to vector<16xf32>
    %221 = vector.shape_cast %220 : vector<16xf32> to vector<16x1xf32>
    %cst_84 = arith.constant 3.200000e+01 : f32
    %222 = vector.broadcast %cst_84 : f32 to vector<16x1xf32>
    %223 = arith.divf %221, %222 : vector<16x1xf32>
    %224 = vector.broadcast %223 : vector<16x1xf32> to vector<16x32xf32>
    %225 = arith.subf %219, %224 : vector<16x32xf32>
    %226 = arith.mulf %225, %225 : vector<16x32xf32>
    %cst_85 = arith.constant dense<0.000000e+00> : vector<16xf32>
    %227 = vector.multi_reduction <add>, %226, %cst_85 [1] : vector<16x32xf32> to vector<16xf32>
    %228 = vector.shape_cast %227 : vector<16xf32> to vector<16x1xf32>
    %cst_86 = arith.constant 3.200000e+01 : f32
    %229 = vector.broadcast %cst_86 : f32 to vector<16x1xf32>
    %230 = arith.divf %228, %229 : vector<16x1xf32>
    %cst_87 = arith.constant 9.99999974E-6 : f32
    %231 = vector.broadcast %cst_87 : f32 to vector<16x1xf32>
    %232 = arith.addf %230, %231 : vector<16x1xf32>
    %233 = math.rsqrt %232 : vector<16x1xf32>
    %234 = vector.broadcast %233 : vector<16x1xf32> to vector<16x32xf32>
    %235 = arith.mulf %225, %234 : vector<16x32xf32>
    %236 = arith.mulf %235, %12 : vector<16x32xf32>
    %237 = arith.addf %236, %15 : vector<16x32xf32>
    %c0_88 = arith.constant 0 : index
    %c0_89 = arith.constant 0 : index
    %238 = vector.load %arg8[%c0_88, %c0_89] : memref<16x32xf32, #tpu.memory_space<vmem>>, vector<16x32xf32>
    tpu.vector_store %arg8[%c0_88, %c0_89], %237 {strides = array<i32>} : memref<16x32xf32, #tpu.memory_space<vmem>>, vector<16x32xf32>,
    return
  }
}

</mosaic_0001>

<llo_original>
// kernel: tpu_custom_call.1
$region0: #{tpu_custom_call.1}
  #allocation0 [shape = 'u32[]', space=smem, size = 0x4, offset = 0x4, fixed_abs, tag = 'smem constant byte address 0x4 - core index']
  #allocation1 [shape = 'u32[144,128]{1,0:T(1,128)}', space=vmem, size = 0x12000, scoped, tag = 'internal scratch']
  #allocation2 [shape = 'bf16[32,2048]{1,0:T(8,128)(2,1)}', space=vmem, size = 0x20000, scoped, tag = 'scratch operand']
  #allocation3 [shape = 'bf16[2048,32]{1,0:T(8,128)(2,1)}', space=vmem, size = 0x80000, scoped, tag = 'scratch operand']
  #allocation4 [shape = 's32[2]{0}', space=sflag, size = 0x8, scoped, tag = 'scratch operand']
  #allocation7 [shape = 's32[]', space=sflag, size = 0x4, offset = 0, fixed_abs, tag = 'sflag constant byte address 0x0 - dummy sync flag']
  #allocation8 [shape = 's32[]', space=sflag, size = 0x4, offset = 0, fixed_abs, tag = 'sflag constant byte address 0x0 - dummy sync flag']
  %s0 = inlined_call_operand.vmem [shape: f32[16,32], index: 0, kind: input, shape index: {}]
  %s1 = inlined_call_operand.vmem [shape: f32[16,32], index: 1, kind: input, shape index: {}]
  %s2 = inlined_call_operand.vmem [shape: f32[2,2,8], index: 2, kind: input, shape index: {}]
  %s3 = inlined_call_operand.vmem [shape: f32[32,256], index: 3, kind: input, shape index: {}]
  %s4 = inlined_call_operand.vmem [shape: f32[1,352], index: 4, kind: input, shape index: {}]
  %s5 = inlined_call_operand.vmem [shape: f32[1,2048], index: 5, kind: input, shape index: {}]
  %s6 = inlined_call_operand.vmem [shape: bf16[32,2048], index: 6, kind: input, shape index: {}]
  %s7 = inlined_call_operand.vmem [shape: bf16[2048,32], index: 7, kind: input, shape index: {}]
  %s8 = inlined_call_operand.hbm [shape: f32[16,32], index: 8, kind: output, shape index: {}]
  %s9 = sld [smem:[#allocation0]]
  $region102: #{tpu_custom_call.1} parent=0
    _
  %s11 = ssub.s32 1, %s9
  %s12 = scalar_select 0, %s11, %s9
  $region1: #{tpu_custom_call.1} parent=0
    #allocation5 [shape = 'u8[8192]{0}', space=vmem, size = 0x2000, scoped, tag = 'output window, operand 0, single buffered']
    #allocation6 [shape = 's32[1]{0}', space=sflag, size = 0x4, scoped, tag = 'scoped memory for tpu_custom_call.1']
    %13 = vsyncpa [#allocation6], 0
    // Predicated region
    $region2: #{tpu_custom_call.1} parent=1 // pred_check
      _
    $region3: #{tpu_custom_call.1} parent=1 // pred_check_branch
      %15 = sbr.rel (0) target = $region5
    $region4: #{tpu_custom_call.1} parent=1 // pred_region
      _
    $region5: #{tpu_custom_call.1} parent=1 // pred_fallthru
      _
    // Predicated region
    $region6: #{tpu_custom_call.1} parent=1 // pred_check
      _
    $region7: #{tpu_custom_call.1} parent=1 // pred_check_branch
      %17 = sbr.rel (0) target = $region9
    $region8: #{tpu_custom_call.1} parent=1 // pred_region
      _
    $region9: #{tpu_custom_call.1} parent=1 // pred_fallthru
      _
    // Predicated region
    $region10: #{tpu_custom_call.1} parent=1 // pred_check
      _
    $region11: #{tpu_custom_call.1} parent=1 // pred_check_branch
      %19 = sbr.rel (0) target = $region13
    $region12: #{tpu_custom_call.1} parent=1 // pred_region
      _
    $region13: #{tpu_custom_call.1} parent=1 // pred_fallthru
      _
    // Predicated region
    $region14: #{tpu_custom_call.1} parent=1 // pred_check
      _
    $region15: #{tpu_custom_call.1} parent=1 // pred_check_branch
      %21 = sbr.rel (0) target = $region17
    $region16: #{tpu_custom_call.1} parent=1 // pred_region
      _
    $region17: #{tpu_custom_call.1} parent=1 // pred_fallthru
      _
    // Predicated region
    $region18: #{tpu_custom_call.1} parent=1 // pred_check
      _
    $region19: #{tpu_custom_call.1} parent=1 // pred_check_branch
      %23 = sbr.rel (0) target = $region21
    $region20: #{tpu_custom_call.1} parent=1 // pred_region
      _
    $region21: #{tpu_custom_call.1} parent=1 // pred_fallthru
      _
    // Predicated region
    $region22: #{tpu_custom_call.1} parent=1 // pred_check
      _
    $region23: #{tpu_custom_call.1} parent=1 // pred_check_branch
      %25 = sbr.rel (0) target = $region25
    $region24: #{tpu_custom_call.1} parent=1 // pred_region
      _
    $region25: #{tpu_custom_call.1} parent=1 // pred_fallthru
      _
    %p28 = scmp.lt.u32.totalorder 256, 8
    %p29 = pneg %p28
    // Predicated region
    $region26: #{tpu_custom_call.1} parent=1 // pred_check
      _
    $region27: #{tpu_custom_call.1} parent=1 // pred_check_branch
      %31 = sbr.rel (%p28) target = $region29
    $region28: #{tpu_custom_call.1} parent=1 // pred_region
      %s47 = sand.u32 256, 7
      %p48 = scmp.eq.s32.totalorder %s47, 0
      // Predicated region
      $region41: #{tpu_custom_call.1} parent=28 // pred_check
        %p49 = pneg %p48
      $region42: #{tpu_custom_call.1} parent=28 // pred_check_branch
        %51 = sbr.rel (%p49) target = $region44
      $region43: #{tpu_custom_call.1} parent=28 // pred_region
        loop: start=0, step=1, limit=1
        $region45: #{tpu_custom_call.1} parent=43 // loop_pre_header
          _
        $region46: #{tpu_custom_call.1} parent=43 // loop_header
          %s53 = sphi 0, %s57
          %p54 = scmp.ge.s32.totalorder %s53, 1
          %s58 = sphi %s6, %s6
          %s59 = sphi [#allocation2], [#allocation2]
        $region47: #{tpu_custom_call.1} parent=43 // loop_header_branch
          %56 = sbr.rel (%p54) target = $region51
        $region48: #{tpu_custom_call.1} parent=43 // loop_body
          %v60 = vld [vmem:[%s58] sm:$0xff]
          %61 = vst [vmem:[%s59] sm:$0xff] %v60
          %v62 = vld [vmem:[%s58 + $0x8] sm:$0xff]
          %63 = vst [vmem:[%s59 + $0x8] sm:$0xff] %v62
          %v64 = vld [vmem:[%s58 + $0x10] sm:$0xff]
          %65 = vst [vmem:[%s59 + $0x10] sm:$0xff] %v64
          %v66 = vld [vmem:[%s58 + $0x18] sm:$0xff]
          %67 = vst [vmem:[%s59 + $0x18] sm:$0xff] %v66
          %v68 = vld [vmem:[%s58 + $0x20] sm:$0xff]
          %69 = vst [vmem:[%s59 + $0x20] sm:$0xff] %v68
          %v70 = vld [vmem:[%s58 + $0x28] sm:$0xff]
          %71 = vst [vmem:[%s59 + $0x28] sm:$0xff] %v70
          %v72 = vld [vmem:[%s58 + $0x30] sm:$0xff]
          %73 = vst [vmem:[%s59 + $0x30] sm:$0xff] %v72
          %v74 = vld [vmem:[%s58 + $0x38] sm:$0xff]
          %75 = vst [vmem:[%s59 + $0x38] sm:$0xff] %v74
          %v76 = vld [vmem:[%s58 + $0x40] sm:$0xff]
          %77 = vst [vmem:[%s59 + $0x40] sm:$0xff] %v76
          %v78 = vld [vmem:[%s58 + $0x48] sm:$0xff]
          %79 = vst [vmem:[%s59 + $0x48] sm:$0xff] %v78
          %v80 = vld [vmem:[%s58 + $0x50] sm:$0xff]
          %81 = vst [vmem:[%s59 + $0x50] sm:$0xff] %v80
          %v82 = vld [vmem:[%s58 + $0x58] sm:$0xff]
          %83 = vst [vmem:[%s59 + $0x58] sm:$0xff] %v82
          %v84 = vld [vmem:[%s58 + $0x60] sm:$0xff]
          %85 = vst [vmem:[%s59 + $0x60] sm:$0xff] %v84
          %v86 = vld [vmem:[%s58 + $0x68] sm:$0xff]
          %87 = vst [vmem:[%s59 + $0x68] sm:$0xff] %v86
          %v88 = vld [vmem:[%s58 + $0x70] sm:$0xff]
          %89 = vst [vmem:[%s59 + $0x70] sm:$0xff] %v88
          %v90 = vld [vmem:[%s58 + $0x78] sm:$0xff]
          %91 = vst [vmem:[%s59 + $0x78] sm:$0xff] %v90
          %v92 = vld [vmem:[%s58 + $0x80] sm:$0xff]
          %93 = vst [vmem:[%s59 + $0x80] sm:$0xff] %v92
          %v94 = vld [vmem:[%s58 + $0x88] sm:$0xff]
          %95 = vst [vmem:[%s59 + $0x88] sm:$0xff] %v94
          %v96 = vld [vmem:[%s58 + $0x90] sm:$0xff]
          %97 = vst [vmem:[%s59 + $0x90] sm:$0xff] %v96
          %v98 = vld [vmem:[%s58 + $0x98] sm:$0xff]
          %99 = vst [vmem:[%s59 + $0x98] sm:$0xff] %v98
          %v100 = vld [vmem:[%s58 + $0xa0] sm:$0xff]
          %101 = vst [vmem:[%s59 + $0xa0] sm:$0xff] %v100
          %v102 = vld [vmem:[%s58 + $0xa8] sm:$0xff]
          %103 = vst [vmem:[%s59 + $0xa8] sm:$0xff] %v102
          %v104 = vld [vmem:[%s58 + $0xb0] sm:$0xff]
          %105 = vst [vmem:[%s59 + $0xb0] sm:$0xff] %v104
          %v106 = vld [vmem:[%s58 + $0xb8] sm:$0xff]
          %107 = vst [vmem:[%s59 + $0xb8] sm:$0xff] %v106
          %v108 = vld [vmem:[%s58 + $0xc0] sm:$0xff]
          %109 = vst [vmem:[%s59 + $0xc0] sm:$0xff] %v108
          %v110 = vld [vmem:[%s58 + $0xc8] sm:$0xff]
          %111 = vst [vmem:[%s59 + $0xc8] sm:$0xff] %v110
          %v112 = vld [vmem:[%s58 + $0xd0] sm:$0xff]
          %113 = vst [vmem:[%s59 + $0xd0] sm:$0xff] %v112
          %v114 = vld [vmem:[%s58 + $0xd8] sm:$0xff]
          %115 = vst [vmem:[%s59 + $0xd8] sm:$0xff] %v114
          %v116 = vld [vmem:[%s58 + $0xe0] sm:$0xff]
          %117 = vst [vmem:[%s59 + $0xe0] sm:$0xff] %v116
          %v118 = vld [vmem:[%s58 + $0xe8] sm:$0xff]
          %119 = vst [vmem:[%s59 + $0xe8] sm:$0xff] %v118
          %v120 = vld [vmem:[%s58 + $0xf0] sm:$0xff]
          %121 = vst [vmem:[%s59 + $0xf0] sm:$0xff] %v120
          %v122 = vld [vmem:[%s58 + $0xf8] sm:$0xff]
          %123 = vst [vmem:[%s59 + $0xf8] sm:$0xff] %v122
        $region49: #{tpu_custom_call.1} parent=43 // loop_footer
          %s57 = sadd.s32 1, %s53
        $region50: #{tpu_custom_call.1} parent=43 // loop_footer_branch
          %52 = sbr.rel target = $region46
        $region51: #{tpu_custom_call.1} parent=43 // loop_exit
          _
      $region44: #{tpu_custom_call.1} parent=28 // pred_fallthru
        _
      %p124 = pneg %p48
      // Predicated region
      $region52: #{tpu_custom_call.1} parent=28 // pred_check
        _
      $region53: #{tpu_custom_call.1} parent=28 // pred_check_branch
        %126 = sbr.rel (%p48) target = $region55
      $region54: #{tpu_custom_call.1} parent=28 // pred_region
        %s127 = sand.u32 256, 7
      $region55: #{tpu_custom_call.1} parent=28 // pred_fallthru
        _
    $region29: #{tpu_custom_call.1} parent=1 // pred_fallthru
      _
    // Predicated region
    $region30: #{tpu_custom_call.1} parent=1 // pred_check
      %p32 = pneg %p28
    $region31: #{tpu_custom_call.1} parent=1 // pred_check_branch
      %34 = sbr.rel (%p32) target = $region33
    $region32: #{tpu_custom_call.1} parent=1 // pred_region
      %s35 = sshll.u32 1, 256
      %s36 = ssub.s32 %s35, 1
      loop: start=0, step=1, limit=1
      $region34: #{tpu_custom_call.1} parent=32 // loop_pre_header
        _
      $region35: #{tpu_custom_call.1} parent=32 // loop_header
        %s38 = sphi 0, %s42
        %p39 = scmp.ge.s32.totalorder %s38, 1
        %s43 = sphi %s6, %s6
        %s44 = sphi [#allocation2], [#allocation2]
      $region36: #{tpu_custom_call.1} parent=32 // loop_header_branch
        %41 = sbr.rel (%p39) target = $region40
      $region37: #{tpu_custom_call.1} parent=32 // loop_body
        %v45 = vld [vmem:[%s43] sm:%s36]
        %46 = vst [vmem:[%s44] sm:%s36] %v45
      $region38: #{tpu_custom_call.1} parent=32 // loop_footer
        %s42 = sadd.s32 1, %s38
      $region39: #{tpu_custom_call.1} parent=32 // loop_footer_branch
        %37 = sbr.rel target = $region35
      $region40: #{tpu_custom_call.1} parent=32 // loop_exit
        _
    $region33: #{tpu_custom_call.1} parent=1 // pred_fallthru
      _
    // Predicated region
    $region56: #{tpu_custom_call.1} parent=1 // pred_check
      _
    $region57: #{tpu_custom_call.1} parent=1 // pred_check_branch
      %130 = sbr.rel (0) target = $region59
    $region58: #{tpu_custom_call.1} parent=1 // pred_region
      %131 = vsyncadd [#allocation4], 4096
    $region59: #{tpu_custom_call.1} parent=1 // pred_fallthru
      _
    %s132 = scalar_lea.sflag [#allocation4], 1
    %p134 = scmp.lt.u32.totalorder 1024, 8
    %p135 = pneg %p134
    // Predicated region
    $region60: #{tpu_custom_call.1} parent=1 // pred_check
      _
    $region61: #{tpu_custom_call.1} parent=1 // pred_check_branch
      %137 = sbr.rel (%p134) target = $region63
    $region62: #{tpu_custom_call.1} parent=1 // pred_region
      %s153 = sand.u32 1024, 7
      %p154 = scmp.eq.s32.totalorder %s153, 0
      // Predicated region
      $region75: #{tpu_custom_call.1} parent=62 // pred_check
        %p155 = pneg %p154
      $region76: #{tpu_custom_call.1} parent=62 // pred_check_branch
        %157 = sbr.rel (%p155) target = $region78
      $region77: #{tpu_custom_call.1} parent=62 // pred_region
        loop: start=0, step=1, limit=1
        $region79: #{tpu_custom_call.1} parent=77 // loop_pre_header
          _
        $region80: #{tpu_custom_call.1} parent=77 // loop_header
          %s159 = sphi 0, %s163
          %p160 = scmp.ge.s32.totalorder %s159, 1
          %s164 = sphi %s7, %s7
          %s165 = sphi [#allocation3], [#allocation3]
        $region81: #{tpu_custom_call.1} parent=77 // loop_header_branch
          %162 = sbr.rel (%p160) target = $region85
        $region82: #{tpu_custom_call.1} parent=77 // loop_body
          %v166 = vld [vmem:[%s164] sm:$0xff]
          %167 = vst [vmem:[%s165] sm:$0xff] %v166
          %v168 = vld [vmem:[%s164 + $0x8] sm:$0xff]
          %169 = vst [vmem:[%s165 + $0x8] sm:$0xff] %v168
          %v170 = vld [vmem:[%s164 + $0x10] sm:$0xff]
          %171 = vst [vmem:[%s165 + $0x10] sm:$0xff] %v170
          %v172 = vld [vmem:[%s164 + $0x18] sm:$0xff]
          %173 = vst [vmem:[%s165 + $0x18] sm:$0xff] %v172
          %v174 = vld [vmem:[%s164 + $0x20] sm:$0xff]
          %175 = vst [vmem:[%s165 + $0x20] sm:$0xff] %v174
          %v176 = vld [vmem:[%s164 + $0x28] sm:$0xff]
          %177 = vst [vmem:[%s165 + $0x28] sm:$0xff] %v176
          %v178 = vld [vmem:[%s164 + $0x30] sm:$0xff]
          %179 = vst [vmem:[%s165 + $0x30] sm:$0xff] %v178
          %v180 = vld [vmem:[%s164 + $0x38] sm:$0xff]
          %181 = vst [vmem:[%s165 + $0x38] sm:$0xff] %v180
          %v182 = vld [vmem:[%s164 + $0x40] sm:$0xff]
          %183 = vst [vmem:[%s165 + $0x40] sm:$0xff] %v182
          %v184 = vld [vmem:[%s164 + $0x48] sm:$0xff]
          %185 = vst [vmem:[%s165 + $0x48] sm:$0xff] %v184
          %v186 = vld [vmem:[%s164 + $0x50] sm:$0xff]
          %187 = vst [vmem:[%s165 + $0x50] sm:$0xff] %v186
          %v188 = vld [vmem:[%s164 + $0x58] sm:$0xff]
          %189 = vst [vmem:[%s165 + $0x58] sm:$0xff] %v188
          %v190 = vld [vmem:[%s164 + $0x60] sm:$0xff]
          %191 = vst [vmem:[%s165 + $0x60] sm:$0xff] %v190
          %v192 = vld [vmem:[%s164 + $0x68] sm:$0xff]
          %193 = vst [vmem:[%s165 + $0x68] sm:$0xff] %v192
          %v194 = vld [vmem:[%s164 + $0x70] sm:$0xff]
          %195 = vst [vmem:[%s165 + $0x70] sm:$0xff] %v194
          %v196 = vld [vmem:[%s164 + $0x78] sm:$0xff]
          %197 = vst [vmem:[%s165 + $0x78] sm:$0xff] %v196
          %v198 = vld [vmem:[%s164 + $0x80] sm:$0xff]
          %199 = vst [vmem:[%s165 + $0x80] sm:$0xff] %v198
          %v200 = vld [vmem:[%s164 + $0x88] sm:$0xff]
          %201 = vst [vmem:[%s165 + $0x88] sm:$0xff] %v200
          %v202 = vld [vmem:[%s164 + $0x90] sm:$0xff]
          %203 = vst [vmem:[%s165 + $0x90] sm:$0xff] %v202
          %v204 = vld [vmem:[%s164 + $0x98] sm:$0xff]
          %205 = vst [vmem:[%s165 + $0x98] sm:$0xff] %v204
          %v206 = vld [vmem:[%s164 + $0xa0] sm:$0xff]
          %207 = vst [vmem:[%s165 + $0xa0] sm:$0xff] %v206
          %v208 = vld [vmem:[%s164 + $0xa8] sm:$0xff]
          %209 = vst [vmem:[%s165 + $0xa8] sm:$0xff] %v208
          %v210 = vld [vmem:[%s164 + $0xb0] sm:$0xff]
          %211 = vst [vmem:[%s165 + $0xb0] sm:$0xff] %v210
          %v212 = vld [vmem:[%s164 + $0xb8] sm:$0xff]
          %213 = vst [vmem:[%s165 + $0xb8] sm:$0xff] %v212
          %v214 = vld [vmem:[%s164 + $0xc0] sm:$0xff]
          %215 = vst [vmem:[%s165 + $0xc0] sm:$0xff] %v214
          %v216 = vld [vmem:[%s164 + $0xc8] sm:$0xff]
          %217 = vst [vmem:[%s165 + $0xc8] sm:$0xff] %v216
          %v218 = vld [vmem:[%s164 + $0xd0] sm:$0xff]
          %219 = vst [vmem:[%s165 + $0xd0] sm:$0xff] %v218
          %v220 = vld [vmem:[%s164 + $0xd8] sm:$0xff]
          %221 = vst [vmem:[%s165 + $0xd8] sm:$0xff] %v220
          %v222 = vld [vmem:[%s164 + $0xe0] sm:$0xff]
          %223 = vst [vmem:[%s165 + $0xe0] sm:$0xff] %v222
          %v224 = vld [vmem:[%s164 + $0xe8] sm:$0xff]
          %225 = vst [vmem:[%s165 + $0xe8] sm:$0xff] %v224
          %v226 = vld [vmem:[%s164 + $0xf0] sm:$0xff]
          %227 = vst [vmem:[%s165 + $0xf0] sm:$0xff] %v226
          %v228 = vld [vmem:[%s164 + $0xf8] sm:$0xff]
          %229 = vst [vmem:[%s165 + $0xf8] sm:$0xff] %v228
          %v230 = vld [vmem:[%s164 + $0x100] sm:$0xff]
          %231 = vst [vmem:[%s165 + $0x100] sm:$0xff] %v230
          %v232 = vld [vmem:[%s164 + $0x108] sm:$0xff]
          %233 = vst [vmem:[%s165 + $0x108] sm:$0xff] %v232
          %v234 = vld [vmem:[%s164 + $0x110] sm:$0xff]
          %235 = vst [vmem:[%s165 + $0x110] sm:$0xff] %v234
          %v236 = vld [vmem:[%s164 + $0x118] sm:$0xff]
          %237 = vst [vmem:[%s165 + $0x118] sm:$0xff] %v236
          %v238 = vld [vmem:[%s164 + $0x120] sm:$0xff]
          %239 = vst [vmem:[%s165 + $0x120] sm:$0xff] %v238
          %v240 = vld [vmem:[%s164 + $0x128] sm:$0xff]
          %241 = vst [vmem:[%s165 + $0x128] sm:$0xff] %v240
          %v242 = vld [vmem:[%s164 + $0x130] sm:$0xff]
          %243 = vst [vmem:[%s165 + $0x130] sm:$0xff] %v242
          %v244 = vld [vmem:[%s164 + $0x138] sm:$0xff]
          %245 = vst [vmem:[%s165 + $0x138] sm:$0xff] %v244
          %v246 = vld [vmem:[%s164 + $0x140] sm:$0xff]
          %247 = vst [vmem:[%s165 + $0x140] sm:$0xff] %v246
          %v248 = vld [vmem:[%s164 + $0x148] sm:$0xff]
          %249 = vst [vmem:[%s165 + $0x148] sm:$0xff] %v248
          %v250 = vld [vmem:[%s164 + $0x150] sm:$0xff]
          %251 = vst [vmem:[%s165 + $0x150] sm:$0xff] %v250
          %v252 = vld [vmem:[%s164 + $0x158] sm:$0xff]
          %253 = vst [vmem:[%s165 + $0x158] sm:$0xff] %v252
          %v254 = vld [vmem:[%s164 + $0x160] sm:$0xff]
          %255 = vst [vmem:[%s165 + $0x160] sm:$0xff] %v254
          %v256 = vld [vmem:[%s164 + $0x168] sm:$0xff]
          %257 = vst [vmem:[%s165 + $0x168] sm:$0xff] %v256
          %v258 = vld [vmem:[%s164 + $0x170] sm:$0xff]
          %259 = vst [vmem:[%s165 + $0x170] sm:$0xff] %v258
          %v260 = vld [vmem:[%s164 + $0x178] sm:$0xff]
          %261 = vst [vmem:[%s165 + $0x178] sm:$0xff] %v260
          %v262 = vld [vmem:[%s164 + $0x180] sm:$0xff]
          %263 = vst [vmem:[%s165 + $0x180] sm:$0xff] %v262
          %v264 = vld [vmem:[%s164 + $0x188] sm:$0xff]
          %265 = vst [vmem:[%s165 + $0x188] sm:$0xff] %v264
          %v266 = vld [vmem:[%s164 + $0x190] sm:$0xff]
          %267 = vst [vmem:[%s165 + $0x190] sm:$0xff] %v266
          %v268 = vld [vmem:[%s164 + $0x198] sm:$0xff]
          %269 = vst [vmem:[%s165 + $0x198] sm:$0xff] %v268
          %v270 = vld [vmem:[%s164 + $0x1a0] sm:$0xff]
          %271 = vst [vmem:[%s165 + $0x1a0] sm:$0xff] %v270
          %v272 = vld [vmem:[%s164 + $0x1a8] sm:$0xff]
          %273 = vst [vmem:[%s165 + $0x1a8] sm:$0xff] %v272
          %v274 = vld [vmem:[%s164 + $0x1b0] sm:$0xff]
          %275 = vst [vmem:[%s165 + $0x1b0] sm:$0xff] %v274
          %v276 = vld [vmem:[%s164 + $0x1b8] sm:$0xff]
          %277 = vst [vmem:[%s165 + $0x1b8] sm:$0xff] %v276
          %v278 = vld [vmem:[%s164 + $0x1c0] sm:$0xff]
          %279 = vst [vmem:[%s165 + $0x1c0] sm:$0xff] %v278
          %v280 = vld [vmem:[%s164 + $0x1c8] sm:$0xff]
          %281 = vst [vmem:[%s165 + $0x1c8] sm:$0xff] %v280
          %v282 = vld [vmem:[%s164 + $0x1d0] sm:$0xff]
          %283 = vst [vmem:[%s165 + $0x1d0] sm:$0xff] %v282
          %v284 = vld [vmem:[%s164 + $0x1d8] sm:$0xff]
          %285 = vst [vmem:[%s165 + $0x1d8] sm:$0xff] %v284
          %v286 = vld [vmem:[%s164 + $0x1e0] sm:$0xff]
          %287 = vst [vmem:[%s165 + $0x1e0] sm:$0xff] %v286
          %v288 = vld [vmem:[%s164 + $0x1e8] sm:$0xff]
          %289 = vst [vmem:[%s165 + $0x1e8] sm:$0xff] %v288
          %v290 = vld [vmem:[%s164 + $0x1f0] sm:$0xff]
          %291 = vst [vmem:[%s165 + $0x1f0] sm:$0xff] %v290
          %v292 = vld [vmem:[%s164 + $0x1f8] sm:$0xff]
          %293 = vst [vmem:[%s165 + $0x1f8] sm:$0xff] %v292
          %v294 = vld [vmem:[%s164 + $0x200] sm:$0xff]
          %295 = vst [vmem:[%s165 + $0x200] sm:$0xff] %v294
          %v296 = vld [vmem:[%s164 + $0x208] sm:$0xff]
          %297 = vst [vmem:[%s165 + $0x208] sm:$0xff] %v296
          %v298 = vld [vmem:[%s164 + $0x210] sm:$0xff]
          %299 = vst [vmem:[%s165 + $0x210] sm:$0xff] %v298
          %v300 = vld [vmem:[%s164 + $0x218] sm:$0xff]
          %301 = vst [vmem:[%s165 + $0x218] sm:$0xff] %v300
          %v302 = vld [vmem:[%s164 + $0x220] sm:$0xff]
          %303 = vst [vmem:[%s165 + $0x220] sm:$0xff] %v302
          %v304 = vld [vmem:[%s164 + $0x228] sm:$0xff]
          %305 = vst [vmem:[%s165 + $0x228] sm:$0xff] %v304
          %v306 = vld [vmem:[%s164 + $0x230] sm:$0xff]
          %307 = vst [vmem:[%s165 + $0x230] sm:$0xff] %v306
          %v308 = vld [vmem:[%s164 + $0x238] sm:$0xff]
          %309 = vst [vmem:[%s165 + $0x238] sm:$0xff] %v308
          %v310 = vld [vmem:[%s164 + $0x240] sm:$0xff]
          %311 = vst [vmem:[%s165 + $0x240] sm:$0xff] %v310
          %v312 = vld [vmem:[%s164 + $0x248] sm:$0xff]
          %313 = vst [vmem:[%s165 + $0x248] sm:$0xff] %v312
          %v314 = vld [vmem:[%s164 + $0x250] sm:$0xff]
          %315 = vst [vmem:[%s165 + $0x250] sm:$0xff] %v314
          %v316 = vld [vmem:[%s164 + $0x258] sm:$0xff]
          %317 = vst [vmem:[%s165 + $0x258] sm:$0xff] %v316
          %v318 = vld [vmem:[%s164 + $0x260] sm:$0xff]
          %319 = vst [vmem:[%s165 + $0x260] sm:$0xff] %v318
          %v320 = vld [vmem:[%s164 + $0x268] sm:$0xff]
          %321 = vst [vmem:[%s165 + $0x268] sm:$0xff] %v320
          %v322 = vld [vmem:[%s164 + $0x270] sm:$0xff]
          %323 = vst [vmem:[%s165 + $0x270] sm:$0xff] %v322
          %v324 = vld [vmem:[%s164 + $0x278] sm:$0xff]
          %325 = vst [vmem:[%s165 + $0x278] sm:$0xff] %v324
          %v326 = vld [vmem:[%s164 + $0x280] sm:$0xff]
          %327 = vst [vmem:[%s165 + $0x280] sm:$0xff] %v326
          %v328 = vld [vmem:[%s164 + $0x288] sm:$0xff]
          %329 = vst [vmem:[%s165 + $0x288] sm:$0xff] %v328
          %v330 = vld [vmem:[%s164 + $0x290] sm:$0xff]
          %331 = vst [vmem:[%s165 + $0x290] sm:$0xff] %v330
          %v332 = vld [vmem:[%s164 + $0x298] sm:$0xff]
          %333 = vst [vmem:[%s165 + $0x298] sm:$0xff] %v332
          %v334 = vld [vmem:[%s164 + $0x2a0] sm:$0xff]
          %335 = vst [vmem:[%s165 + $0x2a0] sm:$0xff] %v334
          %v336 = vld [vmem:[%s164 + $0x2a8] sm:$0xff]
          %337 = vst [vmem:[%s165 + $0x2a8] sm:$0xff] %v336
          %v338 = vld [vmem:[%s164 + $0x2b0] sm:$0xff]
          %339 = vst [vmem:[%s165 + $0x2b0] sm:$0xff] %v338
          %v340 = vld [vmem:[%s164 + $0x2b8] sm:$0xff]
          %341 = vst [vmem:[%s165 + $0x2b8] sm:$0xff] %v340
          %v342 = vld [vmem:[%s164 + $0x2c0] sm:$0xff]
          %343 = vst [vmem:[%s165 + $0x2c0] sm:$0xff] %v342
          %v344 = vld [vmem:[%s164 + $0x2c8] sm:$0xff]
          %345 = vst [vmem:[%s165 + $0x2c8] sm:$0xff] %v344
          %v346 = vld [vmem:[%s164 + $0x2d0] sm:$0xff]
          %347 = vst [vmem:[%s165 + $0x2d0] sm:$0xff] %v346
          %v348 = vld [vmem:[%s164 + $0x2d8] sm:$0xff]
          %349 = vst [vmem:[%s165 + $0x2d8] sm:$0xff] %v348
          %v350 = vld [vmem:[%s164 + $0x2e0] sm:$0xff]
          %351 = vst [vmem:[%s165 + $0x2e0] sm:$0xff] %v350
          %v352 = vld [vmem:[%s164 + $0x2e8] sm:$0xff]
          %353 = vst [vmem:[%s165 + $0x2e8] sm:$0xff] %v352
          %v354 = vld [vmem:[%s164 + $0x2f0] sm:$0xff]
          %355 = vst [vmem:[%s165 + $0x2f0] sm:$0xff] %v354
          %v356 = vld [vmem:[%s164 + $0x2f8] sm:$0xff]
          %357 = vst [vmem:[%s165 + $0x2f8] sm:$0xff] %v356
          %v358 = vld [vmem:[%s164 + $0x300] sm:$0xff]
          %359 = vst [vmem:[%s165 + $0x300] sm:$0xff] %v358
          %v360 = vld [vmem:[%s164 + $0x308] sm:$0xff]
          %361 = vst [vmem:[%s165 + $0x308] sm:$0xff] %v360
          %v362 = vld [vmem:[%s164 + $0x310] sm:$0xff]
          %363 = vst [vmem:[%s165 + $0x310] sm:$0xff] %v362
          %v364 = vld [vmem:[%s164 + $0x318] sm:$0xff]
          %365 = vst [vmem:[%s165 + $0x318] sm:$0xff] %v364
          %v366 = vld [vmem:[%s164 + $0x320] sm:$0xff]
          %367 = vst [vmem:[%s165 + $0x320] sm:$0xff] %v366
          %v368 = vld [vmem:[%s164 + $0x328] sm:$0xff]
          %369 = vst [vmem:[%s165 + $0x328] sm:$0xff] %v368
          %v370 = vld [vmem:[%s164 + $0x330] sm:$0xff]
          %371 = vst [vmem:[%s165 + $0x330] sm:$0xff] %v370
          %v372 = vld [vmem:[%s164 + $0x338] sm:$0xff]
          %373 = vst [vmem:[%s165 + $0x338] sm:$0xff] %v372
          %v374 = vld [vmem:[%s164 + $0x340] sm:$0xff]
          %375 = vst [vmem:[%s165 + $0x340] sm:$0xff] %v374
          %v376 = vld [vmem:[%s164 + $0x348] sm:$0xff]
          %377 = vst [vmem:[%s165 + $0x348] sm:$0xff] %v376
          %v378 = vld [vmem:[%s164 + $0x350] sm:$0xff]
          %379 = vst [vmem:[%s165 + $0x350] sm:$0xff] %v378
          %v380 = vld [vmem:[%s164 + $0x358] sm:$0xff]
          %381 = vst [vmem:[%s165 + $0x358] sm:$0xff] %v380
          %v382 = vld [vmem:[%s164 + $0x360] sm:$0xff]
          %383 = vst [vmem:[%s165 + $0x360] sm:$0xff] %v382
          %v384 = vld [vmem:[%s164 + $0x368] sm:$0xff]
          %385 = vst [vmem:[%s165 + $0x368] sm:$0xff] %v384
          %v386 = vld [vmem:[%s164 + $0x370] sm:$0xff]
          %387 = vst [vmem:[%s165 + $0x370] sm:$0xff] %v386
          %v388 = vld [vmem:[%s164 + $0x378] sm:$0xff]
          %389 = vst [vmem:[%s165 + $0x378] sm:$0xff] %v388
          %v390 = vld [vmem:[%s164 + $0x380] sm:$0xff]
          %391 = vst [vmem:[%s165 + $0x380] sm:$0xff] %v390
          %v392 = vld [vmem:[%s164 + $0x388] sm:$0xff]
          %393 = vst [vmem:[%s165 + $0x388] sm:$0xff] %v392
          %v394 = vld [vmem:[%s164 + $0x390] sm:$0xff]
          %395 = vst [vmem:[%s165 + $0x390] sm:$0xff] %v394
          %v396 = vld [vmem:[%s164 + $0x398] sm:$0xff]
          %397 = vst [vmem:[%s165 + $0x398] sm:$0xff] %v396
          %v398 = vld [vmem:[%s164 + $0x3a0] sm:$0xff]
          %399 = vst [vmem:[%s165 + $0x3a0] sm:$0xff] %v398
          %v400 = vld [vmem:[%s164 + $0x3a8] sm:$0xff]
          %401 = vst [vmem:[%s165 + $0x3a8] sm:$0xff] %v400
          %v402 = vld [vmem:[%s164 + $0x3b0] sm:$0xff]
          %403 = vst [vmem:[%s165 + $0x3b0] sm:$0xff] %v402
          %v404 = vld [vmem:[%s164 + $0x3b8] sm:$0xff]
          %405 = vst [vmem:[%s165 + $0x3b8] sm:$0xff] %v404
          %v406 = vld [vmem:[%s164 + $0x3c0] sm:$0xff]
          %407 = vst [vmem:[%s165 + $0x3c0] sm:$0xff] %v406
          %v408 = vld [vmem:[%s164 + $0x3c8] sm:$0xff]
          %409 = vst [vmem:[%s165 + $0x3c8] sm:$0xff] %v408
          %v410 = vld [vmem:[%s164 + $0x3d0] sm:$0xff]
          %411 = vst [vmem:[%s165 + $0x3d0] sm:$0xff] %v410
          %v412 = vld [vmem:[%s164 + $0x3d8] sm:$0xff]
          %413 = vst [vmem:[%s165 + $0x3d8] sm:$0xff] %v412
          %v414 = vld [vmem:[%s164 + $0x3e0] sm:$0xff]
          %415 = vst [vmem:[%s165 + $0x3e0] sm:$0xff] %v414
          %v416 = vld [vmem:[%s164 + $0x3e8] sm:$0xff]
          %417 = vst [vmem:[%s165 + $0x3e8] sm:$0xff] %v416
          %v418 = vld [vmem:[%s164 + $0x3f0] sm:$0xff]
          %419 = vst [vmem:[%s165 + $0x3f0] sm:$0xff] %v418
          %v420 = vld [vmem:[%s164 + $0x3f8] sm:$0xff]
          %421 = vst [vmem:[%s165 + $0x3f8] sm:$0xff] %v420
        $region83: #{tpu_custom_call.1} parent=77 // loop_footer
          %s163 = sadd.s32 1, %s159
        $region84: #{tpu_custom_call.1} parent=77 // loop_footer_branch
          %158 = sbr.rel target = $region80
        $region85: #{tpu_custom_call.1} parent=77 // loop_exit
          _
      $region78: #{tpu_custom_call.1} parent=62 // pred_fallthru
        _
      %p422 = pneg %p154
      // Predicated region
      $region86: #{tpu_custom_call.1} parent=62 // pred_check
        _
      $region87: #{tpu_custom_call.1} parent=62 // pred_check_branch
        %424 = sbr.rel (%p154) target = $region89
      $region88: #{tpu_custom_call.1} parent=62 // pred_region
        %s425 = sand.u32 1024, 7
      $region89: #{tpu_custom_call.1} parent=62 // pred_fallthru
        _
    $region63: #{tpu_custom_call.1} parent=1 // pred_fallthru
      _
    // Predicated region
    $region64: #{tpu_custom_call.1} parent=1 // pred_check
      %p138 = pneg %p134
    $region65: #{tpu_custom_call.1} parent=1 // pred_check_branch
      %140 = sbr.rel (%p138) target = $region67
    $region66: #{tpu_custom_call.1} parent=1 // pred_region
      %s141 = sshll.u32 1, 1024
      %s142 = ssub.s32 %s141, 1
      loop: start=0, step=1, limit=1
      $region68: #{tpu_custom_call.1} parent=66 // loop_pre_header
        _
      $region69: #{tpu_custom_call.1} parent=66 // loop_header
        %s144 = sphi 0, %s148
        %p145 = scmp.ge.s32.totalorder %s144, 1
        %s149 = sphi %s7, %s7
        %s150 = sphi [#allocation3], [#allocation3]
      $region70: #{tpu_custom_call.1} parent=66 // loop_header_branch
        %147 = sbr.rel (%p145) target = $region74
      $region71: #{tpu_custom_call.1} parent=66 // loop_body
        %v151 = vld [vmem:[%s149] sm:%s142]
        %152 = vst [vmem:[%s150] sm:%s142] %v151
      $region72: #{tpu_custom_call.1} parent=66 // loop_footer
        %s148 = sadd.s32 1, %s144
      $region73: #{tpu_custom_call.1} parent=66 // loop_footer_branch
        %143 = sbr.rel target = $region69
      $region74: #{tpu_custom_call.1} parent=66 // loop_exit
        _
    $region67: #{tpu_custom_call.1} parent=1 // pred_fallthru
      _
    // Predicated region
    $region90: #{tpu_custom_call.1} parent=1 // pred_check
      _
    $region91: #{tpu_custom_call.1} parent=1 // pred_check_branch
      %428 = sbr.rel (0) target = $region93
    $region92: #{tpu_custom_call.1} parent=1 // pred_region
      %429 = vsyncadd %s132, 16384
    $region93: #{tpu_custom_call.1} parent=1 // pred_fallthru
      _
    %v430 = vld [vmem:[%s0] sm:$0xff]
    %v431 = vld [vmem:[%s0 + $0x8] sm:$0xff]
    %v432 = vld [vmem:[%s1] sm:$0xff]
    %v433 = vld [vmem:[%s1 + $0x8] sm:$0xff]
    %v434 = vld [vmem:[%s2] sm:$0x3]
    %s435 = scalar_lea.vmem %s2, 2
    %v436 = vld [vmem:[%s435] sm:$0x3]
    %v437 = vld [vmem:[%s4 + $0x2] sm:$0x1]
    %v439 = vlaneseq
    %v440 = vshrl.u32 %v439, 7
    %v441 = vsub.s32 0, %v440
    %v442 = vrot.slane %v437, %v441
    %v443 = vld [vmem:[%s3] sm:$0xff]
    %v444 = vld [vmem:[%s3 + $0x10] sm:$0xff]
    %v445 = vld [vmem:[%s3 + $0x20] sm:$0xff]
    %v446 = vld [vmem:[%s3 + $0x30] sm:$0xff]
    %v447 = vld [vmem:[%s4] sm:$0x1]
    %v449 = vlaneseq
    %v450 = vshrl.u32 %v449, 7
    %v451 = vsub.s32 0, %v450
    %v452 = vrot.slane %v447, %v451
    %vm454 = vcmask 261120
    %v456 = vsel %vm454, %v430, 0
    %v459 = vsel %vm454, %v431, 0
    %461 = vmatprep.subr.mxu0 0.0
    %462 = vmatpush1.msra.mxu0 0.0
    %463 = vmatprep.subr.mxu0 0.0
    %464 = vmatpush1.msra.mxu0 0.0
    %465 = vmatprep.subr.mxu0 0.0
    %466 = vmatpush1.msra.mxu0 0.0
    %467 = vmatprep.subr.mxu0 0.0
    %468 = vmatpush1.msra.mxu0 0.0
    %469 = vmatprep.subr.mxu0 0.0
    %470 = vmatpush1.msra.mxu0 0.0
    %471 = vmatprep.subr.mxu0 0.0
    %472 = vmatpush1.msra.mxu0 0.0
    %473 = vmatprep.subr.mxu0 0.0
    %474 = vmatpush1.msra.mxu0 0.0
    %475 = vmatprep.subr.mxu0 0.0
    %476 = vmatpush1.msra.mxu0 0.0
    %477 = vmatprep.subr.mxu0 0.0
    %478 = vmatpush1.msra.mxu0 0.0
    %479 = vmatprep.subr.mxu0 0.0
    %480 = vmatpush1.msra.mxu0 0.0
    %481 = vmatprep.subr.mxu0 0.0
    %482 = vmatpush1.msra.mxu0 0.0
    %483 = vmatprep.subr.mxu0 0.0
    %484 = vmatpush1.msra.mxu0 0.0
    %485 = vmatprep.subr.mxu0 0.0
    %486 = vmatpush1.msra.mxu0 %v446
    %487 = vmatprep.subr.mxu0 0.0
    %488 = vmatpush1.msra.mxu0 %v445
    %489 = vmatprep.subr.mxu0 0.0
    %490 = vmatpush1.msra.mxu0 %v444
    %491 = vmatprep.subr.mxu0 0.0
    %492 = vmatpush1.msra.mxu0 %v443
    %493 = vmatprep.subr.mxu0 0.0
    %494 = vmatpush2.msra.mxu0 0.0
    %495 = vmatprep.subr.mxu0 0.0
    %496 = vmatpush2.msra.mxu0 0.0
    %497 = vmatprep.subr.mxu0 0.0
    %498 = vmatpush2.msra.mxu0 0.0
    %499 = vmatprep.subr.mxu0 0.0
    %500 = vmatpush2.msra.mxu0 0.0
    %501 = vmatprep.subr.mxu0 0.0
    %502 = vmatpush2.msra.mxu0 0.0
    %503 = vmatprep.subr.mxu0 0.0
    %504 = vmatpush2.msra.mxu0 0.0
    %505 = vmatprep.subr.mxu0 0.0
    %506 = vmatpush2.msra.mxu0 0.0
    %507 = vmatprep.subr.mxu0 0.0
    %508 = vmatpush2.msra.mxu0 0.0
    %509 = vmatprep.subr.mxu0 0.0
    %510 = vmatpush2.msra.mxu0 0.0
    %511 = vmatprep.subr.mxu0 0.0
    %512 = vmatpush2.msra.mxu0 0.0
    %513 = vmatprep.subr.mxu0 0.0
    %514 = vmatpush2.msra.mxu0 0.0
    %515 = vmatprep.subr.mxu0 0.0
    %516 = vmatpush2.msra.mxu0 0.0
    %517 = vmatprep.subr.mxu0 0.0
    %518 = vmatpush2.msra.mxu0 0.0
    %519 = vmatprep.subr.mxu0 0.0
    %520 = vmatpush2.msra.mxu0 0.0
    %521 = vmatprep.subr.mxu0 0.0
    %522 = vmatpush2.msra.mxu0 0.0
    %523 = vmatprep.subr.mxu0 0.0
    %524 = vmatpush2.msra.mxu0 0.0
    %525 = vmatprep.mubr.f32.mxu0 0.0
    %526 = vmatmul.mubr.f32.gmra.mxu0 %v456
    %v527 = vpop.f32.mrf.mxu0
    %v528 = vadd.f32 %v452, %v527
    %v529 = vpop.f32.mrf.mxu0
    %530 = vmatprep.mubr.f32.mxu0 0.0
    %531 = vmatmul.mubr.f32.gmra.mxu0 %v459
    %v532 = vpop.f32.mrf.mxu0
    %v533 = vadd.f32 %v452, %v532
    %v534 = vpop.f32.mrf.mxu0
    %535 = vdwg.mxu0
    %v536 = vmul.f32 %v528, 0.35355338
    %v537 = vmul.f32 %v533, 0.35355338
    %540 = vrot.lane.b32.xlu0 %v536, 120
    %v541 = vpop.permute.xlu0 %540
    %542 = vrot.lane.b32.xlu0 %v537, 120
    %v543 = vpop.permute.xlu0 %542
    %546 = vrot.lane.b32.xlu0 %v536, 112
    %v547 = vpop.permute.xlu0 %546
    %548 = vrot.lane.b32.xlu0 %v537, 112
    %v549 = vpop.permute.xlu0 %548
    %552 = vrot.lane.b32.xlu0 %v536, 104
    %v553 = vpop.permute.xlu0 %552
    %554 = vrot.lane.b32.xlu0 %v537, 104
    %v555 = vpop.permute.xlu0 %554
    %v558 = vcombine.low %v536, %v547
    %v559 = vcombine.high %v536, %v547
    %v561 = vunpack.c.l.s4 1983009808
    %v562 = vunpack.c.0.s8 %v561
    %v563 = vlaneseq
    %v564 = vshrl.u32 %v563, 7
    %v565 = vsub.s32 %v562, %v564
    %v566 = vrot.slane %v558, %v565
    %v568 = vunpack.c.l.s4 1983009808
    %v569 = vunpack.c.0.s8 %v568
    %v570 = vlaneseq
    %v571 = vshrl.u32 %v570, 7
    %v572 = vsub.s32 %v569, %v571
    %v573 = vrot.slane %v559, %v572
    %v574 = vcombine.low %v541, %v553
    %v575 = vcombine.high %v541, %v553
    %v577 = vunpack.c.l.s4 1983009808
    %v578 = vunpack.c.0.s8 %v577
    %v579 = vlaneseq
    %v580 = vshrl.u32 %v579, 7
    %v581 = vsub.s32 %v578, %v580
    %v582 = vrot.slane %v574, %v581
    %v584 = vunpack.c.l.s4 1983009808
    %v585 = vunpack.c.0.s8 %v584
    %v586 = vlaneseq
    %v587 = vshrl.u32 %v586, 7
    %v588 = vsub.s32 %v585, %v587
    %v589 = vrot.slane %v575, %v588
    %v590 = vcombine.low %v566, %v582
    %v591 = vcombine.high %v566, %v582
    %v593 = vunpack.c.l.s4 1934713408
    %v594 = vunpack.c.0.s8 %v593
    %v595 = vlaneseq
    %v596 = vshrl.u32 %v595, 7
    %v597 = vsub.s32 %v594, %v596
    %v598 = vrot.slane %v590, %v597
    %v600 = vunpack.c.l.s4 1934713408
    %v601 = vunpack.c.0.s8 %v600
    %v602 = vlaneseq
    %v603 = vshrl.u32 %v602, 7
    %v604 = vsub.s32 %v601, %v603
    %v605 = vrot.slane %v591, %v604
    %v606 = vcombine.low %v573, %v589
    %v607 = vcombine.high %v573, %v589
    %v609 = vunpack.c.l.s4 1934713408
    %v610 = vunpack.c.0.s8 %v609
    %v611 = vlaneseq
    %v612 = vshrl.u32 %v611, 7
    %v613 = vsub.s32 %v610, %v612
    %v614 = vrot.slane %v606, %v613
    %v616 = vunpack.c.l.s4 1934713408
    %v617 = vunpack.c.0.s8 %v616
    %v618 = vlaneseq
    %v619 = vshrl.u32 %v618, 7
    %v620 = vsub.s32 %v617, %v619
    %v621 = vrot.slane %v607, %v620
    %v622 = vcombine.high %v598, 0.0
    %v623 = vcombine.high %v605, 0.0
    %v624 = vcombine.high %v614, 0.0
    %v625 = vcombine.high %v621, 0.0
    %v626 = vcombine.low %v537, %v549
    %v627 = vcombine.high %v537, %v549
    %v629 = vunpack.c.l.s4 1983009808
    %v630 = vunpack.c.0.s8 %v629
    %v631 = vlaneseq
    %v632 = vshrl.u32 %v631, 7
    %v633 = vsub.s32 %v630, %v632
    %v634 = vrot.slane %v626, %v633
    %v636 = vunpack.c.l.s4 1983009808
    %v637 = vunpack.c.0.s8 %v636
    %v638 = vlaneseq
    %v639 = vshrl.u32 %v638, 7
    %v640 = vsub.s32 %v637, %v639
    %v641 = vrot.slane %v627, %v640
    %v642 = vcombine.low %v543, %v555
    %v643 = vcombine.high %v543, %v555
    %v645 = vunpack.c.l.s4 1983009808
    %v646 = vunpack.c.0.s8 %v645
    %v647 = vlaneseq
    %v648 = vshrl.u32 %v647, 7
    %v649 = vsub.s32 %v646, %v648
    %v650 = vrot.slane %v642, %v649
    %v652 = vunpack.c.l.s4 1983009808
    %v653 = vunpack.c.0.s8 %v652
    %v654 = vlaneseq
    %v655 = vshrl.u32 %v654, 7
    %v656 = vsub.s32 %v653, %v655
    %v657 = vrot.slane %v643, %v656
    %v658 = vcombine.low %v634, %v650
    %v659 = vcombine.high %v634, %v650
    %v661 = vunpack.c.l.s4 1934713408
    %v662 = vunpack.c.0.s8 %v661
    %v663 = vlaneseq
    %v664 = vshrl.u32 %v663, 7
    %v665 = vsub.s32 %v662, %v664
    %v666 = vrot.slane %v658, %v665
    %v668 = vunpack.c.l.s4 1934713408
    %v669 = vunpack.c.0.s8 %v668
    %v670 = vlaneseq
    %v671 = vshrl.u32 %v670, 7
    %v672 = vsub.s32 %v669, %v671
    %v673 = vrot.slane %v659, %v672
    %v674 = vcombine.low %v641, %v657
    %v675 = vcombine.high %v641, %v657
    %v677 = vunpack.c.l.s4 1934713408
    %v678 = vunpack.c.0.s8 %v677
    %v679 = vlaneseq
    %v680 = vshrl.u32 %v679, 7
    %v681 = vsub.s32 %v678, %v680
    %v682 = vrot.slane %v674, %v681
    %v684 = vunpack.c.l.s4 1934713408
    %v685 = vunpack.c.0.s8 %v684
    %v686 = vlaneseq
    %v687 = vshrl.u32 %v686, 7
    %v688 = vsub.s32 %v685, %v687
    %v689 = vrot.slane %v675, %v688
    %v690 = vcombine.high %v666, 0.0
    %v691 = vcombine.high %v673, 0.0
    %v692 = vcombine.high %v682, 0.0
    %v693 = vcombine.high %v689, 0.0
    %v694 = vcombine.low %v598, %v605
    %v696 = vunpack.c.l.s4 1983009808
    %v697 = vunpack.c.0.s8 %v696
    %v698 = vlaneseq
    %v699 = vshrl.u32 %v698, 7
    %v700 = vsub.s32 %v697, %v699
    %v701 = vrot.slane %v694, %v700
    %v702 = vcombine.low %v622, %v623
    %v704 = vunpack.c.l.s4 1983009808
    %v705 = vunpack.c.0.s8 %v704
    %v706 = vlaneseq
    %v707 = vshrl.u32 %v706, 7
    %v708 = vsub.s32 %v705, %v707
    %v709 = vrot.slane %v702, %v708
    %v710 = vcombine.low %v614, %v621
    %v712 = vunpack.c.l.s4 1983009808
    %v713 = vunpack.c.0.s8 %v712
    %v714 = vlaneseq
    %v715 = vshrl.u32 %v714, 7
    %v716 = vsub.s32 %v713, %v715
    %v717 = vrot.slane %v710, %v716
    %v718 = vcombine.low %v624, %v625
    %v720 = vunpack.c.l.s4 1983009808
    %v721 = vunpack.c.0.s8 %v720
    %v722 = vlaneseq
    %v723 = vshrl.u32 %v722, 7
    %v724 = vsub.s32 %v721, %v723
    %v725 = vrot.slane %v718, %v724
    %v726 = vcombine.low %v701, %v709
    %v727 = vcombine.high %v701, %v709
    %v729 = vunpack.c.l.s4 1934713408
    %v730 = vunpack.c.0.s8 %v729
    %v731 = vlaneseq
    %v732 = vshrl.u32 %v731, 7
    %v733 = vsub.s32 %v730, %v732
    %v734 = vrot.slane %v726, %v733
    %v736 = vunpack.c.l.s4 1934713408
    %v737 = vunpack.c.0.s8 %v736
    %v738 = vlaneseq
    %v739 = vshrl.u32 %v738, 7
    %v740 = vsub.s32 %v737, %v739
    %v741 = vrot.slane %v727, %v740
    %v742 = vcombine.low %v717, %v725
    %v743 = vcombine.high %v717, %v725
    %v745 = vunpack.c.l.s4 1934713408
    %v746 = vunpack.c.0.s8 %v745
    %v747 = vlaneseq
    %v748 = vshrl.u32 %v747, 7
    %v749 = vsub.s32 %v746, %v748
    %v750 = vrot.slane %v742, %v749
    %v752 = vunpack.c.l.s4 1934713408
    %v753 = vunpack.c.0.s8 %v752
    %v754 = vlaneseq
    %v755 = vshrl.u32 %v754, 7
    %v756 = vsub.s32 %v753, %v755
    %v757 = vrot.slane %v743, %v756
    %v758 = vcombine.low %v734, %v750
    %v759 = vcombine.high %v734, %v750
    %v760 = vcombine.low %v741, %v757
    %v761 = vcombine.high %v741, %v757
    %v762 = vcombine.low %v666, %v673
    %v764 = vunpack.c.l.s4 1983009808
    %v765 = vunpack.c.0.s8 %v764
    %v766 = vlaneseq
    %v767 = vshrl.u32 %v766, 7
    %v768 = vsub.s32 %v765, %v767
    %v769 = vrot.slane %v762, %v768
    %v770 = vcombine.low %v690, %v691
    %v772 = vunpack.c.l.s4 1983009808
    %v773 = vunpack.c.0.s8 %v772
    %v774 = vlaneseq
    %v775 = vshrl.u32 %v774, 7
    %v776 = vsub.s32 %v773, %v775
    %v777 = vrot.slane %v770, %v776
    %v778 = vcombine.low %v682, %v689
    %v780 = vunpack.c.l.s4 1983009808
    %v781 = vunpack.c.0.s8 %v780
    %v782 = vlaneseq
    %v783 = vshrl.u32 %v782, 7
    %v784 = vsub.s32 %v781, %v783
    %v785 = vrot.slane %v778, %v784
    %v786 = vcombine.low %v692, %v693
    %v788 = vunpack.c.l.s4 1983009808
    %v789 = vunpack.c.0.s8 %v788
    %v790 = vlaneseq
    %v791 = vshrl.u32 %v790, 7
    %v792 = vsub.s32 %v789, %v791
    %v793 = vrot.slane %v786, %v792
    %v794 = vcombine.low %v769, %v777
    %v795 = vcombine.high %v769, %v777
    %v797 = vunpack.c.l.s4 1934713408
    %v798 = vunpack.c.0.s8 %v797
    %v799 = vlaneseq
    %v800 = vshrl.u32 %v799, 7
    %v801 = vsub.s32 %v798, %v800
    %v802 = vrot.slane %v794, %v801
    %v804 = vunpack.c.l.s4 1934713408
    %v805 = vunpack.c.0.s8 %v804
    %v806 = vlaneseq
    %v807 = vshrl.u32 %v806, 7
    %v808 = vsub.s32 %v805, %v807
    %v809 = vrot.slane %v795, %v808
    %v810 = vcombine.low %v785, %v793
    %v811 = vcombine.high %v785, %v793
    %v813 = vunpack.c.l.s4 1934713408
    %v814 = vunpack.c.0.s8 %v813
    %v815 = vlaneseq
    %v816 = vshrl.u32 %v815, 7
    %v817 = vsub.s32 %v814, %v816
    %v818 = vrot.slane %v810, %v817
    %v820 = vunpack.c.l.s4 1934713408
    %v821 = vunpack.c.0.s8 %v820
    %v822 = vlaneseq
    %v823 = vshrl.u32 %v822, 7
    %v824 = vsub.s32 %v821, %v823
    %v825 = vrot.slane %v811, %v824
    %v826 = vcombine.low %v802, %v818
    %v827 = vcombine.high %v802, %v818
    %v828 = vcombine.low %v809, %v825
    %v829 = vcombine.high %v809, %v825
    %832 = vrot.lane.b32.xlu0 %v528, 120
    %v833 = vpop.permute.xlu0 %832
    %834 = vrot.lane.b32.xlu0 %v533, 120
    %v835 = vpop.permute.xlu0 %834
    %836 = vrot.lane.b32.xlu0 %v528, 112
    %v837 = vpop.permute.xlu0 %836
    %838 = vrot.lane.b32.xlu0 %v533, 112
    %v839 = vpop.permute.xlu0 %838
    %840 = vrot.lane.b32.xlu0 %v528, 104
    %v841 = vpop.permute.xlu0 %840
    %842 = vrot.lane.b32.xlu0 %v533, 104
    %v843 = vpop.permute.xlu0 %842
    %844 = vrot.lane.b32.xlu0 %v528, 96
    %v845 = vpop.permute.xlu0 %844
    %846 = vrot.lane.b32.xlu0 %v533, 96
    %v847 = vpop.permute.xlu0 %846
    %848 = vrot.lane.b32.xlu0 %v833, 96
    %v849 = vpop.permute.xlu0 %848
    %850 = vrot.lane.b32.xlu0 %v835, 96
    %v851 = vpop.permute.xlu0 %850
    %852 = vrot.lane.b32.xlu0 %v837, 96
    %v853 = vpop.permute.xlu0 %852
    %854 = vrot.lane.b32.xlu0 %v839, 96
    %v855 = vpop.permute.xlu0 %854
    %856 = vrot.lane.b32.xlu0 %v841, 96
    %v857 = vpop.permute.xlu0 %856
    %858 = vrot.lane.b32.xlu0 %v843, 96
    %v859 = vpop.permute.xlu0 %858
    %v868 = vcombine.low %v845, %v853
    %v869 = vcombine.high %v845, %v853
    %v871 = vunpack.c.l.s4 1983009808
    %v872 = vunpack.c.0.s8 %v871
    %v873 = vlaneseq
    %v874 = vshrl.u32 %v873, 7
    %v875 = vsub.s32 %v872, %v874
    %v876 = vrot.slane %v868, %v875
    %v878 = vunpack.c.l.s4 1983009808
    %v879 = vunpack.c.0.s8 %v878
    %v880 = vlaneseq
    %v881 = vshrl.u32 %v880, 7
    %v882 = vsub.s32 %v879, %v881
    %v883 = vrot.slane %v869, %v882
    %v884 = vcombine.low %v849, %v857
    %v885 = vcombine.high %v849, %v857
    %v887 = vunpack.c.l.s4 1983009808
    %v888 = vunpack.c.0.s8 %v887
    %v889 = vlaneseq
    %v890 = vshrl.u32 %v889, 7
    %v891 = vsub.s32 %v888, %v890
    %v892 = vrot.slane %v884, %v891
    %v894 = vunpack.c.l.s4 1983009808
    %v895 = vunpack.c.0.s8 %v894
    %v896 = vlaneseq
    %v897 = vshrl.u32 %v896, 7
    %v898 = vsub.s32 %v895, %v897
    %v899 = vrot.slane %v885, %v898
    %v900 = vcombine.low %v876, %v892
    %v901 = vcombine.high %v876, %v892
    %v903 = vunpack.c.l.s4 1934713408
    %v904 = vunpack.c.0.s8 %v903
    %v905 = vlaneseq
    %v906 = vshrl.u32 %v905, 7
    %v907 = vsub.s32 %v904, %v906
    %v908 = vrot.slane %v900, %v907
    %v910 = vunpack.c.l.s4 1934713408
    %v911 = vunpack.c.0.s8 %v910
    %v912 = vlaneseq
    %v913 = vshrl.u32 %v912, 7
    %v914 = vsub.s32 %v911, %v913
    %v915 = vrot.slane %v901, %v914
    %v916 = vcombine.low %v883, %v899
    %v917 = vcombine.high %v883, %v899
    %v919 = vunpack.c.l.s4 1934713408
    %v920 = vunpack.c.0.s8 %v919
    %v921 = vlaneseq
    %v922 = vshrl.u32 %v921, 7
    %v923 = vsub.s32 %v920, %v922
    %v924 = vrot.slane %v916, %v923
    %v926 = vunpack.c.l.s4 1934713408
    %v927 = vunpack.c.0.s8 %v926
    %v928 = vlaneseq
    %v929 = vshrl.u32 %v928, 7
    %v930 = vsub.s32 %v927, %v929
    %v931 = vrot.slane %v917, %v930
    %v932 = vcombine.high %v908, 0.0
    %v933 = vcombine.high %v915, 0.0
    %v934 = vcombine.high %v924, 0.0
    %v935 = vcombine.high %v931, 0.0
    %v936 = vcombine.low %v847, %v855
    %v937 = vcombine.high %v847, %v855
    %v939 = vunpack.c.l.s4 1983009808
    %v940 = vunpack.c.0.s8 %v939
    %v941 = vlaneseq
    %v942 = vshrl.u32 %v941, 7
    %v943 = vsub.s32 %v940, %v942
    %v944 = vrot.slane %v936, %v943
    %v946 = vunpack.c.l.s4 1983009808
    %v947 = vunpack.c.0.s8 %v946
    %v948 = vlaneseq
    %v949 = vshrl.u32 %v948, 7
    %v950 = vsub.s32 %v947, %v949
    %v951 = vrot.slane %v937, %v950
    %v952 = vcombine.low %v851, %v859
    %v953 = vcombine.high %v851, %v859
    %v955 = vunpack.c.l.s4 1983009808
    %v956 = vunpack.c.0.s8 %v955
    %v957 = vlaneseq
    %v958 = vshrl.u32 %v957, 7
    %v959 = vsub.s32 %v956, %v958
    %v960 = vrot.slane %v952, %v959
    %v962 = vunpack.c.l.s4 1983009808
    %v963 = vunpack.c.0.s8 %v962
    %v964 = vlaneseq
    %v965 = vshrl.u32 %v964, 7
    %v966 = vsub.s32 %v963, %v965
    %v967 = vrot.slane %v953, %v966
    %v968 = vcombine.low %v944, %v960
    %v969 = vcombine.high %v944, %v960
    %v971 = vunpack.c.l.s4 1934713408
    %v972 = vunpack.c.0.s8 %v971
    %v973 = vlaneseq
    %v974 = vshrl.u32 %v973, 7
    %v975 = vsub.s32 %v972, %v974
    %v976 = vrot.slane %v968, %v975
    %v978 = vunpack.c.l.s4 1934713408
    %v979 = vunpack.c.0.s8 %v978
    %v980 = vlaneseq
    %v981 = vshrl.u32 %v980, 7
    %v982 = vsub.s32 %v979, %v981
    %v983 = vrot.slane %v969, %v982
    %v984 = vcombine.low %v951, %v967
    %v985 = vcombine.high %v951, %v967
    %v987 = vunpack.c.l.s4 1934713408
    %v988 = vunpack.c.0.s8 %v987
    %v989 = vlaneseq
    %v990 = vshrl.u32 %v989, 7
    %v991 = vsub.s32 %v988, %v990
    %v992 = vrot.slane %v984, %v991
    %v994 = vunpack.c.l.s4 1934713408
    %v995 = vunpack.c.0.s8 %v994
    %v996 = vlaneseq
    %v997 = vshrl.u32 %v996, 7
    %v998 = vsub.s32 %v995, %v997
    %v999 = vrot.slane %v985, %v998
    %v1000 = vcombine.high %v976, 0.0
    %v1001 = vcombine.high %v983, 0.0
    %v1002 = vcombine.high %v992, 0.0
    %v1003 = vcombine.high %v999, 0.0
    %v1004 = vcombine.low %v908, %v915
    %v1006 = vunpack.c.l.s4 1983009808
    %v1007 = vunpack.c.0.s8 %v1006
    %v1008 = vlaneseq
    %v1009 = vshrl.u32 %v1008, 7
    %v1010 = vsub.s32 %v1007, %v1009
    %v1011 = vrot.slane %v1004, %v1010
    %v1012 = vcombine.low %v932, %v933
    %v1014 = vunpack.c.l.s4 1983009808
    %v1015 = vunpack.c.0.s8 %v1014
    %v1016 = vlaneseq
    %v1017 = vshrl.u32 %v1016, 7
    %v1018 = vsub.s32 %v1015, %v1017
    %v1019 = vrot.slane %v1012, %v1018
    %v1020 = vcombine.low %v924, %v931
    %v1022 = vunpack.c.l.s4 1983009808
    %v1023 = vunpack.c.0.s8 %v1022
    %v1024 = vlaneseq
    %v1025 = vshrl.u32 %v1024, 7
    %v1026 = vsub.s32 %v1023, %v1025
    %v1027 = vrot.slane %v1020, %v1026
    %v1028 = vcombine.low %v934, %v935
    %v1030 = vunpack.c.l.s4 1983009808
    %v1031 = vunpack.c.0.s8 %v1030
    %v1032 = vlaneseq
    %v1033 = vshrl.u32 %v1032, 7
    %v1034 = vsub.s32 %v1031, %v1033
    %v1035 = vrot.slane %v1028, %v1034
    %v1036 = vcombine.low %v1011, %v1019
    %v1037 = vcombine.high %v1011, %v1019
    %v1039 = vunpack.c.l.s4 1934713408
    %v1040 = vunpack.c.0.s8 %v1039
    %v1041 = vlaneseq
    %v1042 = vshrl.u32 %v1041, 7
    %v1043 = vsub.s32 %v1040, %v1042
    %v1044 = vrot.slane %v1036, %v1043
    %v1046 = vunpack.c.l.s4 1934713408
    %v1047 = vunpack.c.0.s8 %v1046
    %v1048 = vlaneseq
    %v1049 = vshrl.u32 %v1048, 7
    %v1050 = vsub.s32 %v1047, %v1049
    %v1051 = vrot.slane %v1037, %v1050
    %v1052 = vcombine.low %v1027, %v1035
    %v1053 = vcombine.high %v1027, %v1035
    %v1055 = vunpack.c.l.s4 1934713408
    %v1056 = vunpack.c.0.s8 %v1055
    %v1057 = vlaneseq
    %v1058 = vshrl.u32 %v1057, 7
    %v1059 = vsub.s32 %v1056, %v1058
    %v1060 = vrot.slane %v1052, %v1059
    %v1062 = vunpack.c.l.s4 1934713408
    %v1063 = vunpack.c.0.s8 %v1062
    %v1064 = vlaneseq
    %v1065 = vshrl.u32 %v1064, 7
    %v1066 = vsub.s32 %v1063, %v1065
    %v1067 = vrot.slane %v1053, %v1066
    %v1068 = vcombine.low %v1044, %v1060
    %v1069 = vcombine.high %v1044, %v1060
    %v1070 = vcombine.low %v1051, %v1067
    %v1071 = vcombine.high %v1051, %v1067
    %v1072 = vcombine.low %v976, %v983
    %v1074 = vunpack.c.l.s4 1983009808
    %v1075 = vunpack.c.0.s8 %v1074
    %v1076 = vlaneseq
    %v1077 = vshrl.u32 %v1076, 7
    %v1078 = vsub.s32 %v1075, %v1077
    %v1079 = vrot.slane %v1072, %v1078
    %v1080 = vcombine.low %v1000, %v1001
    %v1082 = vunpack.c.l.s4 1983009808
    %v1083 = vunpack.c.0.s8 %v1082
    %v1084 = vlaneseq
    %v1085 = vshrl.u32 %v1084, 7
    %v1086 = vsub.s32 %v1083, %v1085
    %v1087 = vrot.slane %v1080, %v1086
    %v1088 = vcombine.low %v992, %v999
    %v1090 = vunpack.c.l.s4 1983009808
    %v1091 = vunpack.c.0.s8 %v1090
    %v1092 = vlaneseq
    %v1093 = vshrl.u32 %v1092, 7
    %v1094 = vsub.s32 %v1091, %v1093
    %v1095 = vrot.slane %v1088, %v1094
    %v1096 = vcombine.low %v1002, %v1003
    %v1098 = vunpack.c.l.s4 1983009808
    %v1099 = vunpack.c.0.s8 %v1098
    %v1100 = vlaneseq
    %v1101 = vshrl.u32 %v1100, 7
    %v1102 = vsub.s32 %v1099, %v1101
    %v1103 = vrot.slane %v1096, %v1102
    %v1104 = vcombine.low %v1079, %v1087
    %v1105 = vcombine.high %v1079, %v1087
    %v1107 = vunpack.c.l.s4 1934713408
    %v1108 = vunpack.c.0.s8 %v1107
    %v1109 = vlaneseq
    %v1110 = vshrl.u32 %v1109, 7
    %v1111 = vsub.s32 %v1108, %v1110
    %v1112 = vrot.slane %v1104, %v1111
    %v1114 = vunpack.c.l.s4 1934713408
    %v1115 = vunpack.c.0.s8 %v1114
    %v1116 = vlaneseq
    %v1117 = vshrl.u32 %v1116, 7
    %v1118 = vsub.s32 %v1115, %v1117
    %v1119 = vrot.slane %v1105, %v1118
    %v1120 = vcombine.low %v1095, %v1103
    %v1121 = vcombine.high %v1095, %v1103
    %v1123 = vunpack.c.l.s4 1934713408
    %v1124 = vunpack.c.0.s8 %v1123
    %v1125 = vlaneseq
    %v1126 = vshrl.u32 %v1125, 7
    %v1127 = vsub.s32 %v1124, %v1126
    %v1128 = vrot.slane %v1120, %v1127
    %v1130 = vunpack.c.l.s4 1934713408
    %v1131 = vunpack.c.0.s8 %v1130
    %v1132 = vlaneseq
    %v1133 = vshrl.u32 %v1132, 7
    %v1134 = vsub.s32 %v1131, %v1133
    %v1135 = vrot.slane %v1121, %v1134
    %v1136 = vcombine.low %v1112, %v1128
    %v1137 = vcombine.high %v1112, %v1128
    %v1138 = vcombine.low %v1119, %v1135
    %v1139 = vcombine.high %v1119, %v1135
    %1140 = vrot.lane.b32.xlu0 %v528, 64
    %v1141 = vpop.permute.xlu0 %1140
    %1142 = vrot.lane.b32.xlu0 %v533, 64
    %v1143 = vpop.permute.xlu0 %1142
    %1144 = vrot.lane.b32.xlu0 %v833, 64
    %v1145 = vpop.permute.xlu0 %1144
    %1146 = vrot.lane.b32.xlu0 %v835, 64
    %v1147 = vpop.permute.xlu0 %1146
    %1148 = vrot.lane.b32.xlu0 %v837, 64
    %v1149 = vpop.permute.xlu0 %1148
    %1150 = vrot.lane.b32.xlu0 %v839, 64
    %v1151 = vpop.permute.xlu0 %1150
    %1152 = vrot.lane.b32.xlu0 %v841, 64
    %v1153 = vpop.permute.xlu0 %1152
    %1154 = vrot.lane.b32.xlu0 %v843, 64
    %v1155 = vpop.permute.xlu0 %1154
    %v1164 = vcombine.low %v1141, %v1149
    %v1165 = vcombine.high %v1141, %v1149
    %v1167 = vunpack.c.l.s4 1983009808
    %v1168 = vunpack.c.0.s8 %v1167
    %v1169 = vlaneseq
    %v1170 = vshrl.u32 %v1169, 7
    %v1171 = vsub.s32 %v1168, %v1170
    %v1172 = vrot.slane %v1164, %v1171
    %v1174 = vunpack.c.l.s4 1983009808
    %v1175 = vunpack.c.0.s8 %v1174
    %v1176 = vlaneseq
    %v1177 = vshrl.u32 %v1176, 7
    %v1178 = vsub.s32 %v1175, %v1177
    %v1179 = vrot.slane %v1165, %v1178
    %v1180 = vcombine.low %v1145, %v1153
    %v1181 = vcombine.high %v1145, %v1153
    %v1183 = vunpack.c.l.s4 1983009808
    %v1184 = vunpack.c.0.s8 %v1183
    %v1185 = vlaneseq
    %v1186 = vshrl.u32 %v1185, 7
    %v1187 = vsub.s32 %v1184, %v1186
    %v1188 = vrot.slane %v1180, %v1187
    %v1190 = vunpack.c.l.s4 1983009808
    %v1191 = vunpack.c.0.s8 %v1190
    %v1192 = vlaneseq
    %v1193 = vshrl.u32 %v1192, 7
    %v1194 = vsub.s32 %v1191, %v1193
    %v1195 = vrot.slane %v1181, %v1194
    %v1196 = vcombine.low %v1172, %v1188
    %v1197 = vcombine.high %v1172, %v1188
    %v1199 = vunpack.c.l.s4 1934713408
    %v1200 = vunpack.c.0.s8 %v1199
    %v1201 = vlaneseq
    %v1202 = vshrl.u32 %v1201, 7
    %v1203 = vsub.s32 %v1200, %v1202
    %v1204 = vrot.slane %v1196, %v1203
    %v1206 = vunpack.c.l.s4 1934713408
    %v1207 = vunpack.c.0.s8 %v1206
    %v1208 = vlaneseq
    %v1209 = vshrl.u32 %v1208, 7
    %v1210 = vsub.s32 %v1207, %v1209
    %v1211 = vrot.slane %v1197, %v1210
    %v1212 = vcombine.low %v1179, %v1195
    %v1213 = vcombine.high %v1179, %v1195
    %v1215 = vunpack.c.l.s4 1934713408
    %v1216 = vunpack.c.0.s8 %v1215
    %v1217 = vlaneseq
    %v1218 = vshrl.u32 %v1217, 7
    %v1219 = vsub.s32 %v1216, %v1218
    %v1220 = vrot.slane %v1212, %v1219
    %v1222 = vunpack.c.l.s4 1934713408
    %v1223 = vunpack.c.0.s8 %v1222
    %v1224 = vlaneseq
    %v1225 = vshrl.u32 %v1224, 7
    %v1226 = vsub.s32 %v1223, %v1225
    %v1227 = vrot.slane %v1213, %v1226
    %v1228 = vcombine.high %v1204, 0.0
    %v1229 = vcombine.high %v1211, 0.0
    %v1230 = vcombine.high %v1220, 0.0
    %v1231 = vcombine.high %v1227, 0.0
    %v1232 = vcombine.low %v1143, %v1151
    %v1233 = vcombine.high %v1143, %v1151
    %v1235 = vunpack.c.l.s4 1983009808
    %v1236 = vunpack.c.0.s8 %v1235
    %v1237 = vlaneseq
    %v1238 = vshrl.u32 %v1237, 7
    %v1239 = vsub.s32 %v1236, %v1238
    %v1240 = vrot.slane %v1232, %v1239
    %v1242 = vunpack.c.l.s4 1983009808
    %v1243 = vunpack.c.0.s8 %v1242
    %v1244 = vlaneseq
    %v1245 = vshrl.u32 %v1244, 7
    %v1246 = vsub.s32 %v1243, %v1245
    %v1247 = vrot.slane %v1233, %v1246
    %v1248 = vcombine.low %v1147, %v1155
    %v1249 = vcombine.high %v1147, %v1155
    %v1251 = vunpack.c.l.s4 1983009808
    %v1252 = vunpack.c.0.s8 %v1251
    %v1253 = vlaneseq
    %v1254 = vshrl.u32 %v1253, 7
    %v1255 = vsub.s32 %v1252, %v1254
    %v1256 = vrot.slane %v1248, %v1255
    %v1258 = vunpack.c.l.s4 1983009808
    %v1259 = vunpack.c.0.s8 %v1258
    %v1260 = vlaneseq
    %v1261 = vshrl.u32 %v1260, 7
    %v1262 = vsub.s32 %v1259, %v1261
    %v1263 = vrot.slane %v1249, %v1262
    %v1264 = vcombine.low %v1240, %v1256
    %v1265 = vcombine.high %v1240, %v1256
    %v1267 = vunpack.c.l.s4 1934713408
    %v1268 = vunpack.c.0.s8 %v1267
    %v1269 = vlaneseq
    %v1270 = vshrl.u32 %v1269, 7
    %v1271 = vsub.s32 %v1268, %v1270
    %v1272 = vrot.slane %v1264, %v1271
    %v1274 = vunpack.c.l.s4 1934713408
    %v1275 = vunpack.c.0.s8 %v1274
    %v1276 = vlaneseq
    %v1277 = vshrl.u32 %v1276, 7
    %v1278 = vsub.s32 %v1275, %v1277
    %v1279 = vrot.slane %v1265, %v1278
    %v1280 = vcombine.low %v1247, %v1263
    %v1281 = vcombine.high %v1247, %v1263
    %v1283 = vunpack.c.l.s4 1934713408
    %v1284 = vunpack.c.0.s8 %v1283
    %v1285 = vlaneseq
    %v1286 = vshrl.u32 %v1285, 7
    %v1287 = vsub.s32 %v1284, %v1286
    %v1288 = vrot.slane %v1280, %v1287
    %v1290 = vunpack.c.l.s4 1934713408
    %v1291 = vunpack.c.0.s8 %v1290
    %v1292 = vlaneseq
    %v1293 = vshrl.u32 %v1292, 7
    %v1294 = vsub.s32 %v1291, %v1293
    %v1295 = vrot.slane %v1281, %v1294
    %v1296 = vcombine.high %v1272, 0.0
    %v1297 = vcombine.high %v1279, 0.0
    %v1298 = vcombine.high %v1288, 0.0
    %v1299 = vcombine.high %v1295, 0.0
    %v1300 = vcombine.low %v1204, %v1211
    %v1302 = vunpack.c.l.s4 1983009808
    %v1303 = vunpack.c.0.s8 %v1302
    %v1304 = vlaneseq
    %v1305 = vshrl.u32 %v1304, 7
    %v1306 = vsub.s32 %v1303, %v1305
    %v1307 = vrot.slane %v1300, %v1306
    %v1308 = vcombine.low %v1228, %v1229
    %v1310 = vunpack.c.l.s4 1983009808
    %v1311 = vunpack.c.0.s8 %v1310
    %v1312 = vlaneseq
    %v1313 = vshrl.u32 %v1312, 7
    %v1314 = vsub.s32 %v1311, %v1313
    %v1315 = vrot.slane %v1308, %v1314
    %v1316 = vcombine.low %v1220, %v1227
    %v1318 = vunpack.c.l.s4 1983009808
    %v1319 = vunpack.c.0.s8 %v1318
    %v1320 = vlaneseq
    %v1321 = vshrl.u32 %v1320, 7
    %v1322 = vsub.s32 %v1319, %v1321
    %v1323 = vrot.slane %v1316, %v1322
    %v1324 = vcombine.low %v1230, %v1231
    %v1326 = vunpack.c.l.s4 1983009808
    %v1327 = vunpack.c.0.s8 %v1326
    %v1328 = vlaneseq
    %v1329 = vshrl.u32 %v1328, 7
    %v1330 = vsub.s32 %v1327, %v1329
    %v1331 = vrot.slane %v1324, %v1330
    %v1332 = vcombine.low %v1307, %v1315
    %v1333 = vcombine.high %v1307, %v1315
    %v1335 = vunpack.c.l.s4 1934713408
    %v1336 = vunpack.c.0.s8 %v1335
    %v1337 = vlaneseq
    %v1338 = vshrl.u32 %v1337, 7
    %v1339 = vsub.s32 %v1336, %v1338
    %v1340 = vrot.slane %v1332, %v1339
    %v1342 = vunpack.c.l.s4 1934713408
    %v1343 = vunpack.c.0.s8 %v1342
    %v1344 = vlaneseq
    %v1345 = vshrl.u32 %v1344, 7
    %v1346 = vsub.s32 %v1343, %v1345
    %v1347 = vrot.slane %v1333, %v1346
    %v1348 = vcombine.low %v1323, %v1331
    %v1349 = vcombine.high %v1323, %v1331
    %v1351 = vunpack.c.l.s4 1934713408
    %v1352 = vunpack.c.0.s8 %v1351
    %v1353 = vlaneseq
    %v1354 = vshrl.u32 %v1353, 7
    %v1355 = vsub.s32 %v1352, %v1354
    %v1356 = vrot.slane %v1348, %v1355
    %v1358 = vunpack.c.l.s4 1934713408
    %v1359 = vunpack.c.0.s8 %v1358
    %v1360 = vlaneseq
    %v1361 = vshrl.u32 %v1360, 7
    %v1362 = vsub.s32 %v1359, %v1361
    %v1363 = vrot.slane %v1349, %v1362
    %v1364 = vcombine.low %v1340, %v1356
    %v1365 = vcombine.high %v1340, %v1356
    %v1366 = vcombine.low %v1347, %v1363
    %v1367 = vcombine.high %v1347, %v1363
    %v1368 = vcombine.low %v1272, %v1279
    %v1370 = vunpack.c.l.s4 1983009808
    %v1371 = vunpack.c.0.s8 %v1370
    %v1372 = vlaneseq
    %v1373 = vshrl.u32 %v1372, 7
    %v1374 = vsub.s32 %v1371, %v1373
    %v1375 = vrot.slane %v1368, %v1374
    %v1376 = vcombine.low %v1296, %v1297
    %v1378 = vunpack.c.l.s4 1983009808
    %v1379 = vunpack.c.0.s8 %v1378
    %v1380 = vlaneseq
    %v1381 = vshrl.u32 %v1380, 7
    %v1382 = vsub.s32 %v1379, %v1381
    %v1383 = vrot.slane %v1376, %v1382
    %v1384 = vcombine.low %v1288, %v1295
    %v1386 = vunpack.c.l.s4 1983009808
    %v1387 = vunpack.c.0.s8 %v1386
    %v1388 = vlaneseq
    %v1389 = vshrl.u32 %v1388, 7
    %v1390 = vsub.s32 %v1387, %v1389
    %v1391 = vrot.slane %v1384, %v1390
    %v1392 = vcombine.low %v1298, %v1299
    %v1394 = vunpack.c.l.s4 1983009808
    %v1395 = vunpack.c.0.s8 %v1394
    %v1396 = vlaneseq
    %v1397 = vshrl.u32 %v1396, 7
    %v1398 = vsub.s32 %v1395, %v1397
    %v1399 = vrot.slane %v1392, %v1398
    %v1400 = vcombine.low %v1375, %v1383
    %v1401 = vcombine.high %v1375, %v1383
    %v1403 = vunpack.c.l.s4 1934713408
    %v1404 = vunpack.c.0.s8 %v1403
    %v1405 = vlaneseq
    %v1406 = vshrl.u32 %v1405, 7
    %v1407 = vsub.s32 %v1404, %v1406
    %v1408 = vrot.slane %v1400, %v1407
    %v1410 = vunpack.c.l.s4 1934713408
    %v1411 = vunpack.c.0.s8 %v1410
    %v1412 = vlaneseq
    %v1413 = vshrl.u32 %v1412, 7
    %v1414 = vsub.s32 %v1411, %v1413
    %v1415 = vrot.slane %v1401, %v1414
    %v1416 = vcombine.low %v1391, %v1399
    %v1417 = vcombine.high %v1391, %v1399
    %v1419 = vunpack.c.l.s4 1934713408
    %v1420 = vunpack.c.0.s8 %v1419
    %v1421 = vlaneseq
    %v1422 = vshrl.u32 %v1421, 7
    %v1423 = vsub.s32 %v1420, %v1422
    %v1424 = vrot.slane %v1416, %v1423
    %v1426 = vunpack.c.l.s4 1934713408
    %v1427 = vunpack.c.0.s8 %v1426
    %v1428 = vlaneseq
    %v1429 = vshrl.u32 %v1428, 7
    %v1430 = vsub.s32 %v1427, %v1429
    %v1431 = vrot.slane %v1417, %v1430
    %v1432 = vcombine.low %v1408, %v1424
    %v1433 = vcombine.high %v1408, %v1424
    %v1434 = vcombine.low %v1415, %v1431
    %v1435 = vcombine.high %v1415, %v1431
    %v1438 = vunpack.c.l.s4 1966171168
    %v1439 = vunpack.c.0.s8 %v1438
    %v1440 = vlaneseq
    %v1441 = vshrl.u32 %v1440, 7
    %v1442 = vsub.s32 %v1439, %v1441
    %v1443 = vrot.slane %v434, %v1442
    %v1444 = vcombine.high %v1443, %v1443
    %v1446 = vunpack.c.l.s4 1966171168
    %v1447 = vunpack.c.0.s8 %v1446
    %v1448 = vlaneseq
    %v1449 = vshrl.u32 %v1448, 7
    %v1450 = vsub.s32 %v1447, %v1449
    %v1451 = vrot.slane %v1443, %v1450
    %v1453 = vunpack.c.l.s4 1966171168
    %v1454 = vunpack.c.0.s8 %v1453
    %v1455 = vlaneseq
    %v1456 = vshrl.u32 %v1455, 7
    %v1457 = vsub.s32 %v1454, %v1456
    %v1458 = vrot.slane %v1444, %v1457
    %v1459 = vlaneseq
    %v1460 = vshrl.u32 %v1459, 7
    %v1461 = vsub.s32 0, %v1460
    %v1462 = vrot.slane %v1451, %v1461
    %v1463 = vlaneseq
    %v1464 = vshrl.u32 %v1463, 7
    %v1465 = vsub.s32 0, %v1464
    %v1466 = vrot.slane %v1458, %v1465
    %vm1469 = vcmask 64512
    %v1471 = vsel %vm1469, %v758, 0
    %v1474 = vsel %vm1469, %v1068, 0
    %1476 = vmatprep.subr.mxu0 0.0
    %1477 = vmatpush1.xpose.msra.mxu0 0.0
    %1478 = vmatprep.subr.mxu0 0.0
    %1479 = vmatpush1.xpose.msra.mxu0 0.0
    %1480 = vmatprep.subr.mxu0 0.0
    %1481 = vmatpush1.xpose.msra.mxu0 0.0
    %1482 = vmatprep.subr.mxu0 0.0
    %1483 = vmatpush1.xpose.msra.mxu0 0.0
    %1484 = vmatprep.subr.mxu0 0.0
    %1485 = vmatpush1.xpose.msra.mxu0 0.0
    %1486 = vmatprep.subr.mxu0 0.0
    %1487 = vmatpush1.xpose.msra.mxu0 0.0
    %1488 = vmatprep.subr.mxu0 0.0
    %1489 = vmatpush1.xpose.msra.mxu0 0.0
    %1490 = vmatprep.subr.mxu0 0.0
    %1491 = vmatpush1.xpose.msra.mxu0 0.0
    %1492 = vmatprep.subr.mxu0 0.0
    %1493 = vmatpush1.xpose.msra.mxu0 0.0
    %1494 = vmatprep.subr.mxu0 0.0
    %1495 = vmatpush1.xpose.msra.mxu0 0.0
    %1496 = vmatprep.subr.mxu0 0.0
    %1497 = vmatpush1.xpose.msra.mxu0 0.0
    %1498 = vmatprep.subr.mxu0 0.0
    %1499 = vmatpush1.xpose.msra.mxu0 0.0
    %1500 = vmatprep.subr.mxu0 0.0
    %1501 = vmatpush1.xpose.msra.mxu0 0.0
    %1502 = vmatprep.subr.mxu0 0.0
    %1503 = vmatpush1.xpose.msra.mxu0 0.0
    %1504 = vmatprep.subr.mxu0 0.0
    %1505 = vmatpush1.xpose.msra.mxu0 0.0
    %1506 = vmatprep.subr.mxu0 0.0
    %1507 = vmatpush1.xpose.msra.mxu0 %v1474
    %1508 = vmatprep.subr.mxu0 0.0
    %1509 = vmatpush2.xpose.msra.mxu0 0.0
    %1510 = vmatprep.subr.mxu0 0.0
    %1511 = vmatpush2.xpose.msra.mxu0 0.0
    %1512 = vmatprep.subr.mxu0 0.0
    %1513 = vmatpush2.xpose.msra.mxu0 0.0
    %1514 = vmatprep.subr.mxu0 0.0
    %1515 = vmatpush2.xpose.msra.mxu0 0.0
    %1516 = vmatprep.subr.mxu0 0.0
    %1517 = vmatpush2.xpose.msra.mxu0 0.0
    %1518 = vmatprep.subr.mxu0 0.0
    %1519 = vmatpush2.xpose.msra.mxu0 0.0
    %1520 = vmatprep.subr.mxu0 0.0
    %1521 = vmatpush2.xpose.msra.mxu0 0.0
    %1522 = vmatprep.subr.mxu0 0.0
    %1523 = vmatpush2.xpose.msra.mxu0 0.0
    %1524 = vmatprep.subr.mxu0 0.0
    %1525 = vmatpush2.xpose.msra.mxu0 0.0
    %1526 = vmatprep.subr.mxu0 0.0
    %1527 = vmatpush2.xpose.msra.mxu0 0.0
    %1528 = vmatprep.subr.mxu0 0.0
    %1529 = vmatpush2.xpose.msra.mxu0 0.0
    %1530 = vmatprep.subr.mxu0 0.0
    %1531 = vmatpush2.xpose.msra.mxu0 0.0
    %1532 = vmatprep.subr.mxu0 0.0
    %1533 = vmatpush2.xpose.msra.mxu0 0.0
    %1534 = vmatprep.subr.mxu0 0.0
    %1535 = vmatpush2.xpose.msra.mxu0 0.0
    %1536 = vmatprep.subr.mxu0 0.0
    %1537 = vmatpush2.xpose.msra.mxu0 0.0
    %1538 = vmatprep.subr.mxu0 0.0
    %1539 = vmatpush2.xpose.msra.mxu0 0.0
    %1540 = vmatprep.mubr.f32.mxu0 0.0
    %1541 = vmatmul.mubr.f32.gmra.mxu0 %v1471
    %v1542 = vpop.f32.mrf.mxu0
    %v1543 = vadd.f32 %v1462, %v1542
    %v1544 = vpop.f32.mrf.mxu0
    %1545 = vdwg.mxu0
    %v1547 = vsel %vm1469, %v759, 0
    %v1550 = vsel %vm1469, %v1069, 0
    %1552 = vmatprep.subr.mxu0 0.0
    %1553 = vmatpush1.xpose.msra.mxu0 0.0
    %1554 = vmatprep.subr.mxu0 0.0
    %1555 = vmatpush1.xpose.msra.mxu0 0.0
    %1556 = vmatprep.subr.mxu0 0.0
    %1557 = vmatpush1.xpose.msra.mxu0 0.0
    %1558 = vmatprep.subr.mxu0 0.0
    %1559 = vmatpush1.xpose.msra.mxu0 0.0
    %1560 = vmatprep.subr.mxu0 0.0
    %1561 = vmatpush1.xpose.msra.mxu0 0.0
    %1562 = vmatprep.subr.mxu0 0.0
    %1563 = vmatpush1.xpose.msra.mxu0 0.0
    %1564 = vmatprep.subr.mxu0 0.0
    %1565 = vmatpush1.xpose.msra.mxu0 0.0
    %1566 = vmatprep.subr.mxu0 0.0
    %1567 = vmatpush1.xpose.msra.mxu0 0.0
    %1568 = vmatprep.subr.mxu0 0.0
    %1569 = vmatpush1.xpose.msra.mxu0 0.0
    %1570 = vmatprep.subr.mxu0 0.0
    %1571 = vmatpush1.xpose.msra.mxu0 0.0
    %1572 = vmatprep.subr.mxu0 0.0
    %1573 = vmatpush1.xpose.msra.mxu0 0.0
    %1574 = vmatprep.subr.mxu0 0.0
    %1575 = vmatpush1.xpose.msra.mxu0 0.0
    %1576 = vmatprep.subr.mxu0 0.0
    %1577 = vmatpush1.xpose.msra.mxu0 0.0
    %1578 = vmatprep.subr.mxu0 0.0
    %1579 = vmatpush1.xpose.msra.mxu0 0.0
    %1580 = vmatprep.subr.mxu0 0.0
    %1581 = vmatpush1.xpose.msra.mxu0 0.0
    %1582 = vmatprep.subr.mxu0 0.0
    %1583 = vmatpush1.xpose.msra.mxu0 %v1550
    %1584 = vmatprep.subr.mxu0 0.0
    %1585 = vmatpush2.xpose.msra.mxu0 0.0
    %1586 = vmatprep.subr.mxu0 0.0
    %1587 = vmatpush2.xpose.msra.mxu0 0.0
    %1588 = vmatprep.subr.mxu0 0.0
    %1589 = vmatpush2.xpose.msra.mxu0 0.0
    %1590 = vmatprep.subr.mxu0 0.0
    %1591 = vmatpush2.xpose.msra.mxu0 0.0
    %1592 = vmatprep.subr.mxu0 0.0
    %1593 = vmatpush2.xpose.msra.mxu0 0.0
    %1594 = vmatprep.subr.mxu0 0.0
    %1595 = vmatpush2.xpose.msra.mxu0 0.0
    %1596 = vmatprep.subr.mxu0 0.0
    %1597 = vmatpush2.xpose.msra.mxu0 0.0
    %1598 = vmatprep.subr.mxu0 0.0
    %1599 = vmatpush2.xpose.msra.mxu0 0.0
    %1600 = vmatprep.subr.mxu0 0.0
    %1601 = vmatpush2.xpose.msra.mxu0 0.0
    %1602 = vmatprep.subr.mxu0 0.0
    %1603 = vmatpush2.xpose.msra.mxu0 0.0
    %1604 = vmatprep.subr.mxu0 0.0
    %1605 = vmatpush2.xpose.msra.mxu0 0.0
    %1606 = vmatprep.subr.mxu0 0.0
    %1607 = vmatpush2.xpose.msra.mxu0 0.0
    %1608 = vmatprep.subr.mxu0 0.0
    %1609 = vmatpush2.xpose.msra.mxu0 0.0
    %1610 = vmatprep.subr.mxu0 0.0
    %1611 = vmatpush2.xpose.msra.mxu0 0.0
    %1612 = vmatprep.subr.mxu0 0.0
    %1613 = vmatpush2.xpose.msra.mxu0 0.0
    %1614 = vmatprep.subr.mxu0 0.0
    %1615 = vmatpush2.xpose.msra.mxu0 0.0
    %1616 = vmatprep.mubr.f32.mxu0 0.0
    %1617 = vmatmul.mubr.f32.gmra.mxu0 %v1547
    %v1618 = vpop.f32.mrf.mxu0
    %v1619 = vadd.f32 %v1462, %v1618
    %v1620 = vpop.f32.mrf.mxu0
    %1621 = vdwg.mxu0
    %v1623 = vsel %vm1469, %v760, 0
    %v1626 = vsel %vm1469, %v1070, 0
    %1628 = vmatprep.subr.mxu0 0.0
    %1629 = vmatpush1.xpose.msra.mxu0 0.0
    %1630 = vmatprep.subr.mxu0 0.0
    %1631 = vmatpush1.xpose.msra.mxu0 0.0
    %1632 = vmatprep.subr.mxu0 0.0
    %1633 = vmatpush1.xpose.msra.mxu0 0.0
    %1634 = vmatprep.subr.mxu0 0.0
    %1635 = vmatpush1.xpose.msra.mxu0 0.0
    %1636 = vmatprep.subr.mxu0 0.0
    %1637 = vmatpush1.xpose.msra.mxu0 0.0
    %1638 = vmatprep.subr.mxu0 0.0
    %1639 = vmatpush1.xpose.msra.mxu0 0.0
    %1640 = vmatprep.subr.mxu0 0.0
    %1641 = vmatpush1.xpose.msra.mxu0 0.0
    %1642 = vmatprep.subr.mxu0 0.0
    %1643 = vmatpush1.xpose.msra.mxu0 0.0
    %1644 = vmatprep.subr.mxu0 0.0
    %1645 = vmatpush1.xpose.msra.mxu0 0.0
    %1646 = vmatprep.subr.mxu0 0.0
    %1647 = vmatpush1.xpose.msra.mxu0 0.0
    %1648 = vmatprep.subr.mxu0 0.0
    %1649 = vmatpush1.xpose.msra.mxu0 0.0
    %1650 = vmatprep.subr.mxu0 0.0
    %1651 = vmatpush1.xpose.msra.mxu0 0.0
    %1652 = vmatprep.subr.mxu0 0.0
    %1653 = vmatpush1.xpose.msra.mxu0 0.0
    %1654 = vmatprep.subr.mxu0 0.0
    %1655 = vmatpush1.xpose.msra.mxu0 0.0
    %1656 = vmatprep.subr.mxu0 0.0
    %1657 = vmatpush1.xpose.msra.mxu0 0.0
    %1658 = vmatprep.subr.mxu0 0.0
    %1659 = vmatpush1.xpose.msra.mxu0 %v1626
    %1660 = vmatprep.subr.mxu0 0.0
    %1661 = vmatpush2.xpose.msra.mxu0 0.0
    %1662 = vmatprep.subr.mxu0 0.0
    %1663 = vmatpush2.xpose.msra.mxu0 0.0
    %1664 = vmatprep.subr.mxu0 0.0
    %1665 = vmatpush2.xpose.msra.mxu0 0.0
    %1666 = vmatprep.subr.mxu0 0.0
    %1667 = vmatpush2.xpose.msra.mxu0 0.0
    %1668 = vmatprep.subr.mxu0 0.0
    %1669 = vmatpush2.xpose.msra.mxu0 0.0
    %1670 = vmatprep.subr.mxu0 0.0
    %1671 = vmatpush2.xpose.msra.mxu0 0.0
    %1672 = vmatprep.subr.mxu0 0.0
    %1673 = vmatpush2.xpose.msra.mxu0 0.0
    %1674 = vmatprep.subr.mxu0 0.0
    %1675 = vmatpush2.xpose.msra.mxu0 0.0
    %1676 = vmatprep.subr.mxu0 0.0
    %1677 = vmatpush2.xpose.msra.mxu0 0.0
    %1678 = vmatprep.subr.mxu0 0.0
    %1679 = vmatpush2.xpose.msra.mxu0 0.0
    %1680 = vmatprep.subr.mxu0 0.0
    %1681 = vmatpush2.xpose.msra.mxu0 0.0
    %1682 = vmatprep.subr.mxu0 0.0
    %1683 = vmatpush2.xpose.msra.mxu0 0.0
    %1684 = vmatprep.subr.mxu0 0.0
    %1685 = vmatpush2.xpose.msra.mxu0 0.0
    %1686 = vmatprep.subr.mxu0 0.0
    %1687 = vmatpush2.xpose.msra.mxu0 0.0
    %1688 = vmatprep.subr.mxu0 0.0
    %1689 = vmatpush2.xpose.msra.mxu0 0.0
    %1690 = vmatprep.subr.mxu0 0.0
    %1691 = vmatpush2.xpose.msra.mxu0 0.0
    %1692 = vmatprep.mubr.f32.mxu0 0.0
    %1693 = vmatmul.mubr.f32.gmra.mxu0 %v1623
    %v1694 = vpop.f32.mrf.mxu0
    %v1695 = vadd.f32 %v1462, %v1694
    %v1696 = vpop.f32.mrf.mxu0
    %1697 = vdwg.mxu0
    %v1699 = vsel %vm1469, %v761, 0
    %v1702 = vsel %vm1469, %v1071, 0
    %1704 = vmatprep.subr.mxu0 0.0
    %1705 = vmatpush1.xpose.msra.mxu0 0.0
    %1706 = vmatprep.subr.mxu0 0.0
    %1707 = vmatpush1.xpose.msra.mxu0 0.0
    %1708 = vmatprep.subr.mxu0 0.0
    %1709 = vmatpush1.xpose.msra.mxu0 0.0
    %1710 = vmatprep.subr.mxu0 0.0
    %1711 = vmatpush1.xpose.msra.mxu0 0.0
    %1712 = vmatprep.subr.mxu0 0.0
    %1713 = vmatpush1.xpose.msra.mxu0 0.0
    %1714 = vmatprep.subr.mxu0 0.0
    %1715 = vmatpush1.xpose.msra.mxu0 0.0
    %1716 = vmatprep.subr.mxu0 0.0
    %1717 = vmatpush1.xpose.msra.mxu0 0.0
    %1718 = vmatprep.subr.mxu0 0.0
    %1719 = vmatpush1.xpose.msra.mxu0 0.0
    %1720 = vmatprep.subr.mxu0 0.0
    %1721 = vmatpush1.xpose.msra.mxu0 0.0
    %1722 = vmatprep.subr.mxu0 0.0
    %1723 = vmatpush1.xpose.msra.mxu0 0.0
    %1724 = vmatprep.subr.mxu0 0.0
    %1725 = vmatpush1.xpose.msra.mxu0 0.0
    %1726 = vmatprep.subr.mxu0 0.0
    %1727 = vmatpush1.xpose.msra.mxu0 0.0
    %1728 = vmatprep.subr.mxu0 0.0
    %1729 = vmatpush1.xpose.msra.mxu0 0.0
    %1730 = vmatprep.subr.mxu0 0.0
    %1731 = vmatpush1.xpose.msra.mxu0 0.0
    %1732 = vmatprep.subr.mxu0 0.0
    %1733 = vmatpush1.xpose.msra.mxu0 0.0
    %1734 = vmatprep.subr.mxu0 0.0
    %1735 = vmatpush1.xpose.msra.mxu0 %v1702
    %1736 = vmatprep.subr.mxu0 0.0
    %1737 = vmatpush2.xpose.msra.mxu0 0.0
    %1738 = vmatprep.subr.mxu0 0.0
    %1739 = vmatpush2.xpose.msra.mxu0 0.0
    %1740 = vmatprep.subr.mxu0 0.0
    %1741 = vmatpush2.xpose.msra.mxu0 0.0
    %1742 = vmatprep.subr.mxu0 0.0
    %1743 = vmatpush2.xpose.msra.mxu0 0.0
    %1744 = vmatprep.subr.mxu0 0.0
    %1745 = vmatpush2.xpose.msra.mxu0 0.0
    %1746 = vmatprep.subr.mxu0 0.0
    %1747 = vmatpush2.xpose.msra.mxu0 0.0
    %1748 = vmatprep.subr.mxu0 0.0
    %1749 = vmatpush2.xpose.msra.mxu0 0.0
    %1750 = vmatprep.subr.mxu0 0.0
    %1751 = vmatpush2.xpose.msra.mxu0 0.0
    %1752 = vmatprep.subr.mxu0 0.0
    %1753 = vmatpush2.xpose.msra.mxu0 0.0
    %1754 = vmatprep.subr.mxu0 0.0
    %1755 = vmatpush2.xpose.msra.mxu0 0.0
    %1756 = vmatprep.subr.mxu0 0.0
    %1757 = vmatpush2.xpose.msra.mxu0 0.0
    %1758 = vmatprep.subr.mxu0 0.0
    %1759 = vmatpush2.xpose.msra.mxu0 0.0
    %1760 = vmatprep.subr.mxu0 0.0
    %1761 = vmatpush2.xpose.msra.mxu0 0.0
    %1762 = vmatprep.subr.mxu0 0.0
    %1763 = vmatpush2.xpose.msra.mxu0 0.0
    %1764 = vmatprep.subr.mxu0 0.0
    %1765 = vmatpush2.xpose.msra.mxu0 0.0
    %1766 = vmatprep.subr.mxu0 0.0
    %1767 = vmatpush2.xpose.msra.mxu0 0.0
    %1768 = vmatprep.mubr.f32.mxu0 0.0
    %1769 = vmatmul.mubr.f32.gmra.mxu0 %v1699
    %v1770 = vpop.f32.mrf.mxu0
    %v1771 = vadd.f32 %v1462, %v1770
    %v1772 = vpop.f32.mrf.mxu0
    %1773 = vdwg.mxu0
    %v1775 = vsel %vm1469, %v826, 0
    %v1778 = vsel %vm1469, %v1136, 0
    %1780 = vmatprep.subr.mxu0 0.0
    %1781 = vmatpush1.xpose.msra.mxu0 0.0
    %1782 = vmatprep.subr.mxu0 0.0
    %1783 = vmatpush1.xpose.msra.mxu0 0.0
    %1784 = vmatprep.subr.mxu0 0.0
    %1785 = vmatpush1.xpose.msra.mxu0 0.0
    %1786 = vmatprep.subr.mxu0 0.0
    %1787 = vmatpush1.xpose.msra.mxu0 0.0
    %1788 = vmatprep.subr.mxu0 0.0
    %1789 = vmatpush1.xpose.msra.mxu0 0.0
    %1790 = vmatprep.subr.mxu0 0.0
    %1791 = vmatpush1.xpose.msra.mxu0 0.0
    %1792 = vmatprep.subr.mxu0 0.0
    %1793 = vmatpush1.xpose.msra.mxu0 0.0
    %1794 = vmatprep.subr.mxu0 0.0
    %1795 = vmatpush1.xpose.msra.mxu0 0.0
    %1796 = vmatprep.subr.mxu0 0.0
    %1797 = vmatpush1.xpose.msra.mxu0 0.0
    %1798 = vmatprep.subr.mxu0 0.0
    %1799 = vmatpush1.xpose.msra.mxu0 0.0
    %1800 = vmatprep.subr.mxu0 0.0
    %1801 = vmatpush1.xpose.msra.mxu0 0.0
    %1802 = vmatprep.subr.mxu0 0.0
    %1803 = vmatpush1.xpose.msra.mxu0 0.0
    %1804 = vmatprep.subr.mxu0 0.0
    %1805 = vmatpush1.xpose.msra.mxu0 0.0
    %1806 = vmatprep.subr.mxu0 0.0
    %1807 = vmatpush1.xpose.msra.mxu0 0.0
    %1808 = vmatprep.subr.mxu0 0.0
    %1809 = vmatpush1.xpose.msra.mxu0 0.0
    %1810 = vmatprep.subr.mxu0 0.0
    %1811 = vmatpush1.xpose.msra.mxu0 %v1778
    %1812 = vmatprep.subr.mxu0 0.0
    %1813 = vmatpush2.xpose.msra.mxu0 0.0
    %1814 = vmatprep.subr.mxu0 0.0
    %1815 = vmatpush2.xpose.msra.mxu0 0.0
    %1816 = vmatprep.subr.mxu0 0.0
    %1817 = vmatpush2.xpose.msra.mxu0 0.0
    %1818 = vmatprep.subr.mxu0 0.0
    %1819 = vmatpush2.xpose.msra.mxu0 0.0
    %1820 = vmatprep.subr.mxu0 0.0
    %1821 = vmatpush2.xpose.msra.mxu0 0.0
    %1822 = vmatprep.subr.mxu0 0.0
    %1823 = vmatpush2.xpose.msra.mxu0 0.0
    %1824 = vmatprep.subr.mxu0 0.0
    %1825 = vmatpush2.xpose.msra.mxu0 0.0
    %1826 = vmatprep.subr.mxu0 0.0
    %1827 = vmatpush2.xpose.msra.mxu0 0.0
    %1828 = vmatprep.subr.mxu0 0.0
    %1829 = vmatpush2.xpose.msra.mxu0 0.0
    %1830 = vmatprep.subr.mxu0 0.0
    %1831 = vmatpush2.xpose.msra.mxu0 0.0
    %1832 = vmatprep.subr.mxu0 0.0
    %1833 = vmatpush2.xpose.msra.mxu0 0.0
    %1834 = vmatprep.subr.mxu0 0.0
    %1835 = vmatpush2.xpose.msra.mxu0 0.0
    %1836 = vmatprep.subr.mxu0 0.0
    %1837 = vmatpush2.xpose.msra.mxu0 0.0
    %1838 = vmatprep.subr.mxu0 0.0
    %1839 = vmatpush2.xpose.msra.mxu0 0.0
    %1840 = vmatprep.subr.mxu0 0.0
    %1841 = vmatpush2.xpose.msra.mxu0 0.0
    %1842 = vmatprep.subr.mxu0 0.0
    %1843 = vmatpush2.xpose.msra.mxu0 0.0
    %1844 = vmatprep.mubr.f32.mxu0 0.0
    %1845 = vmatmul.mubr.f32.gmra.mxu0 %v1775
    %v1846 = vpop.f32.mrf.mxu0
    %v1847 = vadd.f32 %v1466, %v1846
    %v1848 = vpop.f32.mrf.mxu0
    %1849 = vdwg.mxu0
    %v1851 = vsel %vm1469, %v827, 0
    %v1854 = vsel %vm1469, %v1137, 0
    %1856 = vmatprep.subr.mxu0 0.0
    %1857 = vmatpush1.xpose.msra.mxu0 0.0
    %1858 = vmatprep.subr.mxu0 0.0
    %1859 = vmatpush1.xpose.msra.mxu0 0.0
    %1860 = vmatprep.subr.mxu0 0.0
    %1861 = vmatpush1.xpose.msra.mxu0 0.0
    %1862 = vmatprep.subr.mxu0 0.0
    %1863 = vmatpush1.xpose.msra.mxu0 0.0
    %1864 = vmatprep.subr.mxu0 0.0
    %1865 = vmatpush1.xpose.msra.mxu0 0.0
    %1866 = vmatprep.subr.mxu0 0.0
    %1867 = vmatpush1.xpose.msra.mxu0 0.0
    %1868 = vmatprep.subr.mxu0 0.0
    %1869 = vmatpush1.xpose.msra.mxu0 0.0
    %1870 = vmatprep.subr.mxu0 0.0
    %1871 = vmatpush1.xpose.msra.mxu0 0.0
    %1872 = vmatprep.subr.mxu0 0.0
    %1873 = vmatpush1.xpose.msra.mxu0 0.0
    %1874 = vmatprep.subr.mxu0 0.0
    %1875 = vmatpush1.xpose.msra.mxu0 0.0
    %1876 = vmatprep.subr.mxu0 0.0
    %1877 = vmatpush1.xpose.msra.mxu0 0.0
    %1878 = vmatprep.subr.mxu0 0.0
    %1879 = vmatpush1.xpose.msra.mxu0 0.0
    %1880 = vmatprep.subr.mxu0 0.0
    %1881 = vmatpush1.xpose.msra.mxu0 0.0
    %1882 = vmatprep.subr.mxu0 0.0
    %1883 = vmatpush1.xpose.msra.mxu0 0.0
    %1884 = vmatprep.subr.mxu0 0.0
    %1885 = vmatpush1.xpose.msra.mxu0 0.0
    %1886 = vmatprep.subr.mxu0 0.0
    %1887 = vmatpush1.xpose.msra.mxu0 %v1854
    %1888 = vmatprep.subr.mxu0 0.0
    %1889 = vmatpush2.xpose.msra.mxu0 0.0
    %1890 = vmatprep.subr.mxu0 0.0
    %1891 = vmatpush2.xpose.msra.mxu0 0.0
    %1892 = vmatprep.subr.mxu0 0.0
    %1893 = vmatpush2.xpose.msra.mxu0 0.0
    %1894 = vmatprep.subr.mxu0 0.0
    %1895 = vmatpush2.xpose.msra.mxu0 0.0
    %1896 = vmatprep.subr.mxu0 0.0
    %1897 = vmatpush2.xpose.msra.mxu0 0.0
    %1898 = vmatprep.subr.mxu0 0.0
    %1899 = vmatpush2.xpose.msra.mxu0 0.0
    %1900 = vmatprep.subr.mxu0 0.0
    %1901 = vmatpush2.xpose.msra.mxu0 0.0
    %1902 = vmatprep.subr.mxu0 0.0
    %1903 = vmatpush2.xpose.msra.mxu0 0.0
    %1904 = vmatprep.subr.mxu0 0.0
    %1905 = vmatpush2.xpose.msra.mxu0 0.0
    %1906 = vmatprep.subr.mxu0 0.0
    %1907 = vmatpush2.xpose.msra.mxu0 0.0
    %1908 = vmatprep.subr.mxu0 0.0
    %1909 = vmatpush2.xpose.msra.mxu0 0.0
    %1910 = vmatprep.subr.mxu0 0.0
    %1911 = vmatpush2.xpose.msra.mxu0 0.0
    %1912 = vmatprep.subr.mxu0 0.0
    %1913 = vmatpush2.xpose.msra.mxu0 0.0
    %1914 = vmatprep.subr.mxu0 0.0
    %1915 = vmatpush2.xpose.msra.mxu0 0.0
    %1916 = vmatprep.subr.mxu0 0.0
    %1917 = vmatpush2.xpose.msra.mxu0 0.0
    %1918 = vmatprep.subr.mxu0 0.0
    %1919 = vmatpush2.xpose.msra.mxu0 0.0
    %1920 = vmatprep.mubr.f32.mxu0 0.0
    %1921 = vmatmul.mubr.f32.gmra.mxu0 %v1851
    %v1922 = vpop.f32.mrf.mxu0
    %v1923 = vadd.f32 %v1466, %v1922
    %v1924 = vpop.f32.mrf.mxu0
    %1925 = vdwg.mxu0
    %v1927 = vsel %vm1469, %v828, 0
    %v1930 = vsel %vm1469, %v1138, 0
    %1932 = vmatprep.subr.mxu0 0.0
    %1933 = vmatpush1.xpose.msra.mxu0 0.0
    %1934 = vmatprep.subr.mxu0 0.0
    %1935 = vmatpush1.xpose.msra.mxu0 0.0
    %1936 = vmatprep.subr.mxu0 0.0
    %1937 = vmatpush1.xpose.msra.mxu0 0.0
    %1938 = vmatprep.subr.mxu0 0.0
    %1939 = vmatpush1.xpose.msra.mxu0 0.0
    %1940 = vmatprep.subr.mxu0 0.0
    %1941 = vmatpush1.xpose.msra.mxu0 0.0
    %1942 = vmatprep.subr.mxu0 0.0
    %1943 = vmatpush1.xpose.msra.mxu0 0.0
    %1944 = vmatprep.subr.mxu0 0.0
    %1945 = vmatpush1.xpose.msra.mxu0 0.0
    %1946 = vmatprep.subr.mxu0 0.0
    %1947 = vmatpush1.xpose.msra.mxu0 0.0
    %1948 = vmatprep.subr.mxu0 0.0
    %1949 = vmatpush1.xpose.msra.mxu0 0.0
    %1950 = vmatprep.subr.mxu0 0.0
    %1951 = vmatpush1.xpose.msra.mxu0 0.0
    %1952 = vmatprep.subr.mxu0 0.0
    %1953 = vmatpush1.xpose.msra.mxu0 0.0
    %1954 = vmatprep.subr.mxu0 0.0
    %1955 = vmatpush1.xpose.msra.mxu0 0.0
    %1956 = vmatprep.subr.mxu0 0.0
    %1957 = vmatpush1.xpose.msra.mxu0 0.0
    %1958 = vmatprep.subr.mxu0 0.0
    %1959 = vmatpush1.xpose.msra.mxu0 0.0
    %1960 = vmatprep.subr.mxu0 0.0
    %1961 = vmatpush1.xpose.msra.mxu0 0.0
    %1962 = vmatprep.subr.mxu0 0.0
    %1963 = vmatpush1.xpose.msra.mxu0 %v1930
    %1964 = vmatprep.subr.mxu0 0.0
    %1965 = vmatpush2.xpose.msra.mxu0 0.0
    %1966 = vmatprep.subr.mxu0 0.0
    %1967 = vmatpush2.xpose.msra.mxu0 0.0
    %1968 = vmatprep.subr.mxu0 0.0
    %1969 = vmatpush2.xpose.msra.mxu0 0.0
    %1970 = vmatprep.subr.mxu0 0.0
    %1971 = vmatpush2.xpose.msra.mxu0 0.0
    %1972 = vmatprep.subr.mxu0 0.0
    %1973 = vmatpush2.xpose.msra.mxu0 0.0
    %1974 = vmatprep.subr.mxu0 0.0
    %1975 = vmatpush2.xpose.msra.mxu0 0.0
    %1976 = vmatprep.subr.mxu0 0.0
    %1977 = vmatpush2.xpose.msra.mxu0 0.0
    %1978 = vmatprep.subr.mxu0 0.0
    %1979 = vmatpush2.xpose.msra.mxu0 0.0
    %1980 = vmatprep.subr.mxu0 0.0
    %1981 = vmatpush2.xpose.msra.mxu0 0.0
    %1982 = vmatprep.subr.mxu0 0.0
    %1983 = vmatpush2.xpose.msra.mxu0 0.0
    %1984 = vmatprep.subr.mxu0 0.0
    %1985 = vmatpush2.xpose.msra.mxu0 0.0
    %1986 = vmatprep.subr.mxu0 0.0
    %1987 = vmatpush2.xpose.msra.mxu0 0.0
    %1988 = vmatprep.subr.mxu0 0.0
    %1989 = vmatpush2.xpose.msra.mxu0 0.0
    %1990 = vmatprep.subr.mxu0 0.0
    %1991 = vmatpush2.xpose.msra.mxu0 0.0
    %1992 = vmatprep.subr.mxu0 0.0
    %1993 = vmatpush2.xpose.msra.mxu0 0.0
    %1994 = vmatprep.subr.mxu0 0.0
    %1995 = vmatpush2.xpose.msra.mxu0 0.0
    %1996 = vmatprep.mubr.f32.mxu0 0.0
    %1997 = vmatmul.mubr.f32.gmra.mxu0 %v1927
    %v1998 = vpop.f32.mrf.mxu0
    %v1999 = vadd.f32 %v1466, %v1998
    %v2000 = vpop.f32.mrf.mxu0
    %2001 = vdwg.mxu0
    %v2003 = vsel %vm1469, %v829, 0
    %v2006 = vsel %vm1469, %v1139, 0
    %2008 = vmatprep.subr.mxu0 0.0
    %2009 = vmatpush1.xpose.msra.mxu0 0.0
    %2010 = vmatprep.subr.mxu0 0.0
    %2011 = vmatpush1.xpose.msra.mxu0 0.0
    %2012 = vmatprep.subr.mxu0 0.0
    %2013 = vmatpush1.xpose.msra.mxu0 0.0
    %2014 = vmatprep.subr.mxu0 0.0
    %2015 = vmatpush1.xpose.msra.mxu0 0.0
    %2016 = vmatprep.subr.mxu0 0.0
    %2017 = vmatpush1.xpose.msra.mxu0 0.0
    %2018 = vmatprep.subr.mxu0 0.0
    %2019 = vmatpush1.xpose.msra.mxu0 0.0
    %2020 = vmatprep.subr.mxu0 0.0
    %2021 = vmatpush1.xpose.msra.mxu0 0.0
    %2022 = vmatprep.subr.mxu0 0.0
    %2023 = vmatpush1.xpose.msra.mxu0 0.0
    %2024 = vmatprep.subr.mxu0 0.0
    %2025 = vmatpush1.xpose.msra.mxu0 0.0
    %2026 = vmatprep.subr.mxu0 0.0
    %2027 = vmatpush1.xpose.msra.mxu0 0.0
    %2028 = vmatprep.subr.mxu0 0.0
    %2029 = vmatpush1.xpose.msra.mxu0 0.0
    %2030 = vmatprep.subr.mxu0 0.0
    %2031 = vmatpush1.xpose.msra.mxu0 0.0
    %2032 = vmatprep.subr.mxu0 0.0
    %2033 = vmatpush1.xpose.msra.mxu0 0.0
    %2034 = vmatprep.subr.mxu0 0.0
    %2035 = vmatpush1.xpose.msra.mxu0 0.0
    %2036 = vmatprep.subr.mxu0 0.0
    %2037 = vmatpush1.xpose.msra.mxu0 0.0
    %2038 = vmatprep.subr.mxu0 0.0
    %2039 = vmatpush1.xpose.msra.mxu0 %v2006
    %2040 = vmatprep.subr.mxu0 0.0
    %2041 = vmatpush2.xpose.msra.mxu0 0.0
    %2042 = vmatprep.subr.mxu0 0.0
    %2043 = vmatpush2.xpose.msra.mxu0 0.0
    %2044 = vmatprep.subr.mxu0 0.0
    %2045 = vmatpush2.xpose.msra.mxu0 0.0
    %2046 = vmatprep.subr.mxu0 0.0
    %2047 = vmatpush2.xpose.msra.mxu0 0.0
    %2048 = vmatprep.subr.mxu0 0.0
    %2049 = vmatpush2.xpose.msra.mxu0 0.0
    %2050 = vmatprep.subr.mxu0 0.0
    %2051 = vmatpush2.xpose.msra.mxu0 0.0
    %2052 = vmatprep.subr.mxu0 0.0
    %2053 = vmatpush2.xpose.msra.mxu0 0.0
    %2054 = vmatprep.subr.mxu0 0.0
    %2055 = vmatpush2.xpose.msra.mxu0 0.0
    %2056 = vmatprep.subr.mxu0 0.0
    %2057 = vmatpush2.xpose.msra.mxu0 0.0
    %2058 = vmatprep.subr.mxu0 0.0
    %2059 = vmatpush2.xpose.msra.mxu0 0.0
    %2060 = vmatprep.subr.mxu0 0.0
    %2061 = vmatpush2.xpose.msra.mxu0 0.0
    %2062 = vmatprep.subr.mxu0 0.0
    %2063 = vmatpush2.xpose.msra.mxu0 0.0
    %2064 = vmatprep.subr.mxu0 0.0
    %2065 = vmatpush2.xpose.msra.mxu0 0.0
    %2066 = vmatprep.subr.mxu0 0.0
    %2067 = vmatpush2.xpose.msra.mxu0 0.0
    %2068 = vmatprep.subr.mxu0 0.0
    %2069 = vmatpush2.xpose.msra.mxu0 0.0
    %2070 = vmatprep.subr.mxu0 0.0
    %2071 = vmatpush2.xpose.msra.mxu0 0.0
    %2072 = vmatprep.mubr.f32.mxu0 0.0
    %2073 = vmatmul.mubr.f32.gmra.mxu0 %v2003
    %v2074 = vpop.f32.mrf.mxu0
    %v2075 = vadd.f32 %v1466, %v2074
    %v2076 = vpop.f32.mrf.mxu0
    %2077 = vdwg.mxu0
    %v2078 = vsel %vm1469, %v1543, -inf
    %2079 = vmax.xlane.f32.xlu0 %v2078
    %v2080 = vpop.xlane.xlu0 %2079
    %v2081 = vsel %vm1469, %v1619, -inf
    %2082 = vmax.xlane.f32.xlu0 %v2081
    %v2083 = vpop.xlane.xlu0 %2082
    %v2084 = vsel %vm1469, %v1695, -inf
    %2085 = vmax.xlane.f32.xlu0 %v2084
    %v2086 = vpop.xlane.xlu0 %2085
    %v2087 = vsel %vm1469, %v1771, -inf
    %2088 = vmax.xlane.f32.xlu0 %v2087
    %v2089 = vpop.xlane.xlu0 %2088
    %v2090 = vsel %vm1469, %v1847, -inf
    %2091 = vmax.xlane.f32.xlu0 %v2090
    %v2092 = vpop.xlane.xlu0 %2091
    %v2093 = vsel %vm1469, %v1923, -inf
    %2094 = vmax.xlane.f32.xlu0 %v2093
    %v2095 = vpop.xlane.xlu0 %2094
    %v2096 = vsel %vm1469, %v1999, -inf
    %2097 = vmax.xlane.f32.xlu0 %v2096
    %v2098 = vpop.xlane.xlu0 %2097
    %v2099 = vsel %vm1469, %v2075, -inf
    %2100 = vmax.xlane.f32.xlu0 %v2099
    %v2101 = vpop.xlane.xlu0 %2100
    %v2102 = vsub.f32 %v1543, %v2080
    %v2103 = vsub.f32 %v1619, %v2083
    %v2104 = vsub.f32 %v1695, %v2086
    %v2105 = vsub.f32 %v1771, %v2089
    %v2106 = vsub.f32 %v1847, %v2092
    %v2107 = vsub.f32 %v1923, %v2095
    %v2108 = vsub.f32 %v1999, %v2098
    %v2109 = vsub.f32 %v2075, %v2101
    %v2110 = vmul.f32 %v2102, 1.442695
    %v2111 = vpow.pop %v2110
    %v2112 = vmul.f32 %v2103, 1.442695
    %v2113 = vpow.pop %v2112
    %v2114 = vmul.f32 %v2104, 1.442695
    %v2115 = vpow.pop %v2114
    %v2116 = vmul.f32 %v2105, 1.442695
    %v2117 = vpow.pop %v2116
    %v2118 = vmul.f32 %v2106, 1.442695
    %v2119 = vpow.pop %v2118
    %v2120 = vmul.f32 %v2107, 1.442695
    %v2121 = vpow.pop %v2120
    %v2122 = vmul.f32 %v2108, 1.442695
    %v2123 = vpow.pop %v2122
    %v2124 = vmul.f32 %v2109, 1.442695
    %v2125 = vpow.pop %v2124
    %v2126 = vsel %vm1469, %v2111, 0.0
    %2127 = vadd.xlane.f32.xlu0 %v2126
    %v2128 = vpop.xlane.xlu0 %2127
    %v2129 = vsel %vm1469, %v2113, 0.0
    %2130 = vadd.xlane.f32.xlu0 %v2129
    %v2131 = vpop.xlane.xlu0 %2130
    %v2132 = vsel %vm1469, %v2115, 0.0
    %2133 = vadd.xlane.f32.xlu0 %v2132
    %v2134 = vpop.xlane.xlu0 %2133
    %v2135 = vsel %vm1469, %v2117, 0.0
    %2136 = vadd.xlane.f32.xlu0 %v2135
    %v2137 = vpop.xlane.xlu0 %2136
    %v2138 = vsel %vm1469, %v2119, 0.0
    %2139 = vadd.xlane.f32.xlu0 %v2138
    %v2140 = vpop.xlane.xlu0 %2139
    %v2141 = vsel %vm1469, %v2121, 0.0
    %2142 = vadd.xlane.f32.xlu0 %v2141
    %v2143 = vpop.xlane.xlu0 %2142
    %v2144 = vsel %vm1469, %v2123, 0.0
    %2145 = vadd.xlane.f32.xlu0 %v2144
    %v2146 = vpop.xlane.xlu0 %2145
    %v2147 = vsel %vm1469, %v2125, 0.0
    %2148 = vadd.xlane.f32.xlu0 %v2147
    %v2149 = vpop.xlane.xlu0 %2148
    %v2150 = vrcp.pop %v2128
    %v2151 = vmul.f32 %v2111, %v2150
    %v2152 = vrcp.pop %v2131
    %v2153 = vmul.f32 %v2113, %v2152
    %v2154 = vrcp.pop %v2134
    %v2155 = vmul.f32 %v2115, %v2154
    %v2156 = vrcp.pop %v2137
    %v2157 = vmul.f32 %v2117, %v2156
    %v2158 = vrcp.pop %v2140
    %v2159 = vmul.f32 %v2119, %v2158
    %v2160 = vrcp.pop %v2143
    %v2161 = vmul.f32 %v2121, %v2160
    %v2162 = vrcp.pop %v2146
    %v2163 = vmul.f32 %v2123, %v2162
    %v2164 = vrcp.pop %v2149
    %v2165 = vmul.f32 %v2125, %v2164
    %v2167 = vsel %vm1469, %v2151, 0
    %2169 = vmatprep.subr.mxu0 0.0
    %2170 = vmatpush1.msra.mxu0 0.0
    %2171 = vmatprep.subr.mxu0 0.0
    %2172 = vmatpush1.msra.mxu0 0.0
    %2173 = vmatprep.subr.mxu0 0.0
    %2174 = vmatpush1.msra.mxu0 0.0
    %2175 = vmatprep.subr.mxu0 0.0
    %2176 = vmatpush1.msra.mxu0 0.0
    %2177 = vmatprep.subr.mxu0 0.0
    %2178 = vmatpush1.msra.mxu0 0.0
    %2179 = vmatprep.subr.mxu0 0.0
    %2180 = vmatpush1.msra.mxu0 0.0
    %2181 = vmatprep.subr.mxu0 0.0
    %2182 = vmatpush1.msra.mxu0 0.0
    %2183 = vmatprep.subr.mxu0 0.0
    %2184 = vmatpush1.msra.mxu0 0.0
    %2185 = vmatprep.subr.mxu0 0.0
    %2186 = vmatpush1.msra.mxu0 0.0
    %2187 = vmatprep.subr.mxu0 0.0
    %2188 = vmatpush1.msra.mxu0 0.0
    %2189 = vmatprep.subr.mxu0 0.0
    %2190 = vmatpush1.msra.mxu0 0.0
    %2191 = vmatprep.subr.mxu0 0.0
    %2192 = vmatpush1.msra.mxu0 0.0
    %2193 = vmatprep.subr.mxu0 0.0
    %2194 = vmatpush1.msra.mxu0 0.0
    %2195 = vmatprep.subr.mxu0 0.0
    %2196 = vmatpush1.msra.mxu0 0.0
    %2197 = vmatprep.subr.mxu0 0.0
    %2198 = vmatpush1.msra.mxu0 0.0
    %2199 = vmatprep.subr.mxu0 0.0
    %2200 = vmatpush1.msra.mxu0 %v1364
    %2201 = vmatprep.subr.mxu0 0.0
    %2202 = vmatpush2.msra.mxu0 0.0
    %2203 = vmatprep.subr.mxu0 0.0
    %2204 = vmatpush2.msra.mxu0 0.0
    %2205 = vmatprep.subr.mxu0 0.0
    %2206 = vmatpush2.msra.mxu0 0.0
    %2207 = vmatprep.subr.mxu0 0.0
    %2208 = vmatpush2.msra.mxu0 0.0
    %2209 = vmatprep.subr.mxu0 0.0
    %2210 = vmatpush2.msra.mxu0 0.0
    %2211 = vmatprep.subr.mxu0 0.0
    %2212 = vmatpush2.msra.mxu0 0.0
    %2213 = vmatprep.subr.mxu0 0.0
    %2214 = vmatpush2.msra.mxu0 0.0
    %2215 = vmatprep.subr.mxu0 0.0
    %2216 = vmatpush2.msra.mxu0 0.0
    %2217 = vmatprep.subr.mxu0 0.0
    %2218 = vmatpush2.msra.mxu0 0.0
    %2219 = vmatprep.subr.mxu0 0.0
    %2220 = vmatpush2.msra.mxu0 0.0
    %2221 = vmatprep.subr.mxu0 0.0
    %2222 = vmatpush2.msra.mxu0 0.0
    %2223 = vmatprep.subr.mxu0 0.0
    %2224 = vmatpush2.msra.mxu0 0.0
    %2225 = vmatprep.subr.mxu0 0.0
    %2226 = vmatpush2.msra.mxu0 0.0
    %2227 = vmatprep.subr.mxu0 0.0
    %2228 = vmatpush2.msra.mxu0 0.0
    %2229 = vmatprep.subr.mxu0 0.0
    %2230 = vmatpush2.msra.mxu0 0.0
    %2231 = vmatprep.subr.mxu0 0.0
    %2232 = vmatpush2.msra.mxu0 0.0
    %2233 = vmatprep.mubr.f32.mxu0 0.0
    %2234 = vmatmul.mubr.f32.gmra.mxu0 %v2167
    %v2235 = vpop.f32.mrf.mxu0
    %v2236 = vadd.f32 0.0, %v2235
    %v2237 = vpop.f32.mrf.mxu0
    %2238 = vdwg.mxu0
    %v2240 = vsel %vm1469, %v2153, 0
    %2242 = vmatprep.subr.mxu0 0.0
    %2243 = vmatpush1.msra.mxu0 0.0
    %2244 = vmatprep.subr.mxu0 0.0
    %2245 = vmatpush1.msra.mxu0 0.0
    %2246 = vmatprep.subr.mxu0 0.0
    %2247 = vmatpush1.msra.mxu0 0.0
    %2248 = vmatprep.subr.mxu0 0.0
    %2249 = vmatpush1.msra.mxu0 0.0
    %2250 = vmatprep.subr.mxu0 0.0
    %2251 = vmatpush1.msra.mxu0 0.0
    %2252 = vmatprep.subr.mxu0 0.0
    %2253 = vmatpush1.msra.mxu0 0.0
    %2254 = vmatprep.subr.mxu0 0.0
    %2255 = vmatpush1.msra.mxu0 0.0
    %2256 = vmatprep.subr.mxu0 0.0
    %2257 = vmatpush1.msra.mxu0 0.0
    %2258 = vmatprep.subr.mxu0 0.0
    %2259 = vmatpush1.msra.mxu0 0.0
    %2260 = vmatprep.subr.mxu0 0.0
    %2261 = vmatpush1.msra.mxu0 0.0
    %2262 = vmatprep.subr.mxu0 0.0
    %2263 = vmatpush1.msra.mxu0 0.0
    %2264 = vmatprep.subr.mxu0 0.0
    %2265 = vmatpush1.msra.mxu0 0.0
    %2266 = vmatprep.subr.mxu0 0.0
    %2267 = vmatpush1.msra.mxu0 0.0
    %2268 = vmatprep.subr.mxu0 0.0
    %2269 = vmatpush1.msra.mxu0 0.0
    %2270 = vmatprep.subr.mxu0 0.0
    %2271 = vmatpush1.msra.mxu0 0.0
    %2272 = vmatprep.subr.mxu0 0.0
    %2273 = vmatpush1.msra.mxu0 %v1365
    %2274 = vmatprep.subr.mxu0 0.0
    %2275 = vmatpush2.msra.mxu0 0.0
    %2276 = vmatprep.subr.mxu0 0.0
    %2277 = vmatpush2.msra.mxu0 0.0
    %2278 = vmatprep.subr.mxu0 0.0
    %2279 = vmatpush2.msra.mxu0 0.0
    %2280 = vmatprep.subr.mxu0 0.0
    %2281 = vmatpush2.msra.mxu0 0.0
    %2282 = vmatprep.subr.mxu0 0.0
    %2283 = vmatpush2.msra.mxu0 0.0
    %2284 = vmatprep.subr.mxu0 0.0
    %2285 = vmatpush2.msra.mxu0 0.0
    %2286 = vmatprep.subr.mxu0 0.0
    %2287 = vmatpush2.msra.mxu0 0.0
    %2288 = vmatprep.subr.mxu0 0.0
    %2289 = vmatpush2.msra.mxu0 0.0
    %2290 = vmatprep.subr.mxu0 0.0
    %2291 = vmatpush2.msra.mxu0 0.0
    %2292 = vmatprep.subr.mxu0 0.0
    %2293 = vmatpush2.msra.mxu0 0.0
    %2294 = vmatprep.subr.mxu0 0.0
    %2295 = vmatpush2.msra.mxu0 0.0
    %2296 = vmatprep.subr.mxu0 0.0
    %2297 = vmatpush2.msra.mxu0 0.0
    %2298 = vmatprep.subr.mxu0 0.0
    %2299 = vmatpush2.msra.mxu0 0.0
    %2300 = vmatprep.subr.mxu0 0.0
    %2301 = vmatpush2.msra.mxu0 0.0
    %2302 = vmatprep.subr.mxu0 0.0
    %2303 = vmatpush2.msra.mxu0 0.0
    %2304 = vmatprep.subr.mxu0 0.0
    %2305 = vmatpush2.msra.mxu0 0.0
    %2306 = vmatprep.mubr.f32.mxu0 0.0
    %2307 = vmatmul.mubr.f32.gmra.mxu0 %v2240
    %v2308 = vpop.f32.mrf.mxu0
    %v2309 = vadd.f32 0.0, %v2308
    %v2310 = vpop.f32.mrf.mxu0
    %2311 = vdwg.mxu0
    %v2313 = vsel %vm1469, %v2155, 0
    %2315 = vmatprep.subr.mxu0 0.0
    %2316 = vmatpush1.msra.mxu0 0.0
    %2317 = vmatprep.subr.mxu0 0.0
    %2318 = vmatpush1.msra.mxu0 0.0
    %2319 = vmatprep.subr.mxu0 0.0
    %2320 = vmatpush1.msra.mxu0 0.0
    %2321 = vmatprep.subr.mxu0 0.0
    %2322 = vmatpush1.msra.mxu0 0.0
    %2323 = vmatprep.subr.mxu0 0.0
    %2324 = vmatpush1.msra.mxu0 0.0
    %2325 = vmatprep.subr.mxu0 0.0
    %2326 = vmatpush1.msra.mxu0 0.0
    %2327 = vmatprep.subr.mxu0 0.0
    %2328 = vmatpush1.msra.mxu0 0.0
    %2329 = vmatprep.subr.mxu0 0.0
    %2330 = vmatpush1.msra.mxu0 0.0
    %2331 = vmatprep.subr.mxu0 0.0
    %2332 = vmatpush1.msra.mxu0 0.0
    %2333 = vmatprep.subr.mxu0 0.0
    %2334 = vmatpush1.msra.mxu0 0.0
    %2335 = vmatprep.subr.mxu0 0.0
    %2336 = vmatpush1.msra.mxu0 0.0
    %2337 = vmatprep.subr.mxu0 0.0
    %2338 = vmatpush1.msra.mxu0 0.0
    %2339 = vmatprep.subr.mxu0 0.0
    %2340 = vmatpush1.msra.mxu0 0.0
    %2341 = vmatprep.subr.mxu0 0.0
    %2342 = vmatpush1.msra.mxu0 0.0
    %2343 = vmatprep.subr.mxu0 0.0
    %2344 = vmatpush1.msra.mxu0 0.0
    %2345 = vmatprep.subr.mxu0 0.0
    %2346 = vmatpush1.msra.mxu0 %v1366
    %2347 = vmatprep.subr.mxu0 0.0
    %2348 = vmatpush2.msra.mxu0 0.0
    %2349 = vmatprep.subr.mxu0 0.0
    %2350 = vmatpush2.msra.mxu0 0.0
    %2351 = vmatprep.subr.mxu0 0.0
    %2352 = vmatpush2.msra.mxu0 0.0
    %2353 = vmatprep.subr.mxu0 0.0
    %2354 = vmatpush2.msra.mxu0 0.0
    %2355 = vmatprep.subr.mxu0 0.0
    %2356 = vmatpush2.msra.mxu0 0.0
    %2357 = vmatprep.subr.mxu0 0.0
    %2358 = vmatpush2.msra.mxu0 0.0
    %2359 = vmatprep.subr.mxu0 0.0
    %2360 = vmatpush2.msra.mxu0 0.0
    %2361 = vmatprep.subr.mxu0 0.0
    %2362 = vmatpush2.msra.mxu0 0.0
    %2363 = vmatprep.subr.mxu0 0.0
    %2364 = vmatpush2.msra.mxu0 0.0
    %2365 = vmatprep.subr.mxu0 0.0
    %2366 = vmatpush2.msra.mxu0 0.0
    %2367 = vmatprep.subr.mxu0 0.0
    %2368 = vmatpush2.msra.mxu0 0.0
    %2369 = vmatprep.subr.mxu0 0.0
    %2370 = vmatpush2.msra.mxu0 0.0
    %2371 = vmatprep.subr.mxu0 0.0
    %2372 = vmatpush2.msra.mxu0 0.0
    %2373 = vmatprep.subr.mxu0 0.0
    %2374 = vmatpush2.msra.mxu0 0.0
    %2375 = vmatprep.subr.mxu0 0.0
    %2376 = vmatpush2.msra.mxu0 0.0
    %2377 = vmatprep.subr.mxu0 0.0
    %2378 = vmatpush2.msra.mxu0 0.0
    %2379 = vmatprep.mubr.f32.mxu0 0.0
    %2380 = vmatmul.mubr.f32.gmra.mxu0 %v2313
    %v2381 = vpop.f32.mrf.mxu0
    %v2382 = vadd.f32 0.0, %v2381
    %v2383 = vpop.f32.mrf.mxu0
    %2384 = vdwg.mxu0
    %v2386 = vsel %vm1469, %v2157, 0
    %2388 = vmatprep.subr.mxu0 0.0
    %2389 = vmatpush1.msra.mxu0 0.0
    %2390 = vmatprep.subr.mxu0 0.0
    %2391 = vmatpush1.msra.mxu0 0.0
    %2392 = vmatprep.subr.mxu0 0.0
    %2393 = vmatpush1.msra.mxu0 0.0
    %2394 = vmatprep.subr.mxu0 0.0
    %2395 = vmatpush1.msra.mxu0 0.0
    %2396 = vmatprep.subr.mxu0 0.0
    %2397 = vmatpush1.msra.mxu0 0.0
    %2398 = vmatprep.subr.mxu0 0.0
    %2399 = vmatpush1.msra.mxu0 0.0
    %2400 = vmatprep.subr.mxu0 0.0
    %2401 = vmatpush1.msra.mxu0 0.0
    %2402 = vmatprep.subr.mxu0 0.0
    %2403 = vmatpush1.msra.mxu0 0.0
    %2404 = vmatprep.subr.mxu0 0.0
    %2405 = vmatpush1.msra.mxu0 0.0
    %2406 = vmatprep.subr.mxu0 0.0
    %2407 = vmatpush1.msra.mxu0 0.0
    %2408 = vmatprep.subr.mxu0 0.0
    %2409 = vmatpush1.msra.mxu0 0.0
    %2410 = vmatprep.subr.mxu0 0.0
    %2411 = vmatpush1.msra.mxu0 0.0
    %2412 = vmatprep.subr.mxu0 0.0
    %2413 = vmatpush1.msra.mxu0 0.0
    %2414 = vmatprep.subr.mxu0 0.0
    %2415 = vmatpush1.msra.mxu0 0.0
    %2416 = vmatprep.subr.mxu0 0.0
    %2417 = vmatpush1.msra.mxu0 0.0
    %2418 = vmatprep.subr.mxu0 0.0
    %2419 = vmatpush1.msra.mxu0 %v1367
    %2420 = vmatprep.subr.mxu0 0.0
    %2421 = vmatpush2.msra.mxu0 0.0
    %2422 = vmatprep.subr.mxu0 0.0
    %2423 = vmatpush2.msra.mxu0 0.0
    %2424 = vmatprep.subr.mxu0 0.0
    %2425 = vmatpush2.msra.mxu0 0.0
    %2426 = vmatprep.subr.mxu0 0.0
    %2427 = vmatpush2.msra.mxu0 0.0
    %2428 = vmatprep.subr.mxu0 0.0
    %2429 = vmatpush2.msra.mxu0 0.0
    %2430 = vmatprep.subr.mxu0 0.0
    %2431 = vmatpush2.msra.mxu0 0.0
    %2432 = vmatprep.subr.mxu0 0.0
    %2433 = vmatpush2.msra.mxu0 0.0
    %2434 = vmatprep.subr.mxu0 0.0
    %2435 = vmatpush2.msra.mxu0 0.0
    %2436 = vmatprep.subr.mxu0 0.0
    %2437 = vmatpush2.msra.mxu0 0.0
    %2438 = vmatprep.subr.mxu0 0.0
    %2439 = vmatpush2.msra.mxu0 0.0
    %2440 = vmatprep.subr.mxu0 0.0
    %2441 = vmatpush2.msra.mxu0 0.0
    %2442 = vmatprep.subr.mxu0 0.0
    %2443 = vmatpush2.msra.mxu0 0.0
    %2444 = vmatprep.subr.mxu0 0.0
    %2445 = vmatpush2.msra.mxu0 0.0
    %2446 = vmatprep.subr.mxu0 0.0
    %2447 = vmatpush2.msra.mxu0 0.0
    %2448 = vmatprep.subr.mxu0 0.0
    %2449 = vmatpush2.msra.mxu0 0.0
    %2450 = vmatprep.subr.mxu0 0.0
    %2451 = vmatpush2.msra.mxu0 0.0
    %2452 = vmatprep.mubr.f32.mxu0 0.0
    %2453 = vmatmul.mubr.f32.gmra.mxu0 %v2386
    %v2454 = vpop.f32.mrf.mxu0
    %v2455 = vadd.f32 0.0, %v2454
    %v2456 = vpop.f32.mrf.mxu0
    %2457 = vdwg.mxu0
    %v2459 = vsel %vm1469, %v2159, 0
    %2461 = vmatprep.subr.mxu0 0.0
    %2462 = vmatpush1.msra.mxu0 0.0
    %2463 = vmatprep.subr.mxu0 0.0
    %2464 = vmatpush1.msra.mxu0 0.0
    %2465 = vmatprep.subr.mxu0 0.0
    %2466 = vmatpush1.msra.mxu0 0.0
    %2467 = vmatprep.subr.mxu0 0.0
    %2468 = vmatpush1.msra.mxu0 0.0
    %2469 = vmatprep.subr.mxu0 0.0
    %2470 = vmatpush1.msra.mxu0 0.0
    %2471 = vmatprep.subr.mxu0 0.0
    %2472 = vmatpush1.msra.mxu0 0.0
    %2473 = vmatprep.subr.mxu0 0.0
    %2474 = vmatpush1.msra.mxu0 0.0
    %2475 = vmatprep.subr.mxu0 0.0
    %2476 = vmatpush1.msra.mxu0 0.0
    %2477 = vmatprep.subr.mxu0 0.0
    %2478 = vmatpush1.msra.mxu0 0.0
    %2479 = vmatprep.subr.mxu0 0.0
    %2480 = vmatpush1.msra.mxu0 0.0
    %2481 = vmatprep.subr.mxu0 0.0
    %2482 = vmatpush1.msra.mxu0 0.0
    %2483 = vmatprep.subr.mxu0 0.0
    %2484 = vmatpush1.msra.mxu0 0.0
    %2485 = vmatprep.subr.mxu0 0.0
    %2486 = vmatpush1.msra.mxu0 0.0
    %2487 = vmatprep.subr.mxu0 0.0
    %2488 = vmatpush1.msra.mxu0 0.0
    %2489 = vmatprep.subr.mxu0 0.0
    %2490 = vmatpush1.msra.mxu0 0.0
    %2491 = vmatprep.subr.mxu0 0.0
    %2492 = vmatpush1.msra.mxu0 %v1432
    %2493 = vmatprep.subr.mxu0 0.0
    %2494 = vmatpush2.msra.mxu0 0.0
    %2495 = vmatprep.subr.mxu0 0.0
    %2496 = vmatpush2.msra.mxu0 0.0
    %2497 = vmatprep.subr.mxu0 0.0
    %2498 = vmatpush2.msra.mxu0 0.0
    %2499 = vmatprep.subr.mxu0 0.0
    %2500 = vmatpush2.msra.mxu0 0.0
    %2501 = vmatprep.subr.mxu0 0.0
    %2502 = vmatpush2.msra.mxu0 0.0
    %2503 = vmatprep.subr.mxu0 0.0
    %2504 = vmatpush2.msra.mxu0 0.0
    %2505 = vmatprep.subr.mxu0 0.0
    %2506 = vmatpush2.msra.mxu0 0.0
    %2507 = vmatprep.subr.mxu0 0.0
    %2508 = vmatpush2.msra.mxu0 0.0
    %2509 = vmatprep.subr.mxu0 0.0
    %2510 = vmatpush2.msra.mxu0 0.0
    %2511 = vmatprep.subr.mxu0 0.0
    %2512 = vmatpush2.msra.mxu0 0.0
    %2513 = vmatprep.subr.mxu0 0.0
    %2514 = vmatpush2.msra.mxu0 0.0
    %2515 = vmatprep.subr.mxu0 0.0
    %2516 = vmatpush2.msra.mxu0 0.0
    %2517 = vmatprep.subr.mxu0 0.0
    %2518 = vmatpush2.msra.mxu0 0.0
    %2519 = vmatprep.subr.mxu0 0.0
    %2520 = vmatpush2.msra.mxu0 0.0
    %2521 = vmatprep.subr.mxu0 0.0
    %2522 = vmatpush2.msra.mxu0 0.0
    %2523 = vmatprep.subr.mxu0 0.0
    %2524 = vmatpush2.msra.mxu0 0.0
    %2525 = vmatprep.mubr.f32.mxu0 0.0
    %2526 = vmatmul.mubr.f32.gmra.mxu0 %v2459
    %v2527 = vpop.f32.mrf.mxu0
    %v2528 = vadd.f32 0.0, %v2527
    %v2529 = vpop.f32.mrf.mxu0
    %2530 = vdwg.mxu0
    %v2532 = vsel %vm1469, %v2161, 0
    %2534 = vmatprep.subr.mxu0 0.0
    %2535 = vmatpush1.msra.mxu0 0.0
    %2536 = vmatprep.subr.mxu0 0.0
    %2537 = vmatpush1.msra.mxu0 0.0
    %2538 = vmatprep.subr.mxu0 0.0
    %2539 = vmatpush1.msra.mxu0 0.0
    %2540 = vmatprep.subr.mxu0 0.0
    %2541 = vmatpush1.msra.mxu0 0.0
    %2542 = vmatprep.subr.mxu0 0.0
    %2543 = vmatpush1.msra.mxu0 0.0
    %2544 = vmatprep.subr.mxu0 0.0
    %2545 = vmatpush1.msra.mxu0 0.0
    %2546 = vmatprep.subr.mxu0 0.0
    %2547 = vmatpush1.msra.mxu0 0.0
    %2548 = vmatprep.subr.mxu0 0.0
    %2549 = vmatpush1.msra.mxu0 0.0
    %2550 = vmatprep.subr.mxu0 0.0
    %2551 = vmatpush1.msra.mxu0 0.0
    %2552 = vmatprep.subr.mxu0 0.0
    %2553 = vmatpush1.msra.mxu0 0.0
    %2554 = vmatprep.subr.mxu0 0.0
    %2555 = vmatpush1.msra.mxu0 0.0
    %2556 = vmatprep.subr.mxu0 0.0
    %2557 = vmatpush1.msra.mxu0 0.0
    %2558 = vmatprep.subr.mxu0 0.0
    %2559 = vmatpush1.msra.mxu0 0.0
    %2560 = vmatprep.subr.mxu0 0.0
    %2561 = vmatpush1.msra.mxu0 0.0
    %2562 = vmatprep.subr.mxu0 0.0
    %2563 = vmatpush1.msra.mxu0 0.0
    %2564 = vmatprep.subr.mxu0 0.0
    %2565 = vmatpush1.msra.mxu0 %v1433
    %2566 = vmatprep.subr.mxu0 0.0
    %2567 = vmatpush2.msra.mxu0 0.0
    %2568 = vmatprep.subr.mxu0 0.0
    %2569 = vmatpush2.msra.mxu0 0.0
    %2570 = vmatprep.subr.mxu0 0.0
    %2571 = vmatpush2.msra.mxu0 0.0
    %2572 = vmatprep.subr.mxu0 0.0
    %2573 = vmatpush2.msra.mxu0 0.0
    %2574 = vmatprep.subr.mxu0 0.0
    %2575 = vmatpush2.msra.mxu0 0.0
    %2576 = vmatprep.subr.mxu0 0.0
    %2577 = vmatpush2.msra.mxu0 0.0
    %2578 = vmatprep.subr.mxu0 0.0
    %2579 = vmatpush2.msra.mxu0 0.0
    %2580 = vmatprep.subr.mxu0 0.0
    %2581 = vmatpush2.msra.mxu0 0.0
    %2582 = vmatprep.subr.mxu0 0.0
    %2583 = vmatpush2.msra.mxu0 0.0
    %2584 = vmatprep.subr.mxu0 0.0
    %2585 = vmatpush2.msra.mxu0 0.0
    %2586 = vmatprep.subr.mxu0 0.0
    %2587 = vmatpush2.msra.mxu0 0.0
    %2588 = vmatprep.subr.mxu0 0.0
    %2589 = vmatpush2.msra.mxu0 0.0
    %2590 = vmatprep.subr.mxu0 0.0
    %2591 = vmatpush2.msra.mxu0 0.0
    %2592 = vmatprep.subr.mxu0 0.0
    %2593 = vmatpush2.msra.mxu0 0.0
    %2594 = vmatprep.subr.mxu0 0.0
    %2595 = vmatpush2.msra.mxu0 0.0
    %2596 = vmatprep.subr.mxu0 0.0
    %2597 = vmatpush2.msra.mxu0 0.0
    %2598 = vmatprep.mubr.f32.mxu0 0.0
    %2599 = vmatmul.mubr.f32.gmra.mxu0 %v2532
    %v2600 = vpop.f32.mrf.mxu0
    %v2601 = vadd.f32 0.0, %v2600
    %v2602 = vpop.f32.mrf.mxu0
    %2603 = vdwg.mxu0
    %v2605 = vsel %vm1469, %v2163, 0
    %2607 = vmatprep.subr.mxu0 0.0
    %2608 = vmatpush1.msra.mxu0 0.0
    %2609 = vmatprep.subr.mxu0 0.0
    %2610 = vmatpush1.msra.mxu0 0.0
    %2611 = vmatprep.subr.mxu0 0.0
    %2612 = vmatpush1.msra.mxu0 0.0
    %2613 = vmatprep.subr.mxu0 0.0
    %2614 = vmatpush1.msra.mxu0 0.0
    %2615 = vmatprep.subr.mxu0 0.0
    %2616 = vmatpush1.msra.mxu0 0.0
    %2617 = vmatprep.subr.mxu0 0.0
    %2618 = vmatpush1.msra.mxu0 0.0
    %2619 = vmatprep.subr.mxu0 0.0
    %2620 = vmatpush1.msra.mxu0 0.0
    %2621 = vmatprep.subr.mxu0 0.0
    %2622 = vmatpush1.msra.mxu0 0.0
    %2623 = vmatprep.subr.mxu0 0.0
    %2624 = vmatpush1.msra.mxu0 0.0
    %2625 = vmatprep.subr.mxu0 0.0
    %2626 = vmatpush1.msra.mxu0 0.0
    %2627 = vmatprep.subr.mxu0 0.0
    %2628 = vmatpush1.msra.mxu0 0.0
    %2629 = vmatprep.subr.mxu0 0.0
    %2630 = vmatpush1.msra.mxu0 0.0
    %2631 = vmatprep.subr.mxu0 0.0
    %2632 = vmatpush1.msra.mxu0 0.0
    %2633 = vmatprep.subr.mxu0 0.0
    %2634 = vmatpush1.msra.mxu0 0.0
    %2635 = vmatprep.subr.mxu0 0.0
    %2636 = vmatpush1.msra.mxu0 0.0
    %2637 = vmatprep.subr.mxu0 0.0
    %2638 = vmatpush1.msra.mxu0 %v1434
    %2639 = vmatprep.subr.mxu0 0.0
    %2640 = vmatpush2.msra.mxu0 0.0
    %2641 = vmatprep.subr.mxu0 0.0
    %2642 = vmatpush2.msra.mxu0 0.0
    %2643 = vmatprep.subr.mxu0 0.0
    %2644 = vmatpush2.msra.mxu0 0.0
    %2645 = vmatprep.subr.mxu0 0.0
    %2646 = vmatpush2.msra.mxu0 0.0
    %2647 = vmatprep.subr.mxu0 0.0
    %2648 = vmatpush2.msra.mxu0 0.0
    %2649 = vmatprep.subr.mxu0 0.0
    %2650 = vmatpush2.msra.mxu0 0.0
    %2651 = vmatprep.subr.mxu0 0.0
    %2652 = vmatpush2.msra.mxu0 0.0
    %2653 = vmatprep.subr.mxu0 0.0
    %2654 = vmatpush2.msra.mxu0 0.0
    %2655 = vmatprep.subr.mxu0 0.0
    %2656 = vmatpush2.msra.mxu0 0.0
    %2657 = vmatprep.subr.mxu0 0.0
    %2658 = vmatpush2.msra.mxu0 0.0
    %2659 = vmatprep.subr.mxu0 0.0
    %2660 = vmatpush2.msra.mxu0 0.0
    %2661 = vmatprep.subr.mxu0 0.0
    %2662 = vmatpush2.msra.mxu0 0.0
    %2663 = vmatprep.subr.mxu0 0.0
    %2664 = vmatpush2.msra.mxu0 0.0
    %2665 = vmatprep.subr.mxu0 0.0
    %2666 = vmatpush2.msra.mxu0 0.0
    %2667 = vmatprep.subr.mxu0 0.0
    %2668 = vmatpush2.msra.mxu0 0.0
    %2669 = vmatprep.subr.mxu0 0.0
    %2670 = vmatpush2.msra.mxu0 0.0
    %2671 = vmatprep.mubr.f32.mxu0 0.0
    %2672 = vmatmul.mubr.f32.gmra.mxu0 %v2605
    %v2673 = vpop.f32.mrf.mxu0
    %v2674 = vadd.f32 0.0, %v2673
    %v2675 = vpop.f32.mrf.mxu0
    %2676 = vdwg.mxu0
    %v2678 = vsel %vm1469, %v2165, 0
    %2680 = vmatprep.subr.mxu0 0.0
    %2681 = vmatpush1.msra.mxu0 0.0
    %2682 = vmatprep.subr.mxu0 0.0
    %2683 = vmatpush1.msra.mxu0 0.0
    %2684 = vmatprep.subr.mxu0 0.0
    %2685 = vmatpush1.msra.mxu0 0.0
    %2686 = vmatprep.subr.mxu0 0.0
    %2687 = vmatpush1.msra.mxu0 0.0
    %2688 = vmatprep.subr.mxu0 0.0
    %2689 = vmatpush1.msra.mxu0 0.0
    %2690 = vmatprep.subr.mxu0 0.0
    %2691 = vmatpush1.msra.mxu0 0.0
    %2692 = vmatprep.subr.mxu0 0.0
    %2693 = vmatpush1.msra.mxu0 0.0
    %2694 = vmatprep.subr.mxu0 0.0
    %2695 = vmatpush1.msra.mxu0 0.0
    %2696 = vmatprep.subr.mxu0 0.0
    %2697 = vmatpush1.msra.mxu0 0.0
    %2698 = vmatprep.subr.mxu0 0.0
    %2699 = vmatpush1.msra.mxu0 0.0
    %2700 = vmatprep.subr.mxu0 0.0
    %2701 = vmatpush1.msra.mxu0 0.0
    %2702 = vmatprep.subr.mxu0 0.0
    %2703 = vmatpush1.msra.mxu0 0.0
    %2704 = vmatprep.subr.mxu0 0.0
    %2705 = vmatpush1.msra.mxu0 0.0
    %2706 = vmatprep.subr.mxu0 0.0
    %2707 = vmatpush1.msra.mxu0 0.0
    %2708 = vmatprep.subr.mxu0 0.0
    %2709 = vmatpush1.msra.mxu0 0.0
    %2710 = vmatprep.subr.mxu0 0.0
    %2711 = vmatpush1.msra.mxu0 %v1435
    %2712 = vmatprep.subr.mxu0 0.0
    %2713 = vmatpush2.msra.mxu0 0.0
    %2714 = vmatprep.subr.mxu0 0.0
    %2715 = vmatpush2.msra.mxu0 0.0
    %2716 = vmatprep.subr.mxu0 0.0
    %2717 = vmatpush2.msra.mxu0 0.0
    %2718 = vmatprep.subr.mxu0 0.0
    %2719 = vmatpush2.msra.mxu0 0.0
    %2720 = vmatprep.subr.mxu0 0.0
    %2721 = vmatpush2.msra.mxu0 0.0
    %2722 = vmatprep.subr.mxu0 0.0
    %2723 = vmatpush2.msra.mxu0 0.0
    %2724 = vmatprep.subr.mxu0 0.0
    %2725 = vmatpush2.msra.mxu0 0.0
    %2726 = vmatprep.subr.mxu0 0.0
    %2727 = vmatpush2.msra.mxu0 0.0
    %2728 = vmatprep.subr.mxu0 0.0
    %2729 = vmatpush2.msra.mxu0 0.0
    %2730 = vmatprep.subr.mxu0 0.0
    %2731 = vmatpush2.msra.mxu0 0.0
    %2732 = vmatprep.subr.mxu0 0.0
    %2733 = vmatpush2.msra.mxu0 0.0
    %2734 = vmatprep.subr.mxu0 0.0
    %2735 = vmatpush2.msra.mxu0 0.0
    %2736 = vmatprep.subr.mxu0 0.0
    %2737 = vmatpush2.msra.mxu0 0.0
    %2738 = vmatprep.subr.mxu0 0.0
    %2739 = vmatpush2.msra.mxu0 0.0
    %2740 = vmatprep.subr.mxu0 0.0
    %2741 = vmatpush2.msra.mxu0 0.0
    %2742 = vmatprep.subr.mxu0 0.0
    %2743 = vmatpush2.msra.mxu0 0.0
    %2744 = vmatprep.mubr.f32.mxu0 0.0
    %2745 = vmatmul.mubr.f32.gmra.mxu0 %v2678
    %v2746 = vpop.f32.mrf.mxu0
    %v2747 = vadd.f32 0.0, %v2746
    %v2748 = vpop.f32.mrf.mxu0
    %2749 = vdwg.mxu0
    %v2750 = vcombine.low %v2236, %v2382
    %v2751 = vcombine.high %v2236, %v2382
    %v2753 = vunpack.c.l.s4 1983009808
    %v2754 = vunpack.c.0.s8 %v2753
    %v2755 = vlaneseq
    %v2756 = vshrl.u32 %v2755, 7
    %v2757 = vsub.s32 %v2754, %v2756
    %v2758 = vrot.slane %v2750, %v2757
    %v2760 = vunpack.c.l.s4 1983009808
    %v2761 = vunpack.c.0.s8 %v2760
    %v2762 = vlaneseq
    %v2763 = vshrl.u32 %v2762, 7
    %v2764 = vsub.s32 %v2761, %v2763
    %v2765 = vrot.slane %v2751, %v2764
    %v2766 = vcombine.low %v2309, %v2455
    %v2767 = vcombine.high %v2309, %v2455
    %v2769 = vunpack.c.l.s4 1983009808
    %v2770 = vunpack.c.0.s8 %v2769
    %v2771 = vlaneseq
    %v2772 = vshrl.u32 %v2771, 7
    %v2773 = vsub.s32 %v2770, %v2772
    %v2774 = vrot.slane %v2766, %v2773
    %v2776 = vunpack.c.l.s4 1983009808
    %v2777 = vunpack.c.0.s8 %v2776
    %v2778 = vlaneseq
    %v2779 = vshrl.u32 %v2778, 7
    %v2780 = vsub.s32 %v2777, %v2779
    %v2781 = vrot.slane %v2767, %v2780
    %v2782 = vcombine.low %v2758, %v2774
    %v2783 = vcombine.high %v2758, %v2774
    %v2785 = vunpack.c.l.s4 1934713408
    %v2786 = vunpack.c.0.s8 %v2785
    %v2787 = vlaneseq
    %v2788 = vshrl.u32 %v2787, 7
    %v2789 = vsub.s32 %v2786, %v2788
    %v2790 = vrot.slane %v2782, %v2789
    %v2792 = vunpack.c.l.s4 1934713408
    %v2793 = vunpack.c.0.s8 %v2792
    %v2794 = vlaneseq
    %v2795 = vshrl.u32 %v2794, 7
    %v2796 = vsub.s32 %v2793, %v2795
    %v2797 = vrot.slane %v2783, %v2796
    %v2798 = vcombine.low %v2765, %v2781
    %v2799 = vcombine.high %v2765, %v2781
    %v2801 = vunpack.c.l.s4 1934713408
    %v2802 = vunpack.c.0.s8 %v2801
    %v2803 = vlaneseq
    %v2804 = vshrl.u32 %v2803, 7
    %v2805 = vsub.s32 %v2802, %v2804
    %v2806 = vrot.slane %v2798, %v2805
    %v2808 = vunpack.c.l.s4 1934713408
    %v2809 = vunpack.c.0.s8 %v2808
    %v2810 = vlaneseq
    %v2811 = vshrl.u32 %v2810, 7
    %v2812 = vsub.s32 %v2809, %v2811
    %v2813 = vrot.slane %v2799, %v2812
    %v2814 = vcombine.high %v2790, 0.0
    %v2815 = vcombine.high %v2797, 0.0
    %v2816 = vcombine.high %v2806, 0.0
    %v2817 = vcombine.high %v2813, 0.0
    %v2818 = vcombine.low %v2528, %v2674
    %v2819 = vcombine.high %v2528, %v2674
    %v2821 = vunpack.c.l.s4 1983009808
    %v2822 = vunpack.c.0.s8 %v2821
    %v2823 = vlaneseq
    %v2824 = vshrl.u32 %v2823, 7
    %v2825 = vsub.s32 %v2822, %v2824
    %v2826 = vrot.slane %v2818, %v2825
    %v2828 = vunpack.c.l.s4 1983009808
    %v2829 = vunpack.c.0.s8 %v2828
    %v2830 = vlaneseq
    %v2831 = vshrl.u32 %v2830, 7
    %v2832 = vsub.s32 %v2829, %v2831
    %v2833 = vrot.slane %v2819, %v2832
    %v2834 = vcombine.low %v2601, %v2747
    %v2835 = vcombine.high %v2601, %v2747
    %v2837 = vunpack.c.l.s4 1983009808
    %v2838 = vunpack.c.0.s8 %v2837
    %v2839 = vlaneseq
    %v2840 = vshrl.u32 %v2839, 7
    %v2841 = vsub.s32 %v2838, %v2840
    %v2842 = vrot.slane %v2834, %v2841
    %v2844 = vunpack.c.l.s4 1983009808
    %v2845 = vunpack.c.0.s8 %v2844
    %v2846 = vlaneseq
    %v2847 = vshrl.u32 %v2846, 7
    %v2848 = vsub.s32 %v2845, %v2847
    %v2849 = vrot.slane %v2835, %v2848
    %v2850 = vcombine.low %v2826, %v2842
    %v2851 = vcombine.high %v2826, %v2842
    %v2853 = vunpack.c.l.s4 1934713408
    %v2854 = vunpack.c.0.s8 %v2853
    %v2855 = vlaneseq
    %v2856 = vshrl.u32 %v2855, 7
    %v2857 = vsub.s32 %v2854, %v2856
    %v2858 = vrot.slane %v2850, %v2857
    %v2860 = vunpack.c.l.s4 1934713408
    %v2861 = vunpack.c.0.s8 %v2860
    %v2862 = vlaneseq
    %v2863 = vshrl.u32 %v2862, 7
    %v2864 = vsub.s32 %v2861, %v2863
    %v2865 = vrot.slane %v2851, %v2864
    %v2866 = vcombine.low %v2833, %v2849
    %v2867 = vcombine.high %v2833, %v2849
    %v2869 = vunpack.c.l.s4 1934713408
    %v2870 = vunpack.c.0.s8 %v2869
    %v2871 = vlaneseq
    %v2872 = vshrl.u32 %v2871, 7
    %v2873 = vsub.s32 %v2870, %v2872
    %v2874 = vrot.slane %v2866, %v2873
    %v2876 = vunpack.c.l.s4 1934713408
    %v2877 = vunpack.c.0.s8 %v2876
    %v2878 = vlaneseq
    %v2879 = vshrl.u32 %v2878, 7
    %v2880 = vsub.s32 %v2877, %v2879
    %v2881 = vrot.slane %v2867, %v2880
    %v2882 = vcombine.high %v2858, 0.0
    %v2883 = vcombine.high %v2865, 0.0
    %v2884 = vcombine.high %v2874, 0.0
    %v2885 = vcombine.high %v2881, 0.0
    %v2886 = vcombine.low %v2790, %v2797
    %v2888 = vunpack.c.l.s4 1983009808
    %v2889 = vunpack.c.0.s8 %v2888
    %v2890 = vlaneseq
    %v2891 = vshrl.u32 %v2890, 7
    %v2892 = vsub.s32 %v2889, %v2891
    %v2893 = vrot.slane %v2886, %v2892
    %v2894 = vcombine.low %v2814, %v2815
    %v2896 = vunpack.c.l.s4 1983009808
    %v2897 = vunpack.c.0.s8 %v2896
    %v2898 = vlaneseq
    %v2899 = vshrl.u32 %v2898, 7
    %v2900 = vsub.s32 %v2897, %v2899
    %v2901 = vrot.slane %v2894, %v2900
    %v2902 = vcombine.low %v2806, %v2813
    %v2904 = vunpack.c.l.s4 1983009808
    %v2905 = vunpack.c.0.s8 %v2904
    %v2906 = vlaneseq
    %v2907 = vshrl.u32 %v2906, 7
    %v2908 = vsub.s32 %v2905, %v2907
    %v2909 = vrot.slane %v2902, %v2908
    %v2910 = vcombine.low %v2816, %v2817
    %v2912 = vunpack.c.l.s4 1983009808
    %v2913 = vunpack.c.0.s8 %v2912
    %v2914 = vlaneseq
    %v2915 = vshrl.u32 %v2914, 7
    %v2916 = vsub.s32 %v2913, %v2915
    %v2917 = vrot.slane %v2910, %v2916
    %v2918 = vcombine.low %v2893, %v2901
    %v2919 = vcombine.high %v2893, %v2901
    %v2921 = vunpack.c.l.s4 1934713408
    %v2922 = vunpack.c.0.s8 %v2921
    %v2923 = vlaneseq
    %v2924 = vshrl.u32 %v2923, 7
    %v2925 = vsub.s32 %v2922, %v2924
    %v2926 = vrot.slane %v2918, %v2925
    %v2928 = vunpack.c.l.s4 1934713408
    %v2929 = vunpack.c.0.s8 %v2928
    %v2930 = vlaneseq
    %v2931 = vshrl.u32 %v2930, 7
    %v2932 = vsub.s32 %v2929, %v2931
    %v2933 = vrot.slane %v2919, %v2932
    %v2934 = vcombine.low %v2909, %v2917
    %v2935 = vcombine.high %v2909, %v2917
    %v2937 = vunpack.c.l.s4 1934713408
    %v2938 = vunpack.c.0.s8 %v2937
    %v2939 = vlaneseq
    %v2940 = vshrl.u32 %v2939, 7
    %v2941 = vsub.s32 %v2938, %v2940
    %v2942 = vrot.slane %v2934, %v2941
    %v2944 = vunpack.c.l.s4 1934713408
    %v2945 = vunpack.c.0.s8 %v2944
    %v2946 = vlaneseq
    %v2947 = vshrl.u32 %v2946, 7
    %v2948 = vsub.s32 %v2945, %v2947
    %v2949 = vrot.slane %v2935, %v2948
    %v2950 = vcombine.low %v2926, %v2942
    %v2951 = vcombine.high %v2926, %v2942
    %v2952 = vcombine.low %v2933, %v2949
    %v2953 = vcombine.high %v2933, %v2949
    %v2954 = vcombine.low %v2858, %v2865
    %v2956 = vunpack.c.l.s4 1983009808
    %v2957 = vunpack.c.0.s8 %v2956
    %v2958 = vlaneseq
    %v2959 = vshrl.u32 %v2958, 7
    %v2960 = vsub.s32 %v2957, %v2959
    %v2961 = vrot.slane %v2954, %v2960
    %v2962 = vcombine.low %v2882, %v2883
    %v2964 = vunpack.c.l.s4 1983009808
    %v2965 = vunpack.c.0.s8 %v2964
    %v2966 = vlaneseq
    %v2967 = vshrl.u32 %v2966, 7
    %v2968 = vsub.s32 %v2965, %v2967
    %v2969 = vrot.slane %v2962, %v2968
    %v2970 = vcombine.low %v2874, %v2881
    %v2972 = vunpack.c.l.s4 1983009808
    %v2973 = vunpack.c.0.s8 %v2972
    %v2974 = vlaneseq
    %v2975 = vshrl.u32 %v2974, 7
    %v2976 = vsub.s32 %v2973, %v2975
    %v2977 = vrot.slane %v2970, %v2976
    %v2978 = vcombine.low %v2884, %v2885
    %v2980 = vunpack.c.l.s4 1983009808
    %v2981 = vunpack.c.0.s8 %v2980
    %v2982 = vlaneseq
    %v2983 = vshrl.u32 %v2982, 7
    %v2984 = vsub.s32 %v2981, %v2983
    %v2985 = vrot.slane %v2978, %v2984
    %v2986 = vcombine.low %v2961, %v2969
    %v2987 = vcombine.high %v2961, %v2969
    %v2989 = vunpack.c.l.s4 1934713408
    %v2990 = vunpack.c.0.s8 %v2989
    %v2991 = vlaneseq
    %v2992 = vshrl.u32 %v2991, 7
    %v2993 = vsub.s32 %v2990, %v2992
    %v2994 = vrot.slane %v2986, %v2993
    %v2996 = vunpack.c.l.s4 1934713408
    %v2997 = vunpack.c.0.s8 %v2996
    %v2998 = vlaneseq
    %v2999 = vshrl.u32 %v2998, 7
    %v3000 = vsub.s32 %v2997, %v2999
    %v3001 = vrot.slane %v2987, %v3000
    %v3002 = vcombine.low %v2977, %v2985
    %v3003 = vcombine.high %v2977, %v2985
    %v3005 = vunpack.c.l.s4 1934713408
    %v3006 = vunpack.c.0.s8 %v3005
    %v3007 = vlaneseq
    %v3008 = vshrl.u32 %v3007, 7
    %v3009 = vsub.s32 %v3006, %v3008
    %v3010 = vrot.slane %v3002, %v3009
    %v3012 = vunpack.c.l.s4 1934713408
    %v3013 = vunpack.c.0.s8 %v3012
    %v3014 = vlaneseq
    %v3015 = vshrl.u32 %v3014, 7
    %v3016 = vsub.s32 %v3013, %v3015
    %v3017 = vrot.slane %v3003, %v3016
    %v3018 = vcombine.low %v2994, %v3010
    %v3019 = vcombine.high %v2994, %v3010
    %v3020 = vcombine.low %v3001, %v3017
    %v3021 = vcombine.high %v3001, %v3017
    %3024 = vrot.lane.b32.xlu0 %v2951, 8
    %v3025 = vpop.permute.xlu0 %3024
    %3026 = vrot.lane.b32.xlu0 %v3019, 8
    %v3027 = vpop.permute.xlu0 %3026
    %3032 = vrot.lane.b32.xlu0 %v2952, 16
    %v3033 = vpop.permute.xlu0 %3032
    %3034 = vrot.lane.b32.xlu0 %v3020, 16
    %v3035 = vpop.permute.xlu0 %3034
    %3040 = vrot.lane.b32.xlu0 %v2953, 24
    %v3041 = vpop.permute.xlu0 %3040
    %3042 = vrot.lane.b32.xlu0 %v3021, 24
    %v3043 = vpop.permute.xlu0 %3042
    %v3046 = vsel %vm1469, %v2950, %v3025
    %v3047 = vsel %vm1469, %v3018, %v3027
    %vm3048 = vcmask 130048
    %v3049 = vsel %vm3048, %v3046, %v3033
    %v3050 = vsel %vm3048, %v3047, %v3035
    %vm3051 = vcmask 195584
    %v3052 = vsel %vm3051, %v3049, %v3041
    %v3053 = vsel %vm3051, %v3050, %v3043
    %v3054 = vld [vmem:[%s3] sm:$0xff]
    %v3055 = vld [vmem:[%s3 + $0x10] sm:$0xff]
    %v3056 = vld [vmem:[%s3 + $0x20] sm:$0xff]
    %v3057 = vld [vmem:[%s3 + $0x30] sm:$0xff]
    %v3058 = vld [vmem:[%s4] sm:$0x1]
    %v3060 = vlaneseq
    %v3061 = vshrl.u32 %v3060, 7
    %v3062 = vsub.s32 0, %v3061
    %v3063 = vrot.slane %v3058, %v3062
    %3068 = vrot.lane.b32.xlu0 %v3054, 32
    %v3069 = vpop.permute.xlu0 %3068
    %3070 = vrot.lane.b32.xlu0 %v3055, 32
    %v3071 = vpop.permute.xlu0 %3070
    %3072 = vrot.lane.b32.xlu0 %v3056, 32
    %v3073 = vpop.permute.xlu0 %3072
    %3074 = vrot.lane.b32.xlu0 %v3057, 32
    %v3075 = vpop.permute.xlu0 %3074
    %3080 = vrot.lane.b32.xlu0 %v3063, 32
    %v3081 = vpop.permute.xlu0 %3080
    %v3084 = vsel %vm454, %v3052, 0
    %v3087 = vsel %vm454, %v3053, 0
    %3089 = vmatprep.subr.mxu0 0.0
    %3090 = vmatpush1.msra.mxu0 0.0
    %3091 = vmatprep.subr.mxu0 0.0
    %3092 = vmatpush1.msra.mxu0 0.0
    %3093 = vmatprep.subr.mxu0 0.0
    %3094 = vmatpush1.msra.mxu0 0.0
    %3095 = vmatprep.subr.mxu0 0.0
    %3096 = vmatpush1.msra.mxu0 0.0
    %3097 = vmatprep.subr.mxu0 0.0
    %3098 = vmatpush1.msra.mxu0 0.0
    %3099 = vmatprep.subr.mxu0 0.0
    %3100 = vmatpush1.msra.mxu0 0.0
    %3101 = vmatprep.subr.mxu0 0.0
    %3102 = vmatpush1.msra.mxu0 0.0
    %3103 = vmatprep.subr.mxu0 0.0
    %3104 = vmatpush1.msra.mxu0 0.0
    %3105 = vmatprep.subr.mxu0 0.0
    %3106 = vmatpush1.msra.mxu0 0.0
    %3107 = vmatprep.subr.mxu0 0.0
    %3108 = vmatpush1.msra.mxu0 0.0
    %3109 = vmatprep.subr.mxu0 0.0
    %3110 = vmatpush1.msra.mxu0 0.0
    %3111 = vmatprep.subr.mxu0 0.0
    %3112 = vmatpush1.msra.mxu0 0.0
    %3113 = vmatprep.subr.mxu0 0.0
    %3114 = vmatpush1.msra.mxu0 %v3075
    %3115 = vmatprep.subr.mxu0 0.0
    %3116 = vmatpush1.msra.mxu0 %v3073
    %3117 = vmatprep.subr.mxu0 0.0
    %3118 = vmatpush1.msra.mxu0 %v3071
    %3119 = vmatprep.subr.mxu0 0.0
    %3120 = vmatpush1.msra.mxu0 %v3069
    %3121 = vmatprep.subr.mxu0 0.0
    %3122 = vmatpush2.msra.mxu0 0.0
    %3123 = vmatprep.subr.mxu0 0.0
    %3124 = vmatpush2.msra.mxu0 0.0
    %3125 = vmatprep.subr.mxu0 0.0
    %3126 = vmatpush2.msra.mxu0 0.0
    %3127 = vmatprep.subr.mxu0 0.0
    %3128 = vmatpush2.msra.mxu0 0.0
    %3129 = vmatprep.subr.mxu0 0.0
    %3130 = vmatpush2.msra.mxu0 0.0
    %3131 = vmatprep.subr.mxu0 0.0
    %3132 = vmatpush2.msra.mxu0 0.0
    %3133 = vmatprep.subr.mxu0 0.0
    %3134 = vmatpush2.msra.mxu0 0.0
    %3135 = vmatprep.subr.mxu0 0.0
    %3136 = vmatpush2.msra.mxu0 0.0
    %3137 = vmatprep.subr.mxu0 0.0
    %3138 = vmatpush2.msra.mxu0 0.0
    %3139 = vmatprep.subr.mxu0 0.0
    %3140 = vmatpush2.msra.mxu0 0.0
    %3141 = vmatprep.subr.mxu0 0.0
    %3142 = vmatpush2.msra.mxu0 0.0
    %3143 = vmatprep.subr.mxu0 0.0
    %3144 = vmatpush2.msra.mxu0 0.0
    %3145 = vmatprep.subr.mxu0 0.0
    %3146 = vmatpush2.msra.mxu0 0.0
    %3147 = vmatprep.subr.mxu0 0.0
    %3148 = vmatpush2.msra.mxu0 0.0
    %3149 = vmatprep.subr.mxu0 0.0
    %3150 = vmatpush2.msra.mxu0 0.0
    %3151 = vmatprep.subr.mxu0 0.0
    %3152 = vmatpush2.msra.mxu0 0.0
    %3153 = vmatprep.mubr.f32.mxu0 0.0
    %3154 = vmatmul.mubr.f32.gmra.mxu0 %v3084
    %v3155 = vpop.f32.mrf.mxu0
    %v3156 = vadd.f32 %v3081, %v3155
    %v3157 = vpop.f32.mrf.mxu0
    %3158 = vmatprep.mubr.f32.mxu0 0.0
    %3159 = vmatmul.mubr.f32.gmra.mxu0 %v3087
    %v3160 = vpop.f32.mrf.mxu0
    %v3161 = vadd.f32 %v3081, %v3160
    %v3162 = vpop.f32.mrf.mxu0
    %3163 = vdwg.mxu0
    %v3164 = vadd.f32 %v3156, %v430
    %v3165 = vadd.f32 %v3161, %v431
    %v3166 = vsel %vm454, %v3164, 0.0
    %3167 = vadd.xlane.f32.xlu0 %v3166
    %v3168 = vpop.xlane.xlu0 %3167
    %v3169 = vsel %vm454, %v3165, 0.0
    %3170 = vadd.xlane.f32.xlu0 %v3169
    %v3171 = vpop.xlane.xlu0 %3170
    %v3172 = vrcp.pop 32.0
    %v3173 = vmul.f32 %v3168, %v3172
    %v3174 = vmul.f32 %v3171, %v3172
    %v3175 = vsub.f32 %v3164, %v3173
    %v3176 = vsub.f32 %v3165, %v3174
    %v3177 = vmul.f32 %v3175, %v3175
    %v3178 = vmul.f32 %v3176, %v3176
    %v3179 = vsel %vm454, %v3177, 0.0
    %3180 = vadd.xlane.f32.xlu0 %v3179
    %v3181 = vpop.xlane.xlu0 %3180
    %v3182 = vsel %vm454, %v3178, 0.0
    %3183 = vadd.xlane.f32.xlu0 %v3182
    %v3184 = vpop.xlane.xlu0 %3183
    %v3185 = vmul.f32 %v3181, %v3172
    %v3186 = vmul.f32 %v3184, %v3172
    %v3187 = vadd.f32 %v3185, 1e-05
    %v3188 = vadd.f32 %v3186, 1e-05
    %v3189 = vrsqrt.pop %v3187
    %v3190 = vrsqrt.pop %v3188
    %v3191 = vmul.f32 %v3175, %v3189
    %v3192 = vmul.f32 %v3176, %v3190
    %3193 = vrot.lane.b32.xlu0 %v442, 96
    %v3194 = vpop.permute.xlu0 %3193
    %v3196 = vmul.f32 %v3191, %v3194
    %v3197 = vmul.f32 %v3192, %v3194
    %3198 = vrot.lane.b32.xlu0 %v442, 64
    %v3199 = vpop.permute.xlu0 %3198
    %v3201 = vadd.f32 %v3196, %v3199
    %v3202 = vadd.f32 %v3197, %v3199
    %v3203 = vld [vmem:[%s3 + $0x8] sm:$0xff]
    %v3204 = vld [vmem:[%s3 + $0x18] sm:$0xff]
    %v3205 = vld [vmem:[%s3 + $0x28] sm:$0xff]
    %v3206 = vld [vmem:[%s3 + $0x38] sm:$0xff]
    %v3207 = vld [vmem:[%s4 + $0x1] sm:$0x1]
    %v3209 = vlaneseq
    %v3210 = vshrl.u32 %v3209, 7
    %v3211 = vsub.s32 0, %v3210
    %v3212 = vrot.slane %v3207, %v3211
    %v3215 = vsel %vm454, %v3201, 0
    %v3218 = vsel %vm454, %v3202, 0
    %3220 = vmatprep.subr.mxu0 0.0
    %3221 = vmatpush1.msra.mxu0 0.0
    %3222 = vmatprep.subr.mxu0 0.0
    %3223 = vmatpush1.msra.mxu0 0.0
    %3224 = vmatprep.subr.mxu0 0.0
    %3225 = vmatpush1.msra.mxu0 0.0
    %3226 = vmatprep.subr.mxu0 0.0
    %3227 = vmatpush1.msra.mxu0 0.0
    %3228 = vmatprep.subr.mxu0 0.0
    %3229 = vmatpush1.msra.mxu0 0.0
    %3230 = vmatprep.subr.mxu0 0.0
    %3231 = vmatpush1.msra.mxu0 0.0
    %3232 = vmatprep.subr.mxu0 0.0
    %3233 = vmatpush1.msra.mxu0 0.0
    %3234 = vmatprep.subr.mxu0 0.0
    %3235 = vmatpush1.msra.mxu0 0.0
    %3236 = vmatprep.subr.mxu0 0.0
    %3237 = vmatpush1.msra.mxu0 0.0
    %3238 = vmatprep.subr.mxu0 0.0
    %3239 = vmatpush1.msra.mxu0 0.0
    %3240 = vmatprep.subr.mxu0 0.0
    %3241 = vmatpush1.msra.mxu0 0.0
    %3242 = vmatprep.subr.mxu0 0.0
    %3243 = vmatpush1.msra.mxu0 0.0
    %3244 = vmatprep.subr.mxu0 0.0
    %3245 = vmatpush1.msra.mxu0 %v3206
    %3246 = vmatprep.subr.mxu0 0.0
    %3247 = vmatpush1.msra.mxu0 %v3205
    %3248 = vmatprep.subr.mxu0 0.0
    %3249 = vmatpush1.msra.mxu0 %v3204
    %3250 = vmatprep.subr.mxu0 0.0
    %3251 = vmatpush1.msra.mxu0 %v3203
    %3252 = vmatprep.subr.mxu0 0.0
    %3253 = vmatpush2.msra.mxu0 0.0
    %3254 = vmatprep.subr.mxu0 0.0
    %3255 = vmatpush2.msra.mxu0 0.0
    %3256 = vmatprep.subr.mxu0 0.0
    %3257 = vmatpush2.msra.mxu0 0.0
    %3258 = vmatprep.subr.mxu0 0.0
    %3259 = vmatpush2.msra.mxu0 0.0
    %3260 = vmatprep.subr.mxu0 0.0
    %3261 = vmatpush2.msra.mxu0 0.0
    %3262 = vmatprep.subr.mxu0 0.0
    %3263 = vmatpush2.msra.mxu0 0.0
    %3264 = vmatprep.subr.mxu0 0.0
    %3265 = vmatpush2.msra.mxu0 0.0
    %3266 = vmatprep.subr.mxu0 0.0
    %3267 = vmatpush2.msra.mxu0 0.0
    %3268 = vmatprep.subr.mxu0 0.0
    %3269 = vmatpush2.msra.mxu0 0.0
    %3270 = vmatprep.subr.mxu0 0.0
    %3271 = vmatpush2.msra.mxu0 0.0
    %3272 = vmatprep.subr.mxu0 0.0
    %3273 = vmatpush2.msra.mxu0 0.0
    %3274 = vmatprep.subr.mxu0 0.0
    %3275 = vmatpush2.msra.mxu0 0.0
    %3276 = vmatprep.subr.mxu0 0.0
    %3277 = vmatpush2.msra.mxu0 0.0
    %3278 = vmatprep.subr.mxu0 0.0
    %3279 = vmatpush2.msra.mxu0 0.0
    %3280 = vmatprep.subr.mxu0 0.0
    %3281 = vmatpush2.msra.mxu0 0.0
    %3282 = vmatprep.subr.mxu0 0.0
    %3283 = vmatpush2.msra.mxu0 0.0
    %3284 = vmatprep.mubr.f32.mxu0 0.0
    %3285 = vmatmul.mubr.f32.gmra.mxu0 %v3215
    %v3286 = vpop.f32.mrf.mxu0
    %v3287 = vadd.f32 %v3212, %v3286
    %v3288 = vpop.f32.mrf.mxu0
    %3289 = vmatprep.mubr.f32.mxu0 0.0
    %3290 = vmatmul.mubr.f32.gmra.mxu0 %v3218
    %v3291 = vpop.f32.mrf.mxu0
    %v3292 = vadd.f32 %v3212, %v3291
    %v3293 = vpop.f32.mrf.mxu0
    %3294 = vdwg.mxu0
    %v3295 = vmul.f32 %v3287, 0.35355338
    %v3296 = vmul.f32 %v3292, 0.35355338
    %3301 = vrot.lane.b32.xlu0 %v3203, 96
    %v3302 = vpop.permute.xlu0 %3301
    %3303 = vrot.lane.b32.xlu0 %v3204, 96
    %v3304 = vpop.permute.xlu0 %3303
    %3305 = vrot.lane.b32.xlu0 %v3205, 96
    %v3306 = vpop.permute.xlu0 %3305
    %3307 = vrot.lane.b32.xlu0 %v3206, 96
    %v3308 = vpop.permute.xlu0 %3307
    %3313 = vrot.lane.b32.xlu0 %v3212, 96
    %v3314 = vpop.permute.xlu0 %3313
    %v3317 = vsel %vm454, %v432, 0
    %v3320 = vsel %vm454, %v433, 0
    %3322 = vmatprep.subr.mxu0 0.0
    %3323 = vmatpush1.msra.mxu0 0.0
    %3324 = vmatprep.subr.mxu0 0.0
    %3325 = vmatpush1.msra.mxu0 0.0
    %3326 = vmatprep.subr.mxu0 0.0
    %3327 = vmatpush1.msra.mxu0 0.0
    %3328 = vmatprep.subr.mxu0 0.0
    %3329 = vmatpush1.msra.mxu0 0.0
    %3330 = vmatprep.subr.mxu0 0.0
    %3331 = vmatpush1.msra.mxu0 0.0
    %3332 = vmatprep.subr.mxu0 0.0
    %3333 = vmatpush1.msra.mxu0 0.0
    %3334 = vmatprep.subr.mxu0 0.0
    %3335 = vmatpush1.msra.mxu0 0.0
    %3336 = vmatprep.subr.mxu0 0.0
    %3337 = vmatpush1.msra.mxu0 0.0
    %3338 = vmatprep.subr.mxu0 0.0
    %3339 = vmatpush1.msra.mxu0 0.0
    %3340 = vmatprep.subr.mxu0 0.0
    %3341 = vmatpush1.msra.mxu0 0.0
    %3342 = vmatprep.subr.mxu0 0.0
    %3343 = vmatpush1.msra.mxu0 0.0
    %3344 = vmatprep.subr.mxu0 0.0
    %3345 = vmatpush1.msra.mxu0 0.0
    %3346 = vmatprep.subr.mxu0 0.0
    %3347 = vmatpush1.msra.mxu0 %v3308
    %3348 = vmatprep.subr.mxu0 0.0
    %3349 = vmatpush1.msra.mxu0 %v3306
    %3350 = vmatprep.subr.mxu0 0.0
    %3351 = vmatpush1.msra.mxu0 %v3304
    %3352 = vmatprep.subr.mxu0 0.0
    %3353 = vmatpush1.msra.mxu0 %v3302
    %3354 = vmatprep.subr.mxu0 0.0
    %3355 = vmatpush2.msra.mxu0 0.0
    %3356 = vmatprep.subr.mxu0 0.0
    %3357 = vmatpush2.msra.mxu0 0.0
    %3358 = vmatprep.subr.mxu0 0.0
    %3359 = vmatpush2.msra.mxu0 0.0
    %3360 = vmatprep.subr.mxu0 0.0
    %3361 = vmatpush2.msra.mxu0 0.0
    %3362 = vmatprep.subr.mxu0 0.0
    %3363 = vmatpush2.msra.mxu0 0.0
    %3364 = vmatprep.subr.mxu0 0.0
    %3365 = vmatpush2.msra.mxu0 0.0
    %3366 = vmatprep.subr.mxu0 0.0
    %3367 = vmatpush2.msra.mxu0 0.0
    %3368 = vmatprep.subr.mxu0 0.0
    %3369 = vmatpush2.msra.mxu0 0.0
    %3370 = vmatprep.subr.mxu0 0.0
    %3371 = vmatpush2.msra.mxu0 0.0
    %3372 = vmatprep.subr.mxu0 0.0
    %3373 = vmatpush2.msra.mxu0 0.0
    %3374 = vmatprep.subr.mxu0 0.0
    %3375 = vmatpush2.msra.mxu0 0.0
    %3376 = vmatprep.subr.mxu0 0.0
    %3377 = vmatpush2.msra.mxu0 0.0
    %3378 = vmatprep.subr.mxu0 0.0
    %3379 = vmatpush2.msra.mxu0 0.0
    %3380 = vmatprep.subr.mxu0 0.0
    %3381 = vmatpush2.msra.mxu0 0.0
    %3382 = vmatprep.subr.mxu0 0.0
    %3383 = vmatpush2.msra.mxu0 0.0
    %3384 = vmatprep.subr.mxu0 0.0
    %3385 = vmatpush2.msra.mxu0 0.0
    %3386 = vmatprep.mubr.f32.mxu0 0.0
    %3387 = vmatmul.mubr.f32.gmra.mxu0 %v3317
    %v3388 = vpop.f32.mrf.mxu0
    %v3389 = vadd.f32 %v3314, %v3388
    %v3390 = vpop.f32.mrf.mxu0
    %3391 = vmatprep.mubr.f32.mxu0 0.0
    %3392 = vmatmul.mubr.f32.gmra.mxu0 %v3320
    %v3393 = vpop.f32.mrf.mxu0
    %v3394 = vadd.f32 %v3314, %v3393
    %v3395 = vpop.f32.mrf.mxu0
    %3396 = vdwg.mxu0
    %3399 = vrot.lane.b32.xlu0 %v3295, 120
    %v3400 = vpop.permute.xlu0 %3399
    %3401 = vrot.lane.b32.xlu0 %v3296, 120
    %v3402 = vpop.permute.xlu0 %3401
    %3405 = vrot.lane.b32.xlu0 %v3295, 112
    %v3406 = vpop.permute.xlu0 %3405
    %3407 = vrot.lane.b32.xlu0 %v3296, 112
    %v3408 = vpop.permute.xlu0 %3407
    %3411 = vrot.lane.b32.xlu0 %v3295, 104
    %v3412 = vpop.permute.xlu0 %3411
    %3413 = vrot.lane.b32.xlu0 %v3296, 104
    %v3414 = vpop.permute.xlu0 %3413
    %v3417 = vcombine.low %v3295, %v3406
    %v3418 = vcombine.high %v3295, %v3406
    %v3420 = vunpack.c.l.s4 1983009808
    %v3421 = vunpack.c.0.s8 %v3420
    %v3422 = vlaneseq
    %v3423 = vshrl.u32 %v3422, 7
    %v3424 = vsub.s32 %v3421, %v3423
    %v3425 = vrot.slane %v3417, %v3424
    %v3427 = vunpack.c.l.s4 1983009808
    %v3428 = vunpack.c.0.s8 %v3427
    %v3429 = vlaneseq
    %v3430 = vshrl.u32 %v3429, 7
    %v3431 = vsub.s32 %v3428, %v3430
    %v3432 = vrot.slane %v3418, %v3431
    %v3433 = vcombine.low %v3400, %v3412
    %v3434 = vcombine.high %v3400, %v3412
    %v3436 = vunpack.c.l.s4 1983009808
    %v3437 = vunpack.c.0.s8 %v3436
    %v3438 = vlaneseq
    %v3439 = vshrl.u32 %v3438, 7
    %v3440 = vsub.s32 %v3437, %v3439
    %v3441 = vrot.slane %v3433, %v3440
    %v3443 = vunpack.c.l.s4 1983009808
    %v3444 = vunpack.c.0.s8 %v3443
    %v3445 = vlaneseq
    %v3446 = vshrl.u32 %v3445, 7
    %v3447 = vsub.s32 %v3444, %v3446
    %v3448 = vrot.slane %v3434, %v3447
    %v3449 = vcombine.low %v3425, %v3441
    %v3450 = vcombine.high %v3425, %v3441
    %v3452 = vunpack.c.l.s4 1934713408
    %v3453 = vunpack.c.0.s8 %v3452
    %v3454 = vlaneseq
    %v3455 = vshrl.u32 %v3454, 7
    %v3456 = vsub.s32 %v3453, %v3455
    %v3457 = vrot.slane %v3449, %v3456
    %v3459 = vunpack.c.l.s4 1934713408
    %v3460 = vunpack.c.0.s8 %v3459
    %v3461 = vlaneseq
    %v3462 = vshrl.u32 %v3461, 7
    %v3463 = vsub.s32 %v3460, %v3462
    %v3464 = vrot.slane %v3450, %v3463
    %v3465 = vcombine.low %v3432, %v3448
    %v3466 = vcombine.high %v3432, %v3448
    %v3468 = vunpack.c.l.s4 1934713408
    %v3469 = vunpack.c.0.s8 %v3468
    %v3470 = vlaneseq
    %v3471 = vshrl.u32 %v3470, 7
    %v3472 = vsub.s32 %v3469, %v3471
    %v3473 = vrot.slane %v3465, %v3472
    %v3475 = vunpack.c.l.s4 1934713408
    %v3476 = vunpack.c.0.s8 %v3475
    %v3477 = vlaneseq
    %v3478 = vshrl.u32 %v3477, 7
    %v3479 = vsub.s32 %v3476, %v3478
    %v3480 = vrot.slane %v3466, %v3479
    %v3481 = vcombine.high %v3457, 0.0
    %v3482 = vcombine.high %v3464, 0.0
    %v3483 = vcombine.high %v3473, 0.0
    %v3484 = vcombine.high %v3480, 0.0
    %v3485 = vcombine.low %v3296, %v3408
    %v3486 = vcombine.high %v3296, %v3408
    %v3488 = vunpack.c.l.s4 1983009808
    %v3489 = vunpack.c.0.s8 %v3488
    %v3490 = vlaneseq
    %v3491 = vshrl.u32 %v3490, 7
    %v3492 = vsub.s32 %v3489, %v3491
    %v3493 = vrot.slane %v3485, %v3492
    %v3495 = vunpack.c.l.s4 1983009808
    %v3496 = vunpack.c.0.s8 %v3495
    %v3497 = vlaneseq
    %v3498 = vshrl.u32 %v3497, 7
    %v3499 = vsub.s32 %v3496, %v3498
    %v3500 = vrot.slane %v3486, %v3499
    %v3501 = vcombine.low %v3402, %v3414
    %v3502 = vcombine.high %v3402, %v3414
    %v3504 = vunpack.c.l.s4 1983009808
    %v3505 = vunpack.c.0.s8 %v3504
    %v3506 = vlaneseq
    %v3507 = vshrl.u32 %v3506, 7
    %v3508 = vsub.s32 %v3505, %v3507
    %v3509 = vrot.slane %v3501, %v3508
    %v3511 = vunpack.c.l.s4 1983009808
    %v3512 = vunpack.c.0.s8 %v3511
    %v3513 = vlaneseq
    %v3514 = vshrl.u32 %v3513, 7
    %v3515 = vsub.s32 %v3512, %v3514
    %v3516 = vrot.slane %v3502, %v3515
    %v3517 = vcombine.low %v3493, %v3509
    %v3518 = vcombine.high %v3493, %v3509
    %v3520 = vunpack.c.l.s4 1934713408
    %v3521 = vunpack.c.0.s8 %v3520
    %v3522 = vlaneseq
    %v3523 = vshrl.u32 %v3522, 7
    %v3524 = vsub.s32 %v3521, %v3523
    %v3525 = vrot.slane %v3517, %v3524
    %v3527 = vunpack.c.l.s4 1934713408
    %v3528 = vunpack.c.0.s8 %v3527
    %v3529 = vlaneseq
    %v3530 = vshrl.u32 %v3529, 7
    %v3531 = vsub.s32 %v3528, %v3530
    %v3532 = vrot.slane %v3518, %v3531
    %v3533 = vcombine.low %v3500, %v3516
    %v3534 = vcombine.high %v3500, %v3516
    %v3536 = vunpack.c.l.s4 1934713408
    %v3537 = vunpack.c.0.s8 %v3536
    %v3538 = vlaneseq
    %v3539 = vshrl.u32 %v3538, 7
    %v3540 = vsub.s32 %v3537, %v3539
    %v3541 = vrot.slane %v3533, %v3540
    %v3543 = vunpack.c.l.s4 1934713408
    %v3544 = vunpack.c.0.s8 %v3543
    %v3545 = vlaneseq
    %v3546 = vshrl.u32 %v3545, 7
    %v3547 = vsub.s32 %v3544, %v3546
    %v3548 = vrot.slane %v3534, %v3547
    %v3549 = vcombine.high %v3525, 0.0
    %v3550 = vcombine.high %v3532, 0.0
    %v3551 = vcombine.high %v3541, 0.0
    %v3552 = vcombine.high %v3548, 0.0
    %v3553 = vcombine.low %v3457, %v3464
    %v3555 = vunpack.c.l.s4 1983009808
    %v3556 = vunpack.c.0.s8 %v3555
    %v3557 = vlaneseq
    %v3558 = vshrl.u32 %v3557, 7
    %v3559 = vsub.s32 %v3556, %v3558
    %v3560 = vrot.slane %v3553, %v3559
    %v3561 = vcombine.low %v3481, %v3482
    %v3563 = vunpack.c.l.s4 1983009808
    %v3564 = vunpack.c.0.s8 %v3563
    %v3565 = vlaneseq
    %v3566 = vshrl.u32 %v3565, 7
    %v3567 = vsub.s32 %v3564, %v3566
    %v3568 = vrot.slane %v3561, %v3567
    %v3569 = vcombine.low %v3473, %v3480
    %v3571 = vunpack.c.l.s4 1983009808
    %v3572 = vunpack.c.0.s8 %v3571
    %v3573 = vlaneseq
    %v3574 = vshrl.u32 %v3573, 7
    %v3575 = vsub.s32 %v3572, %v3574
    %v3576 = vrot.slane %v3569, %v3575
    %v3577 = vcombine.low %v3483, %v3484
    %v3579 = vunpack.c.l.s4 1983009808
    %v3580 = vunpack.c.0.s8 %v3579
    %v3581 = vlaneseq
    %v3582 = vshrl.u32 %v3581, 7
    %v3583 = vsub.s32 %v3580, %v3582
    %v3584 = vrot.slane %v3577, %v3583
    %v3585 = vcombine.low %v3560, %v3568
    %v3586 = vcombine.high %v3560, %v3568
    %v3588 = vunpack.c.l.s4 1934713408
    %v3589 = vunpack.c.0.s8 %v3588
    %v3590 = vlaneseq
    %v3591 = vshrl.u32 %v3590, 7
    %v3592 = vsub.s32 %v3589, %v3591
    %v3593 = vrot.slane %v3585, %v3592
    %v3595 = vunpack.c.l.s4 1934713408
    %v3596 = vunpack.c.0.s8 %v3595
    %v3597 = vlaneseq
    %v3598 = vshrl.u32 %v3597, 7
    %v3599 = vsub.s32 %v3596, %v3598
    %v3600 = vrot.slane %v3586, %v3599
    %v3601 = vcombine.low %v3576, %v3584
    %v3602 = vcombine.high %v3576, %v3584
    %v3604 = vunpack.c.l.s4 1934713408
    %v3605 = vunpack.c.0.s8 %v3604
    %v3606 = vlaneseq
    %v3607 = vshrl.u32 %v3606, 7
    %v3608 = vsub.s32 %v3605, %v3607
    %v3609 = vrot.slane %v3601, %v3608
    %v3611 = vunpack.c.l.s4 1934713408
    %v3612 = vunpack.c.0.s8 %v3611
    %v3613 = vlaneseq
    %v3614 = vshrl.u32 %v3613, 7
    %v3615 = vsub.s32 %v3612, %v3614
    %v3616 = vrot.slane %v3602, %v3615
    %v3617 = vcombine.low %v3593, %v3609
    %v3618 = vcombine.high %v3593, %v3609
    %v3619 = vcombine.low %v3600, %v3616
    %v3620 = vcombine.high %v3600, %v3616
    %v3621 = vcombine.low %v3525, %v3532
    %v3623 = vunpack.c.l.s4 1983009808
    %v3624 = vunpack.c.0.s8 %v3623
    %v3625 = vlaneseq
    %v3626 = vshrl.u32 %v3625, 7
    %v3627 = vsub.s32 %v3624, %v3626
    %v3628 = vrot.slane %v3621, %v3627
    %v3629 = vcombine.low %v3549, %v3550
    %v3631 = vunpack.c.l.s4 1983009808
    %v3632 = vunpack.c.0.s8 %v3631
    %v3633 = vlaneseq
    %v3634 = vshrl.u32 %v3633, 7
    %v3635 = vsub.s32 %v3632, %v3634
    %v3636 = vrot.slane %v3629, %v3635
    %v3637 = vcombine.low %v3541, %v3548
    %v3639 = vunpack.c.l.s4 1983009808
    %v3640 = vunpack.c.0.s8 %v3639
    %v3641 = vlaneseq
    %v3642 = vshrl.u32 %v3641, 7
    %v3643 = vsub.s32 %v3640, %v3642
    %v3644 = vrot.slane %v3637, %v3643
    %v3645 = vcombine.low %v3551, %v3552
    %v3647 = vunpack.c.l.s4 1983009808
    %v3648 = vunpack.c.0.s8 %v3647
    %v3649 = vlaneseq
    %v3650 = vshrl.u32 %v3649, 7
    %v3651 = vsub.s32 %v3648, %v3650
    %v3652 = vrot.slane %v3645, %v3651
    %v3653 = vcombine.low %v3628, %v3636
    %v3654 = vcombine.high %v3628, %v3636
    %v3656 = vunpack.c.l.s4 1934713408
    %v3657 = vunpack.c.0.s8 %v3656
    %v3658 = vlaneseq
    %v3659 = vshrl.u32 %v3658, 7
    %v3660 = vsub.s32 %v3657, %v3659
    %v3661 = vrot.slane %v3653, %v3660
    %v3663 = vunpack.c.l.s4 1934713408
    %v3664 = vunpack.c.0.s8 %v3663
    %v3665 = vlaneseq
    %v3666 = vshrl.u32 %v3665, 7
    %v3667 = vsub.s32 %v3664, %v3666
    %v3668 = vrot.slane %v3654, %v3667
    %v3669 = vcombine.low %v3644, %v3652
    %v3670 = vcombine.high %v3644, %v3652
    %v3672 = vunpack.c.l.s4 1934713408
    %v3673 = vunpack.c.0.s8 %v3672
    %v3674 = vlaneseq
    %v3675 = vshrl.u32 %v3674, 7
    %v3676 = vsub.s32 %v3673, %v3675
    %v3677 = vrot.slane %v3669, %v3676
    %v3679 = vunpack.c.l.s4 1934713408
    %v3680 = vunpack.c.0.s8 %v3679
    %v3681 = vlaneseq
    %v3682 = vshrl.u32 %v3681, 7
    %v3683 = vsub.s32 %v3680, %v3682
    %v3684 = vrot.slane %v3670, %v3683
    %v3685 = vcombine.low %v3661, %v3677
    %v3686 = vcombine.high %v3661, %v3677
    %v3687 = vcombine.low %v3668, %v3684
    %v3688 = vcombine.high %v3668, %v3684
    %3691 = vrot.lane.b32.xlu0 %v3389, 120
    %v3692 = vpop.permute.xlu0 %3691
    %3693 = vrot.lane.b32.xlu0 %v3394, 120
    %v3694 = vpop.permute.xlu0 %3693
    %3697 = vrot.lane.b32.xlu0 %v3389, 112
    %v3698 = vpop.permute.xlu0 %3697
    %3699 = vrot.lane.b32.xlu0 %v3394, 112
    %v3700 = vpop.permute.xlu0 %3699
    %3703 = vrot.lane.b32.xlu0 %v3389, 104
    %v3704 = vpop.permute.xlu0 %3703
    %3705 = vrot.lane.b32.xlu0 %v3394, 104
    %v3706 = vpop.permute.xlu0 %3705
    %v3709 = vcombine.low %v3389, %v3698
    %v3710 = vcombine.high %v3389, %v3698
    %v3712 = vunpack.c.l.s4 1983009808
    %v3713 = vunpack.c.0.s8 %v3712
    %v3714 = vlaneseq
    %v3715 = vshrl.u32 %v3714, 7
    %v3716 = vsub.s32 %v3713, %v3715
    %v3717 = vrot.slane %v3709, %v3716
    %v3719 = vunpack.c.l.s4 1983009808
    %v3720 = vunpack.c.0.s8 %v3719
    %v3721 = vlaneseq
    %v3722 = vshrl.u32 %v3721, 7
    %v3723 = vsub.s32 %v3720, %v3722
    %v3724 = vrot.slane %v3710, %v3723
    %v3725 = vcombine.low %v3692, %v3704
    %v3726 = vcombine.high %v3692, %v3704
    %v3728 = vunpack.c.l.s4 1983009808
    %v3729 = vunpack.c.0.s8 %v3728
    %v3730 = vlaneseq
    %v3731 = vshrl.u32 %v3730, 7
    %v3732 = vsub.s32 %v3729, %v3731
    %v3733 = vrot.slane %v3725, %v3732
    %v3735 = vunpack.c.l.s4 1983009808
    %v3736 = vunpack.c.0.s8 %v3735
    %v3737 = vlaneseq
    %v3738 = vshrl.u32 %v3737, 7
    %v3739 = vsub.s32 %v3736, %v3738
    %v3740 = vrot.slane %v3726, %v3739
    %v3741 = vcombine.low %v3717, %v3733
    %v3742 = vcombine.high %v3717, %v3733
    %v3744 = vunpack.c.l.s4 1934713408
    %v3745 = vunpack.c.0.s8 %v3744
    %v3746 = vlaneseq
    %v3747 = vshrl.u32 %v3746, 7
    %v3748 = vsub.s32 %v3745, %v3747
    %v3749 = vrot.slane %v3741, %v3748
    %v3751 = vunpack.c.l.s4 1934713408
    %v3752 = vunpack.c.0.s8 %v3751
    %v3753 = vlaneseq
    %v3754 = vshrl.u32 %v3753, 7
    %v3755 = vsub.s32 %v3752, %v3754
    %v3756 = vrot.slane %v3742, %v3755
    %v3757 = vcombine.low %v3724, %v3740
    %v3758 = vcombine.high %v3724, %v3740
    %v3760 = vunpack.c.l.s4 1934713408
    %v3761 = vunpack.c.0.s8 %v3760
    %v3762 = vlaneseq
    %v3763 = vshrl.u32 %v3762, 7
    %v3764 = vsub.s32 %v3761, %v3763
    %v3765 = vrot.slane %v3757, %v3764
    %v3767 = vunpack.c.l.s4 1934713408
    %v3768 = vunpack.c.0.s8 %v3767
    %v3769 = vlaneseq
    %v3770 = vshrl.u32 %v3769, 7
    %v3771 = vsub.s32 %v3768, %v3770
    %v3772 = vrot.slane %v3758, %v3771
    %v3773 = vcombine.high %v3749, 0.0
    %v3774 = vcombine.high %v3756, 0.0
    %v3775 = vcombine.high %v3765, 0.0
    %v3776 = vcombine.high %v3772, 0.0
    %v3777 = vcombine.low %v3394, %v3700
    %v3778 = vcombine.high %v3394, %v3700
    %v3780 = vunpack.c.l.s4 1983009808
    %v3781 = vunpack.c.0.s8 %v3780
    %v3782 = vlaneseq
    %v3783 = vshrl.u32 %v3782, 7
    %v3784 = vsub.s32 %v3781, %v3783
    %v3785 = vrot.slane %v3777, %v3784
    %v3787 = vunpack.c.l.s4 1983009808
    %v3788 = vunpack.c.0.s8 %v3787
    %v3789 = vlaneseq
    %v3790 = vshrl.u32 %v3789, 7
    %v3791 = vsub.s32 %v3788, %v3790
    %v3792 = vrot.slane %v3778, %v3791
    %v3793 = vcombine.low %v3694, %v3706
    %v3794 = vcombine.high %v3694, %v3706
    %v3796 = vunpack.c.l.s4 1983009808
    %v3797 = vunpack.c.0.s8 %v3796
    %v3798 = vlaneseq
    %v3799 = vshrl.u32 %v3798, 7
    %v3800 = vsub.s32 %v3797, %v3799
    %v3801 = vrot.slane %v3793, %v3800
    %v3803 = vunpack.c.l.s4 1983009808
    %v3804 = vunpack.c.0.s8 %v3803
    %v3805 = vlaneseq
    %v3806 = vshrl.u32 %v3805, 7
    %v3807 = vsub.s32 %v3804, %v3806
    %v3808 = vrot.slane %v3794, %v3807
    %v3809 = vcombine.low %v3785, %v3801
    %v3810 = vcombine.high %v3785, %v3801
    %v3812 = vunpack.c.l.s4 1934713408
    %v3813 = vunpack.c.0.s8 %v3812
    %v3814 = vlaneseq
    %v3815 = vshrl.u32 %v3814, 7
    %v3816 = vsub.s32 %v3813, %v3815
    %v3817 = vrot.slane %v3809, %v3816
    %v3819 = vunpack.c.l.s4 1934713408
    %v3820 = vunpack.c.0.s8 %v3819
    %v3821 = vlaneseq
    %v3822 = vshrl.u32 %v3821, 7
    %v3823 = vsub.s32 %v3820, %v3822
    %v3824 = vrot.slane %v3810, %v3823
    %v3825 = vcombine.low %v3792, %v3808
    %v3826 = vcombine.high %v3792, %v3808
    %v3828 = vunpack.c.l.s4 1934713408
    %v3829 = vunpack.c.0.s8 %v3828
    %v3830 = vlaneseq
    %v3831 = vshrl.u32 %v3830, 7
    %v3832 = vsub.s32 %v3829, %v3831
    %v3833 = vrot.slane %v3825, %v3832
    %v3835 = vunpack.c.l.s4 1934713408
    %v3836 = vunpack.c.0.s8 %v3835
    %v3837 = vlaneseq
    %v3838 = vshrl.u32 %v3837, 7
    %v3839 = vsub.s32 %v3836, %v3838
    %v3840 = vrot.slane %v3826, %v3839
    %v3841 = vcombine.high %v3817, 0.0
    %v3842 = vcombine.high %v3824, 0.0
    %v3843 = vcombine.high %v3833, 0.0
    %v3844 = vcombine.high %v3840, 0.0
    %v3845 = vcombine.low %v3749, %v3756
    %v3847 = vunpack.c.l.s4 1983009808
    %v3848 = vunpack.c.0.s8 %v3847
    %v3849 = vlaneseq
    %v3850 = vshrl.u32 %v3849, 7
    %v3851 = vsub.s32 %v3848, %v3850
    %v3852 = vrot.slane %v3845, %v3851
    %v3853 = vcombine.low %v3773, %v3774
    %v3855 = vunpack.c.l.s4 1983009808
    %v3856 = vunpack.c.0.s8 %v3855
    %v3857 = vlaneseq
    %v3858 = vshrl.u32 %v3857, 7
    %v3859 = vsub.s32 %v3856, %v3858
    %v3860 = vrot.slane %v3853, %v3859
    %v3861 = vcombine.low %v3765, %v3772
    %v3863 = vunpack.c.l.s4 1983009808
    %v3864 = vunpack.c.0.s8 %v3863
    %v3865 = vlaneseq
    %v3866 = vshrl.u32 %v3865, 7
    %v3867 = vsub.s32 %v3864, %v3866
    %v3868 = vrot.slane %v3861, %v3867
    %v3869 = vcombine.low %v3775, %v3776
    %v3871 = vunpack.c.l.s4 1983009808
    %v3872 = vunpack.c.0.s8 %v3871
    %v3873 = vlaneseq
    %v3874 = vshrl.u32 %v3873, 7
    %v3875 = vsub.s32 %v3872, %v3874
    %v3876 = vrot.slane %v3869, %v3875
    %v3877 = vcombine.low %v3852, %v3860
    %v3878 = vcombine.high %v3852, %v3860
    %v3880 = vunpack.c.l.s4 1934713408
    %v3881 = vunpack.c.0.s8 %v3880
    %v3882 = vlaneseq
    %v3883 = vshrl.u32 %v3882, 7
    %v3884 = vsub.s32 %v3881, %v3883
    %v3885 = vrot.slane %v3877, %v3884
    %v3887 = vunpack.c.l.s4 1934713408
    %v3888 = vunpack.c.0.s8 %v3887
    %v3889 = vlaneseq
    %v3890 = vshrl.u32 %v3889, 7
    %v3891 = vsub.s32 %v3888, %v3890
    %v3892 = vrot.slane %v3878, %v3891
    %v3893 = vcombine.low %v3868, %v3876
    %v3894 = vcombine.high %v3868, %v3876
    %v3896 = vunpack.c.l.s4 1934713408
    %v3897 = vunpack.c.0.s8 %v3896
    %v3898 = vlaneseq
    %v3899 = vshrl.u32 %v3898, 7
    %v3900 = vsub.s32 %v3897, %v3899
    %v3901 = vrot.slane %v3893, %v3900
    %v3903 = vunpack.c.l.s4 1934713408
    %v3904 = vunpack.c.0.s8 %v3903
    %v3905 = vlaneseq
    %v3906 = vshrl.u32 %v3905, 7
    %v3907 = vsub.s32 %v3904, %v3906
    %v3908 = vrot.slane %v3894, %v3907
    %v3909 = vcombine.low %v3885, %v3901
    %v3910 = vcombine.high %v3885, %v3901
    %v3911 = vcombine.low %v3892, %v3908
    %v3912 = vcombine.high %v3892, %v3908
    %v3913 = vcombine.low %v3817, %v3824
    %v3915 = vunpack.c.l.s4 1983009808
    %v3916 = vunpack.c.0.s8 %v3915
    %v3917 = vlaneseq
    %v3918 = vshrl.u32 %v3917, 7
    %v3919 = vsub.s32 %v3916, %v3918
    %v3920 = vrot.slane %v3913, %v3919
    %v3921 = vcombine.low %v3841, %v3842
    %v3923 = vunpack.c.l.s4 1983009808
    %v3924 = vunpack.c.0.s8 %v3923
    %v3925 = vlaneseq
    %v3926 = vshrl.u32 %v3925, 7
    %v3927 = vsub.s32 %v3924, %v3926
    %v3928 = vrot.slane %v3921, %v3927
    %v3929 = vcombine.low %v3833, %v3840
    %v3931 = vunpack.c.l.s4 1983009808
    %v3932 = vunpack.c.0.s8 %v3931
    %v3933 = vlaneseq
    %v3934 = vshrl.u32 %v3933, 7
    %v3935 = vsub.s32 %v3932, %v3934
    %v3936 = vrot.slane %v3929, %v3935
    %v3937 = vcombine.low %v3843, %v3844
    %v3939 = vunpack.c.l.s4 1983009808
    %v3940 = vunpack.c.0.s8 %v3939
    %v3941 = vlaneseq
    %v3942 = vshrl.u32 %v3941, 7
    %v3943 = vsub.s32 %v3940, %v3942
    %v3944 = vrot.slane %v3937, %v3943
    %v3945 = vcombine.low %v3920, %v3928
    %v3946 = vcombine.high %v3920, %v3928
    %v3948 = vunpack.c.l.s4 1934713408
    %v3949 = vunpack.c.0.s8 %v3948
    %v3950 = vlaneseq
    %v3951 = vshrl.u32 %v3950, 7
    %v3952 = vsub.s32 %v3949, %v3951
    %v3953 = vrot.slane %v3945, %v3952
    %v3955 = vunpack.c.l.s4 1934713408
    %v3956 = vunpack.c.0.s8 %v3955
    %v3957 = vlaneseq
    %v3958 = vshrl.u32 %v3957, 7
    %v3959 = vsub.s32 %v3956, %v3958
    %v3960 = vrot.slane %v3946, %v3959
    %v3961 = vcombine.low %v3936, %v3944
    %v3962 = vcombine.high %v3936, %v3944
    %v3964 = vunpack.c.l.s4 1934713408
    %v3965 = vunpack.c.0.s8 %v3964
    %v3966 = vlaneseq
    %v3967 = vshrl.u32 %v3966, 7
    %v3968 = vsub.s32 %v3965, %v3967
    %v3969 = vrot.slane %v3961, %v3968
    %v3971 = vunpack.c.l.s4 1934713408
    %v3972 = vunpack.c.0.s8 %v3971
    %v3973 = vlaneseq
    %v3974 = vshrl.u32 %v3973, 7
    %v3975 = vsub.s32 %v3972, %v3974
    %v3976 = vrot.slane %v3962, %v3975
    %v3977 = vcombine.low %v3953, %v3969
    %v3978 = vcombine.high %v3953, %v3969
    %v3979 = vcombine.low %v3960, %v3976
    %v3980 = vcombine.high %v3960, %v3976
    %3981 = vrot.lane.b32.xlu0 %v3389, 96
    %v3982 = vpop.permute.xlu0 %3981
    %3983 = vrot.lane.b32.xlu0 %v3394, 96
    %v3984 = vpop.permute.xlu0 %3983
    %3985 = vrot.lane.b32.xlu0 %v3692, 96
    %v3986 = vpop.permute.xlu0 %3985
    %3987 = vrot.lane.b32.xlu0 %v3694, 96
    %v3988 = vpop.permute.xlu0 %3987
    %3989 = vrot.lane.b32.xlu0 %v3698, 96
    %v3990 = vpop.permute.xlu0 %3989
    %3991 = vrot.lane.b32.xlu0 %v3700, 96
    %v3992 = vpop.permute.xlu0 %3991
    %3993 = vrot.lane.b32.xlu0 %v3704, 96
    %v3994 = vpop.permute.xlu0 %3993
    %3995 = vrot.lane.b32.xlu0 %v3706, 96
    %v3996 = vpop.permute.xlu0 %3995
    %v4005 = vcombine.low %v3982, %v3990
    %v4006 = vcombine.high %v3982, %v3990
    %v4008 = vunpack.c.l.s4 1983009808
    %v4009 = vunpack.c.0.s8 %v4008
    %v4010 = vlaneseq
    %v4011 = vshrl.u32 %v4010, 7
    %v4012 = vsub.s32 %v4009, %v4011
    %v4013 = vrot.slane %v4005, %v4012
    %v4015 = vunpack.c.l.s4 1983009808
    %v4016 = vunpack.c.0.s8 %v4015
    %v4017 = vlaneseq
    %v4018 = vshrl.u32 %v4017, 7
    %v4019 = vsub.s32 %v4016, %v4018
    %v4020 = vrot.slane %v4006, %v4019
    %v4021 = vcombine.low %v3986, %v3994
    %v4022 = vcombine.high %v3986, %v3994
    %v4024 = vunpack.c.l.s4 1983009808
    %v4025 = vunpack.c.0.s8 %v4024
    %v4026 = vlaneseq
    %v4027 = vshrl.u32 %v4026, 7
    %v4028 = vsub.s32 %v4025, %v4027
    %v4029 = vrot.slane %v4021, %v4028
    %v4031 = vunpack.c.l.s4 1983009808
    %v4032 = vunpack.c.0.s8 %v4031
    %v4033 = vlaneseq
    %v4034 = vshrl.u32 %v4033, 7
    %v4035 = vsub.s32 %v4032, %v4034
    %v4036 = vrot.slane %v4022, %v4035
    %v4037 = vcombine.low %v4013, %v4029
    %v4038 = vcombine.high %v4013, %v4029
    %v4040 = vunpack.c.l.s4 1934713408
    %v4041 = vunpack.c.0.s8 %v4040
    %v4042 = vlaneseq
    %v4043 = vshrl.u32 %v4042, 7
    %v4044 = vsub.s32 %v4041, %v4043
    %v4045 = vrot.slane %v4037, %v4044
    %v4047 = vunpack.c.l.s4 1934713408
    %v4048 = vunpack.c.0.s8 %v4047
    %v4049 = vlaneseq
    %v4050 = vshrl.u32 %v4049, 7
    %v4051 = vsub.s32 %v4048, %v4050
    %v4052 = vrot.slane %v4038, %v4051
    %v4053 = vcombine.low %v4020, %v4036
    %v4054 = vcombine.high %v4020, %v4036
    %v4056 = vunpack.c.l.s4 1934713408
    %v4057 = vunpack.c.0.s8 %v4056
    %v4058 = vlaneseq
    %v4059 = vshrl.u32 %v4058, 7
    %v4060 = vsub.s32 %v4057, %v4059
    %v4061 = vrot.slane %v4053, %v4060
    %v4063 = vunpack.c.l.s4 1934713408
    %v4064 = vunpack.c.0.s8 %v4063
    %v4065 = vlaneseq
    %v4066 = vshrl.u32 %v4065, 7
    %v4067 = vsub.s32 %v4064, %v4066
    %v4068 = vrot.slane %v4054, %v4067
    %v4069 = vcombine.high %v4045, 0.0
    %v4070 = vcombine.high %v4052, 0.0
    %v4071 = vcombine.high %v4061, 0.0
    %v4072 = vcombine.high %v4068, 0.0
    %v4073 = vcombine.low %v3984, %v3992
    %v4074 = vcombine.high %v3984, %v3992
    %v4076 = vunpack.c.l.s4 1983009808
    %v4077 = vunpack.c.0.s8 %v4076
    %v4078 = vlaneseq
    %v4079 = vshrl.u32 %v4078, 7
    %v4080 = vsub.s32 %v4077, %v4079
    %v4081 = vrot.slane %v4073, %v4080
    %v4083 = vunpack.c.l.s4 1983009808
    %v4084 = vunpack.c.0.s8 %v4083
    %v4085 = vlaneseq
    %v4086 = vshrl.u32 %v4085, 7
    %v4087 = vsub.s32 %v4084, %v4086
    %v4088 = vrot.slane %v4074, %v4087
    %v4089 = vcombine.low %v3988, %v3996
    %v4090 = vcombine.high %v3988, %v3996
    %v4092 = vunpack.c.l.s4 1983009808
    %v4093 = vunpack.c.0.s8 %v4092
    %v4094 = vlaneseq
    %v4095 = vshrl.u32 %v4094, 7
    %v4096 = vsub.s32 %v4093, %v4095
    %v4097 = vrot.slane %v4089, %v4096
    %v4099 = vunpack.c.l.s4 1983009808
    %v4100 = vunpack.c.0.s8 %v4099
    %v4101 = vlaneseq
    %v4102 = vshrl.u32 %v4101, 7
    %v4103 = vsub.s32 %v4100, %v4102
    %v4104 = vrot.slane %v4090, %v4103
    %v4105 = vcombine.low %v4081, %v4097
    %v4106 = vcombine.high %v4081, %v4097
    %v4108 = vunpack.c.l.s4 1934713408
    %v4109 = vunpack.c.0.s8 %v4108
    %v4110 = vlaneseq
    %v4111 = vshrl.u32 %v4110, 7
    %v4112 = vsub.s32 %v4109, %v4111
    %v4113 = vrot.slane %v4105, %v4112
    %v4115 = vunpack.c.l.s4 1934713408
    %v4116 = vunpack.c.0.s8 %v4115
    %v4117 = vlaneseq
    %v4118 = vshrl.u32 %v4117, 7
    %v4119 = vsub.s32 %v4116, %v4118
    %v4120 = vrot.slane %v4106, %v4119
    %v4121 = vcombine.low %v4088, %v4104
    %v4122 = vcombine.high %v4088, %v4104
    %v4124 = vunpack.c.l.s4 1934713408
    %v4125 = vunpack.c.0.s8 %v4124
    %v4126 = vlaneseq
    %v4127 = vshrl.u32 %v4126, 7
    %v4128 = vsub.s32 %v4125, %v4127
    %v4129 = vrot.slane %v4121, %v4128
    %v4131 = vunpack.c.l.s4 1934713408
    %v4132 = vunpack.c.0.s8 %v4131
    %v4133 = vlaneseq
    %v4134 = vshrl.u32 %v4133, 7
    %v4135 = vsub.s32 %v4132, %v4134
    %v4136 = vrot.slane %v4122, %v4135
    %v4137 = vcombine.high %v4113, 0.0
    %v4138 = vcombine.high %v4120, 0.0
    %v4139 = vcombine.high %v4129, 0.0
    %v4140 = vcombine.high %v4136, 0.0
    %v4141 = vcombine.low %v4045, %v4052
    %v4143 = vunpack.c.l.s4 1983009808
    %v4144 = vunpack.c.0.s8 %v4143
    %v4145 = vlaneseq
    %v4146 = vshrl.u32 %v4145, 7
    %v4147 = vsub.s32 %v4144, %v4146
    %v4148 = vrot.slane %v4141, %v4147
    %v4149 = vcombine.low %v4069, %v4070
    %v4151 = vunpack.c.l.s4 1983009808
    %v4152 = vunpack.c.0.s8 %v4151
    %v4153 = vlaneseq
    %v4154 = vshrl.u32 %v4153, 7
    %v4155 = vsub.s32 %v4152, %v4154
    %v4156 = vrot.slane %v4149, %v4155
    %v4157 = vcombine.low %v4061, %v4068
    %v4159 = vunpack.c.l.s4 1983009808
    %v4160 = vunpack.c.0.s8 %v4159
    %v4161 = vlaneseq
    %v4162 = vshrl.u32 %v4161, 7
    %v4163 = vsub.s32 %v4160, %v4162
    %v4164 = vrot.slane %v4157, %v4163
    %v4165 = vcombine.low %v4071, %v4072
    %v4167 = vunpack.c.l.s4 1983009808
    %v4168 = vunpack.c.0.s8 %v4167
    %v4169 = vlaneseq
    %v4170 = vshrl.u32 %v4169, 7
    %v4171 = vsub.s32 %v4168, %v4170
    %v4172 = vrot.slane %v4165, %v4171
    %v4173 = vcombine.low %v4148, %v4156
    %v4174 = vcombine.high %v4148, %v4156
    %v4176 = vunpack.c.l.s4 1934713408
    %v4177 = vunpack.c.0.s8 %v4176
    %v4178 = vlaneseq
    %v4179 = vshrl.u32 %v4178, 7
    %v4180 = vsub.s32 %v4177, %v4179
    %v4181 = vrot.slane %v4173, %v4180
    %v4183 = vunpack.c.l.s4 1934713408
    %v4184 = vunpack.c.0.s8 %v4183
    %v4185 = vlaneseq
    %v4186 = vshrl.u32 %v4185, 7
    %v4187 = vsub.s32 %v4184, %v4186
    %v4188 = vrot.slane %v4174, %v4187
    %v4189 = vcombine.low %v4164, %v4172
    %v4190 = vcombine.high %v4164, %v4172
    %v4192 = vunpack.c.l.s4 1934713408
    %v4193 = vunpack.c.0.s8 %v4192
    %v4194 = vlaneseq
    %v4195 = vshrl.u32 %v4194, 7
    %v4196 = vsub.s32 %v4193, %v4195
    %v4197 = vrot.slane %v4189, %v4196
    %v4199 = vunpack.c.l.s4 1934713408
    %v4200 = vunpack.c.0.s8 %v4199
    %v4201 = vlaneseq
    %v4202 = vshrl.u32 %v4201, 7
    %v4203 = vsub.s32 %v4200, %v4202
    %v4204 = vrot.slane %v4190, %v4203
    %v4205 = vcombine.low %v4181, %v4197
    %v4206 = vcombine.high %v4181, %v4197
    %v4207 = vcombine.low %v4188, %v4204
    %v4208 = vcombine.high %v4188, %v4204
    %v4209 = vcombine.low %v4113, %v4120
    %v4211 = vunpack.c.l.s4 1983009808
    %v4212 = vunpack.c.0.s8 %v4211
    %v4213 = vlaneseq
    %v4214 = vshrl.u32 %v4213, 7
    %v4215 = vsub.s32 %v4212, %v4214
    %v4216 = vrot.slane %v4209, %v4215
    %v4217 = vcombine.low %v4137, %v4138
    %v4219 = vunpack.c.l.s4 1983009808
    %v4220 = vunpack.c.0.s8 %v4219
    %v4221 = vlaneseq
    %v4222 = vshrl.u32 %v4221, 7
    %v4223 = vsub.s32 %v4220, %v4222
    %v4224 = vrot.slane %v4217, %v4223
    %v4225 = vcombine.low %v4129, %v4136
    %v4227 = vunpack.c.l.s4 1983009808
    %v4228 = vunpack.c.0.s8 %v4227
    %v4229 = vlaneseq
    %v4230 = vshrl.u32 %v4229, 7
    %v4231 = vsub.s32 %v4228, %v4230
    %v4232 = vrot.slane %v4225, %v4231
    %v4233 = vcombine.low %v4139, %v4140
    %v4235 = vunpack.c.l.s4 1983009808
    %v4236 = vunpack.c.0.s8 %v4235
    %v4237 = vlaneseq
    %v4238 = vshrl.u32 %v4237, 7
    %v4239 = vsub.s32 %v4236, %v4238
    %v4240 = vrot.slane %v4233, %v4239
    %v4241 = vcombine.low %v4216, %v4224
    %v4242 = vcombine.high %v4216, %v4224
    %v4244 = vunpack.c.l.s4 1934713408
    %v4245 = vunpack.c.0.s8 %v4244
    %v4246 = vlaneseq
    %v4247 = vshrl.u32 %v4246, 7
    %v4248 = vsub.s32 %v4245, %v4247
    %v4249 = vrot.slane %v4241, %v4248
    %v4251 = vunpack.c.l.s4 1934713408
    %v4252 = vunpack.c.0.s8 %v4251
    %v4253 = vlaneseq
    %v4254 = vshrl.u32 %v4253, 7
    %v4255 = vsub.s32 %v4252, %v4254
    %v4256 = vrot.slane %v4242, %v4255
    %v4257 = vcombine.low %v4232, %v4240
    %v4258 = vcombine.high %v4232, %v4240
    %v4260 = vunpack.c.l.s4 1934713408
    %v4261 = vunpack.c.0.s8 %v4260
    %v4262 = vlaneseq
    %v4263 = vshrl.u32 %v4262, 7
    %v4264 = vsub.s32 %v4261, %v4263
    %v4265 = vrot.slane %v4257, %v4264
    %v4267 = vunpack.c.l.s4 1934713408
    %v4268 = vunpack.c.0.s8 %v4267
    %v4269 = vlaneseq
    %v4270 = vshrl.u32 %v4269, 7
    %v4271 = vsub.s32 %v4268, %v4270
    %v4272 = vrot.slane %v4258, %v4271
    %v4273 = vcombine.low %v4249, %v4265
    %v4274 = vcombine.high %v4249, %v4265
    %v4275 = vcombine.low %v4256, %v4272
    %v4276 = vcombine.high %v4256, %v4272
    %v4279 = vunpack.c.l.s4 1966171168
    %v4280 = vunpack.c.0.s8 %v4279
    %v4281 = vlaneseq
    %v4282 = vshrl.u32 %v4281, 7
    %v4283 = vsub.s32 %v4280, %v4282
    %v4284 = vrot.slane %v436, %v4283
    %v4285 = vcombine.high %v4284, %v4284
    %v4287 = vunpack.c.l.s4 1966171168
    %v4288 = vunpack.c.0.s8 %v4287
    %v4289 = vlaneseq
    %v4290 = vshrl.u32 %v4289, 7
    %v4291 = vsub.s32 %v4288, %v4290
    %v4292 = vrot.slane %v4284, %v4291
    %v4294 = vunpack.c.l.s4 1966171168
    %v4295 = vunpack.c.0.s8 %v4294
    %v4296 = vlaneseq
    %v4297 = vshrl.u32 %v4296, 7
    %v4298 = vsub.s32 %v4295, %v4297
    %v4299 = vrot.slane %v4285, %v4298
    %v4300 = vlaneseq
    %v4301 = vshrl.u32 %v4300, 7
    %v4302 = vsub.s32 0, %v4301
    %v4303 = vrot.slane %v4292, %v4302
    %v4304 = vlaneseq
    %v4305 = vshrl.u32 %v4304, 7
    %v4306 = vsub.s32 0, %v4305
    %v4307 = vrot.slane %v4299, %v4306
    %v4311 = vsel %vm1469, %v3617, 0
    %v4314 = vsel %vm1469, %v3909, 0
    %4316 = vmatprep.subr.mxu0 0.0
    %4317 = vmatpush1.xpose.msra.mxu0 0.0
    %4318 = vmatprep.subr.mxu0 0.0
    %4319 = vmatpush1.xpose.msra.mxu0 0.0
    %4320 = vmatprep.subr.mxu0 0.0
    %4321 = vmatpush1.xpose.msra.mxu0 0.0
    %4322 = vmatprep.subr.mxu0 0.0
    %4323 = vmatpush1.xpose.msra.mxu0 0.0
    %4324 = vmatprep.subr.mxu0 0.0
    %4325 = vmatpush1.xpose.msra.mxu0 0.0
    %4326 = vmatprep.subr.mxu0 0.0
    %4327 = vmatpush1.xpose.msra.mxu0 0.0
    %4328 = vmatprep.subr.mxu0 0.0
    %4329 = vmatpush1.xpose.msra.mxu0 0.0
    %4330 = vmatprep.subr.mxu0 0.0
    %4331 = vmatpush1.xpose.msra.mxu0 0.0
    %4332 = vmatprep.subr.mxu0 0.0
    %4333 = vmatpush1.xpose.msra.mxu0 0.0
    %4334 = vmatprep.subr.mxu0 0.0
    %4335 = vmatpush1.xpose.msra.mxu0 0.0
    %4336 = vmatprep.subr.mxu0 0.0
    %4337 = vmatpush1.xpose.msra.mxu0 0.0
    %4338 = vmatprep.subr.mxu0 0.0
    %4339 = vmatpush1.xpose.msra.mxu0 0.0
    %4340 = vmatprep.subr.mxu0 0.0
    %4341 = vmatpush1.xpose.msra.mxu0 0.0
    %4342 = vmatprep.subr.mxu0 0.0
    %4343 = vmatpush1.xpose.msra.mxu0 0.0
    %4344 = vmatprep.subr.mxu0 0.0
    %4345 = vmatpush1.xpose.msra.mxu0 0.0
    %4346 = vmatprep.subr.mxu0 0.0
    %4347 = vmatpush1.xpose.msra.mxu0 %v4314
    %4348 = vmatprep.subr.mxu0 0.0
    %4349 = vmatpush2.xpose.msra.mxu0 0.0
    %4350 = vmatprep.subr.mxu0 0.0
    %4351 = vmatpush2.xpose.msra.mxu0 0.0
    %4352 = vmatprep.subr.mxu0 0.0
    %4353 = vmatpush2.xpose.msra.mxu0 0.0
    %4354 = vmatprep.subr.mxu0 0.0
    %4355 = vmatpush2.xpose.msra.mxu0 0.0
    %4356 = vmatprep.subr.mxu0 0.0
    %4357 = vmatpush2.xpose.msra.mxu0 0.0
    %4358 = vmatprep.subr.mxu0 0.0
    %4359 = vmatpush2.xpose.msra.mxu0 0.0
    %4360 = vmatprep.subr.mxu0 0.0
    %4361 = vmatpush2.xpose.msra.mxu0 0.0
    %4362 = vmatprep.subr.mxu0 0.0
    %4363 = vmatpush2.xpose.msra.mxu0 0.0
    %4364 = vmatprep.subr.mxu0 0.0
    %4365 = vmatpush2.xpose.msra.mxu0 0.0
    %4366 = vmatprep.subr.mxu0 0.0
    %4367 = vmatpush2.xpose.msra.mxu0 0.0
    %4368 = vmatprep.subr.mxu0 0.0
    %4369 = vmatpush2.xpose.msra.mxu0 0.0
    %4370 = vmatprep.subr.mxu0 0.0
    %4371 = vmatpush2.xpose.msra.mxu0 0.0
    %4372 = vmatprep.subr.mxu0 0.0
    %4373 = vmatpush2.xpose.msra.mxu0 0.0
    %4374 = vmatprep.subr.mxu0 0.0
    %4375 = vmatpush2.xpose.msra.mxu0 0.0
    %4376 = vmatprep.subr.mxu0 0.0
    %4377 = vmatpush2.xpose.msra.mxu0 0.0
    %4378 = vmatprep.subr.mxu0 0.0
    %4379 = vmatpush2.xpose.msra.mxu0 0.0
    %4380 = vmatprep.mubr.f32.mxu0 0.0
    %4381 = vmatmul.mubr.f32.gmra.mxu0 %v4311
    %v4382 = vpop.f32.mrf.mxu0
    %v4383 = vadd.f32 %v4303, %v4382
    %v4384 = vpop.f32.mrf.mxu0
    %4385 = vdwg.mxu0
    %v4387 = vsel %vm1469, %v3618, 0
    %v4390 = vsel %vm1469, %v3910, 0
    %4392 = vmatprep.subr.mxu0 0.0
    %4393 = vmatpush1.xpose.msra.mxu0 0.0
    %4394 = vmatprep.subr.mxu0 0.0
    %4395 = vmatpush1.xpose.msra.mxu0 0.0
    %4396 = vmatprep.subr.mxu0 0.0
    %4397 = vmatpush1.xpose.msra.mxu0 0.0
    %4398 = vmatprep.subr.mxu0 0.0
    %4399 = vmatpush1.xpose.msra.mxu0 0.0
    %4400 = vmatprep.subr.mxu0 0.0
    %4401 = vmatpush1.xpose.msra.mxu0 0.0
    %4402 = vmatprep.subr.mxu0 0.0
    %4403 = vmatpush1.xpose.msra.mxu0 0.0
    %4404 = vmatprep.subr.mxu0 0.0
    %4405 = vmatpush1.xpose.msra.mxu0 0.0
    %4406 = vmatprep.subr.mxu0 0.0
    %4407 = vmatpush1.xpose.msra.mxu0 0.0
    %4408 = vmatprep.subr.mxu0 0.0
    %4409 = vmatpush1.xpose.msra.mxu0 0.0
    %4410 = vmatprep.subr.mxu0 0.0
    %4411 = vmatpush1.xpose.msra.mxu0 0.0
    %4412 = vmatprep.subr.mxu0 0.0
    %4413 = vmatpush1.xpose.msra.mxu0 0.0
    %4414 = vmatprep.subr.mxu0 0.0
    %4415 = vmatpush1.xpose.msra.mxu0 0.0
    %4416 = vmatprep.subr.mxu0 0.0
    %4417 = vmatpush1.xpose.msra.mxu0 0.0
    %4418 = vmatprep.subr.mxu0 0.0
    %4419 = vmatpush1.xpose.msra.mxu0 0.0
    %4420 = vmatprep.subr.mxu0 0.0
    %4421 = vmatpush1.xpose.msra.mxu0 0.0
    %4422 = vmatprep.subr.mxu0 0.0
    %4423 = vmatpush1.xpose.msra.mxu0 %v4390
    %4424 = vmatprep.subr.mxu0 0.0
    %4425 = vmatpush2.xpose.msra.mxu0 0.0
    %4426 = vmatprep.subr.mxu0 0.0
    %4427 = vmatpush2.xpose.msra.mxu0 0.0
    %4428 = vmatprep.subr.mxu0 0.0
    %4429 = vmatpush2.xpose.msra.mxu0 0.0
    %4430 = vmatprep.subr.mxu0 0.0
    %4431 = vmatpush2.xpose.msra.mxu0 0.0
    %4432 = vmatprep.subr.mxu0 0.0
    %4433 = vmatpush2.xpose.msra.mxu0 0.0
    %4434 = vmatprep.subr.mxu0 0.0
    %4435 = vmatpush2.xpose.msra.mxu0 0.0
    %4436 = vmatprep.subr.mxu0 0.0
    %4437 = vmatpush2.xpose.msra.mxu0 0.0
    %4438 = vmatprep.subr.mxu0 0.0
    %4439 = vmatpush2.xpose.msra.mxu0 0.0
    %4440 = vmatprep.subr.mxu0 0.0
    %4441 = vmatpush2.xpose.msra.mxu0 0.0
    %4442 = vmatprep.subr.mxu0 0.0
    %4443 = vmatpush2.xpose.msra.mxu0 0.0
    %4444 = vmatprep.subr.mxu0 0.0
    %4445 = vmatpush2.xpose.msra.mxu0 0.0
    %4446 = vmatprep.subr.mxu0 0.0
    %4447 = vmatpush2.xpose.msra.mxu0 0.0
    %4448 = vmatprep.subr.mxu0 0.0
    %4449 = vmatpush2.xpose.msra.mxu0 0.0
    %4450 = vmatprep.subr.mxu0 0.0
    %4451 = vmatpush2.xpose.msra.mxu0 0.0
    %4452 = vmatprep.subr.mxu0 0.0
    %4453 = vmatpush2.xpose.msra.mxu0 0.0
    %4454 = vmatprep.subr.mxu0 0.0
    %4455 = vmatpush2.xpose.msra.mxu0 0.0
    %4456 = vmatprep.mubr.f32.mxu0 0.0
    %4457 = vmatmul.mubr.f32.gmra.mxu0 %v4387
    %v4458 = vpop.f32.mrf.mxu0
    %v4459 = vadd.f32 %v4303, %v4458
    %v4460 = vpop.f32.mrf.mxu0
    %4461 = vdwg.mxu0
    %v4463 = vsel %vm1469, %v3619, 0
    %v4466 = vsel %vm1469, %v3911, 0
    %4468 = vmatprep.subr.mxu0 0.0
    %4469 = vmatpush1.xpose.msra.mxu0 0.0
    %4470 = vmatprep.subr.mxu0 0.0
    %4471 = vmatpush1.xpose.msra.mxu0 0.0
    %4472 = vmatprep.subr.mxu0 0.0
    %4473 = vmatpush1.xpose.msra.mxu0 0.0
    %4474 = vmatprep.subr.mxu0 0.0
    %4475 = vmatpush1.xpose.msra.mxu0 0.0
    %4476 = vmatprep.subr.mxu0 0.0
    %4477 = vmatpush1.xpose.msra.mxu0 0.0
    %4478 = vmatprep.subr.mxu0 0.0
    %4479 = vmatpush1.xpose.msra.mxu0 0.0
    %4480 = vmatprep.subr.mxu0 0.0
    %4481 = vmatpush1.xpose.msra.mxu0 0.0
    %4482 = vmatprep.subr.mxu0 0.0
    %4483 = vmatpush1.xpose.msra.mxu0 0.0
    %4484 = vmatprep.subr.mxu0 0.0
    %4485 = vmatpush1.xpose.msra.mxu0 0.0
    %4486 = vmatprep.subr.mxu0 0.0
    %4487 = vmatpush1.xpose.msra.mxu0 0.0
    %4488 = vmatprep.subr.mxu0 0.0
    %4489 = vmatpush1.xpose.msra.mxu0 0.0
    %4490 = vmatprep.subr.mxu0 0.0
    %4491 = vmatpush1.xpose.msra.mxu0 0.0
    %4492 = vmatprep.subr.mxu0 0.0
    %4493 = vmatpush1.xpose.msra.mxu0 0.0
    %4494 = vmatprep.subr.mxu0 0.0
    %4495 = vmatpush1.xpose.msra.mxu0 0.0
    %4496 = vmatprep.subr.mxu0 0.0
    %4497 = vmatpush1.xpose.msra.mxu0 0.0
    %4498 = vmatprep.subr.mxu0 0.0
    %4499 = vmatpush1.xpose.msra.mxu0 %v4466
    %4500 = vmatprep.subr.mxu0 0.0
    %4501 = vmatpush2.xpose.msra.mxu0 0.0
    %4502 = vmatprep.subr.mxu0 0.0
    %4503 = vmatpush2.xpose.msra.mxu0 0.0
    %4504 = vmatprep.subr.mxu0 0.0
    %4505 = vmatpush2.xpose.msra.mxu0 0.0
    %4506 = vmatprep.subr.mxu0 0.0
    %4507 = vmatpush2.xpose.msra.mxu0 0.0
    %4508 = vmatprep.subr.mxu0 0.0
    %4509 = vmatpush2.xpose.msra.mxu0 0.0
    %4510 = vmatprep.subr.mxu0 0.0
    %4511 = vmatpush2.xpose.msra.mxu0 0.0
    %4512 = vmatprep.subr.mxu0 0.0
    %4513 = vmatpush2.xpose.msra.mxu0 0.0
    %4514 = vmatprep.subr.mxu0 0.0
    %4515 = vmatpush2.xpose.msra.mxu0 0.0
    %4516 = vmatprep.subr.mxu0 0.0
    %4517 = vmatpush2.xpose.msra.mxu0 0.0
    %4518 = vmatprep.subr.mxu0 0.0
    %4519 = vmatpush2.xpose.msra.mxu0 0.0
    %4520 = vmatprep.subr.mxu0 0.0
    %4521 = vmatpush2.xpose.msra.mxu0 0.0
    %4522 = vmatprep.subr.mxu0 0.0
    %4523 = vmatpush2.xpose.msra.mxu0 0.0
    %4524 = vmatprep.subr.mxu0 0.0
    %4525 = vmatpush2.xpose.msra.mxu0 0.0
    %4526 = vmatprep.subr.mxu0 0.0
    %4527 = vmatpush2.xpose.msra.mxu0 0.0
    %4528 = vmatprep.subr.mxu0 0.0
    %4529 = vmatpush2.xpose.msra.mxu0 0.0
    %4530 = vmatprep.subr.mxu0 0.0
    %4531 = vmatpush2.xpose.msra.mxu0 0.0
    %4532 = vmatprep.mubr.f32.mxu0 0.0
    %4533 = vmatmul.mubr.f32.gmra.mxu0 %v4463
    %v4534 = vpop.f32.mrf.mxu0
    %v4535 = vadd.f32 %v4303, %v4534
    %v4536 = vpop.f32.mrf.mxu0
    %4537 = vdwg.mxu0
    %v4539 = vsel %vm1469, %v3620, 0
    %v4542 = vsel %vm1469, %v3912, 0
    %4544 = vmatprep.subr.mxu0 0.0
    %4545 = vmatpush1.xpose.msra.mxu0 0.0
    %4546 = vmatprep.subr.mxu0 0.0
    %4547 = vmatpush1.xpose.msra.mxu0 0.0
    %4548 = vmatprep.subr.mxu0 0.0
    %4549 = vmatpush1.xpose.msra.mxu0 0.0
    %4550 = vmatprep.subr.mxu0 0.0
    %4551 = vmatpush1.xpose.msra.mxu0 0.0
    %4552 = vmatprep.subr.mxu0 0.0
    %4553 = vmatpush1.xpose.msra.mxu0 0.0
    %4554 = vmatprep.subr.mxu0 0.0
    %4555 = vmatpush1.xpose.msra.mxu0 0.0
    %4556 = vmatprep.subr.mxu0 0.0
    %4557 = vmatpush1.xpose.msra.mxu0 0.0
    %4558 = vmatprep.subr.mxu0 0.0
    %4559 = vmatpush1.xpose.msra.mxu0 0.0
    %4560 = vmatprep.subr.mxu0 0.0
    %4561 = vmatpush1.xpose.msra.mxu0 0.0
    %4562 = vmatprep.subr.mxu0 0.0
    %4563 = vmatpush1.xpose.msra.mxu0 0.0
    %4564 = vmatprep.subr.mxu0 0.0
    %4565 = vmatpush1.xpose.msra.mxu0 0.0
    %4566 = vmatprep.subr.mxu0 0.0
    %4567 = vmatpush1.xpose.msra.mxu0 0.0
    %4568 = vmatprep.subr.mxu0 0.0
    %4569 = vmatpush1.xpose.msra.mxu0 0.0
    %4570 = vmatprep.subr.mxu0 0.0
    %4571 = vmatpush1.xpose.msra.mxu0 0.0
    %4572 = vmatprep.subr.mxu0 0.0
    %4573 = vmatpush1.xpose.msra.mxu0 0.0
    %4574 = vmatprep.subr.mxu0 0.0
    %4575 = vmatpush1.xpose.msra.mxu0 %v4542
    %4576 = vmatprep.subr.mxu0 0.0
    %4577 = vmatpush2.xpose.msra.mxu0 0.0
    %4578 = vmatprep.subr.mxu0 0.0
    %4579 = vmatpush2.xpose.msra.mxu0 0.0
    %4580 = vmatprep.subr.mxu0 0.0
    %4581 = vmatpush2.xpose.msra.mxu0 0.0
    %4582 = vmatprep.subr.mxu0 0.0
    %4583 = vmatpush2.xpose.msra.mxu0 0.0
    %4584 = vmatprep.subr.mxu0 0.0
    %4585 = vmatpush2.xpose.msra.mxu0 0.0
    %4586 = vmatprep.subr.mxu0 0.0
    %4587 = vmatpush2.xpose.msra.mxu0 0.0
    %4588 = vmatprep.subr.mxu0 0.0
    %4589 = vmatpush2.xpose.msra.mxu0 0.0
    %4590 = vmatprep.subr.mxu0 0.0
    %4591 = vmatpush2.xpose.msra.mxu0 0.0
    %4592 = vmatprep.subr.mxu0 0.0
    %4593 = vmatpush2.xpose.msra.mxu0 0.0
    %4594 = vmatprep.subr.mxu0 0.0
    %4595 = vmatpush2.xpose.msra.mxu0 0.0
    %4596 = vmatprep.subr.mxu0 0.0
    %4597 = vmatpush2.xpose.msra.mxu0 0.0
    %4598 = vmatprep.subr.mxu0 0.0
    %4599 = vmatpush2.xpose.msra.mxu0 0.0
    %4600 = vmatprep.subr.mxu0 0.0
    %4601 = vmatpush2.xpose.msra.mxu0 0.0
    %4602 = vmatprep.subr.mxu0 0.0
    %4603 = vmatpush2.xpose.msra.mxu0 0.0
    %4604 = vmatprep.subr.mxu0 0.0
    %4605 = vmatpush2.xpose.msra.mxu0 0.0
    %4606 = vmatprep.subr.mxu0 0.0
    %4607 = vmatpush2.xpose.msra.mxu0 0.0
    %4608 = vmatprep.mubr.f32.mxu0 0.0
    %4609 = vmatmul.mubr.f32.gmra.mxu0 %v4539
    %v4610 = vpop.f32.mrf.mxu0
    %v4611 = vadd.f32 %v4303, %v4610
    %v4612 = vpop.f32.mrf.mxu0
    %4613 = vdwg.mxu0
    %v4615 = vsel %vm1469, %v3685, 0
    %v4618 = vsel %vm1469, %v3977, 0
    %4620 = vmatprep.subr.mxu0 0.0
    %4621 = vmatpush1.xpose.msra.mxu0 0.0
    %4622 = vmatprep.subr.mxu0 0.0
    %4623 = vmatpush1.xpose.msra.mxu0 0.0
    %4624 = vmatprep.subr.mxu0 0.0
    %4625 = vmatpush1.xpose.msra.mxu0 0.0
    %4626 = vmatprep.subr.mxu0 0.0
    %4627 = vmatpush1.xpose.msra.mxu0 0.0
    %4628 = vmatprep.subr.mxu0 0.0
    %4629 = vmatpush1.xpose.msra.mxu0 0.0
    %4630 = vmatprep.subr.mxu0 0.0
    %4631 = vmatpush1.xpose.msra.mxu0 0.0
    %4632 = vmatprep.subr.mxu0 0.0
    %4633 = vmatpush1.xpose.msra.mxu0 0.0
    %4634 = vmatprep.subr.mxu0 0.0
    %4635 = vmatpush1.xpose.msra.mxu0 0.0
    %4636 = vmatprep.subr.mxu0 0.0
    %4637 = vmatpush1.xpose.msra.mxu0 0.0
    %4638 = vmatprep.subr.mxu0 0.0
    %4639 = vmatpush1.xpose.msra.mxu0 0.0
    %4640 = vmatprep.subr.mxu0 0.0
    %4641 = vmatpush1.xpose.msra.mxu0 0.0
    %4642 = vmatprep.subr.mxu0 0.0
    %4643 = vmatpush1.xpose.msra.mxu0 0.0
    %4644 = vmatprep.subr.mxu0 0.0
    %4645 = vmatpush1.xpose.msra.mxu0 0.0
    %4646 = vmatprep.subr.mxu0 0.0
    %4647 = vmatpush1.xpose.msra.mxu0 0.0
    %4648 = vmatprep.subr.mxu0 0.0
    %4649 = vmatpush1.xpose.msra.mxu0 0.0
    %4650 = vmatprep.subr.mxu0 0.0
    %4651 = vmatpush1.xpose.msra.mxu0 %v4618
    %4652 = vmatprep.subr.mxu0 0.0
    %4653 = vmatpush2.xpose.msra.mxu0 0.0
    %4654 = vmatprep.subr.mxu0 0.0
    %4655 = vmatpush2.xpose.msra.mxu0 0.0
    %4656 = vmatprep.subr.mxu0 0.0
    %4657 = vmatpush2.xpose.msra.mxu0 0.0
    %4658 = vmatprep.subr.mxu0 0.0
    %4659 = vmatpush2.xpose.msra.mxu0 0.0
    %4660 = vmatprep.subr.mxu0 0.0
    %4661 = vmatpush2.xpose.msra.mxu0 0.0
    %4662 = vmatprep.subr.mxu0 0.0
    %4663 = vmatpush2.xpose.msra.mxu0 0.0
    %4664 = vmatprep.subr.mxu0 0.0
    %4665 = vmatpush2.xpose.msra.mxu0 0.0
    %4666 = vmatprep.subr.mxu0 0.0
    %4667 = vmatpush2.xpose.msra.mxu0 0.0
    %4668 = vmatprep.subr.mxu0 0.0
    %4669 = vmatpush2.xpose.msra.mxu0 0.0
    %4670 = vmatprep.subr.mxu0 0.0
    %4671 = vmatpush2.xpose.msra.mxu0 0.0
    %4672 = vmatprep.subr.mxu0 0.0
    %4673 = vmatpush2.xpose.msra.mxu0 0.0
    %4674 = vmatprep.subr.mxu0 0.0
    %4675 = vmatpush2.xpose.msra.mxu0 0.0
    %4676 = vmatprep.subr.mxu0 0.0
    %4677 = vmatpush2.xpose.msra.mxu0 0.0
    %4678 = vmatprep.subr.mxu0 0.0
    %4679 = vmatpush2.xpose.msra.mxu0 0.0
    %4680 = vmatprep.subr.mxu0 0.0
    %4681 = vmatpush2.xpose.msra.mxu0 0.0
    %4682 = vmatprep.subr.mxu0 0.0
    %4683 = vmatpush2.xpose.msra.mxu0 0.0
    %4684 = vmatprep.mubr.f32.mxu0 0.0
    %4685 = vmatmul.mubr.f32.gmra.mxu0 %v4615
    %v4686 = vpop.f32.mrf.mxu0
    %v4687 = vadd.f32 %v4307, %v4686
    %v4688 = vpop.f32.mrf.mxu0
    %4689 = vdwg.mxu0
    %v4691 = vsel %vm1469, %v3686, 0
    %v4694 = vsel %vm1469, %v3978, 0
    %4696 = vmatprep.subr.mxu0 0.0
    %4697 = vmatpush1.xpose.msra.mxu0 0.0
    %4698 = vmatprep.subr.mxu0 0.0
    %4699 = vmatpush1.xpose.msra.mxu0 0.0
    %4700 = vmatprep.subr.mxu0 0.0
    %4701 = vmatpush1.xpose.msra.mxu0 0.0
    %4702 = vmatprep.subr.mxu0 0.0
    %4703 = vmatpush1.xpose.msra.mxu0 0.0
    %4704 = vmatprep.subr.mxu0 0.0
    %4705 = vmatpush1.xpose.msra.mxu0 0.0
    %4706 = vmatprep.subr.mxu0 0.0
    %4707 = vmatpush1.xpose.msra.mxu0 0.0
    %4708 = vmatprep.subr.mxu0 0.0
    %4709 = vmatpush1.xpose.msra.mxu0 0.0
    %4710 = vmatprep.subr.mxu0 0.0
    %4711 = vmatpush1.xpose.msra.mxu0 0.0
    %4712 = vmatprep.subr.mxu0 0.0
    %4713 = vmatpush1.xpose.msra.mxu0 0.0
    %4714 = vmatprep.subr.mxu0 0.0
    %4715 = vmatpush1.xpose.msra.mxu0 0.0
    %4716 = vmatprep.subr.mxu0 0.0
    %4717 = vmatpush1.xpose.msra.mxu0 0.0
    %4718 = vmatprep.subr.mxu0 0.0
    %4719 = vmatpush1.xpose.msra.mxu0 0.0
    %4720 = vmatprep.subr.mxu0 0.0
    %4721 = vmatpush1.xpose.msra.mxu0 0.0
    %4722 = vmatprep.subr.mxu0 0.0
    %4723 = vmatpush1.xpose.msra.mxu0 0.0
    %4724 = vmatprep.subr.mxu0 0.0
    %4725 = vmatpush1.xpose.msra.mxu0 0.0
    %4726 = vmatprep.subr.mxu0 0.0
    %4727 = vmatpush1.xpose.msra.mxu0 %v4694
    %4728 = vmatprep.subr.mxu0 0.0
    %4729 = vmatpush2.xpose.msra.mxu0 0.0
    %4730 = vmatprep.subr.mxu0 0.0
    %4731 = vmatpush2.xpose.msra.mxu0 0.0
    %4732 = vmatprep.subr.mxu0 0.0
    %4733 = vmatpush2.xpose.msra.mxu0 0.0
    %4734 = vmatprep.subr.mxu0 0.0
    %4735 = vmatpush2.xpose.msra.mxu0 0.0
    %4736 = vmatprep.subr.mxu0 0.0
    %4737 = vmatpush2.xpose.msra.mxu0 0.0
    %4738 = vmatprep.subr.mxu0 0.0
    %4739 = vmatpush2.xpose.msra.mxu0 0.0
    %4740 = vmatprep.subr.mxu0 0.0
    %4741 = vmatpush2.xpose.msra.mxu0 0.0
    %4742 = vmatprep.subr.mxu0 0.0
    %4743 = vmatpush2.xpose.msra.mxu0 0.0
    %4744 = vmatprep.subr.mxu0 0.0
    %4745 = vmatpush2.xpose.msra.mxu0 0.0
    %4746 = vmatprep.subr.mxu0 0.0
    %4747 = vmatpush2.xpose.msra.mxu0 0.0
    %4748 = vmatprep.subr.mxu0 0.0
    %4749 = vmatpush2.xpose.msra.mxu0 0.0
    %4750 = vmatprep.subr.mxu0 0.0
    %4751 = vmatpush2.xpose.msra.mxu0 0.0
    %4752 = vmatprep.subr.mxu0 0.0
    %4753 = vmatpush2.xpose.msra.mxu0 0.0
    %4754 = vmatprep.subr.mxu0 0.0
    %4755 = vmatpush2.xpose.msra.mxu0 0.0
    %4756 = vmatprep.subr.mxu0 0.0
    %4757 = vmatpush2.xpose.msra.mxu0 0.0
    %4758 = vmatprep.subr.mxu0 0.0
    %4759 = vmatpush2.xpose.msra.mxu0 0.0
    %4760 = vmatprep.mubr.f32.mxu0 0.0
    %4761 = vmatmul.mubr.f32.gmra.mxu0 %v4691
    %v4762 = vpop.f32.mrf.mxu0
    %v4763 = vadd.f32 %v4307, %v4762
    %v4764 = vpop.f32.mrf.mxu0
    %4765 = vdwg.mxu0
    %v4767 = vsel %vm1469, %v3687, 0
    %v4770 = vsel %vm1469, %v3979, 0
    %4772 = vmatprep.subr.mxu0 0.0
    %4773 = vmatpush1.xpose.msra.mxu0 0.0
    %4774 = vmatprep.subr.mxu0 0.0
    %4775 = vmatpush1.xpose.msra.mxu0 0.0
    %4776 = vmatprep.subr.mxu0 0.0
    %4777 = vmatpush1.xpose.msra.mxu0 0.0
    %4778 = vmatprep.subr.mxu0 0.0
    %4779 = vmatpush1.xpose.msra.mxu0 0.0
    %4780 = vmatprep.subr.mxu0 0.0
    %4781 = vmatpush1.xpose.msra.mxu0 0.0
    %4782 = vmatprep.subr.mxu0 0.0
    %4783 = vmatpush1.xpose.msra.mxu0 0.0
    %4784 = vmatprep.subr.mxu0 0.0
    %4785 = vmatpush1.xpose.msra.mxu0 0.0
    %4786 = vmatprep.subr.mxu0 0.0
    %4787 = vmatpush1.xpose.msra.mxu0 0.0
    %4788 = vmatprep.subr.mxu0 0.0
    %4789 = vmatpush1.xpose.msra.mxu0 0.0
    %4790 = vmatprep.subr.mxu0 0.0
    %4791 = vmatpush1.xpose.msra.mxu0 0.0
    %4792 = vmatprep.subr.mxu0 0.0
    %4793 = vmatpush1.xpose.msra.mxu0 0.0
    %4794 = vmatprep.subr.mxu0 0.0
    %4795 = vmatpush1.xpose.msra.mxu0 0.0
    %4796 = vmatprep.subr.mxu0 0.0
    %4797 = vmatpush1.xpose.msra.mxu0 0.0
    %4798 = vmatprep.subr.mxu0 0.0
    %4799 = vmatpush1.xpose.msra.mxu0 0.0
    %4800 = vmatprep.subr.mxu0 0.0
    %4801 = vmatpush1.xpose.msra.mxu0 0.0
    %4802 = vmatprep.subr.mxu0 0.0
    %4803 = vmatpush1.xpose.msra.mxu0 %v4770
    %4804 = vmatprep.subr.mxu0 0.0
    %4805 = vmatpush2.xpose.msra.mxu0 0.0
    %4806 = vmatprep.subr.mxu0 0.0
    %4807 = vmatpush2.xpose.msra.mxu0 0.0
    %4808 = vmatprep.subr.mxu0 0.0
    %4809 = vmatpush2.xpose.msra.mxu0 0.0
    %4810 = vmatprep.subr.mxu0 0.0
    %4811 = vmatpush2.xpose.msra.mxu0 0.0
    %4812 = vmatprep.subr.mxu0 0.0
    %4813 = vmatpush2.xpose.msra.mxu0 0.0
    %4814 = vmatprep.subr.mxu0 0.0
    %4815 = vmatpush2.xpose.msra.mxu0 0.0
    %4816 = vmatprep.subr.mxu0 0.0
    %4817 = vmatpush2.xpose.msra.mxu0 0.0
    %4818 = vmatprep.subr.mxu0 0.0
    %4819 = vmatpush2.xpose.msra.mxu0 0.0
    %4820 = vmatprep.subr.mxu0 0.0
    %4821 = vmatpush2.xpose.msra.mxu0 0.0
    %4822 = vmatprep.subr.mxu0 0.0
    %4823 = vmatpush2.xpose.msra.mxu0 0.0
    %4824 = vmatprep.subr.mxu0 0.0
    %4825 = vmatpush2.xpose.msra.mxu0 0.0
    %4826 = vmatprep.subr.mxu0 0.0
    %4827 = vmatpush2.xpose.msra.mxu0 0.0
    %4828 = vmatprep.subr.mxu0 0.0
    %4829 = vmatpush2.xpose.msra.mxu0 0.0
    %4830 = vmatprep.subr.mxu0 0.0
    %4831 = vmatpush2.xpose.msra.mxu0 0.0
    %4832 = vmatprep.subr.mxu0 0.0
    %4833 = vmatpush2.xpose.msra.mxu0 0.0
    %4834 = vmatprep.subr.mxu0 0.0
    %4835 = vmatpush2.xpose.msra.mxu0 0.0
    %4836 = vmatprep.mubr.f32.mxu0 0.0
    %4837 = vmatmul.mubr.f32.gmra.mxu0 %v4767
    %v4838 = vpop.f32.mrf.mxu0
    %v4839 = vadd.f32 %v4307, %v4838
    %v4840 = vpop.f32.mrf.mxu0
    %4841 = vdwg.mxu0
    %v4843 = vsel %vm1469, %v3688, 0
    %v4846 = vsel %vm1469, %v3980, 0
    %4848 = vmatprep.subr.mxu0 0.0
    %4849 = vmatpush1.xpose.msra.mxu0 0.0
    %4850 = vmatprep.subr.mxu0 0.0
    %4851 = vmatpush1.xpose.msra.mxu0 0.0
    %4852 = vmatprep.subr.mxu0 0.0
    %4853 = vmatpush1.xpose.msra.mxu0 0.0
    %4854 = vmatprep.subr.mxu0 0.0
    %4855 = vmatpush1.xpose.msra.mxu0 0.0
    %4856 = vmatprep.subr.mxu0 0.0
    %4857 = vmatpush1.xpose.msra.mxu0 0.0
    %4858 = vmatprep.subr.mxu0 0.0
    %4859 = vmatpush1.xpose.msra.mxu0 0.0
    %4860 = vmatprep.subr.mxu0 0.0
    %4861 = vmatpush1.xpose.msra.mxu0 0.0
    %4862 = vmatprep.subr.mxu0 0.0
    %4863 = vmatpush1.xpose.msra.mxu0 0.0
    %4864 = vmatprep.subr.mxu0 0.0
    %4865 = vmatpush1.xpose.msra.mxu0 0.0
    %4866 = vmatprep.subr.mxu0 0.0
    %4867 = vmatpush1.xpose.msra.mxu0 0.0
    %4868 = vmatprep.subr.mxu0 0.0
    %4869 = vmatpush1.xpose.msra.mxu0 0.0
    %4870 = vmatprep.subr.mxu0 0.0
    %4871 = vmatpush1.xpose.msra.mxu0 0.0
    %4872 = vmatprep.subr.mxu0 0.0
    %4873 = vmatpush1.xpose.msra.mxu0 0.0
    %4874 = vmatprep.subr.mxu0 0.0
    %4875 = vmatpush1.xpose.msra.mxu0 0.0
    %4876 = vmatprep.subr.mxu0 0.0
    %4877 = vmatpush1.xpose.msra.mxu0 0.0
    %4878 = vmatprep.subr.mxu0 0.0
    %4879 = vmatpush1.xpose.msra.mxu0 %v4846
    %4880 = vmatprep.subr.mxu0 0.0
    %4881 = vmatpush2.xpose.msra.mxu0 0.0
    %4882 = vmatprep.subr.mxu0 0.0
    %4883 = vmatpush2.xpose.msra.mxu0 0.0
    %4884 = vmatprep.subr.mxu0 0.0
    %4885 = vmatpush2.xpose.msra.mxu0 0.0
    %4886 = vmatprep.subr.mxu0 0.0
    %4887 = vmatpush2.xpose.msra.mxu0 0.0
    %4888 = vmatprep.subr.mxu0 0.0
    %4889 = vmatpush2.xpose.msra.mxu0 0.0
    %4890 = vmatprep.subr.mxu0 0.0
    %4891 = vmatpush2.xpose.msra.mxu0 0.0
    %4892 = vmatprep.subr.mxu0 0.0
    %4893 = vmatpush2.xpose.msra.mxu0 0.0
    %4894 = vmatprep.subr.mxu0 0.0
    %4895 = vmatpush2.xpose.msra.mxu0 0.0
    %4896 = vmatprep.subr.mxu0 0.0
    %4897 = vmatpush2.xpose.msra.mxu0 0.0
    %4898 = vmatprep.subr.mxu0 0.0
    %4899 = vmatpush2.xpose.msra.mxu0 0.0
    %4900 = vmatprep.subr.mxu0 0.0
    %4901 = vmatpush2.xpose.msra.mxu0 0.0
    %4902 = vmatprep.subr.mxu0 0.0
    %4903 = vmatpush2.xpose.msra.mxu0 0.0
    %4904 = vmatprep.subr.mxu0 0.0
    %4905 = vmatpush2.xpose.msra.mxu0 0.0
    %4906 = vmatprep.subr.mxu0 0.0
    %4907 = vmatpush2.xpose.msra.mxu0 0.0
    %4908 = vmatprep.subr.mxu0 0.0
    %4909 = vmatpush2.xpose.msra.mxu0 0.0
    %4910 = vmatprep.subr.mxu0 0.0
    %4911 = vmatpush2.xpose.msra.mxu0 0.0
    %4912 = vmatprep.mubr.f32.mxu0 0.0
    %4913 = vmatmul.mubr.f32.gmra.mxu0 %v4843
    %v4914 = vpop.f32.mrf.mxu0
    %v4915 = vadd.f32 %v4307, %v4914
    %v4916 = vpop.f32.mrf.mxu0
    %4917 = vdwg.mxu0
    %v4918 = vsel %vm1469, %v4383, -inf
    %4919 = vmax.xlane.f32.xlu0 %v4918
    %v4920 = vpop.xlane.xlu0 %4919
    %v4921 = vsel %vm1469, %v4459, -inf
    %4922 = vmax.xlane.f32.xlu0 %v4921
    %v4923 = vpop.xlane.xlu0 %4922
    %v4924 = vsel %vm1469, %v4535, -inf
    %4925 = vmax.xlane.f32.xlu0 %v4924
    %v4926 = vpop.xlane.xlu0 %4925
    %v4927 = vsel %vm1469, %v4611, -inf
    %4928 = vmax.xlane.f32.xlu0 %v4927
    %v4929 = vpop.xlane.xlu0 %4928
    %v4930 = vsel %vm1469, %v4687, -inf
    %4931 = vmax.xlane.f32.xlu0 %v4930
    %v4932 = vpop.xlane.xlu0 %4931
    %v4933 = vsel %vm1469, %v4763, -inf
    %4934 = vmax.xlane.f32.xlu0 %v4933
    %v4935 = vpop.xlane.xlu0 %4934
    %v4936 = vsel %vm1469, %v4839, -inf
    %4937 = vmax.xlane.f32.xlu0 %v4936
    %v4938 = vpop.xlane.xlu0 %4937
    %v4939 = vsel %vm1469, %v4915, -inf
    %4940 = vmax.xlane.f32.xlu0 %v4939
    %v4941 = vpop.xlane.xlu0 %4940
    %v4942 = vsub.f32 %v4383, %v4920
    %v4943 = vsub.f32 %v4459, %v4923
    %v4944 = vsub.f32 %v4535, %v4926
    %v4945 = vsub.f32 %v4611, %v4929
    %v4946 = vsub.f32 %v4687, %v4932
    %v4947 = vsub.f32 %v4763, %v4935
    %v4948 = vsub.f32 %v4839, %v4938
    %v4949 = vsub.f32 %v4915, %v4941
    %v4950 = vmul.f32 %v4942, 1.442695
    %v4951 = vpow.pop %v4950
    %v4952 = vmul.f32 %v4943, 1.442695
    %v4953 = vpow.pop %v4952
    %v4954 = vmul.f32 %v4944, 1.442695
    %v4955 = vpow.pop %v4954
    %v4956 = vmul.f32 %v4945, 1.442695
    %v4957 = vpow.pop %v4956
    %v4958 = vmul.f32 %v4946, 1.442695
    %v4959 = vpow.pop %v4958
    %v4960 = vmul.f32 %v4947, 1.442695
    %v4961 = vpow.pop %v4960
    %v4962 = vmul.f32 %v4948, 1.442695
    %v4963 = vpow.pop %v4962
    %v4964 = vmul.f32 %v4949, 1.442695
    %v4965 = vpow.pop %v4964
    %v4966 = vsel %vm1469, %v4951, 0.0
    %4967 = vadd.xlane.f32.xlu0 %v4966
    %v4968 = vpop.xlane.xlu0 %4967
    %v4969 = vsel %vm1469, %v4953, 0.0
    %4970 = vadd.xlane.f32.xlu0 %v4969
    %v4971 = vpop.xlane.xlu0 %4970
    %v4972 = vsel %vm1469, %v4955, 0.0
    %4973 = vadd.xlane.f32.xlu0 %v4972
    %v4974 = vpop.xlane.xlu0 %4973
    %v4975 = vsel %vm1469, %v4957, 0.0
    %4976 = vadd.xlane.f32.xlu0 %v4975
    %v4977 = vpop.xlane.xlu0 %4976
    %v4978 = vsel %vm1469, %v4959, 0.0
    %4979 = vadd.xlane.f32.xlu0 %v4978
    %v4980 = vpop.xlane.xlu0 %4979
    %v4981 = vsel %vm1469, %v4961, 0.0
    %4982 = vadd.xlane.f32.xlu0 %v4981
    %v4983 = vpop.xlane.xlu0 %4982
    %v4984 = vsel %vm1469, %v4963, 0.0
    %4985 = vadd.xlane.f32.xlu0 %v4984
    %v4986 = vpop.xlane.xlu0 %4985
    %v4987 = vsel %vm1469, %v4965, 0.0
    %4988 = vadd.xlane.f32.xlu0 %v4987
    %v4989 = vpop.xlane.xlu0 %4988
    %v4990 = vrcp.pop %v4968
    %v4991 = vmul.f32 %v4951, %v4990
    %v4992 = vrcp.pop %v4971
    %v4993 = vmul.f32 %v4953, %v4992
    %v4994 = vrcp.pop %v4974
    %v4995 = vmul.f32 %v4955, %v4994
    %v4996 = vrcp.pop %v4977
    %v4997 = vmul.f32 %v4957, %v4996
    %v4998 = vrcp.pop %v4980
    %v4999 = vmul.f32 %v4959, %v4998
    %v5000 = vrcp.pop %v4983
    %v5001 = vmul.f32 %v4961, %v5000
    %v5002 = vrcp.pop %v4986
    %v5003 = vmul.f32 %v4963, %v5002
    %v5004 = vrcp.pop %v4989
    %v5005 = vmul.f32 %v4965, %v5004
    %v5007 = vsel %vm1469, %v4991, 0
    %5009 = vmatprep.subr.mxu0 0.0
    %5010 = vmatpush1.msra.mxu0 0.0
    %5011 = vmatprep.subr.mxu0 0.0
    %5012 = vmatpush1.msra.mxu0 0.0
    %5013 = vmatprep.subr.mxu0 0.0
    %5014 = vmatpush1.msra.mxu0 0.0
    %5015 = vmatprep.subr.mxu0 0.0
    %5016 = vmatpush1.msra.mxu0 0.0
    %5017 = vmatprep.subr.mxu0 0.0
    %5018 = vmatpush1.msra.mxu0 0.0
    %5019 = vmatprep.subr.mxu0 0.0
    %5020 = vmatpush1.msra.mxu0 0.0
    %5021 = vmatprep.subr.mxu0 0.0
    %5022 = vmatpush1.msra.mxu0 0.0
    %5023 = vmatprep.subr.mxu0 0.0
    %5024 = vmatpush1.msra.mxu0 0.0
    %5025 = vmatprep.subr.mxu0 0.0
    %5026 = vmatpush1.msra.mxu0 0.0
    %5027 = vmatprep.subr.mxu0 0.0
    %5028 = vmatpush1.msra.mxu0 0.0
    %5029 = vmatprep.subr.mxu0 0.0
    %5030 = vmatpush1.msra.mxu0 0.0
    %5031 = vmatprep.subr.mxu0 0.0
    %5032 = vmatpush1.msra.mxu0 0.0
    %5033 = vmatprep.subr.mxu0 0.0
    %5034 = vmatpush1.msra.mxu0 0.0
    %5035 = vmatprep.subr.mxu0 0.0
    %5036 = vmatpush1.msra.mxu0 0.0
    %5037 = vmatprep.subr.mxu0 0.0
    %5038 = vmatpush1.msra.mxu0 0.0
    %5039 = vmatprep.subr.mxu0 0.0
    %5040 = vmatpush1.msra.mxu0 %v4205
    %5041 = vmatprep.subr.mxu0 0.0
    %5042 = vmatpush2.msra.mxu0 0.0
    %5043 = vmatprep.subr.mxu0 0.0
    %5044 = vmatpush2.msra.mxu0 0.0
    %5045 = vmatprep.subr.mxu0 0.0
    %5046 = vmatpush2.msra.mxu0 0.0
    %5047 = vmatprep.subr.mxu0 0.0
    %5048 = vmatpush2.msra.mxu0 0.0
    %5049 = vmatprep.subr.mxu0 0.0
    %5050 = vmatpush2.msra.mxu0 0.0
    %5051 = vmatprep.subr.mxu0 0.0
    %5052 = vmatpush2.msra.mxu0 0.0
    %5053 = vmatprep.subr.mxu0 0.0
    %5054 = vmatpush2.msra.mxu0 0.0
    %5055 = vmatprep.subr.mxu0 0.0
    %5056 = vmatpush2.msra.mxu0 0.0
    %5057 = vmatprep.subr.mxu0 0.0
    %5058 = vmatpush2.msra.mxu0 0.0
    %5059 = vmatprep.subr.mxu0 0.0
    %5060 = vmatpush2.msra.mxu0 0.0
    %5061 = vmatprep.subr.mxu0 0.0
    %5062 = vmatpush2.msra.mxu0 0.0
    %5063 = vmatprep.subr.mxu0 0.0
    %5064 = vmatpush2.msra.mxu0 0.0
    %5065 = vmatprep.subr.mxu0 0.0
    %5066 = vmatpush2.msra.mxu0 0.0
    %5067 = vmatprep.subr.mxu0 0.0
    %5068 = vmatpush2.msra.mxu0 0.0
    %5069 = vmatprep.subr.mxu0 0.0
    %5070 = vmatpush2.msra.mxu0 0.0
    %5071 = vmatprep.subr.mxu0 0.0
    %5072 = vmatpush2.msra.mxu0 0.0
    %5073 = vmatprep.mubr.f32.mxu0 0.0
    %5074 = vmatmul.mubr.f32.gmra.mxu0 %v5007
    %v5075 = vpop.f32.mrf.mxu0
    %v5076 = vadd.f32 0.0, %v5075
    %v5077 = vpop.f32.mrf.mxu0
    %5078 = vdwg.mxu0
    %v5080 = vsel %vm1469, %v4993, 0
    %5082 = vmatprep.subr.mxu0 0.0
    %5083 = vmatpush1.msra.mxu0 0.0
    %5084 = vmatprep.subr.mxu0 0.0
    %5085 = vmatpush1.msra.mxu0 0.0
    %5086 = vmatprep.subr.mxu0 0.0
    %5087 = vmatpush1.msra.mxu0 0.0
    %5088 = vmatprep.subr.mxu0 0.0
    %5089 = vmatpush1.msra.mxu0 0.0
    %5090 = vmatprep.subr.mxu0 0.0
    %5091 = vmatpush1.msra.mxu0 0.0
    %5092 = vmatprep.subr.mxu0 0.0
    %5093 = vmatpush1.msra.mxu0 0.0
    %5094 = vmatprep.subr.mxu0 0.0
    %5095 = vmatpush1.msra.mxu0 0.0
    %5096 = vmatprep.subr.mxu0 0.0
    %5097 = vmatpush1.msra.mxu0 0.0
    %5098 = vmatprep.subr.mxu0 0.0
    %5099 = vmatpush1.msra.mxu0 0.0
    %5100 = vmatprep.subr.mxu0 0.0
    %5101 = vmatpush1.msra.mxu0 0.0
    %5102 = vmatprep.subr.mxu0 0.0
    %5103 = vmatpush1.msra.mxu0 0.0
    %5104 = vmatprep.subr.mxu0 0.0
    %5105 = vmatpush1.msra.mxu0 0.0
    %5106 = vmatprep.subr.mxu0 0.0
    %5107 = vmatpush1.msra.mxu0 0.0
    %5108 = vmatprep.subr.mxu0 0.0
    %5109 = vmatpush1.msra.mxu0 0.0
    %5110 = vmatprep.subr.mxu0 0.0
    %5111 = vmatpush1.msra.mxu0 0.0
    %5112 = vmatprep.subr.mxu0 0.0
    %5113 = vmatpush1.msra.mxu0 %v4206
    %5114 = vmatprep.subr.mxu0 0.0
    %5115 = vmatpush2.msra.mxu0 0.0
    %5116 = vmatprep.subr.mxu0 0.0
    %5117 = vmatpush2.msra.mxu0 0.0
    %5118 = vmatprep.subr.mxu0 0.0
    %5119 = vmatpush2.msra.mxu0 0.0
    %5120 = vmatprep.subr.mxu0 0.0
    %5121 = vmatpush2.msra.mxu0 0.0
    %5122 = vmatprep.subr.mxu0 0.0
    %5123 = vmatpush2.msra.mxu0 0.0
    %5124 = vmatprep.subr.mxu0 0.0
    %5125 = vmatpush2.msra.mxu0 0.0
    %5126 = vmatprep.subr.mxu0 0.0
    %5127 = vmatpush2.msra.mxu0 0.0
    %5128 = vmatprep.subr.mxu0 0.0
    %5129 = vmatpush2.msra.mxu0 0.0
    %5130 = vmatprep.subr.mxu0 0.0
    %5131 = vmatpush2.msra.mxu0 0.0
    %5132 = vmatprep.subr.mxu0 0.0
    %5133 = vmatpush2.msra.mxu0 0.0
    %5134 = vmatprep.subr.mxu0 0.0
    %5135 = vmatpush2.msra.mxu0 0.0
    %5136 = vmatprep.subr.mxu0 0.0
    %5137 = vmatpush2.msra.mxu0 0.0
    %5138 = vmatprep.subr.mxu0 0.0
    %5139 = vmatpush2.msra.mxu0 0.0
    %5140 = vmatprep.subr.mxu0 0.0
    %5141 = vmatpush2.msra.mxu0 0.0
    %5142 = vmatprep.subr.mxu0 0.0
    %5143 = vmatpush2.msra.mxu0 0.0
    %5144 = vmatprep.subr.mxu0 0.0
    %5145 = vmatpush2.msra.mxu0 0.0
    %5146 = vmatprep.mubr.f32.mxu0 0.0
    %5147 = vmatmul.mubr.f32.gmra.mxu0 %v5080
    %v5148 = vpop.f32.mrf.mxu0
    %v5149 = vadd.f32 0.0, %v5148
    %v5150 = vpop.f32.mrf.mxu0
    %5151 = vdwg.mxu0
    %v5153 = vsel %vm1469, %v4995, 0
    %5155 = vmatprep.subr.mxu0 0.0
    %5156 = vmatpush1.msra.mxu0 0.0
    %5157 = vmatprep.subr.mxu0 0.0
    %5158 = vmatpush1.msra.mxu0 0.0
    %5159 = vmatprep.subr.mxu0 0.0
    %5160 = vmatpush1.msra.mxu0 0.0
    %5161 = vmatprep.subr.mxu0 0.0
    %5162 = vmatpush1.msra.mxu0 0.0
    %5163 = vmatprep.subr.mxu0 0.0
    %5164 = vmatpush1.msra.mxu0 0.0
    %5165 = vmatprep.subr.mxu0 0.0
    %5166 = vmatpush1.msra.mxu0 0.0
    %5167 = vmatprep.subr.mxu0 0.0
    %5168 = vmatpush1.msra.mxu0 0.0
    %5169 = vmatprep.subr.mxu0 0.0
    %5170 = vmatpush1.msra.mxu0 0.0
    %5171 = vmatprep.subr.mxu0 0.0
    %5172 = vmatpush1.msra.mxu0 0.0
    %5173 = vmatprep.subr.mxu0 0.0
    %5174 = vmatpush1.msra.mxu0 0.0
    %5175 = vmatprep.subr.mxu0 0.0
    %5176 = vmatpush1.msra.mxu0 0.0
    %5177 = vmatprep.subr.mxu0 0.0
    %5178 = vmatpush1.msra.mxu0 0.0
    %5179 = vmatprep.subr.mxu0 0.0
    %5180 = vmatpush1.msra.mxu0 0.0
    %5181 = vmatprep.subr.mxu0 0.0
    %5182 = vmatpush1.msra.mxu0 0.0
    %5183 = vmatprep.subr.mxu0 0.0
    %5184 = vmatpush1.msra.mxu0 0.0
    %5185 = vmatprep.subr.mxu0 0.0
    %5186 = vmatpush1.msra.mxu0 %v4207
    %5187 = vmatprep.subr.mxu0 0.0
    %5188 = vmatpush2.msra.mxu0 0.0
    %5189 = vmatprep.subr.mxu0 0.0
    %5190 = vmatpush2.msra.mxu0 0.0
    %5191 = vmatprep.subr.mxu0 0.0
    %5192 = vmatpush2.msra.mxu0 0.0
    %5193 = vmatprep.subr.mxu0 0.0
    %5194 = vmatpush2.msra.mxu0 0.0
    %5195 = vmatprep.subr.mxu0 0.0
    %5196 = vmatpush2.msra.mxu0 0.0
    %5197 = vmatprep.subr.mxu0 0.0
    %5198 = vmatpush2.msra.mxu0 0.0
    %5199 = vmatprep.subr.mxu0 0.0
    %5200 = vmatpush2.msra.mxu0 0.0
    %5201 = vmatprep.subr.mxu0 0.0
    %5202 = vmatpush2.msra.mxu0 0.0
    %5203 = vmatprep.subr.mxu0 0.0
    %5204 = vmatpush2.msra.mxu0 0.0
    %5205 = vmatprep.subr.mxu0 0.0
    %5206 = vmatpush2.msra.mxu0 0.0
    %5207 = vmatprep.subr.mxu0 0.0
    %5208 = vmatpush2.msra.mxu0 0.0
    %5209 = vmatprep.subr.mxu0 0.0
    %5210 = vmatpush2.msra.mxu0 0.0
    %5211 = vmatprep.subr.mxu0 0.0
    %5212 = vmatpush2.msra.mxu0 0.0
    %5213 = vmatprep.subr.mxu0 0.0
    %5214 = vmatpush2.msra.mxu0 0.0
    %5215 = vmatprep.subr.mxu0 0.0
    %5216 = vmatpush2.msra.mxu0 0.0
    %5217 = vmatprep.subr.mxu0 0.0
    %5218 = vmatpush2.msra.mxu0 0.0
    %5219 = vmatprep.mubr.f32.mxu0 0.0
    %5220 = vmatmul.mubr.f32.gmra.mxu0 %v5153
    %v5221 = vpop.f32.mrf.mxu0
    %v5222 = vadd.f32 0.0, %v5221
    %v5223 = vpop.f32.mrf.mxu0
    %5224 = vdwg.mxu0
    %v5226 = vsel %vm1469, %v4997, 0
    %5228 = vmatprep.subr.mxu0 0.0
    %5229 = vmatpush1.msra.mxu0 0.0
    %5230 = vmatprep.subr.mxu0 0.0
    %5231 = vmatpush1.msra.mxu0 0.0
    %5232 = vmatprep.subr.mxu0 0.0
    %5233 = vmatpush1.msra.mxu0 0.0
    %5234 = vmatprep.subr.mxu0 0.0
    %5235 = vmatpush1.msra.mxu0 0.0
    %5236 = vmatprep.subr.mxu0 0.0
    %5237 = vmatpush1.msra.mxu0 0.0
    %5238 = vmatprep.subr.mxu0 0.0
    %5239 = vmatpush1.msra.mxu0 0.0
    %5240 = vmatprep.subr.mxu0 0.0
    %5241 = vmatpush1.msra.mxu0 0.0
    %5242 = vmatprep.subr.mxu0 0.0
    %5243 = vmatpush1.msra.mxu0 0.0
    %5244 = vmatprep.subr.mxu0 0.0
    %5245 = vmatpush1.msra.mxu0 0.0
    %5246 = vmatprep.subr.mxu0 0.0
    %5247 = vmatpush1.msra.mxu0 0.0
    %5248 = vmatprep.subr.mxu0 0.0
    %5249 = vmatpush1.msra.mxu0 0.0
    %5250 = vmatprep.subr.mxu0 0.0
    %5251 = vmatpush1.msra.mxu0 0.0
    %5252 = vmatprep.subr.mxu0 0.0
    %5253 = vmatpush1.msra.mxu0 0.0
    %5254 = vmatprep.subr.mxu0 0.0
    %5255 = vmatpush1.msra.mxu0 0.0
    %5256 = vmatprep.subr.mxu0 0.0
    %5257 = vmatpush1.msra.mxu0 0.0
    %5258 = vmatprep.subr.mxu0 0.0
    %5259 = vmatpush1.msra.mxu0 %v4208
    %5260 = vmatprep.subr.mxu0 0.0
    %5261 = vmatpush2.msra.mxu0 0.0
    %5262 = vmatprep.subr.mxu0 0.0
    %5263 = vmatpush2.msra.mxu0 0.0
    %5264 = vmatprep.subr.mxu0 0.0
    %5265 = vmatpush2.msra.mxu0 0.0
    %5266 = vmatprep.subr.mxu0 0.0
    %5267 = vmatpush2.msra.mxu0 0.0
    %5268 = vmatprep.subr.mxu0 0.0
    %5269 = vmatpush2.msra.mxu0 0.0
    %5270 = vmatprep.subr.mxu0 0.0
    %5271 = vmatpush2.msra.mxu0 0.0
    %5272 = vmatprep.subr.mxu0 0.0
    %5273 = vmatpush2.msra.mxu0 0.0
    %5274 = vmatprep.subr.mxu0 0.0
    %5275 = vmatpush2.msra.mxu0 0.0
    %5276 = vmatprep.subr.mxu0 0.0
    %5277 = vmatpush2.msra.mxu0 0.0
    %5278 = vmatprep.subr.mxu0 0.0
    %5279 = vmatpush2.msra.mxu0 0.0
    %5280 = vmatprep.subr.mxu0 0.0
    %5281 = vmatpush2.msra.mxu0 0.0
    %5282 = vmatprep.subr.mxu0 0.0
    %5283 = vmatpush2.msra.mxu0 0.0
    %5284 = vmatprep.subr.mxu0 0.0
    %5285 = vmatpush2.msra.mxu0 0.0
    %5286 = vmatprep.subr.mxu0 0.0
    %5287 = vmatpush2.msra.mxu0 0.0
    %5288 = vmatprep.subr.mxu0 0.0
    %5289 = vmatpush2.msra.mxu0 0.0
    %5290 = vmatprep.subr.mxu0 0.0
    %5291 = vmatpush2.msra.mxu0 0.0
    %5292 = vmatprep.mubr.f32.mxu0 0.0
    %5293 = vmatmul.mubr.f32.gmra.mxu0 %v5226
    %v5294 = vpop.f32.mrf.mxu0
    %v5295 = vadd.f32 0.0, %v5294
    %v5296 = vpop.f32.mrf.mxu0
    %5297 = vdwg.mxu0
    %v5299 = vsel %vm1469, %v4999, 0
    %5301 = vmatprep.subr.mxu0 0.0
    %5302 = vmatpush1.msra.mxu0 0.0
    %5303 = vmatprep.subr.mxu0 0.0
    %5304 = vmatpush1.msra.mxu0 0.0
    %5305 = vmatprep.subr.mxu0 0.0
    %5306 = vmatpush1.msra.mxu0 0.0
    %5307 = vmatprep.subr.mxu0 0.0
    %5308 = vmatpush1.msra.mxu0 0.0
    %5309 = vmatprep.subr.mxu0 0.0
    %5310 = vmatpush1.msra.mxu0 0.0
    %5311 = vmatprep.subr.mxu0 0.0
    %5312 = vmatpush1.msra.mxu0 0.0
    %5313 = vmatprep.subr.mxu0 0.0
    %5314 = vmatpush1.msra.mxu0 0.0
    %5315 = vmatprep.subr.mxu0 0.0
    %5316 = vmatpush1.msra.mxu0 0.0
    %5317 = vmatprep.subr.mxu0 0.0
    %5318 = vmatpush1.msra.mxu0 0.0
    %5319 = vmatprep.subr.mxu0 0.0
    %5320 = vmatpush1.msra.mxu0 0.0
    %5321 = vmatprep.subr.mxu0 0.0
    %5322 = vmatpush1.msra.mxu0 0.0
    %5323 = vmatprep.subr.mxu0 0.0
    %5324 = vmatpush1.msra.mxu0 0.0
    %5325 = vmatprep.subr.mxu0 0.0
    %5326 = vmatpush1.msra.mxu0 0.0
    %5327 = vmatprep.subr.mxu0 0.0
    %5328 = vmatpush1.msra.mxu0 0.0
    %5329 = vmatprep.subr.mxu0 0.0
    %5330 = vmatpush1.msra.mxu0 0.0
    %5331 = vmatprep.subr.mxu0 0.0
    %5332 = vmatpush1.msra.mxu0 %v4273
    %5333 = vmatprep.subr.mxu0 0.0
    %5334 = vmatpush2.msra.mxu0 0.0
    %5335 = vmatprep.subr.mxu0 0.0
    %5336 = vmatpush2.msra.mxu0 0.0
    %5337 = vmatprep.subr.mxu0 0.0
    %5338 = vmatpush2.msra.mxu0 0.0
    %5339 = vmatprep.subr.mxu0 0.0
    %5340 = vmatpush2.msra.mxu0 0.0
    %5341 = vmatprep.subr.mxu0 0.0
    %5342 = vmatpush2.msra.mxu0 0.0
    %5343 = vmatprep.subr.mxu0 0.0
    %5344 = vmatpush2.msra.mxu0 0.0
    %5345 = vmatprep.subr.mxu0 0.0
    %5346 = vmatpush2.msra.mxu0 0.0
    %5347 = vmatprep.subr.mxu0 0.0
    %5348 = vmatpush2.msra.mxu0 0.0
    %5349 = vmatprep.subr.mxu0 0.0
    %5350 = vmatpush2.msra.mxu0 0.0
    %5351 = vmatprep.subr.mxu0 0.0
    %5352 = vmatpush2.msra.mxu0 0.0
    %5353 = vmatprep.subr.mxu0 0.0
    %5354 = vmatpush2.msra.mxu0 0.0
    %5355 = vmatprep.subr.mxu0 0.0
    %5356 = vmatpush2.msra.mxu0 0.0
    %5357 = vmatprep.subr.mxu0 0.0
    %5358 = vmatpush2.msra.mxu0 0.0
    %5359 = vmatprep.subr.mxu0 0.0
    %5360 = vmatpush2.msra.mxu0 0.0
    %5361 = vmatprep.subr.mxu0 0.0
    %5362 = vmatpush2.msra.mxu0 0.0
    %5363 = vmatprep.subr.mxu0 0.0
    %5364 = vmatpush2.msra.mxu0 0.0
    %5365 = vmatprep.mubr.f32.mxu0 0.0
    %5366 = vmatmul.mubr.f32.gmra.mxu0 %v5299
    %v5367 = vpop.f32.mrf.mxu0
    %v5368 = vadd.f32 0.0, %v5367
    %v5369 = vpop.f32.mrf.mxu0
    %5370 = vdwg.mxu0
    %v5372 = vsel %vm1469, %v5001, 0
    %5374 = vmatprep.subr.mxu0 0.0
    %5375 = vmatpush1.msra.mxu0 0.0
    %5376 = vmatprep.subr.mxu0 0.0
    %5377 = vmatpush1.msra.mxu0 0.0
    %5378 = vmatprep.subr.mxu0 0.0
    %5379 = vmatpush1.msra.mxu0 0.0
    %5380 = vmatprep.subr.mxu0 0.0
    %5381 = vmatpush1.msra.mxu0 0.0
    %5382 = vmatprep.subr.mxu0 0.0
    %5383 = vmatpush1.msra.mxu0 0.0
    %5384 = vmatprep.subr.mxu0 0.0
    %5385 = vmatpush1.msra.mxu0 0.0
    %5386 = vmatprep.subr.mxu0 0.0
    %5387 = vmatpush1.msra.mxu0 0.0
    %5388 = vmatprep.subr.mxu0 0.0
    %5389 = vmatpush1.msra.mxu0 0.0
    %5390 = vmatprep.subr.mxu0 0.0
    %5391 = vmatpush1.msra.mxu0 0.0
    %5392 = vmatprep.subr.mxu0 0.0
    %5393 = vmatpush1.msra.mxu0 0.0
    %5394 = vmatprep.subr.mxu0 0.0
    %5395 = vmatpush1.msra.mxu0 0.0
    %5396 = vmatprep.subr.mxu0 0.0
    %5397 = vmatpush1.msra.mxu0 0.0
    %5398 = vmatprep.subr.mxu0 0.0
    %5399 = vmatpush1.msra.mxu0 0.0
    %5400 = vmatprep.subr.mxu0 0.0
    %5401 = vmatpush1.msra.mxu0 0.0
    %5402 = vmatprep.subr.mxu0 0.0
    %5403 = vmatpush1.msra.mxu0 0.0
    %5404 = vmatprep.subr.mxu0 0.0
    %5405 = vmatpush1.msra.mxu0 %v4274
    %5406 = vmatprep.subr.mxu0 0.0
    %5407 = vmatpush2.msra.mxu0 0.0
    %5408 = vmatprep.subr.mxu0 0.0
    %5409 = vmatpush2.msra.mxu0 0.0
    %5410 = vmatprep.subr.mxu0 0.0
    %5411 = vmatpush2.msra.mxu0 0.0
    %5412 = vmatprep.subr.mxu0 0.0
    %5413 = vmatpush2.msra.mxu0 0.0
    %5414 = vmatprep.subr.mxu0 0.0
    %5415 = vmatpush2.msra.mxu0 0.0
    %5416 = vmatprep.subr.mxu0 0.0
    %5417 = vmatpush2.msra.mxu0 0.0
    %5418 = vmatprep.subr.mxu0 0.0
    %5419 = vmatpush2.msra.mxu0 0.0
    %5420 = vmatprep.subr.mxu0 0.0
    %5421 = vmatpush2.msra.mxu0 0.0
    %5422 = vmatprep.subr.mxu0 0.0
    %5423 = vmatpush2.msra.mxu0 0.0
    %5424 = vmatprep.subr.mxu0 0.0
    %5425 = vmatpush2.msra.mxu0 0.0
    %5426 = vmatprep.subr.mxu0 0.0
    %5427 = vmatpush2.msra.mxu0 0.0
    %5428 = vmatprep.subr.mxu0 0.0
    %5429 = vmatpush2.msra.mxu0 0.0
    %5430 = vmatprep.subr.mxu0 0.0
    %5431 = vmatpush2.msra.mxu0 0.0
    %5432 = vmatprep.subr.mxu0 0.0
    %5433 = vmatpush2.msra.mxu0 0.0
    %5434 = vmatprep.subr.mxu0 0.0
    %5435 = vmatpush2.msra.mxu0 0.0
    %5436 = vmatprep.subr.mxu0 0.0
    %5437 = vmatpush2.msra.mxu0 0.0
    %5438 = vmatprep.mubr.f32.mxu0 0.0
    %5439 = vmatmul.mubr.f32.gmra.mxu0 %v5372
    %v5440 = vpop.f32.mrf.mxu0
    %v5441 = vadd.f32 0.0, %v5440
    %v5442 = vpop.f32.mrf.mxu0
    %5443 = vdwg.mxu0
    %v5445 = vsel %vm1469, %v5003, 0
    %5447 = vmatprep.subr.mxu0 0.0
    %5448 = vmatpush1.msra.mxu0 0.0
    %5449 = vmatprep.subr.mxu0 0.0
    %5450 = vmatpush1.msra.mxu0 0.0
    %5451 = vmatprep.subr.mxu0 0.0
    %5452 = vmatpush1.msra.mxu0 0.0
    %5453 = vmatprep.subr.mxu0 0.0
    %5454 = vmatpush1.msra.mxu0 0.0
    %5455 = vmatprep.subr.mxu0 0.0
    %5456 = vmatpush1.msra.mxu0 0.0
    %5457 = vmatprep.subr.mxu0 0.0
    %5458 = vmatpush1.msra.mxu0 0.0
    %5459 = vmatprep.subr.mxu0 0.0
    %5460 = vmatpush1.msra.mxu0 0.0
    %5461 = vmatprep.subr.mxu0 0.0
    %5462 = vmatpush1.msra.mxu0 0.0
    %5463 = vmatprep.subr.mxu0 0.0
    %5464 = vmatpush1.msra.mxu0 0.0
    %5465 = vmatprep.subr.mxu0 0.0
    %5466 = vmatpush1.msra.mxu0 0.0
    %5467 = vmatprep.subr.mxu0 0.0
    %5468 = vmatpush1.msra.mxu0 0.0
    %5469 = vmatprep.subr.mxu0 0.0
    %5470 = vmatpush1.msra.mxu0 0.0
    %5471 = vmatprep.subr.mxu0 0.0
    %5472 = vmatpush1.msra.mxu0 0.0
    %5473 = vmatprep.subr.mxu0 0.0
    %5474 = vmatpush1.msra.mxu0 0.0
    %5475 = vmatprep.subr.mxu0 0.0
    %5476 = vmatpush1.msra.mxu0 0.0
    %5477 = vmatprep.subr.mxu0 0.0
    %5478 = vmatpush1.msra.mxu0 %v4275
    %5479 = vmatprep.subr.mxu0 0.0
    %5480 = vmatpush2.msra.mxu0 0.0
    %5481 = vmatprep.subr.mxu0 0.0
    %5482 = vmatpush2.msra.mxu0 0.0
    %5483 = vmatprep.subr.mxu0 0.0
    %5484 = vmatpush2.msra.mxu0 0.0
    %5485 = vmatprep.subr.mxu0 0.0
    %5486 = vmatpush2.msra.mxu0 0.0
    %5487 = vmatprep.subr.mxu0 0.0
    %5488 = vmatpush2.msra.mxu0 0.0
    %5489 = vmatprep.subr.mxu0 0.0
    %5490 = vmatpush2.msra.mxu0 0.0
    %5491 = vmatprep.subr.mxu0 0.0
    %5492 = vmatpush2.msra.mxu0 0.0
    %5493 = vmatprep.subr.mxu0 0.0
    %5494 = vmatpush2.msra.mxu0 0.0
    %5495 = vmatprep.subr.mxu0 0.0
    %5496 = vmatpush2.msra.mxu0 0.0
    %5497 = vmatprep.subr.mxu0 0.0
    %5498 = vmatpush2.msra.mxu0 0.0
    %5499 = vmatprep.subr.mxu0 0.0
    %5500 = vmatpush2.msra.mxu0 0.0
    %5501 = vmatprep.subr.mxu0 0.0
    %5502 = vmatpush2.msra.mxu0 0.0
    %5503 = vmatprep.subr.mxu0 0.0
    %5504 = vmatpush2.msra.mxu0 0.0
    %5505 = vmatprep.subr.mxu0 0.0
    %5506 = vmatpush2.msra.mxu0 0.0
    %5507 = vmatprep.subr.mxu0 0.0
    %5508 = vmatpush2.msra.mxu0 0.0
    %5509 = vmatprep.subr.mxu0 0.0
    %5510 = vmatpush2.msra.mxu0 0.0
    %5511 = vmatprep.mubr.f32.mxu0 0.0
    %5512 = vmatmul.mubr.f32.gmra.mxu0 %v5445
    %v5513 = vpop.f32.mrf.mxu0
    %v5514 = vadd.f32 0.0, %v5513
    %v5515 = vpop.f32.mrf.mxu0
    %5516 = vdwg.mxu0
    %v5518 = vsel %vm1469, %v5005, 0
    %5520 = vmatprep.subr.mxu0 0.0
    %5521 = vmatpush1.msra.mxu0 0.0
    %5522 = vmatprep.subr.mxu0 0.0
    %5523 = vmatpush1.msra.mxu0 0.0
    %5524 = vmatprep.subr.mxu0 0.0
    %5525 = vmatpush1.msra.mxu0 0.0
    %5526 = vmatprep.subr.mxu0 0.0
    %5527 = vmatpush1.msra.mxu0 0.0
    %5528 = vmatprep.subr.mxu0 0.0
    %5529 = vmatpush1.msra.mxu0 0.0
    %5530 = vmatprep.subr.mxu0 0.0
    %5531 = vmatpush1.msra.mxu0 0.0
    %5532 = vmatprep.subr.mxu0 0.0
    %5533 = vmatpush1.msra.mxu0 0.0
    %5534 = vmatprep.subr.mxu0 0.0
    %5535 = vmatpush1.msra.mxu0 0.0
    %5536 = vmatprep.subr.mxu0 0.0
    %5537 = vmatpush1.msra.mxu0 0.0
    %5538 = vmatprep.subr.mxu0 0.0
    %5539 = vmatpush1.msra.mxu0 0.0
    %5540 = vmatprep.subr.mxu0 0.0
    %5541 = vmatpush1.msra.mxu0 0.0
    %5542 = vmatprep.subr.mxu0 0.0
    %5543 = vmatpush1.msra.mxu0 0.0
    %5544 = vmatprep.subr.mxu0 0.0
    %5545 = vmatpush1.msra.mxu0 0.0
    %5546 = vmatprep.subr.mxu0 0.0
    %5547 = vmatpush1.msra.mxu0 0.0
    %5548 = vmatprep.subr.mxu0 0.0
    %5549 = vmatpush1.msra.mxu0 0.0
    %5550 = vmatprep.subr.mxu0 0.0
    %5551 = vmatpush1.msra.mxu0 %v4276
    %5552 = vmatprep.subr.mxu0 0.0
    %5553 = vmatpush2.msra.mxu0 0.0
    %5554 = vmatprep.subr.mxu0 0.0
    %5555 = vmatpush2.msra.mxu0 0.0
    %5556 = vmatprep.subr.mxu0 0.0
    %5557 = vmatpush2.msra.mxu0 0.0
    %5558 = vmatprep.subr.mxu0 0.0
    %5559 = vmatpush2.msra.mxu0 0.0
    %5560 = vmatprep.subr.mxu0 0.0
    %5561 = vmatpush2.msra.mxu0 0.0
    %5562 = vmatprep.subr.mxu0 0.0
    %5563 = vmatpush2.msra.mxu0 0.0
    %5564 = vmatprep.subr.mxu0 0.0
    %5565 = vmatpush2.msra.mxu0 0.0
    %5566 = vmatprep.subr.mxu0 0.0
    %5567 = vmatpush2.msra.mxu0 0.0
    %5568 = vmatprep.subr.mxu0 0.0
    %5569 = vmatpush2.msra.mxu0 0.0
    %5570 = vmatprep.subr.mxu0 0.0
    %5571 = vmatpush2.msra.mxu0 0.0
    %5572 = vmatprep.subr.mxu0 0.0
    %5573 = vmatpush2.msra.mxu0 0.0
    %5574 = vmatprep.subr.mxu0 0.0
    %5575 = vmatpush2.msra.mxu0 0.0
    %5576 = vmatprep.subr.mxu0 0.0
    %5577 = vmatpush2.msra.mxu0 0.0
    %5578 = vmatprep.subr.mxu0 0.0
    %5579 = vmatpush2.msra.mxu0 0.0
    %5580 = vmatprep.subr.mxu0 0.0
    %5581 = vmatpush2.msra.mxu0 0.0
    %5582 = vmatprep.subr.mxu0 0.0
    %5583 = vmatpush2.msra.mxu0 0.0
    %5584 = vmatprep.mubr.f32.mxu0 0.0
    %5585 = vmatmul.mubr.f32.gmra.mxu0 %v5518
    %v5586 = vpop.f32.mrf.mxu0
    %v5587 = vadd.f32 0.0, %v5586
    %v5588 = vpop.f32.mrf.mxu0
    %5589 = vdwg.mxu0
    %v5590 = vcombine.low %v5076, %v5222
    %v5591 = vcombine.high %v5076, %v5222
    %v5593 = vunpack.c.l.s4 1983009808
    %v5594 = vunpack.c.0.s8 %v5593
    %v5595 = vlaneseq
    %v5596 = vshrl.u32 %v5595, 7
    %v5597 = vsub.s32 %v5594, %v5596
    %v5598 = vrot.slane %v5590, %v5597
    %v5600 = vunpack.c.l.s4 1983009808
    %v5601 = vunpack.c.0.s8 %v5600
    %v5602 = vlaneseq
    %v5603 = vshrl.u32 %v5602, 7
    %v5604 = vsub.s32 %v5601, %v5603
    %v5605 = vrot.slane %v5591, %v5604
    %v5606 = vcombine.low %v5149, %v5295
    %v5607 = vcombine.high %v5149, %v5295
    %v5609 = vunpack.c.l.s4 1983009808
    %v5610 = vunpack.c.0.s8 %v5609
    %v5611 = vlaneseq
    %v5612 = vshrl.u32 %v5611, 7
    %v5613 = vsub.s32 %v5610, %v5612
    %v5614 = vrot.slane %v5606, %v5613
    %v5616 = vunpack.c.l.s4 1983009808
    %v5617 = vunpack.c.0.s8 %v5616
    %v5618 = vlaneseq
    %v5619 = vshrl.u32 %v5618, 7
    %v5620 = vsub.s32 %v5617, %v5619
    %v5621 = vrot.slane %v5607, %v5620
    %v5622 = vcombine.low %v5598, %v5614
    %v5623 = vcombine.high %v5598, %v5614
    %v5625 = vunpack.c.l.s4 1934713408
    %v5626 = vunpack.c.0.s8 %v5625
    %v5627 = vlaneseq
    %v5628 = vshrl.u32 %v5627, 7
    %v5629 = vsub.s32 %v5626, %v5628
    %v5630 = vrot.slane %v5622, %v5629
    %v5632 = vunpack.c.l.s4 1934713408
    %v5633 = vunpack.c.0.s8 %v5632
    %v5634 = vlaneseq
    %v5635 = vshrl.u32 %v5634, 7
    %v5636 = vsub.s32 %v5633, %v5635
    %v5637 = vrot.slane %v5623, %v5636
    %v5638 = vcombine.low %v5605, %v5621
    %v5639 = vcombine.high %v5605, %v5621
    %v5641 = vunpack.c.l.s4 1934713408
    %v5642 = vunpack.c.0.s8 %v5641
    %v5643 = vlaneseq
    %v5644 = vshrl.u32 %v5643, 7
    %v5645 = vsub.s32 %v5642, %v5644
    %v5646 = vrot.slane %v5638, %v5645
    %v5648 = vunpack.c.l.s4 1934713408
    %v5649 = vunpack.c.0.s8 %v5648
    %v5650 = vlaneseq
    %v5651 = vshrl.u32 %v5650, 7
    %v5652 = vsub.s32 %v5649, %v5651
    %v5653 = vrot.slane %v5639, %v5652
    %v5654 = vcombine.high %v5630, 0.0
    %v5655 = vcombine.high %v5637, 0.0
    %v5656 = vcombine.high %v5646, 0.0
    %v5657 = vcombine.high %v5653, 0.0
    %v5658 = vcombine.low %v5368, %v5514
    %v5659 = vcombine.high %v5368, %v5514
    %v5661 = vunpack.c.l.s4 1983009808
    %v5662 = vunpack.c.0.s8 %v5661
    %v5663 = vlaneseq
    %v5664 = vshrl.u32 %v5663, 7
    %v5665 = vsub.s32 %v5662, %v5664
    %v5666 = vrot.slane %v5658, %v5665
    %v5668 = vunpack.c.l.s4 1983009808
    %v5669 = vunpack.c.0.s8 %v5668
    %v5670 = vlaneseq
    %v5671 = vshrl.u32 %v5670, 7
    %v5672 = vsub.s32 %v5669, %v5671
    %v5673 = vrot.slane %v5659, %v5672
    %v5674 = vcombine.low %v5441, %v5587
    %v5675 = vcombine.high %v5441, %v5587
    %v5677 = vunpack.c.l.s4 1983009808
    %v5678 = vunpack.c.0.s8 %v5677
    %v5679 = vlaneseq
    %v5680 = vshrl.u32 %v5679, 7
    %v5681 = vsub.s32 %v5678, %v5680
    %v5682 = vrot.slane %v5674, %v5681
    %v5684 = vunpack.c.l.s4 1983009808
    %v5685 = vunpack.c.0.s8 %v5684
    %v5686 = vlaneseq
    %v5687 = vshrl.u32 %v5686, 7
    %v5688 = vsub.s32 %v5685, %v5687
    %v5689 = vrot.slane %v5675, %v5688
    %v5690 = vcombine.low %v5666, %v5682
    %v5691 = vcombine.high %v5666, %v5682
    %v5693 = vunpack.c.l.s4 1934713408
    %v5694 = vunpack.c.0.s8 %v5693
    %v5695 = vlaneseq
    %v5696 = vshrl.u32 %v5695, 7
    %v5697 = vsub.s32 %v5694, %v5696
    %v5698 = vrot.slane %v5690, %v5697
    %v5700 = vunpack.c.l.s4 1934713408
    %v5701 = vunpack.c.0.s8 %v5700
    %v5702 = vlaneseq
    %v5703 = vshrl.u32 %v5702, 7
    %v5704 = vsub.s32 %v5701, %v5703
    %v5705 = vrot.slane %v5691, %v5704
    %v5706 = vcombine.low %v5673, %v5689
    %v5707 = vcombine.high %v5673, %v5689
    %v5709 = vunpack.c.l.s4 1934713408
    %v5710 = vunpack.c.0.s8 %v5709
    %v5711 = vlaneseq
    %v5712 = vshrl.u32 %v5711, 7
    %v5713 = vsub.s32 %v5710, %v5712
    %v5714 = vrot.slane %v5706, %v5713
    %v5716 = vunpack.c.l.s4 1934713408
    %v5717 = vunpack.c.0.s8 %v5716
    %v5718 = vlaneseq
    %v5719 = vshrl.u32 %v5718, 7
    %v5720 = vsub.s32 %v5717, %v5719
    %v5721 = vrot.slane %v5707, %v5720
    %v5722 = vcombine.high %v5698, 0.0
    %v5723 = vcombine.high %v5705, 0.0
    %v5724 = vcombine.high %v5714, 0.0
    %v5725 = vcombine.high %v5721, 0.0
    %v5726 = vcombine.low %v5630, %v5637
    %v5728 = vunpack.c.l.s4 1983009808
    %v5729 = vunpack.c.0.s8 %v5728
    %v5730 = vlaneseq
    %v5731 = vshrl.u32 %v5730, 7
    %v5732 = vsub.s32 %v5729, %v5731
    %v5733 = vrot.slane %v5726, %v5732
    %v5734 = vcombine.low %v5654, %v5655
    %v5736 = vunpack.c.l.s4 1983009808
    %v5737 = vunpack.c.0.s8 %v5736
    %v5738 = vlaneseq
    %v5739 = vshrl.u32 %v5738, 7
    %v5740 = vsub.s32 %v5737, %v5739
    %v5741 = vrot.slane %v5734, %v5740
    %v5742 = vcombine.low %v5646, %v5653
    %v5744 = vunpack.c.l.s4 1983009808
    %v5745 = vunpack.c.0.s8 %v5744
    %v5746 = vlaneseq
    %v5747 = vshrl.u32 %v5746, 7
    %v5748 = vsub.s32 %v5745, %v5747
    %v5749 = vrot.slane %v5742, %v5748
    %v5750 = vcombine.low %v5656, %v5657
    %v5752 = vunpack.c.l.s4 1983009808
    %v5753 = vunpack.c.0.s8 %v5752
    %v5754 = vlaneseq
    %v5755 = vshrl.u32 %v5754, 7
    %v5756 = vsub.s32 %v5753, %v5755
    %v5757 = vrot.slane %v5750, %v5756
    %v5758 = vcombine.low %v5733, %v5741
    %v5759 = vcombine.high %v5733, %v5741
    %v5761 = vunpack.c.l.s4 1934713408
    %v5762 = vunpack.c.0.s8 %v5761
    %v5763 = vlaneseq
    %v5764 = vshrl.u32 %v5763, 7
    %v5765 = vsub.s32 %v5762, %v5764
    %v5766 = vrot.slane %v5758, %v5765
    %v5768 = vunpack.c.l.s4 1934713408
    %v5769 = vunpack.c.0.s8 %v5768
    %v5770 = vlaneseq
    %v5771 = vshrl.u32 %v5770, 7
    %v5772 = vsub.s32 %v5769, %v5771
    %v5773 = vrot.slane %v5759, %v5772
    %v5774 = vcombine.low %v5749, %v5757
    %v5775 = vcombine.high %v5749, %v5757
    %v5777 = vunpack.c.l.s4 1934713408
    %v5778 = vunpack.c.0.s8 %v5777
    %v5779 = vlaneseq
    %v5780 = vshrl.u32 %v5779, 7
    %v5781 = vsub.s32 %v5778, %v5780
    %v5782 = vrot.slane %v5774, %v5781
    %v5784 = vunpack.c.l.s4 1934713408
    %v5785 = vunpack.c.0.s8 %v5784
    %v5786 = vlaneseq
    %v5787 = vshrl.u32 %v5786, 7
    %v5788 = vsub.s32 %v5785, %v5787
    %v5789 = vrot.slane %v5775, %v5788
    %v5790 = vcombine.low %v5766, %v5782
    %v5791 = vcombine.high %v5766, %v5782
    %v5792 = vcombine.low %v5773, %v5789
    %v5793 = vcombine.high %v5773, %v5789
    %v5794 = vcombine.low %v5698, %v5705
    %v5796 = vunpack.c.l.s4 1983009808
    %v5797 = vunpack.c.0.s8 %v5796
    %v5798 = vlaneseq
    %v5799 = vshrl.u32 %v5798, 7
    %v5800 = vsub.s32 %v5797, %v5799
    %v5801 = vrot.slane %v5794, %v5800
    %v5802 = vcombine.low %v5722, %v5723
    %v5804 = vunpack.c.l.s4 1983009808
    %v5805 = vunpack.c.0.s8 %v5804
    %v5806 = vlaneseq
    %v5807 = vshrl.u32 %v5806, 7
    %v5808 = vsub.s32 %v5805, %v5807
    %v5809 = vrot.slane %v5802, %v5808
    %v5810 = vcombine.low %v5714, %v5721
    %v5812 = vunpack.c.l.s4 1983009808
    %v5813 = vunpack.c.0.s8 %v5812
    %v5814 = vlaneseq
    %v5815 = vshrl.u32 %v5814, 7
    %v5816 = vsub.s32 %v5813, %v5815
    %v5817 = vrot.slane %v5810, %v5816
    %v5818 = vcombine.low %v5724, %v5725
    %v5820 = vunpack.c.l.s4 1983009808
    %v5821 = vunpack.c.0.s8 %v5820
    %v5822 = vlaneseq
    %v5823 = vshrl.u32 %v5822, 7
    %v5824 = vsub.s32 %v5821, %v5823
    %v5825 = vrot.slane %v5818, %v5824
    %v5826 = vcombine.low %v5801, %v5809
    %v5827 = vcombine.high %v5801, %v5809
    %v5829 = vunpack.c.l.s4 1934713408
    %v5830 = vunpack.c.0.s8 %v5829
    %v5831 = vlaneseq
    %v5832 = vshrl.u32 %v5831, 7
    %v5833 = vsub.s32 %v5830, %v5832
    %v5834 = vrot.slane %v5826, %v5833
    %v5836 = vunpack.c.l.s4 1934713408
    %v5837 = vunpack.c.0.s8 %v5836
    %v5838 = vlaneseq
    %v5839 = vshrl.u32 %v5838, 7
    %v5840 = vsub.s32 %v5837, %v5839
    %v5841 = vrot.slane %v5827, %v5840
    %v5842 = vcombine.low %v5817, %v5825
    %v5843 = vcombine.high %v5817, %v5825
    %v5845 = vunpack.c.l.s4 1934713408
    %v5846 = vunpack.c.0.s8 %v5845
    %v5847 = vlaneseq
    %v5848 = vshrl.u32 %v5847, 7
    %v5849 = vsub.s32 %v5846, %v5848
    %v5850 = vrot.slane %v5842, %v5849
    %v5852 = vunpack.c.l.s4 1934713408
    %v5853 = vunpack.c.0.s8 %v5852
    %v5854 = vlaneseq
    %v5855 = vshrl.u32 %v5854, 7
    %v5856 = vsub.s32 %v5853, %v5855
    %v5857 = vrot.slane %v5843, %v5856
    %v5858 = vcombine.low %v5834, %v5850
    %v5859 = vcombine.high %v5834, %v5850
    %v5860 = vcombine.low %v5841, %v5857
    %v5861 = vcombine.high %v5841, %v5857
    %5864 = vrot.lane.b32.xlu0 %v5791, 8
    %v5865 = vpop.permute.xlu0 %5864
    %5866 = vrot.lane.b32.xlu0 %v5859, 8
    %v5867 = vpop.permute.xlu0 %5866
    %5872 = vrot.lane.b32.xlu0 %v5792, 16
    %v5873 = vpop.permute.xlu0 %5872
    %5874 = vrot.lane.b32.xlu0 %v5860, 16
    %v5875 = vpop.permute.xlu0 %5874
    %5880 = vrot.lane.b32.xlu0 %v5793, 24
    %v5881 = vpop.permute.xlu0 %5880
    %5882 = vrot.lane.b32.xlu0 %v5861, 24
    %v5883 = vpop.permute.xlu0 %5882
    %v5886 = vsel %vm1469, %v5790, %v5865
    %v5887 = vsel %vm1469, %v5858, %v5867
    %v5888 = vsel %vm3048, %v5886, %v5873
    %v5889 = vsel %vm3048, %v5887, %v5875
    %v5890 = vsel %vm3051, %v5888, %v5881
    %v5891 = vsel %vm3051, %v5889, %v5883
    %v5892 = vld [vmem:[%s3 + $0x8] sm:$0xff]
    %v5893 = vld [vmem:[%s3 + $0x18] sm:$0xff]
    %v5894 = vld [vmem:[%s3 + $0x28] sm:$0xff]
    %v5895 = vld [vmem:[%s3 + $0x38] sm:$0xff]
    %v5896 = vld [vmem:[%s4 + $0x1] sm:$0x1]
    %v5898 = vlaneseq
    %v5899 = vshrl.u32 %v5898, 7
    %v5900 = vsub.s32 0, %v5899
    %v5901 = vrot.slane %v5896, %v5900
    %5906 = vrot.lane.b32.xlu0 %v5892, 32
    %v5907 = vpop.permute.xlu0 %5906
    %5908 = vrot.lane.b32.xlu0 %v5893, 32
    %v5909 = vpop.permute.xlu0 %5908
    %5910 = vrot.lane.b32.xlu0 %v5894, 32
    %v5911 = vpop.permute.xlu0 %5910
    %5912 = vrot.lane.b32.xlu0 %v5895, 32
    %v5913 = vpop.permute.xlu0 %5912
    %5918 = vrot.lane.b32.xlu0 %v5901, 32
    %v5919 = vpop.permute.xlu0 %5918
    %v5922 = vsel %vm454, %v5890, 0
    %v5925 = vsel %vm454, %v5891, 0
    %5927 = vmatprep.subr.mxu0 0.0
    %5928 = vmatpush1.msra.mxu0 0.0
    %5929 = vmatprep.subr.mxu0 0.0
    %5930 = vmatpush1.msra.mxu0 0.0
    %5931 = vmatprep.subr.mxu0 0.0
    %5932 = vmatpush1.msra.mxu0 0.0
    %5933 = vmatprep.subr.mxu0 0.0
    %5934 = vmatpush1.msra.mxu0 0.0
    %5935 = vmatprep.subr.mxu0 0.0
    %5936 = vmatpush1.msra.mxu0 0.0
    %5937 = vmatprep.subr.mxu0 0.0
    %5938 = vmatpush1.msra.mxu0 0.0
    %5939 = vmatprep.subr.mxu0 0.0
    %5940 = vmatpush1.msra.mxu0 0.0
    %5941 = vmatprep.subr.mxu0 0.0
    %5942 = vmatpush1.msra.mxu0 0.0
    %5943 = vmatprep.subr.mxu0 0.0
    %5944 = vmatpush1.msra.mxu0 0.0
    %5945 = vmatprep.subr.mxu0 0.0
    %5946 = vmatpush1.msra.mxu0 0.0
    %5947 = vmatprep.subr.mxu0 0.0
    %5948 = vmatpush1.msra.mxu0 0.0
    %5949 = vmatprep.subr.mxu0 0.0
    %5950 = vmatpush1.msra.mxu0 0.0
    %5951 = vmatprep.subr.mxu0 0.0
    %5952 = vmatpush1.msra.mxu0 %v5913
    %5953 = vmatprep.subr.mxu0 0.0
    %5954 = vmatpush1.msra.mxu0 %v5911
    %5955 = vmatprep.subr.mxu0 0.0
    %5956 = vmatpush1.msra.mxu0 %v5909
    %5957 = vmatprep.subr.mxu0 0.0
    %5958 = vmatpush1.msra.mxu0 %v5907
    %5959 = vmatprep.subr.mxu0 0.0
    %5960 = vmatpush2.msra.mxu0 0.0
    %5961 = vmatprep.subr.mxu0 0.0
    %5962 = vmatpush2.msra.mxu0 0.0
    %5963 = vmatprep.subr.mxu0 0.0
    %5964 = vmatpush2.msra.mxu0 0.0
    %5965 = vmatprep.subr.mxu0 0.0
    %5966 = vmatpush2.msra.mxu0 0.0
    %5967 = vmatprep.subr.mxu0 0.0
    %5968 = vmatpush2.msra.mxu0 0.0
    %5969 = vmatprep.subr.mxu0 0.0
    %5970 = vmatpush2.msra.mxu0 0.0
    %5971 = vmatprep.subr.mxu0 0.0
    %5972 = vmatpush2.msra.mxu0 0.0
    %5973 = vmatprep.subr.mxu0 0.0
    %5974 = vmatpush2.msra.mxu0 0.0
    %5975 = vmatprep.subr.mxu0 0.0
    %5976 = vmatpush2.msra.mxu0 0.0
    %5977 = vmatprep.subr.mxu0 0.0
    %5978 = vmatpush2.msra.mxu0 0.0
    %5979 = vmatprep.subr.mxu0 0.0
    %5980 = vmatpush2.msra.mxu0 0.0
    %5981 = vmatprep.subr.mxu0 0.0
    %5982 = vmatpush2.msra.mxu0 0.0
    %5983 = vmatprep.subr.mxu0 0.0
    %5984 = vmatpush2.msra.mxu0 0.0
    %5985 = vmatprep.subr.mxu0 0.0
    %5986 = vmatpush2.msra.mxu0 0.0
    %5987 = vmatprep.subr.mxu0 0.0
    %5988 = vmatpush2.msra.mxu0 0.0
    %5989 = vmatprep.subr.mxu0 0.0
    %5990 = vmatpush2.msra.mxu0 0.0
    %5991 = vmatprep.mubr.f32.mxu0 0.0
    %5992 = vmatmul.mubr.f32.gmra.mxu0 %v5922
    %v5993 = vpop.f32.mrf.mxu0
    %v5994 = vadd.f32 %v5919, %v5993
    %v5995 = vpop.f32.mrf.mxu0
    %5996 = vmatprep.mubr.f32.mxu0 0.0
    %5997 = vmatmul.mubr.f32.gmra.mxu0 %v5925
    %v5998 = vpop.f32.mrf.mxu0
    %v5999 = vadd.f32 %v5919, %v5998
    %v6000 = vpop.f32.mrf.mxu0
    %6001 = vdwg.mxu0
    %v6002 = vadd.f32 %v5994, %v3201
    %v6003 = vadd.f32 %v5999, %v3202
    %v6004 = vsel %vm454, %v6002, 0.0
    %6005 = vadd.xlane.f32.xlu0 %v6004
    %v6006 = vpop.xlane.xlu0 %6005
    %v6007 = vsel %vm454, %v6003, 0.0
    %6008 = vadd.xlane.f32.xlu0 %v6007
    %v6009 = vpop.xlane.xlu0 %6008
    %v6010 = vmul.f32 %v6006, %v3172
    %v6011 = vmul.f32 %v6009, %v3172
    %v6012 = vsub.f32 %v6002, %v6010
    %v6013 = vsub.f32 %v6003, %v6011
    %v6014 = vmul.f32 %v6012, %v6012
    %v6015 = vmul.f32 %v6013, %v6013
    %v6016 = vsel %vm454, %v6014, 0.0
    %6017 = vadd.xlane.f32.xlu0 %v6016
    %v6018 = vpop.xlane.xlu0 %6017
    %v6019 = vsel %vm454, %v6015, 0.0
    %6020 = vadd.xlane.f32.xlu0 %v6019
    %v6021 = vpop.xlane.xlu0 %6020
    %v6022 = vmul.f32 %v6018, %v3172
    %v6023 = vmul.f32 %v6021, %v3172
    %v6024 = vadd.f32 %v6022, 1e-05
    %v6025 = vadd.f32 %v6023, 1e-05
    %v6026 = vrsqrt.pop %v6024
    %v6027 = vrsqrt.pop %v6025
    %v6028 = vmul.f32 %v6012, %v6026
    %v6029 = vmul.f32 %v6013, %v6027
    %v6030 = vmul.f32 %v6028, %v3194
    %v6031 = vmul.f32 %v6029, %v3194
    %v6032 = vadd.f32 %v6030, %v3199
    %v6033 = vadd.f32 %v6031, %v3199
    %s6034 = smul.u32 4, 4
    %s6035 = smul.u32 %s6034, 16
    %s6036 = sshll.u32 %s6035, 4
    %6037 = dma.done [#allocation4], %s6036
    %s6038 = smul.u32 4, 256
    %s6039 = smul.u32 %s6038, 1
    %s6040 = sshll.u32 %s6039, 4
    %6041 = dma.done %s132, %s6040
    %v6042 = vpack.c.bf16 %v6033, %v6032
    %v6043 = vld [vmem:[#allocation2] sm:$0xff]
    %v6044 = vld [vmem:[#allocation2 + $0x8] sm:$0xff]
    %v6045 = vld [vmem:[#allocation2 + $0x40] sm:$0xff]
    %v6046 = vld [vmem:[#allocation2 + $0x48] sm:$0xff]
    %v6047 = vld [vmem:[#allocation2 + $0x80] sm:$0xff]
    %v6048 = vld [vmem:[#allocation2 + $0x88] sm:$0xff]
    %v6049 = vld [vmem:[#allocation2 + $0xc0] sm:$0xff]
    %v6050 = vld [vmem:[#allocation2 + $0xc8] sm:$0xff]
    %v6051 = vld [vmem:[%s5] sm:$0xf]
    %v6053 = vlaneseq
    %v6054 = vshrl.u32 %v6053, 7
    %v6055 = vsub.s32 0, %v6054
    %v6056 = vrot.slane %v6051, %v6055
    %v6057 = vlaneseq
    %v6058 = vshrl.u32 %v6057, 7
    %v6059 = vsub.s32 1, %v6058
    %v6060 = vrot.slane %v6051, %v6059
    %v6061 = vlaneseq
    %v6062 = vshrl.u32 %v6061, 7
    %v6063 = vsub.s32 2, %v6062
    %v6064 = vrot.slane %v6051, %v6063
    %v6065 = vlaneseq
    %v6066 = vshrl.u32 %v6065, 7
    %v6067 = vsub.s32 3, %v6066
    %v6068 = vrot.slane %v6051, %v6067
    %v6081 = vunpack.c.l.b16 %v6043
    %v6082 = vunpack.c.h.b16 %v6043
    %v6083 = vunpack.c.l.b16 %v6044
    %v6084 = vunpack.c.h.b16 %v6044
    %v6085 = vunpack.c.l.b16 %v6045
    %v6086 = vunpack.c.h.b16 %v6045
    %v6087 = vunpack.c.l.b16 %v6046
    %v6088 = vunpack.c.h.b16 %v6046
    %v6089 = vunpack.c.l.b16 %v6047
    %v6090 = vunpack.c.h.b16 %v6047
    %v6091 = vunpack.c.l.b16 %v6048
    %v6092 = vunpack.c.h.b16 %v6048
    %v6093 = vunpack.c.l.b16 %v6049
    %v6094 = vunpack.c.h.b16 %v6049
    %v6095 = vunpack.c.l.b16 %v6050
    %v6096 = vunpack.c.h.b16 %v6050
    %v6097 = vpack.c.b16 %v6085, %v6081
    %v6098 = vpack.c.b16 %v6086, %v6082
    %v6099 = vpack.c.b16 %v6087, %v6083
    %v6100 = vpack.c.b16 %v6088, %v6084
    %v6101 = vpack.c.b16 %v6093, %v6089
    %v6102 = vpack.c.b16 %v6094, %v6090
    %v6103 = vpack.c.b16 %v6095, %v6091
    %v6104 = vpack.c.b16 %v6096, %v6092
    %v6114 = vsel %vm454, %v6042, 0
    %6116 = vmatprep.subr.bf16.mxu0 0
    %6117 = vmatpush1.bf16.msra.mxu0 0
    %6118 = vmatprep.subr.bf16.mxu0 0
    %6119 = vmatpush1.bf16.msra.mxu0 0
    %6120 = vmatprep.subr.bf16.mxu0 0
    %6121 = vmatpush1.bf16.msra.mxu0 0
    %6122 = vmatprep.subr.bf16.mxu0 0
    %6123 = vmatpush1.bf16.msra.mxu0 0
    %6124 = vmatprep.subr.bf16.mxu0 0
    %6125 = vmatpush1.bf16.msra.mxu0 0
    %6126 = vmatprep.subr.bf16.mxu0 0
    %6127 = vmatpush1.bf16.msra.mxu0 0
    %6128 = vmatprep.subr.bf16.mxu0 %v6102
    %6129 = vmatpush1.bf16.msra.mxu0 %v6101
    %6130 = vmatprep.subr.bf16.mxu0 %v6098
    %6131 = vmatpush1.bf16.msra.mxu0 %v6097
    %6132 = vmatprep.subr.bf16.mxu0 0
    %6133 = vmatpush2.bf16.msra.mxu0 0
    %6134 = vmatprep.subr.bf16.mxu0 0
    %6135 = vmatpush2.bf16.msra.mxu0 0
    %6136 = vmatprep.subr.bf16.mxu0 0
    %6137 = vmatpush2.bf16.msra.mxu0 0
    %6138 = vmatprep.subr.bf16.mxu0 0
    %6139 = vmatpush2.bf16.msra.mxu0 0
    %6140 = vmatprep.subr.bf16.mxu0 0
    %6141 = vmatpush2.bf16.msra.mxu0 0
    %6142 = vmatprep.subr.bf16.mxu0 0
    %6143 = vmatpush2.bf16.msra.mxu0 0
    %6144 = vmatprep.subr.bf16.mxu0 0
    %6145 = vmatpush2.bf16.msra.mxu0 0
    %6146 = vmatprep.subr.bf16.mxu0 0
    %6147 = vmatpush2.bf16.msra.mxu0 0
    %6148 = vmatprep.mubr.bf16.mxu0 0
    %6149 = vmatmul.mubr.bf16.gmra.mxu0 %v6114
    %v6150 = vpop.f32.mrf.mxu0
    %v6151 = vadd.f32 %v6056, %v6150
    %v6152 = vpop.f32.mrf.mxu0
    %v6153 = vadd.f32 %v6060, %v6152
    %v6154 = vpop.f32.mrf.mxu0
    %v6155 = vadd.f32 %v6056, %v6154
    %v6156 = vpop.f32.mrf.mxu0
    %v6157 = vadd.f32 %v6060, %v6156
    %6158 = vdwg.mxu0
    %6159 = vmatprep.subr.bf16.mxu0 0
    %6160 = vmatpush1.bf16.msra.mxu0 0
    %6161 = vmatprep.subr.bf16.mxu0 0
    %6162 = vmatpush1.bf16.msra.mxu0 0
    %6163 = vmatprep.subr.bf16.mxu0 0
    %6164 = vmatpush1.bf16.msra.mxu0 0
    %6165 = vmatprep.subr.bf16.mxu0 0
    %6166 = vmatpush1.bf16.msra.mxu0 0
    %6167 = vmatprep.subr.bf16.mxu0 0
    %6168 = vmatpush1.bf16.msra.mxu0 0
    %6169 = vmatprep.subr.bf16.mxu0 0
    %6170 = vmatpush1.bf16.msra.mxu0 0
    %6171 = vmatprep.subr.bf16.mxu0 %v6104
    %6172 = vmatpush1.bf16.msra.mxu0 %v6103
    %6173 = vmatprep.subr.bf16.mxu0 %v6100
    %6174 = vmatpush1.bf16.msra.mxu0 %v6099
    %6175 = vmatprep.subr.bf16.mxu0 0
    %6176 = vmatpush2.bf16.msra.mxu0 0
    %6177 = vmatprep.subr.bf16.mxu0 0
    %6178 = vmatpush2.bf16.msra.mxu0 0
    %6179 = vmatprep.subr.bf16.mxu0 0
    %6180 = vmatpush2.bf16.msra.mxu0 0
    %6181 = vmatprep.subr.bf16.mxu0 0
    %6182 = vmatpush2.bf16.msra.mxu0 0
    %6183 = vmatprep.subr.bf16.mxu0 0
    %6184 = vmatpush2.bf16.msra.mxu0 0
    %6185 = vmatprep.subr.bf16.mxu0 0
    %6186 = vmatpush2.bf16.msra.mxu0 0
    %6187 = vmatprep.subr.bf16.mxu0 0
    %6188 = vmatpush2.bf16.msra.mxu0 0
    %6189 = vmatprep.subr.bf16.mxu0 0
    %6190 = vmatpush2.bf16.msra.mxu0 0
    %6191 = vmatprep.mubr.bf16.mxu0 0
    %6192 = vmatmul.mubr.bf16.gmra.mxu0 %v6114
    %v6193 = vpop.f32.mrf.mxu0
    %v6194 = vadd.f32 %v6064, %v6193
    %v6195 = vpop.f32.mrf.mxu0
    %v6196 = vadd.f32 %v6068, %v6195
    %v6197 = vpop.f32.mrf.mxu0
    %v6198 = vadd.f32 %v6064, %v6197
    %v6199 = vpop.f32.mrf.mxu0
    %v6200 = vadd.f32 %v6068, %v6199
    %6201 = vdwg.mxu0
    %v6202 = vmax.f32 %v6151, 0.0
    %v6203 = vmax.f32 %v6153, 0.0
    %v6204 = vmax.f32 %v6194, 0.0
    %v6205 = vmax.f32 %v6196, 0.0
    %v6206 = vmax.f32 %v6155, 0.0
    %v6207 = vmax.f32 %v6157, 0.0
    %v6208 = vmax.f32 %v6198, 0.0
    %v6209 = vmax.f32 %v6200, 0.0
    %v6210 = vpack.c.bf16 %v6206, %v6202
    %v6211 = vpack.c.bf16 %v6207, %v6203
    %v6212 = vpack.c.bf16 %v6208, %v6204
    %v6213 = vpack.c.bf16 %v6209, %v6205
    %v6214 = vld [vmem:[#allocation3] sm:$0xf]
    %v6215 = vld [vmem:[#allocation3 + $0x4] sm:$0xf]
    %v6216 = vld [vmem:[#allocation3 + $0x8] sm:$0xf]
    %v6217 = vld [vmem:[#allocation3 + $0xc] sm:$0xf]
    %v6218 = vld [vmem:[#allocation3 + $0x10] sm:$0xf]
    %v6219 = vld [vmem:[#allocation3 + $0x14] sm:$0xf]
    %v6220 = vld [vmem:[#allocation3 + $0x18] sm:$0xf]
    %v6221 = vld [vmem:[#allocation3 + $0x1c] sm:$0xf]
    %v6222 = vld [vmem:[#allocation3 + $0x20] sm:$0xf]
    %v6223 = vld [vmem:[#allocation3 + $0x24] sm:$0xf]
    %v6224 = vld [vmem:[#allocation3 + $0x28] sm:$0xf]
    %v6225 = vld [vmem:[#allocation3 + $0x2c] sm:$0xf]
    %v6226 = vld [vmem:[#allocation3 + $0x30] sm:$0xf]
    %v6227 = vld [vmem:[#allocation3 + $0x34] sm:$0xf]
    %v6228 = vld [vmem:[#allocation3 + $0x38] sm:$0xf]
    %v6229 = vld [vmem:[#allocation3 + $0x3c] sm:$0xf]
    %v6230 = vld [vmem:[#allocation3 + $0x40] sm:$0xf]
    %v6231 = vld [vmem:[#allocation3 + $0x44] sm:$0xf]
    %v6232 = vld [vmem:[#allocation3 + $0x48] sm:$0xf]
    %v6233 = vld [vmem:[#allocation3 + $0x4c] sm:$0xf]
    %v6234 = vld [vmem:[#allocation3 + $0x50] sm:$0xf]
    %v6235 = vld [vmem:[#allocation3 + $0x54] sm:$0xf]
    %v6236 = vld [vmem:[#allocation3 + $0x58] sm:$0xf]
    %v6237 = vld [vmem:[#allocation3 + $0x5c] sm:$0xf]
    %v6238 = vld [vmem:[#allocation3 + $0x60] sm:$0xf]
    %v6239 = vld [vmem:[#allocation3 + $0x64] sm:$0xf]
    %v6240 = vld [vmem:[#allocation3 + $0x68] sm:$0xf]
    %v6241 = vld [vmem:[#allocation3 + $0x6c] sm:$0xf]
    %v6242 = vld [vmem:[#allocation3 + $0x70] sm:$0xf]
    %v6243 = vld [vmem:[#allocation3 + $0x74] sm:$0xf]
    %v6244 = vld [vmem:[#allocation3 + $0x78] sm:$0xf]
    %v6245 = vld [vmem:[#allocation3 + $0x7c] sm:$0xf]
    %v6246 = vld [vmem:[#allocation3 + $0x80] sm:$0xf]
    %v6247 = vld [vmem:[#allocation3 + $0x84] sm:$0xf]
    %v6248 = vld [vmem:[#allocation3 + $0x88] sm:$0xf]
    %v6249 = vld [vmem:[#allocation3 + $0x8c] sm:$0xf]
    %v6250 = vld [vmem:[#allocation3 + $0x90] sm:$0xf]
    %v6251 = vld [vmem:[#allocation3 + $0x94] sm:$0xf]
    %v6252 = vld [vmem:[#allocation3 + $0x98] sm:$0xf]
    %v6253 = vld [vmem:[#allocation3 + $0x9c] sm:$0xf]
    %v6254 = vld [vmem:[#allocation3 + $0xa0] sm:$0xf]
    %v6255 = vld [vmem:[#allocation3 + $0xa4] sm:$0xf]
    %v6256 = vld [vmem:[#allocation3 + $0xa8] sm:$0xf]
    %v6257 = vld [vmem:[#allocation3 + $0xac] sm:$0xf]
    %v6258 = vld [vmem:[#allocation3 + $0xb0] sm:$0xf]
    %v6259 = vld [vmem:[#allocation3 + $0xb4] sm:$0xf]
    %v6260 = vld [vmem:[#allocation3 + $0xb8] sm:$0xf]
    %v6261 = vld [vmem:[#allocation3 + $0xbc] sm:$0xf]
    %v6262 = vld [vmem:[#allocation3 + $0xc0] sm:$0xf]
    %v6263 = vld [vmem:[#allocation3 + $0xc4] sm:$0xf]
    %v6264 = vld [vmem:[#allocation3 + $0xc8] sm:$0xf]
    %v6265 = vld [vmem:[#allocation3 + $0xcc] sm:$0xf]
    %v6266 = vld [vmem:[#allocation3 + $0xd0] sm:$0xf]
    %v6267 = vld [vmem:[#allocation3 + $0xd4] sm:$0xf]
    %v6268 = vld [vmem:[#allocation3 + $0xd8] sm:$0xf]
    %v6269 = vld [vmem:[#allocation3 + $0xdc] sm:$0xf]
    %v6270 = vld [vmem:[#allocation3 + $0xe0] sm:$0xf]
    %v6271 = vld [vmem:[#allocation3 + $0xe4] sm:$0xf]
    %v6272 = vld [vmem:[#allocation3 + $0xe8] sm:$0xf]
    %v6273 = vld [vmem:[#allocation3 + $0xec] sm:$0xf]
    %v6274 = vld [vmem:[#allocation3 + $0xf0] sm:$0xf]
    %v6275 = vld [vmem:[#allocation3 + $0xf4] sm:$0xf]
    %v6276 = vld [vmem:[#allocation3 + $0xf8] sm:$0xf]
    %v6277 = vld [vmem:[#allocation3 + $0xfc] sm:$0xf]
    %s6278 = scalar_lea.vmem [#allocation2], 16
    %v6279 = vld [vmem:[%s6278] sm:$0xff]
    %v6280 = vld [vmem:[%s6278 + $0x8] sm:$0xff]
    %v6281 = vld [vmem:[%s6278 + $0x40] sm:$0xff]
    %v6282 = vld [vmem:[%s6278 + $0x48] sm:$0xff]
    %v6283 = vld [vmem:[%s6278 + $0x80] sm:$0xff]
    %v6284 = vld [vmem:[%s6278 + $0x88] sm:$0xff]
    %v6285 = vld [vmem:[%s6278 + $0xc0] sm:$0xff]
    %v6286 = vld [vmem:[%s6278 + $0xc8] sm:$0xff]
    %s6287 = scalar_lea.vmem %s5, 4
    %v6288 = vld [vmem:[%s6287] sm:$0xf]
    %v6290 = vlaneseq
    %v6291 = vshrl.u32 %v6290, 7
    %v6292 = vsub.s32 0, %v6291
    %v6293 = vrot.slane %v6288, %v6292
    %v6294 = vlaneseq
    %v6295 = vshrl.u32 %v6294, 7
    %v6296 = vsub.s32 1, %v6295
    %v6297 = vrot.slane %v6288, %v6296
    %v6298 = vlaneseq
    %v6299 = vshrl.u32 %v6298, 7
    %v6300 = vsub.s32 2, %v6299
    %v6301 = vrot.slane %v6288, %v6300
    %v6302 = vlaneseq
    %v6303 = vshrl.u32 %v6302, 7
    %v6304 = vsub.s32 3, %v6303
    %v6305 = vrot.slane %v6288, %v6304
    %v6318 = vunpack.c.l.b16 %v6279
    %v6319 = vunpack.c.h.b16 %v6279
    %v6320 = vunpack.c.l.b16 %v6280
    %v6321 = vunpack.c.h.b16 %v6280
    %v6322 = vunpack.c.l.b16 %v6281
    %v6323 = vunpack.c.h.b16 %v6281
    %v6324 = vunpack.c.l.b16 %v6282
    %v6325 = vunpack.c.h.b16 %v6282
    %v6326 = vunpack.c.l.b16 %v6283
    %v6327 = vunpack.c.h.b16 %v6283
    %v6328 = vunpack.c.l.b16 %v6284
    %v6329 = vunpack.c.h.b16 %v6284
    %v6330 = vunpack.c.l.b16 %v6285
    %v6331 = vunpack.c.h.b16 %v6285
    %v6332 = vunpack.c.l.b16 %v6286
    %v6333 = vunpack.c.h.b16 %v6286
    %v6334 = vpack.c.b16 %v6322, %v6318
    %v6335 = vpack.c.b16 %v6323, %v6319
    %v6336 = vpack.c.b16 %v6324, %v6320
    %v6337 = vpack.c.b16 %v6325, %v6321
    %v6338 = vpack.c.b16 %v6330, %v6326
    %v6339 = vpack.c.b16 %v6331, %v6327
    %v6340 = vpack.c.b16 %v6332, %v6328
    %v6341 = vpack.c.b16 %v6333, %v6329
    %6350 = vmatprep.subr.bf16.mxu0 0
    %6351 = vmatpush1.bf16.msra.mxu0 0
    %6352 = vmatprep.subr.bf16.mxu0 0
    %6353 = vmatpush1.bf16.msra.mxu0 0
    %6354 = vmatprep.subr.bf16.mxu0 0
    %6355 = vmatpush1.bf16.msra.mxu0 0
    %6356 = vmatprep.subr.bf16.mxu0 0
    %6357 = vmatpush1.bf16.msra.mxu0 0
    %6358 = vmatprep.subr.bf16.mxu0 0
    %6359 = vmatpush1.bf16.msra.mxu0 0
    %6360 = vmatprep.subr.bf16.mxu0 0
    %6361 = vmatpush1.bf16.msra.mxu0 0
    %6362 = vmatprep.subr.bf16.mxu0 %v6339
    %6363 = vmatpush1.bf16.msra.mxu0 %v6338
    %6364 = vmatprep.subr.bf16.mxu0 %v6335
    %6365 = vmatpush1.bf16.msra.mxu0 %v6334
    %6366 = vmatprep.subr.bf16.mxu0 0
    %6367 = vmatpush2.bf16.msra.mxu0 0
    %6368 = vmatprep.subr.bf16.mxu0 0
    %6369 = vmatpush2.bf16.msra.mxu0 0
    %6370 = vmatprep.subr.bf16.mxu0 0
    %6371 = vmatpush2.bf16.msra.mxu0 0
    %6372 = vmatprep.subr.bf16.mxu0 0
    %6373 = vmatpush2.bf16.msra.mxu0 0
    %6374 = vmatprep.subr.bf16.mxu0 0
    %6375 = vmatpush2.bf16.msra.mxu0 0
    %6376 = vmatprep.subr.bf16.mxu0 0
    %6377 = vmatpush2.bf16.msra.mxu0 0
    %6378 = vmatprep.subr.bf16.mxu0 0
    %6379 = vmatpush2.bf16.msra.mxu0 0
    %6380 = vmatprep.subr.bf16.mxu0 0
    %6381 = vmatpush2.bf16.msra.mxu0 0
    %6382 = vmatprep.mubr.bf16.mxu0 0
    %6383 = vmatmul.mubr.bf16.gmra.mxu0 %v6114
    %v6384 = vpop.f32.mrf.mxu0
    %v6385 = vadd.f32 %v6293, %v6384
    %v6386 = vpop.f32.mrf.mxu0
    %v6387 = vadd.f32 %v6297, %v6386
    %v6388 = vpop.f32.mrf.mxu0
    %v6389 = vadd.f32 %v6293, %v6388
    %v6390 = vpop.f32.mrf.mxu0
    %v6391 = vadd.f32 %v6297, %v6390
    %6392 = vdwg.mxu0
    %6393 = vmatprep.subr.bf16.mxu0 0
    %6394 = vmatpush1.bf16.msra.mxu0 0
    %6395 = vmatprep.subr.bf16.mxu0 0
    %6396 = vmatpush1.bf16.msra.mxu0 0
    %6397 = vmatprep.subr.bf16.mxu0 0
    %6398 = vmatpush1.bf16.msra.mxu0 0
    %6399 = vmatprep.subr.bf16.mxu0 0
    %6400 = vmatpush1.bf16.msra.mxu0 0
    %6401 = vmatprep.subr.bf16.mxu0 0
    %6402 = vmatpush1.bf16.msra.mxu0 0
    %6403 = vmatprep.subr.bf16.mxu0 0
    %6404 = vmatpush1.bf16.msra.mxu0 0
    %6405 = vmatprep.subr.bf16.mxu0 %v6341
    %6406 = vmatpush1.bf16.msra.mxu0 %v6340
    %6407 = vmatprep.subr.bf16.mxu0 %v6337
    %6408 = vmatpush1.bf16.msra.mxu0 %v6336
    %6409 = vmatprep.subr.bf16.mxu0 0
    %6410 = vmatpush2.bf16.msra.mxu0 0
    %6411 = vmatprep.subr.bf16.mxu0 0
    %6412 = vmatpush2.bf16.msra.mxu0 0
    %6413 = vmatprep.subr.bf16.mxu0 0
    %6414 = vmatpush2.bf16.msra.mxu0 0
    %6415 = vmatprep.subr.bf16.mxu0 0
    %6416 = vmatpush2.bf16.msra.mxu0 0
    %6417 = vmatprep.subr.bf16.mxu0 0
    %6418 = vmatpush2.bf16.msra.mxu0 0
    %6419 = vmatprep.subr.bf16.mxu0 0
    %6420 = vmatpush2.bf16.msra.mxu0 0
    %6421 = vmatprep.subr.bf16.mxu0 0
    %6422 = vmatpush2.bf16.msra.mxu0 0
    %6423 = vmatprep.subr.bf16.mxu0 0
    %6424 = vmatpush2.bf16.msra.mxu0 0
    %6425 = vmatprep.mubr.bf16.mxu0 0
    %6426 = vmatmul.mubr.bf16.gmra.mxu0 %v6114
    %v6427 = vpop.f32.mrf.mxu0
    %v6428 = vadd.f32 %v6301, %v6427
    %v6429 = vpop.f32.mrf.mxu0
    %v6430 = vadd.f32 %v6305, %v6429
    %v6431 = vpop.f32.mrf.mxu0
    %v6432 = vadd.f32 %v6301, %v6431
    %v6433 = vpop.f32.mrf.mxu0
    %v6434 = vadd.f32 %v6305, %v6433
    %6435 = vdwg.mxu0
    %v6436 = vmax.f32 %v6385, 0.0
    %v6437 = vmax.f32 %v6387, 0.0
    %v6438 = vmax.f32 %v6428, 0.0
    %v6439 = vmax.f32 %v6430, 0.0
    %v6440 = vmax.f32 %v6389, 0.0
    %v6441 = vmax.f32 %v6391, 0.0
    %v6442 = vmax.f32 %v6432, 0.0
    %v6443 = vmax.f32 %v6434, 0.0
    %v6444 = vpack.c.bf16 %v6440, %v6436
    %v6445 = vpack.c.bf16 %v6441, %v6437
    %v6446 = vpack.c.bf16 %v6442, %v6438
    %v6447 = vpack.c.bf16 %v6443, %v6439
    %s6448 = scalar_lea.vmem [#allocation3], 256
    %v6449 = vld [vmem:[%s6448] sm:$0xf]
    %v6450 = vld [vmem:[%s6448 + $0x4] sm:$0xf]
    %v6451 = vld [vmem:[%s6448 + $0x8] sm:$0xf]
    %v6452 = vld [vmem:[%s6448 + $0xc] sm:$0xf]
    %v6453 = vld [vmem:[%s6448 + $0x10] sm:$0xf]
    %v6454 = vld [vmem:[%s6448 + $0x14] sm:$0xf]
    %v6455 = vld [vmem:[%s6448 + $0x18] sm:$0xf]
    %v6456 = vld [vmem:[%s6448 + $0x1c] sm:$0xf]
    %v6457 = vld [vmem:[%s6448 + $0x20] sm:$0xf]
    %v6458 = vld [vmem:[%s6448 + $0x24] sm:$0xf]
    %v6459 = vld [vmem:[%s6448 + $0x28] sm:$0xf]
    %v6460 = vld [vmem:[%s6448 + $0x2c] sm:$0xf]
    %v6461 = vld [vmem:[%s6448 + $0x30] sm:$0xf]
    %v6462 = vld [vmem:[%s6448 + $0x34] sm:$0xf]
    %v6463 = vld [vmem:[%s6448 + $0x38] sm:$0xf]
    %v6464 = vld [vmem:[%s6448 + $0x3c] sm:$0xf]
    %v6465 = vld [vmem:[%s6448 + $0x40] sm:$0xf]
    %v6466 = vld [vmem:[%s6448 + $0x44] sm:$0xf]
    %v6467 = vld [vmem:[%s6448 + $0x48] sm:$0xf]
    %v6468 = vld [vmem:[%s6448 + $0x4c] sm:$0xf]
    %v6469 = vld [vmem:[%s6448 + $0x50] sm:$0xf]
    %v6470 = vld [vmem:[%s6448 + $0x54] sm:$0xf]
    %v6471 = vld [vmem:[%s6448 + $0x58] sm:$0xf]
    %v6472 = vld [vmem:[%s6448 + $0x5c] sm:$0xf]
    %v6473 = vld [vmem:[%s6448 + $0x60] sm:$0xf]
    %v6474 = vld [vmem:[%s6448 + $0x64] sm:$0xf]
    %v6475 = vld [vmem:[%s6448 + $0x68] sm:$0xf]
    %v6476 = vld [vmem:[%s6448 + $0x6c] sm:$0xf]
    %v6477 = vld [vmem:[%s6448 + $0x70] sm:$0xf]
    %v6478 = vld [vmem:[%s6448 + $0x74] sm:$0xf]
    %v6479 = vld [vmem:[%s6448 + $0x78] sm:$0xf]
    %v6480 = vld [vmem:[%s6448 + $0x7c] sm:$0xf]
    %v6481 = vld [vmem:[%s6448 + $0x80] sm:$0xf]
    %v6482 = vld [vmem:[%s6448 + $0x84] sm:$0xf]
    %v6483 = vld [vmem:[%s6448 + $0x88] sm:$0xf]
    %v6484 = vld [vmem:[%s6448 + $0x8c] sm:$0xf]
    %v6485 = vld [vmem:[%s6448 + $0x90] sm:$0xf]
    %v6486 = vld [vmem:[%s6448 + $0x94] sm:$0xf]
    %v6487 = vld [vmem:[%s6448 + $0x98] sm:$0xf]
    %v6488 = vld [vmem:[%s6448 + $0x9c] sm:$0xf]
    %v6489 = vld [vmem:[%s6448 + $0xa0] sm:$0xf]
    %v6490 = vld [vmem:[%s6448 + $0xa4] sm:$0xf]
    %v6491 = vld [vmem:[%s6448 + $0xa8] sm:$0xf]
    %v6492 = vld [vmem:[%s6448 + $0xac] sm:$0xf]
    %v6493 = vld [vmem:[%s6448 + $0xb0] sm:$0xf]
    %v6494 = vld [vmem:[%s6448 + $0xb4] sm:$0xf]
    %v6495 = vld [vmem:[%s6448 + $0xb8] sm:$0xf]
    %v6496 = vld [vmem:[%s6448 + $0xbc] sm:$0xf]
    %v6497 = vld [vmem:[%s6448 + $0xc0] sm:$0xf]
    %v6498 = vld [vmem:[%s6448 + $0xc4] sm:$0xf]
    %v6499 = vld [vmem:[%s6448 + $0xc8] sm:$0xf]
    %v6500 = vld [vmem:[%s6448 + $0xcc] sm:$0xf]
    %v6501 = vld [vmem:[%s6448 + $0xd0] sm:$0xf]
    %v6502 = vld [vmem:[%s6448 + $0xd4] sm:$0xf]
    %v6503 = vld [vmem:[%s6448 + $0xd8] sm:$0xf]
    %v6504 = vld [vmem:[%s6448 + $0xdc] sm:$0xf]
    %v6505 = vld [vmem:[%s6448 + $0xe0] sm:$0xf]
    %v6506 = vld [vmem:[%s6448 + $0xe4] sm:$0xf]
    %v6507 = vld [vmem:[%s6448 + $0xe8] sm:$0xf]
    %v6508 = vld [vmem:[%s6448 + $0xec] sm:$0xf]
    %v6509 = vld [vmem:[%s6448 + $0xf0] sm:$0xf]
    %v6510 = vld [vmem:[%s6448 + $0xf4] sm:$0xf]
    %v6511 = vld [vmem:[%s6448 + $0xf8] sm:$0xf]
    %v6512 = vld [vmem:[%s6448 + $0xfc] sm:$0xf]
    %v6577 = vunpack.c.l.b16 %v6449
    %v6578 = vunpack.c.l.b16 %v6450
    %v6579 = vunpack.c.l.b16 %v6451
    %v6580 = vunpack.c.l.b16 %v6452
    %v6581 = vunpack.c.l.b16 %v6453
    %v6582 = vunpack.c.l.b16 %v6454
    %v6583 = vunpack.c.l.b16 %v6455
    %v6584 = vunpack.c.l.b16 %v6456
    %v6585 = vunpack.c.l.b16 %v6457
    %v6586 = vunpack.c.l.b16 %v6458
    %v6587 = vunpack.c.l.b16 %v6459
    %v6588 = vunpack.c.l.b16 %v6460
    %v6589 = vunpack.c.l.b16 %v6461
    %v6590 = vunpack.c.l.b16 %v6462
    %v6591 = vunpack.c.l.b16 %v6463
    %v6592 = vunpack.c.l.b16 %v6464
    %v6593 = vunpack.c.l.b16 %v6465
    %v6594 = vunpack.c.l.b16 %v6466
    %v6595 = vunpack.c.l.b16 %v6467
    %v6596 = vunpack.c.l.b16 %v6468
    %v6597 = vunpack.c.l.b16 %v6469
    %v6598 = vunpack.c.l.b16 %v6470
    %v6599 = vunpack.c.l.b16 %v6471
    %v6600 = vunpack.c.l.b16 %v6472
    %v6601 = vunpack.c.l.b16 %v6473
    %v6602 = vunpack.c.l.b16 %v6474
    %v6603 = vunpack.c.l.b16 %v6475
    %v6604 = vunpack.c.l.b16 %v6476
    %v6605 = vunpack.c.l.b16 %v6477
    %v6606 = vunpack.c.l.b16 %v6478
    %v6607 = vunpack.c.l.b16 %v6479
    %v6608 = vunpack.c.l.b16 %v6480
    %v6609 = vunpack.c.l.b16 %v6481
    %v6610 = vunpack.c.l.b16 %v6482
    %v6611 = vunpack.c.l.b16 %v6483
    %v6612 = vunpack.c.l.b16 %v6484
    %v6613 = vunpack.c.l.b16 %v6485
    %v6614 = vunpack.c.l.b16 %v6486
    %v6615 = vunpack.c.l.b16 %v6487
    %v6616 = vunpack.c.l.b16 %v6488
    %v6617 = vunpack.c.l.b16 %v6489
    %v6618 = vunpack.c.l.b16 %v6490
    %v6619 = vunpack.c.l.b16 %v6491
    %v6620 = vunpack.c.l.b16 %v6492
    %v6621 = vunpack.c.l.b16 %v6493
    %v6622 = vunpack.c.l.b16 %v6494
    %v6623 = vunpack.c.l.b16 %v6495
    %v6624 = vunpack.c.l.b16 %v6496
    %v6625 = vunpack.c.l.b16 %v6497
    %v6626 = vunpack.c.l.b16 %v6498
    %v6627 = vunpack.c.l.b16 %v6499
    %v6628 = vunpack.c.l.b16 %v6500
    %v6629 = vunpack.c.l.b16 %v6501
    %v6630 = vunpack.c.l.b16 %v6502
    %v6631 = vunpack.c.l.b16 %v6503
    %v6632 = vunpack.c.l.b16 %v6504
    %v6633 = vunpack.c.l.b16 %v6505
    %v6634 = vunpack.c.l.b16 %v6506
    %v6635 = vunpack.c.l.b16 %v6507
    %v6636 = vunpack.c.l.b16 %v6508
    %v6637 = vunpack.c.l.b16 %v6509
    %v6638 = vunpack.c.l.b16 %v6510
    %v6639 = vunpack.c.l.b16 %v6511
    %v6640 = vunpack.c.l.b16 %v6512
    %v6641 = vpack.c.b16 %v6578, %v6577
    %v6642 = vpack.c.b16 %v6580, %v6579
    %v6643 = vpack.c.b16 %v6582, %v6581
    %v6644 = vpack.c.b16 %v6584, %v6583
    %v6645 = vpack.c.b16 %v6586, %v6585
    %v6646 = vpack.c.b16 %v6588, %v6587
    %v6647 = vpack.c.b16 %v6590, %v6589
    %v6648 = vpack.c.b16 %v6592, %v6591
    %v6649 = vpack.c.b16 %v6594, %v6593
    %v6650 = vpack.c.b16 %v6596, %v6595
    %v6651 = vpack.c.b16 %v6598, %v6597
    %v6652 = vpack.c.b16 %v6600, %v6599
    %v6653 = vpack.c.b16 %v6602, %v6601
    %v6654 = vpack.c.b16 %v6604, %v6603
    %v6655 = vpack.c.b16 %v6606, %v6605
    %v6656 = vpack.c.b16 %v6608, %v6607
    %v6657 = vpack.c.b16 %v6610, %v6609
    %v6658 = vpack.c.b16 %v6612, %v6611
    %v6659 = vpack.c.b16 %v6614, %v6613
    %v6660 = vpack.c.b16 %v6616, %v6615
    %v6661 = vpack.c.b16 %v6618, %v6617
    %v6662 = vpack.c.b16 %v6620, %v6619
    %v6663 = vpack.c.b16 %v6622, %v6621
    %v6664 = vpack.c.b16 %v6624, %v6623
    %v6665 = vpack.c.b16 %v6626, %v6625
    %v6666 = vpack.c.b16 %v6628, %v6627
    %v6667 = vpack.c.b16 %v6630, %v6629
    %v6668 = vpack.c.b16 %v6632, %v6631
    %v6669 = vpack.c.b16 %v6634, %v6633
    %v6670 = vpack.c.b16 %v6636, %v6635
    %v6671 = vpack.c.b16 %v6638, %v6637
    %v6672 = vpack.c.b16 %v6640, %v6639
    %6705 = vmatprep.subr.bf16.mxu0 0
    %6706 = vmatpush1.bf16.msra.mxu0 %v6648
    %6707 = vmatprep.subr.bf16.mxu0 0
    %6708 = vmatpush1.bf16.msra.mxu0 %v6647
    %6709 = vmatprep.subr.bf16.mxu0 0
    %6710 = vmatpush1.bf16.msra.mxu0 %v6646
    %6711 = vmatprep.subr.bf16.mxu0 0
    %6712 = vmatpush1.bf16.msra.mxu0 %v6645
    %6713 = vmatprep.subr.bf16.mxu0 0
    %6714 = vmatpush1.bf16.msra.mxu0 %v6644
    %6715 = vmatprep.subr.bf16.mxu0 0
    %6716 = vmatpush1.bf16.msra.mxu0 %v6643
    %6717 = vmatprep.subr.bf16.mxu0 0
    %6718 = vmatpush1.bf16.msra.mxu0 %v6642
    %6719 = vmatprep.subr.bf16.mxu0 0
    %6720 = vmatpush1.bf16.msra.mxu0 %v6641
    %6721 = vmatprep.subr.bf16.mxu0 0
    %6722 = vmatpush2.bf16.msra.mxu0 %v6656
    %6723 = vmatprep.subr.bf16.mxu0 0
    %6724 = vmatpush2.bf16.msra.mxu0 %v6655
    %6725 = vmatprep.subr.bf16.mxu0 0
    %6726 = vmatpush2.bf16.msra.mxu0 %v6654
    %6727 = vmatprep.subr.bf16.mxu0 0
    %6728 = vmatpush2.bf16.msra.mxu0 %v6653
    %6729 = vmatprep.subr.bf16.mxu0 0
    %6730 = vmatpush2.bf16.msra.mxu0 %v6652
    %6731 = vmatprep.subr.bf16.mxu0 0
    %6732 = vmatpush2.bf16.msra.mxu0 %v6651
    %6733 = vmatprep.subr.bf16.mxu0 0
    %6734 = vmatpush2.bf16.msra.mxu0 %v6650
    %6735 = vmatprep.subr.bf16.mxu0 0
    %6736 = vmatpush2.bf16.msra.mxu0 %v6649
    %6737 = vmatprep.mubr.bf16.mxu0 %v6445
    %6738 = vmatmul.mubr.bf16.gmra.mxu0 %v6444
    %v6739 = vpop.f32.mrf.mxu0
    %v6740 = vadd.f32 0.0, %v6739
    %v6741 = vpop.f32.mrf.mxu0
    %v6742 = vpop.f32.mrf.mxu0
    %v6743 = vadd.f32 0.0, %v6742
    %v6744 = vpop.f32.mrf.mxu0
    %6745 = vdwg.mxu0
    %6746 = vmatprep.subr.bf16.mxu0 0
    %6747 = vmatpush1.bf16.msra.mxu0 %v6664
    %6748 = vmatprep.subr.bf16.mxu0 0
    %6749 = vmatpush1.bf16.msra.mxu0 %v6663
    %6750 = vmatprep.subr.bf16.mxu0 0
    %6751 = vmatpush1.bf16.msra.mxu0 %v6662
    %6752 = vmatprep.subr.bf16.mxu0 0
    %6753 = vmatpush1.bf16.msra.mxu0 %v6661
    %6754 = vmatprep.subr.bf16.mxu0 0
    %6755 = vmatpush1.bf16.msra.mxu0 %v6660
    %6756 = vmatprep.subr.bf16.mxu0 0
    %6757 = vmatpush1.bf16.msra.mxu0 %v6659
    %6758 = vmatprep.subr.bf16.mxu0 0
    %6759 = vmatpush1.bf16.msra.mxu0 %v6658
    %6760 = vmatprep.subr.bf16.mxu0 0
    %6761 = vmatpush1.bf16.msra.mxu0 %v6657
    %6762 = vmatprep.subr.bf16.mxu0 0
    %6763 = vmatpush2.bf16.msra.mxu0 %v6672
    %6764 = vmatprep.subr.bf16.mxu0 0
    %6765 = vmatpush2.bf16.msra.mxu0 %v6671
    %6766 = vmatprep.subr.bf16.mxu0 0
    %6767 = vmatpush2.bf16.msra.mxu0 %v6670
    %6768 = vmatprep.subr.bf16.mxu0 0
    %6769 = vmatpush2.bf16.msra.mxu0 %v6669
    %6770 = vmatprep.subr.bf16.mxu0 0
    %6771 = vmatpush2.bf16.msra.mxu0 %v6668
    %6772 = vmatprep.subr.bf16.mxu0 0
    %6773 = vmatpush2.bf16.msra.mxu0 %v6667
    %6774 = vmatprep.subr.bf16.mxu0 0
    %6775 = vmatpush2.bf16.msra.mxu0 %v6666
    %6776 = vmatprep.subr.bf16.mxu0 0
    %6777 = vmatpush2.bf16.msra.mxu0 %v6665
    %6778 = vmatprep.mubr.bf16.mxu0 %v6447
    %6779 = vmatmul.mubr.bf16.gmra.mxu0 %v6446
    %v6780 = vpop.f32.mrf.mxu0
    %v6781 = vadd.f32 %v6740, %v6780
    %v6782 = vpop.f32.mrf.mxu0
    %v6783 = vpop.f32.mrf.mxu0
    %v6784 = vadd.f32 %v6743, %v6783
    %v6785 = vpop.f32.mrf.mxu0
    %6786 = vdwg.mxu0
    %v6851 = vunpack.c.l.b16 %v6214
    %v6852 = vunpack.c.l.b16 %v6215
    %v6853 = vunpack.c.l.b16 %v6216
    %v6854 = vunpack.c.l.b16 %v6217
    %v6855 = vunpack.c.l.b16 %v6218
    %v6856 = vunpack.c.l.b16 %v6219
    %v6857 = vunpack.c.l.b16 %v6220
    %v6858 = vunpack.c.l.b16 %v6221
    %v6859 = vunpack.c.l.b16 %v6222
    %v6860 = vunpack.c.l.b16 %v6223
    %v6861 = vunpack.c.l.b16 %v6224
    %v6862 = vunpack.c.l.b16 %v6225
    %v6863 = vunpack.c.l.b16 %v6226
    %v6864 = vunpack.c.l.b16 %v6227
    %v6865 = vunpack.c.l.b16 %v6228
    %v6866 = vunpack.c.l.b16 %v6229
    %v6867 = vunpack.c.l.b16 %v6230
    %v6868 = vunpack.c.l.b16 %v6231
    %v6869 = vunpack.c.l.b16 %v6232
    %v6870 = vunpack.c.l.b16 %v6233
    %v6871 = vunpack.c.l.b16 %v6234
    %v6872 = vunpack.c.l.b16 %v6235
    %v6873 = vunpack.c.l.b16 %v6236
    %v6874 = vunpack.c.l.b16 %v6237
    %v6875 = vunpack.c.l.b16 %v6238
    %v6876 = vunpack.c.l.b16 %v6239
    %v6877 = vunpack.c.l.b16 %v6240
    %v6878 = vunpack.c.l.b16 %v6241
    %v6879 = vunpack.c.l.b16 %v6242
    %v6880 = vunpack.c.l.b16 %v6243
    %v6881 = vunpack.c.l.b16 %v6244
    %v6882 = vunpack.c.l.b16 %v6245
    %v6883 = vunpack.c.l.b16 %v6246
    %v6884 = vunpack.c.l.b16 %v6247
    %v6885 = vunpack.c.l.b16 %v6248
    %v6886 = vunpack.c.l.b16 %v6249
    %v6887 = vunpack.c.l.b16 %v6250
    %v6888 = vunpack.c.l.b16 %v6251
    %v6889 = vunpack.c.l.b16 %v6252
    %v6890 = vunpack.c.l.b16 %v6253
    %v6891 = vunpack.c.l.b16 %v6254
    %v6892 = vunpack.c.l.b16 %v6255
    %v6893 = vunpack.c.l.b16 %v6256
    %v6894 = vunpack.c.l.b16 %v6257
    %v6895 = vunpack.c.l.b16 %v6258
    %v6896 = vunpack.c.l.b16 %v6259
    %v6897 = vunpack.c.l.b16 %v6260
    %v6898 = vunpack.c.l.b16 %v6261
    %v6899 = vunpack.c.l.b16 %v6262
    %v6900 = vunpack.c.l.b16 %v6263
    %v6901 = vunpack.c.l.b16 %v6264
    %v6902 = vunpack.c.l.b16 %v6265
    %v6903 = vunpack.c.l.b16 %v6266
    %v6904 = vunpack.c.l.b16 %v6267
    %v6905 = vunpack.c.l.b16 %v6268
    %v6906 = vunpack.c.l.b16 %v6269
    %v6907 = vunpack.c.l.b16 %v6270
    %v6908 = vunpack.c.l.b16 %v6271
    %v6909 = vunpack.c.l.b16 %v6272
    %v6910 = vunpack.c.l.b16 %v6273
    %v6911 = vunpack.c.l.b16 %v6274
    %v6912 = vunpack.c.l.b16 %v6275
    %v6913 = vunpack.c.l.b16 %v6276
    %v6914 = vunpack.c.l.b16 %v6277
    %v6915 = vpack.c.b16 %v6852, %v6851
    %v6916 = vpack.c.b16 %v6854, %v6853
    %v6917 = vpack.c.b16 %v6856, %v6855
    %v6918 = vpack.c.b16 %v6858, %v6857
    %v6919 = vpack.c.b16 %v6860, %v6859
    %v6920 = vpack.c.b16 %v6862, %v6861
    %v6921 = vpack.c.b16 %v6864, %v6863
    %v6922 = vpack.c.b16 %v6866, %v6865
    %v6923 = vpack.c.b16 %v6868, %v6867
    %v6924 = vpack.c.b16 %v6870, %v6869
    %v6925 = vpack.c.b16 %v6872, %v6871
    %v6926 = vpack.c.b16 %v6874, %v6873
    %v6927 = vpack.c.b16 %v6876, %v6875
    %v6928 = vpack.c.b16 %v6878, %v6877
    %v6929 = vpack.c.b16 %v6880, %v6879
    %v6930 = vpack.c.b16 %v6882, %v6881
    %v6931 = vpack.c.b16 %v6884, %v6883
    %v6932 = vpack.c.b16 %v6886, %v6885
    %v6933 = vpack.c.b16 %v6888, %v6887
    %v6934 = vpack.c.b16 %v6890, %v6889
    %v6935 = vpack.c.b16 %v6892, %v6891
    %v6936 = vpack.c.b16 %v6894, %v6893
    %v6937 = vpack.c.b16 %v6896, %v6895
    %v6938 = vpack.c.b16 %v6898, %v6897
    %v6939 = vpack.c.b16 %v6900, %v6899
    %v6940 = vpack.c.b16 %v6902, %v6901
    %v6941 = vpack.c.b16 %v6904, %v6903
    %v6942 = vpack.c.b16 %v6906, %v6905
    %v6943 = vpack.c.b16 %v6908, %v6907
    %v6944 = vpack.c.b16 %v6910, %v6909
    %v6945 = vpack.c.b16 %v6912, %v6911
    %v6946 = vpack.c.b16 %v6914, %v6913
    %6979 = vmatprep.subr.bf16.mxu0 0
    %6980 = vmatpush1.bf16.msra.mxu0 %v6922
    %6981 = vmatprep.subr.bf16.mxu0 0
    %6982 = vmatpush1.bf16.msra.mxu0 %v6921
    %6983 = vmatprep.subr.bf16.mxu0 0
    %6984 = vmatpush1.bf16.msra.mxu0 %v6920
    %6985 = vmatprep.subr.bf16.mxu0 0
    %6986 = vmatpush1.bf16.msra.mxu0 %v6919
    %6987 = vmatprep.subr.bf16.mxu0 0
    %6988 = vmatpush1.bf16.msra.mxu0 %v6918
    %6989 = vmatprep.subr.bf16.mxu0 0
    %6990 = vmatpush1.bf16.msra.mxu0 %v6917
    %6991 = vmatprep.subr.bf16.mxu0 0
    %6992 = vmatpush1.bf16.msra.mxu0 %v6916
    %6993 = vmatprep.subr.bf16.mxu0 0
    %6994 = vmatpush1.bf16.msra.mxu0 %v6915
    %6995 = vmatprep.subr.bf16.mxu0 0
    %6996 = vmatpush2.bf16.msra.mxu0 %v6930
    %6997 = vmatprep.subr.bf16.mxu0 0
    %6998 = vmatpush2.bf16.msra.mxu0 %v6929
    %6999 = vmatprep.subr.bf16.mxu0 0
    %7000 = vmatpush2.bf16.msra.mxu0 %v6928
    %7001 = vmatprep.subr.bf16.mxu0 0
    %7002 = vmatpush2.bf16.msra.mxu0 %v6927
    %7003 = vmatprep.subr.bf16.mxu0 0
    %7004 = vmatpush2.bf16.msra.mxu0 %v6926
    %7005 = vmatprep.subr.bf16.mxu0 0
    %7006 = vmatpush2.bf16.msra.mxu0 %v6925
    %7007 = vmatprep.subr.bf16.mxu0 0
    %7008 = vmatpush2.bf16.msra.mxu0 %v6924
    %7009 = vmatprep.subr.bf16.mxu0 0
    %7010 = vmatpush2.bf16.msra.mxu0 %v6923
    %7011 = vmatprep.mubr.bf16.mxu0 %v6211
    %7012 = vmatmul.mubr.bf16.gmra.mxu0 %v6210
    %v7013 = vpop.f32.mrf.mxu0
    %v7014 = vadd.f32 %v6781, %v7013
    %v7015 = vpop.f32.mrf.mxu0
    %v7016 = vpop.f32.mrf.mxu0
    %v7017 = vadd.f32 %v6784, %v7016
    %v7018 = vpop.f32.mrf.mxu0
    %7019 = vdwg.mxu0
    %7020 = vmatprep.subr.bf16.mxu0 0
    %7021 = vmatpush1.bf16.msra.mxu0 %v6938
    %7022 = vmatprep.subr.bf16.mxu0 0
    %7023 = vmatpush1.bf16.msra.mxu0 %v6937
    %7024 = vmatprep.subr.bf16.mxu0 0
    %7025 = vmatpush1.bf16.msra.mxu0 %v6936
    %7026 = vmatprep.subr.bf16.mxu0 0
    %7027 = vmatpush1.bf16.msra.mxu0 %v6935
    %7028 = vmatprep.subr.bf16.mxu0 0
    %7029 = vmatpush1.bf16.msra.mxu0 %v6934
    %7030 = vmatprep.subr.bf16.mxu0 0
    %7031 = vmatpush1.bf16.msra.mxu0 %v6933
    %7032 = vmatprep.subr.bf16.mxu0 0
    %7033 = vmatpush1.bf16.msra.mxu0 %v6932
    %7034 = vmatprep.subr.bf16.mxu0 0
    %7035 = vmatpush1.bf16.msra.mxu0 %v6931
    %7036 = vmatprep.subr.bf16.mxu0 0
    %7037 = vmatpush2.bf16.msra.mxu0 %v6946
    %7038 = vmatprep.subr.bf16.mxu0 0
    %7039 = vmatpush2.bf16.msra.mxu0 %v6945
    %7040 = vmatprep.subr.bf16.mxu0 0
    %7041 = vmatpush2.bf16.msra.mxu0 %v6944
    %7042 = vmatprep.subr.bf16.mxu0 0
    %7043 = vmatpush2.bf16.msra.mxu0 %v6943
    %7044 = vmatprep.subr.bf16.mxu0 0
    %7045 = vmatpush2.bf16.msra.mxu0 %v6942
    %7046 = vmatprep.subr.bf16.mxu0 0
    %7047 = vmatpush2.bf16.msra.mxu0 %v6941
    %7048 = vmatprep.subr.bf16.mxu0 0
    %7049 = vmatpush2.bf16.msra.mxu0 %v6940
    %7050 = vmatprep.subr.bf16.mxu0 0
    %7051 = vmatpush2.bf16.msra.mxu0 %v6939
    %7052 = vmatprep.mubr.bf16.mxu0 %v6213
    %7053 = vmatmul.mubr.bf16.gmra.mxu0 %v6212
    %v7054 = vpop.f32.mrf.mxu0
    %v7055 = vadd.f32 %v7014, %v7054
    %v7056 = vpop.f32.mrf.mxu0
    %v7057 = vpop.f32.mrf.mxu0
    %v7058 = vadd.f32 %v7017, %v7057
    %v7059 = vpop.f32.mrf.mxu0
    %7060 = vdwg.mxu0
    %s7061 = scalar_lea.vmem [#allocation2], 32
    %v7062 = vld [vmem:[%s7061] sm:$0xff]
    %v7063 = vld [vmem:[%s7061 + $0x8] sm:$0xff]
    %v7064 = vld [vmem:[%s7061 + $0x40] sm:$0xff]
    %v7065 = vld [vmem:[%s7061 + $0x48] sm:$0xff]
    %v7066 = vld [vmem:[%s7061 + $0x80] sm:$0xff]
    %v7067 = vld [vmem:[%s7061 + $0x88] sm:$0xff]
    %v7068 = vld [vmem:[%s7061 + $0xc0] sm:$0xff]
    %v7069 = vld [vmem:[%s7061 + $0xc8] sm:$0xff]
    %s7070 = scalar_lea.vmem %s5, 8
    %v7071 = vld [vmem:[%s7070] sm:$0xf]
    %v7073 = vlaneseq
    %v7074 = vshrl.u32 %v7073, 7
    %v7075 = vsub.s32 0, %v7074
    %v7076 = vrot.slane %v7071, %v7075
    %v7077 = vlaneseq
    %v7078 = vshrl.u32 %v7077, 7
    %v7079 = vsub.s32 1, %v7078
    %v7080 = vrot.slane %v7071, %v7079
    %v7081 = vlaneseq
    %v7082 = vshrl.u32 %v7081, 7
    %v7083 = vsub.s32 2, %v7082
    %v7084 = vrot.slane %v7071, %v7083
    %v7085 = vlaneseq
    %v7086 = vshrl.u32 %v7085, 7
    %v7087 = vsub.s32 3, %v7086
    %v7088 = vrot.slane %v7071, %v7087
    %v7101 = vunpack.c.l.b16 %v7062
    %v7102 = vunpack.c.h.b16 %v7062
    %v7103 = vunpack.c.l.b16 %v7063
    %v7104 = vunpack.c.h.b16 %v7063
    %v7105 = vunpack.c.l.b16 %v7064
    %v7106 = vunpack.c.h.b16 %v7064
    %v7107 = vunpack.c.l.b16 %v7065
    %v7108 = vunpack.c.h.b16 %v7065
    %v7109 = vunpack.c.l.b16 %v7066
    %v7110 = vunpack.c.h.b16 %v7066
    %v7111 = vunpack.c.l.b16 %v7067
    %v7112 = vunpack.c.h.b16 %v7067
    %v7113 = vunpack.c.l.b16 %v7068
    %v7114 = vunpack.c.h.b16 %v7068
    %v7115 = vunpack.c.l.b16 %v7069
    %v7116 = vunpack.c.h.b16 %v7069
    %v7117 = vpack.c.b16 %v7105, %v7101
    %v7118 = vpack.c.b16 %v7106, %v7102
    %v7119 = vpack.c.b16 %v7107, %v7103
    %v7120 = vpack.c.b16 %v7108, %v7104
    %v7121 = vpack.c.b16 %v7113, %v7109
    %v7122 = vpack.c.b16 %v7114, %v7110
    %v7123 = vpack.c.b16 %v7115, %v7111
    %v7124 = vpack.c.b16 %v7116, %v7112
    %7133 = vmatprep.subr.bf16.mxu0 0
    %7134 = vmatpush1.bf16.msra.mxu0 0
    %7135 = vmatprep.subr.bf16.mxu0 0
    %7136 = vmatpush1.bf16.msra.mxu0 0
    %7137 = vmatprep.subr.bf16.mxu0 0
    %7138 = vmatpush1.bf16.msra.mxu0 0
    %7139 = vmatprep.subr.bf16.mxu0 0
    %7140 = vmatpush1.bf16.msra.mxu0 0
    %7141 = vmatprep.subr.bf16.mxu0 0
    %7142 = vmatpush1.bf16.msra.mxu0 0
    %7143 = vmatprep.subr.bf16.mxu0 0
    %7144 = vmatpush1.bf16.msra.mxu0 0
    %7145 = vmatprep.subr.bf16.mxu0 %v7122
    %7146 = vmatpush1.bf16.msra.mxu0 %v7121
    %7147 = vmatprep.subr.bf16.mxu0 %v7118
    %7148 = vmatpush1.bf16.msra.mxu0 %v7117
    %7149 = vmatprep.subr.bf16.mxu0 0
    %7150 = vmatpush2.bf16.msra.mxu0 0
    %7151 = vmatprep.subr.bf16.mxu0 0
    %7152 = vmatpush2.bf16.msra.mxu0 0
    %7153 = vmatprep.subr.bf16.mxu0 0
    %7154 = vmatpush2.bf16.msra.mxu0 0
    %7155 = vmatprep.subr.bf16.mxu0 0
    %7156 = vmatpush2.bf16.msra.mxu0 0
    %7157 = vmatprep.subr.bf16.mxu0 0
    %7158 = vmatpush2.bf16.msra.mxu0 0
    %7159 = vmatprep.subr.bf16.mxu0 0
    %7160 = vmatpush2.bf16.msra.mxu0 0
    %7161 = vmatprep.subr.bf16.mxu0 0
    %7162 = vmatpush2.bf16.msra.mxu0 0
    %7163 = vmatprep.subr.bf16.mxu0 0
    %7164 = vmatpush2.bf16.msra.mxu0 0
    %7165 = vmatprep.mubr.bf16.mxu0 0
    %7166 = vmatmul.mubr.bf16.gmra.mxu0 %v6114
    %v7167 = vpop.f32.mrf.mxu0
    %v7168 = vadd.f32 %v7076, %v7167
    %v7169 = vpop.f32.mrf.mxu0
    %v7170 = vadd.f32 %v7080, %v7169
    %v7171 = vpop.f32.mrf.mxu0
    %v7172 = vadd.f32 %v7076, %v7171
    %v7173 = vpop.f32.mrf.mxu0
    %v7174 = vadd.f32 %v7080, %v7173
    %7175 = vdwg.mxu0
    %7176 = vmatprep.subr.bf16.mxu0 0
    %7177 = vmatpush1.bf16.msra.mxu0 0
    %7178 = vmatprep.subr.bf16.mxu0 0
    %7179 = vmatpush1.bf16.msra.mxu0 0
    %7180 = vmatprep.subr.bf16.mxu0 0
    %7181 = vmatpush1.bf16.msra.mxu0 0
    %7182 = vmatprep.subr.bf16.mxu0 0
    %7183 = vmatpush1.bf16.msra.mxu0 0
    %7184 = vmatprep.subr.bf16.mxu0 0
    %7185 = vmatpush1.bf16.msra.mxu0 0
    %7186 = vmatprep.subr.bf16.mxu0 0
    %7187 = vmatpush1.bf16.msra.mxu0 0
    %7188 = vmatprep.subr.bf16.mxu0 %v7124
    %7189 = vmatpush1.bf16.msra.mxu0 %v7123
    %7190 = vmatprep.subr.bf16.mxu0 %v7120
    %7191 = vmatpush1.bf16.msra.mxu0 %v7119
    %7192 = vmatprep.subr.bf16.mxu0 0
    %7193 = vmatpush2.bf16.msra.mxu0 0
    %7194 = vmatprep.subr.bf16.mxu0 0
    %7195 = vmatpush2.bf16.msra.mxu0 0
    %7196 = vmatprep.subr.bf16.mxu0 0
    %7197 = vmatpush2.bf16.msra.mxu0 0
    %7198 = vmatprep.subr.bf16.mxu0 0
    %7199 = vmatpush2.bf16.msra.mxu0 0
    %7200 = vmatprep.subr.bf16.mxu0 0
    %7201 = vmatpush2.bf16.msra.mxu0 0
    %7202 = vmatprep.subr.bf16.mxu0 0
    %7203 = vmatpush2.bf16.msra.mxu0 0
    %7204 = vmatprep.subr.bf16.mxu0 0
    %7205 = vmatpush2.bf16.msra.mxu0 0
    %7206 = vmatprep.subr.bf16.mxu0 0
    %7207 = vmatpush2.bf16.msra.mxu0 0
    %7208 = vmatprep.mubr.bf16.mxu0 0
    %7209 = vmatmul.mubr.bf16.gmra.mxu0 %v6114
    %v7210 = vpop.f32.mrf.mxu0
    %v7211 = vadd.f32 %v7084, %v7210
    %v7212 = vpop.f32.mrf.mxu0
    %v7213 = vadd.f32 %v7088, %v7212
    %v7214 = vpop.f32.mrf.mxu0
    %v7215 = vadd.f32 %v7084, %v7214
    %v7216 = vpop.f32.mrf.mxu0
    %v7217 = vadd.f32 %v7088, %v7216
    %7218 = vdwg.mxu0
    %v7219 = vmax.f32 %v7168, 0.0
    %v7220 = vmax.f32 %v7170, 0.0
    %v7221 = vmax.f32 %v7211, 0.0
    %v7222 = vmax.f32 %v7213, 0.0
    %v7223 = vmax.f32 %v7172, 0.0
    %v7224 = vmax.f32 %v7174, 0.0
    %v7225 = vmax.f32 %v7215, 0.0
    %v7226 = vmax.f32 %v7217, 0.0
    %v7227 = vpack.c.bf16 %v7223, %v7219
    %v7228 = vpack.c.bf16 %v7224, %v7220
    %v7229 = vpack.c.bf16 %v7225, %v7221
    %v7230 = vpack.c.bf16 %v7226, %v7222
    %s7231 = scalar_lea.vmem [#allocation3], 512
    %v7232 = vld [vmem:[%s7231] sm:$0xf]
    %v7233 = vld [vmem:[%s7231 + $0x4] sm:$0xf]
    %v7234 = vld [vmem:[%s7231 + $0x8] sm:$0xf]
    %v7235 = vld [vmem:[%s7231 + $0xc] sm:$0xf]
    %v7236 = vld [vmem:[%s7231 + $0x10] sm:$0xf]
    %v7237 = vld [vmem:[%s7231 + $0x14] sm:$0xf]
    %v7238 = vld [vmem:[%s7231 + $0x18] sm:$0xf]
    %v7239 = vld [vmem:[%s7231 + $0x1c] sm:$0xf]
    %v7240 = vld [vmem:[%s7231 + $0x20] sm:$0xf]
    %v7241 = vld [vmem:[%s7231 + $0x24] sm:$0xf]
    %v7242 = vld [vmem:[%s7231 + $0x28] sm:$0xf]
    %v7243 = vld [vmem:[%s7231 + $0x2c] sm:$0xf]
    %v7244 = vld [vmem:[%s7231 + $0x30] sm:$0xf]
    %v7245 = vld [vmem:[%s7231 + $0x34] sm:$0xf]
    %v7246 = vld [vmem:[%s7231 + $0x38] sm:$0xf]
    %v7247 = vld [vmem:[%s7231 + $0x3c] sm:$0xf]
    %v7248 = vld [vmem:[%s7231 + $0x40] sm:$0xf]
    %v7249 = vld [vmem:[%s7231 + $0x44] sm:$0xf]
    %v7250 = vld [vmem:[%s7231 + $0x48] sm:$0xf]
    %v7251 = vld [vmem:[%s7231 + $0x4c] sm:$0xf]
    %v7252 = vld [vmem:[%s7231 + $0x50] sm:$0xf]
    %v7253 = vld [vmem:[%s7231 + $0x54] sm:$0xf]
    %v7254 = vld [vmem:[%s7231 + $0x58] sm:$0xf]
    %v7255 = vld [vmem:[%s7231 + $0x5c] sm:$0xf]
    %v7256 = vld [vmem:[%s7231 + $0x60] sm:$0xf]
    %v7257 = vld [vmem:[%s7231 + $0x64] sm:$0xf]
    %v7258 = vld [vmem:[%s7231 + $0x68] sm:$0xf]
    %v7259 = vld [vmem:[%s7231 + $0x6c] sm:$0xf]
    %v7260 = vld [vmem:[%s7231 + $0x70] sm:$0xf]
    %v7261 = vld [vmem:[%s7231 + $0x74] sm:$0xf]
    %v7262 = vld [vmem:[%s7231 + $0x78] sm:$0xf]
    %v7263 = vld [vmem:[%s7231 + $0x7c] sm:$0xf]
    %v7264 = vld [vmem:[%s7231 + $0x80] sm:$0xf]
    %v7265 = vld [vmem:[%s7231 + $0x84] sm:$0xf]
    %v7266 = vld [vmem:[%s7231 + $0x88] sm:$0xf]
    %v7267 = vld [vmem:[%s7231 + $0x8c] sm:$0xf]
    %v7268 = vld [vmem:[%s7231 + $0x90] sm:$0xf]
    %v7269 = vld [vmem:[%s7231 + $0x94] sm:$0xf]
    %v7270 = vld [vmem:[%s7231 + $0x98] sm:$0xf]
    %v7271 = vld [vmem:[%s7231 + $0x9c] sm:$0xf]
    %v7272 = vld [vmem:[%s7231 + $0xa0] sm:$0xf]
    %v7273 = vld [vmem:[%s7231 + $0xa4] sm:$0xf]
    %v7274 = vld [vmem:[%s7231 + $0xa8] sm:$0xf]
    %v7275 = vld [vmem:[%s7231 + $0xac] sm:$0xf]
    %v7276 = vld [vmem:[%s7231 + $0xb0] sm:$0xf]
    %v7277 = vld [vmem:[%s7231 + $0xb4] sm:$0xf]
    %v7278 = vld [vmem:[%s7231 + $0xb8] sm:$0xf]
    %v7279 = vld [vmem:[%s7231 + $0xbc] sm:$0xf]
    %v7280 = vld [vmem:[%s7231 + $0xc0] sm:$0xf]
    %v7281 = vld [vmem:[%s7231 + $0xc4] sm:$0xf]
    %v7282 = vld [vmem:[%s7231 + $0xc8] sm:$0xf]
    %v7283 = vld [vmem:[%s7231 + $0xcc] sm:$0xf]
    %v7284 = vld [vmem:[%s7231 + $0xd0] sm:$0xf]
    %v7285 = vld [vmem:[%s7231 + $0xd4] sm:$0xf]
    %v7286 = vld [vmem:[%s7231 + $0xd8] sm:$0xf]
    %v7287 = vld [vmem:[%s7231 + $0xdc] sm:$0xf]
    %v7288 = vld [vmem:[%s7231 + $0xe0] sm:$0xf]
    %v7289 = vld [vmem:[%s7231 + $0xe4] sm:$0xf]
    %v7290 = vld [vmem:[%s7231 + $0xe8] sm:$0xf]
    %v7291 = vld [vmem:[%s7231 + $0xec] sm:$0xf]
    %v7292 = vld [vmem:[%s7231 + $0xf0] sm:$0xf]
    %v7293 = vld [vmem:[%s7231 + $0xf4] sm:$0xf]
    %v7294 = vld [vmem:[%s7231 + $0xf8] sm:$0xf]
    %v7295 = vld [vmem:[%s7231 + $0xfc] sm:$0xf]
    %v7360 = vunpack.c.l.b16 %v7232
    %v7361 = vunpack.c.l.b16 %v7233
    %v7362 = vunpack.c.l.b16 %v7234
    %v7363 = vunpack.c.l.b16 %v7235
    %v7364 = vunpack.c.l.b16 %v7236
    %v7365 = vunpack.c.l.b16 %v7237
    %v7366 = vunpack.c.l.b16 %v7238
    %v7367 = vunpack.c.l.b16 %v7239
    %v7368 = vunpack.c.l.b16 %v7240
    %v7369 = vunpack.c.l.b16 %v7241
    %v7370 = vunpack.c.l.b16 %v7242
    %v7371 = vunpack.c.l.b16 %v7243
    %v7372 = vunpack.c.l.b16 %v7244
    %v7373 = vunpack.c.l.b16 %v7245
    %v7374 = vunpack.c.l.b16 %v7246
    %v7375 = vunpack.c.l.b16 %v7247
    %v7376 = vunpack.c.l.b16 %v7248
    %v7377 = vunpack.c.l.b16 %v7249
    %v7378 = vunpack.c.l.b16 %v7250
    %v7379 = vunpack.c.l.b16 %v7251
    %v7380 = vunpack.c.l.b16 %v7252
    %v7381 = vunpack.c.l.b16 %v7253
    %v7382 = vunpack.c.l.b16 %v7254
    %v7383 = vunpack.c.l.b16 %v7255
    %v7384 = vunpack.c.l.b16 %v7256
    %v7385 = vunpack.c.l.b16 %v7257
    %v7386 = vunpack.c.l.b16 %v7258
    %v7387 = vunpack.c.l.b16 %v7259
    %v7388 = vunpack.c.l.b16 %v7260
    %v7389 = vunpack.c.l.b16 %v7261
    %v7390 = vunpack.c.l.b16 %v7262
    %v7391 = vunpack.c.l.b16 %v7263
    %v7392 = vunpack.c.l.b16 %v7264
    %v7393 = vunpack.c.l.b16 %v7265
    %v7394 = vunpack.c.l.b16 %v7266
    %v7395 = vunpack.c.l.b16 %v7267
    %v7396 = vunpack.c.l.b16 %v7268
    %v7397 = vunpack.c.l.b16 %v7269
    %v7398 = vunpack.c.l.b16 %v7270
    %v7399 = vunpack.c.l.b16 %v7271
    %v7400 = vunpack.c.l.b16 %v7272
    %v7401 = vunpack.c.l.b16 %v7273
    %v7402 = vunpack.c.l.b16 %v7274
    %v7403 = vunpack.c.l.b16 %v7275
    %v7404 = vunpack.c.l.b16 %v7276
    %v7405 = vunpack.c.l.b16 %v7277
    %v7406 = vunpack.c.l.b16 %v7278
    %v7407 = vunpack.c.l.b16 %v7279
    %v7408 = vunpack.c.l.b16 %v7280
    %v7409 = vunpack.c.l.b16 %v7281
    %v7410 = vunpack.c.l.b16 %v7282
    %v7411 = vunpack.c.l.b16 %v7283
    %v7412 = vunpack.c.l.b16 %v7284
    %v7413 = vunpack.c.l.b16 %v7285
    %v7414 = vunpack.c.l.b16 %v7286
    %v7415 = vunpack.c.l.b16 %v7287
    %v7416 = vunpack.c.l.b16 %v7288
    %v7417 = vunpack.c.l.b16 %v7289
    %v7418 = vunpack.c.l.b16 %v7290
    %v7419 = vunpack.c.l.b16 %v7291
    %v7420 = vunpack.c.l.b16 %v7292
    %v7421 = vunpack.c.l.b16 %v7293
    %v7422 = vunpack.c.l.b16 %v7294
    %v7423 = vunpack.c.l.b16 %v7295
    %v7424 = vpack.c.b16 %v7361, %v7360
    %v7425 = vpack.c.b16 %v7363, %v7362
    %v7426 = vpack.c.b16 %v7365, %v7364
    %v7427 = vpack.c.b16 %v7367, %v7366
    %v7428 = vpack.c.b16 %v7369, %v7368
    %v7429 = vpack.c.b16 %v7371, %v7370
    %v7430 = vpack.c.b16 %v7373, %v7372
    %v7431 = vpack.c.b16 %v7375, %v7374
    %v7432 = vpack.c.b16 %v7377, %v7376
    %v7433 = vpack.c.b16 %v7379, %v7378
    %v7434 = vpack.c.b16 %v7381, %v7380
    %v7435 = vpack.c.b16 %v7383, %v7382
    %v7436 = vpack.c.b16 %v7385, %v7384
    %v7437 = vpack.c.b16 %v7387, %v7386
    %v7438 = vpack.c.b16 %v7389, %v7388
    %v7439 = vpack.c.b16 %v7391, %v7390
    %v7440 = vpack.c.b16 %v7393, %v7392
    %v7441 = vpack.c.b16 %v7395, %v7394
    %v7442 = vpack.c.b16 %v7397, %v7396
    %v7443 = vpack.c.b16 %v7399, %v7398
    %v7444 = vpack.c.b16 %v7401, %v7400
    %v7445 = vpack.c.b16 %v7403, %v7402
    %v7446 = vpack.c.b16 %v7405, %v7404
    %v7447 = vpack.c.b16 %v7407, %v7406
    %v7448 = vpack.c.b16 %v7409, %v7408
    %v7449 = vpack.c.b16 %v7411, %v7410
    %v7450 = vpack.c.b16 %v7413, %v7412
    %v7451 = vpack.c.b16 %v7415, %v7414
    %v7452 = vpack.c.b16 %v7417, %v7416
    %v7453 = vpack.c.b16 %v7419, %v7418
    %v7454 = vpack.c.b16 %v7421, %v7420
    %v7455 = vpack.c.b16 %v7423, %v7422
    %7488 = vmatprep.subr.bf16.mxu0 0
    %7489 = vmatpush1.bf16.msra.mxu0 %v7431
    %7490 = vmatprep.subr.bf16.mxu0 0
    %7491 = vmatpush1.bf16.msra.mxu0 %v7430
    %7492 = vmatprep.subr.bf16.mxu0 0
    %7493 = vmatpush1.bf16.msra.mxu0 %v7429
    %7494 = vmatprep.subr.bf16.mxu0 0
    %7495 = vmatpush1.bf16.msra.mxu0 %v7428
    %7496 = vmatprep.subr.bf16.mxu0 0
    %7497 = vmatpush1.bf16.msra.mxu0 %v7427
    %7498 = vmatprep.subr.bf16.mxu0 0
    %7499 = vmatpush1.bf16.msra.mxu0 %v7426
    %7500 = vmatprep.subr.bf16.mxu0 0
    %7501 = vmatpush1.bf16.msra.mxu0 %v7425
    %7502 = vmatprep.subr.bf16.mxu0 0
    %7503 = vmatpush1.bf16.msra.mxu0 %v7424
    %7504 = vmatprep.subr.bf16.mxu0 0
    %7505 = vmatpush2.bf16.msra.mxu0 %v7439
    %7506 = vmatprep.subr.bf16.mxu0 0
    %7507 = vmatpush2.bf16.msra.mxu0 %v7438
    %7508 = vmatprep.subr.bf16.mxu0 0
    %7509 = vmatpush2.bf16.msra.mxu0 %v7437
    %7510 = vmatprep.subr.bf16.mxu0 0
    %7511 = vmatpush2.bf16.msra.mxu0 %v7436
    %7512 = vmatprep.subr.bf16.mxu0 0
    %7513 = vmatpush2.bf16.msra.mxu0 %v7435
    %7514 = vmatprep.subr.bf16.mxu0 0
    %7515 = vmatpush2.bf16.msra.mxu0 %v7434
    %7516 = vmatprep.subr.bf16.mxu0 0
    %7517 = vmatpush2.bf16.msra.mxu0 %v7433
    %7518 = vmatprep.subr.bf16.mxu0 0
    %7519 = vmatpush2.bf16.msra.mxu0 %v7432
    %7520 = vmatprep.mubr.bf16.mxu0 %v7228
    %7521 = vmatmul.mubr.bf16.gmra.mxu0 %v7227
    %v7522 = vpop.f32.mrf.mxu0
    %v7523 = vadd.f32 0.0, %v7522
    %v7524 = vpop.f32.mrf.mxu0
    %v7525 = vpop.f32.mrf.mxu0
    %v7526 = vadd.f32 0.0, %v7525
    %v7527 = vpop.f32.mrf.mxu0
    %7528 = vdwg.mxu0
    %7529 = vmatprep.subr.bf16.mxu0 0
    %7530 = vmatpush1.bf16.msra.mxu0 %v7447
    %7531 = vmatprep.subr.bf16.mxu0 0
    %7532 = vmatpush1.bf16.msra.mxu0 %v7446
    %7533 = vmatprep.subr.bf16.mxu0 0
    %7534 = vmatpush1.bf16.msra.mxu0 %v7445
    %7535 = vmatprep.subr.bf16.mxu0 0
    %7536 = vmatpush1.bf16.msra.mxu0 %v7444
    %7537 = vmatprep.subr.bf16.mxu0 0
    %7538 = vmatpush1.bf16.msra.mxu0 %v7443
    %7539 = vmatprep.subr.bf16.mxu0 0
    %7540 = vmatpush1.bf16.msra.mxu0 %v7442
    %7541 = vmatprep.subr.bf16.mxu0 0
    %7542 = vmatpush1.bf16.msra.mxu0 %v7441
    %7543 = vmatprep.subr.bf16.mxu0 0
    %7544 = vmatpush1.bf16.msra.mxu0 %v7440
    %7545 = vmatprep.subr.bf16.mxu0 0
    %7546 = vmatpush2.bf16.msra.mxu0 %v7455
    %7547 = vmatprep.subr.bf16.mxu0 0
    %7548 = vmatpush2.bf16.msra.mxu0 %v7454
    %7549 = vmatprep.subr.bf16.mxu0 0
    %7550 = vmatpush2.bf16.msra.mxu0 %v7453
    %7551 = vmatprep.subr.bf16.mxu0 0
    %7552 = vmatpush2.bf16.msra.mxu0 %v7452
    %7553 = vmatprep.subr.bf16.mxu0 0
    %7554 = vmatpush2.bf16.msra.mxu0 %v7451
    %7555 = vmatprep.subr.bf16.mxu0 0
    %7556 = vmatpush2.bf16.msra.mxu0 %v7450
    %7557 = vmatprep.subr.bf16.mxu0 0
    %7558 = vmatpush2.bf16.msra.mxu0 %v7449
    %7559 = vmatprep.subr.bf16.mxu0 0
    %7560 = vmatpush2.bf16.msra.mxu0 %v7448
    %7561 = vmatprep.mubr.bf16.mxu0 %v7230
    %7562 = vmatmul.mubr.bf16.gmra.mxu0 %v7229
    %v7563 = vpop.f32.mrf.mxu0
    %v7564 = vadd.f32 %v7523, %v7563
    %v7565 = vpop.f32.mrf.mxu0
    %v7566 = vpop.f32.mrf.mxu0
    %v7567 = vadd.f32 %v7526, %v7566
    %v7568 = vpop.f32.mrf.mxu0
    %7569 = vdwg.mxu0
    %v7570 = vadd.f32 %v7055, %v7564
    %v7571 = vadd.f32 %v7058, %v7567
    %s7572 = scalar_lea.vmem [#allocation2], 48
    %v7573 = vld [vmem:[%s7572] sm:$0xff]
    %v7574 = vld [vmem:[%s7572 + $0x8] sm:$0xff]
    %v7575 = vld [vmem:[%s7572 + $0x40] sm:$0xff]
    %v7576 = vld [vmem:[%s7572 + $0x48] sm:$0xff]
    %v7577 = vld [vmem:[%s7572 + $0x80] sm:$0xff]
    %v7578 = vld [vmem:[%s7572 + $0x88] sm:$0xff]
    %v7579 = vld [vmem:[%s7572 + $0xc0] sm:$0xff]
    %v7580 = vld [vmem:[%s7572 + $0xc8] sm:$0xff]
    %s7581 = scalar_lea.vmem %s5, 12
    %v7582 = vld [vmem:[%s7581] sm:$0xf]
    %v7584 = vlaneseq
    %v7585 = vshrl.u32 %v7584, 7
    %v7586 = vsub.s32 0, %v7585
    %v7587 = vrot.slane %v7582, %v7586
    %v7588 = vlaneseq
    %v7589 = vshrl.u32 %v7588, 7
    %v7590 = vsub.s32 1, %v7589
    %v7591 = vrot.slane %v7582, %v7590
    %v7592 = vlaneseq
    %v7593 = vshrl.u32 %v7592, 7
    %v7594 = vsub.s32 2, %v7593
    %v7595 = vrot.slane %v7582, %v7594
    %v7596 = vlaneseq
    %v7597 = vshrl.u32 %v7596, 7
    %v7598 = vsub.s32 3, %v7597
    %v7599 = vrot.slane %v7582, %v7598
    %v7612 = vunpack.c.l.b16 %v7573
    %v7613 = vunpack.c.h.b16 %v7573
    %v7614 = vunpack.c.l.b16 %v7574
    %v7615 = vunpack.c.h.b16 %v7574
    %v7616 = vunpack.c.l.b16 %v7575
    %v7617 = vunpack.c.h.b16 %v7575
    %v7618 = vunpack.c.l.b16 %v7576
    %v7619 = vunpack.c.h.b16 %v7576
    %v7620 = vunpack.c.l.b16 %v7577
    %v7621 = vunpack.c.h.b16 %v7577
    %v7622 = vunpack.c.l.b16 %v7578
    %v7623 = vunpack.c.h.b16 %v7578
    %v7624 = vunpack.c.l.b16 %v7579
    %v7625 = vunpack.c.h.b16 %v7579
    %v7626 = vunpack.c.l.b16 %v7580
    %v7627 = vunpack.c.h.b16 %v7580
    %v7628 = vpack.c.b16 %v7616, %v7612
    %v7629 = vpack.c.b16 %v7617, %v7613
    %v7630 = vpack.c.b16 %v7618, %v7614
    %v7631 = vpack.c.b16 %v7619, %v7615
    %v7632 = vpack.c.b16 %v7624, %v7620
    %v7633 = vpack.c.b16 %v7625, %v7621
    %v7634 = vpack.c.b16 %v7626, %v7622
    %v7635 = vpack.c.b16 %v7627, %v7623
    %7644 = vmatprep.subr.bf16.mxu0 0
    %7645 = vmatpush1.bf16.msra.mxu0 0
    %7646 = vmatprep.subr.bf16.mxu0 0
    %7647 = vmatpush1.bf16.msra.mxu0 0
    %7648 = vmatprep.subr.bf16.mxu0 0
    %7649 = vmatpush1.bf16.msra.mxu0 0
    %7650 = vmatprep.subr.bf16.mxu0 0
    %7651 = vmatpush1.bf16.msra.mxu0 0
    %7652 = vmatprep.subr.bf16.mxu0 0
    %7653 = vmatpush1.bf16.msra.mxu0 0
    %7654 = vmatprep.subr.bf16.mxu0 0
    %7655 = vmatpush1.bf16.msra.mxu0 0
    %7656 = vmatprep.subr.bf16.mxu0 %v7633
    %7657 = vmatpush1.bf16.msra.mxu0 %v7632
    %7658 = vmatprep.subr.bf16.mxu0 %v7629
    %7659 = vmatpush1.bf16.msra.mxu0 %v7628
    %7660 = vmatprep.subr.bf16.mxu0 0
    %7661 = vmatpush2.bf16.msra.mxu0 0
    %7662 = vmatprep.subr.bf16.mxu0 0
    %7663 = vmatpush2.bf16.msra.mxu0 0
    %7664 = vmatprep.subr.bf16.mxu0 0
    %7665 = vmatpush2.bf16.msra.mxu0 0
    %7666 = vmatprep.subr.bf16.mxu0 0
    %7667 = vmatpush2.bf16.msra.mxu0 0
    %7668 = vmatprep.subr.bf16.mxu0 0
    %7669 = vmatpush2.bf16.msra.mxu0 0
    %7670 = vmatprep.subr.bf16.mxu0 0
    %7671 = vmatpush2.bf16.msra.mxu0 0
    %7672 = vmatprep.subr.bf16.mxu0 0
    %7673 = vmatpush2.bf16.msra.mxu0 0
    %7674 = vmatprep.subr.bf16.mxu0 0
    %7675 = vmatpush2.bf16.msra.mxu0 0
    %7676 = vmatprep.mubr.bf16.mxu0 0
    %7677 = vmatmul.mubr.bf16.gmra.mxu0 %v6114
    %v7678 = vpop.f32.mrf.mxu0
    %v7679 = vadd.f32 %v7587, %v7678
    %v7680 = vpop.f32.mrf.mxu0
    %v7681 = vadd.f32 %v7591, %v7680
    %v7682 = vpop.f32.mrf.mxu0
    %v7683 = vadd.f32 %v7587, %v7682
    %v7684 = vpop.f32.mrf.mxu0
    %v7685 = vadd.f32 %v7591, %v7684
    %7686 = vdwg.mxu0
    %7687 = vmatprep.subr.bf16.mxu0 0
    %7688 = vmatpush1.bf16.msra.mxu0 0
    %7689 = vmatprep.subr.bf16.mxu0 0
    %7690 = vmatpush1.bf16.msra.mxu0 0
    %7691 = vmatprep.subr.bf16.mxu0 0
    %7692 = vmatpush1.bf16.msra.mxu0 0
    %7693 = vmatprep.subr.bf16.mxu0 0
    %7694 = vmatpush1.bf16.msra.mxu0 0
    %7695 = vmatprep.subr.bf16.mxu0 0
    %7696 = vmatpush1.bf16.msra.mxu0 0
    %7697 = vmatprep.subr.bf16.mxu0 0
    %7698 = vmatpush1.bf16.msra.mxu0 0
    %7699 = vmatprep.subr.bf16.mxu0 %v7635
    %7700 = vmatpush1.bf16.msra.mxu0 %v7634
    %7701 = vmatprep.subr.bf16.mxu0 %v7631
    %7702 = vmatpush1.bf16.msra.mxu0 %v7630
    %7703 = vmatprep.subr.bf16.mxu0 0
    %7704 = vmatpush2.bf16.msra.mxu0 0
    %7705 = vmatprep.subr.bf16.mxu0 0
    %7706 = vmatpush2.bf16.msra.mxu0 0
    %7707 = vmatprep.subr.bf16.mxu0 0
    %7708 = vmatpush2.bf16.msra.mxu0 0
    %7709 = vmatprep.subr.bf16.mxu0 0
    %7710 = vmatpush2.bf16.msra.mxu0 0
    %7711 = vmatprep.subr.bf16.mxu0 0
    %7712 = vmatpush2.bf16.msra.mxu0 0
    %7713 = vmatprep.subr.bf16.mxu0 0
    %7714 = vmatpush2.bf16.msra.mxu0 0
    %7715 = vmatprep.subr.bf16.mxu0 0
    %7716 = vmatpush2.bf16.msra.mxu0 0
    %7717 = vmatprep.subr.bf16.mxu0 0
    %7718 = vmatpush2.bf16.msra.mxu0 0
    %7719 = vmatprep.mubr.bf16.mxu0 0
    %7720 = vmatmul.mubr.bf16.gmra.mxu0 %v6114
    %v7721 = vpop.f32.mrf.mxu0
    %v7722 = vadd.f32 %v7595, %v7721
    %v7723 = vpop.f32.mrf.mxu0
    %v7724 = vadd.f32 %v7599, %v7723
    %v7725 = vpop.f32.mrf.mxu0
    %v7726 = vadd.f32 %v7595, %v7725
    %v7727 = vpop.f32.mrf.mxu0
    %v7728 = vadd.f32 %v7599, %v7727
    %7729 = vdwg.mxu0
    %v7730 = vmax.f32 %v7679, 0.0
    %v7731 = vmax.f32 %v7681, 0.0
    %v7732 = vmax.f32 %v7722, 0.0
    %v7733 = vmax.f32 %v7724, 0.0
    %v7734 = vmax.f32 %v7683, 0.0
    %v7735 = vmax.f32 %v7685, 0.0
    %v7736 = vmax.f32 %v7726, 0.0
    %v7737 = vmax.f32 %v7728, 0.0
    %v7738 = vpack.c.bf16 %v7734, %v7730
    %v7739 = vpack.c.bf16 %v7735, %v7731
    %v7740 = vpack.c.bf16 %v7736, %v7732
    %v7741 = vpack.c.bf16 %v7737, %v7733
    %s7742 = scalar_lea.vmem [#allocation3], 768
    %v7743 = vld [vmem:[%s7742] sm:$0xf]
    %v7744 = vld [vmem:[%s7742 + $0x4] sm:$0xf]
    %v7745 = vld [vmem:[%s7742 + $0x8] sm:$0xf]
    %v7746 = vld [vmem:[%s7742 + $0xc] sm:$0xf]
    %v7747 = vld [vmem:[%s7742 + $0x10] sm:$0xf]
    %v7748 = vld [vmem:[%s7742 + $0x14] sm:$0xf]
    %v7749 = vld [vmem:[%s7742 + $0x18] sm:$0xf]
    %v7750 = vld [vmem:[%s7742 + $0x1c] sm:$0xf]
    %v7751 = vld [vmem:[%s7742 + $0x20] sm:$0xf]
    %v7752 = vld [vmem:[%s7742 + $0x24] sm:$0xf]
    %v7753 = vld [vmem:[%s7742 + $0x28] sm:$0xf]
    %v7754 = vld [vmem:[%s7742 + $0x2c] sm:$0xf]
    %v7755 = vld [vmem:[%s7742 + $0x30] sm:$0xf]
    %v7756 = vld [vmem:[%s7742 + $0x34] sm:$0xf]
    %v7757 = vld [vmem:[%s7742 + $0x38] sm:$0xf]
    %v7758 = vld [vmem:[%s7742 + $0x3c] sm:$0xf]
    %v7759 = vld [vmem:[%s7742 + $0x40] sm:$0xf]
    %v7760 = vld [vmem:[%s7742 + $0x44] sm:$0xf]
    %v7761 = vld [vmem:[%s7742 + $0x48] sm:$0xf]
    %v7762 = vld [vmem:[%s7742 + $0x4c] sm:$0xf]
    %v7763 = vld [vmem:[%s7742 + $0x50] sm:$0xf]
    %v7764 = vld [vmem:[%s7742 + $0x54] sm:$0xf]
    %v7765 = vld [vmem:[%s7742 + $0x58] sm:$0xf]
    %v7766 = vld [vmem:[%s7742 + $0x5c] sm:$0xf]
    %v7767 = vld [vmem:[%s7742 + $0x60] sm:$0xf]
    %v7768 = vld [vmem:[%s7742 + $0x64] sm:$0xf]
    %v7769 = vld [vmem:[%s7742 + $0x68] sm:$0xf]
    %v7770 = vld [vmem:[%s7742 + $0x6c] sm:$0xf]
    %v7771 = vld [vmem:[%s7742 + $0x70] sm:$0xf]
    %v7772 = vld [vmem:[%s7742 + $0x74] sm:$0xf]
    %v7773 = vld [vmem:[%s7742 + $0x78] sm:$0xf]
    %v7774 = vld [vmem:[%s7742 + $0x7c] sm:$0xf]
    %v7775 = vld [vmem:[%s7742 + $0x80] sm:$0xf]
    %v7776 = vld [vmem:[%s7742 + $0x84] sm:$0xf]
    %v7777 = vld [vmem:[%s7742 + $0x88] sm:$0xf]
    %v7778 = vld [vmem:[%s7742 + $0x8c] sm:$0xf]
    %v7779 = vld [vmem:[%s7742 + $0x90] sm:$0xf]
    %v7780 = vld [vmem:[%s7742 + $0x94] sm:$0xf]
    %v7781 = vld [vmem:[%s7742 + $0x98] sm:$0xf]
    %v7782 = vld [vmem:[%s7742 + $0x9c] sm:$0xf]
    %v7783 = vld [vmem:[%s7742 + $0xa0] sm:$0xf]
    %v7784 = vld [vmem:[%s7742 + $0xa4] sm:$0xf]
    %v7785 = vld [vmem:[%s7742 + $0xa8] sm:$0xf]
    %v7786 = vld [vmem:[%s7742 + $0xac] sm:$0xf]
    %v7787 = vld [vmem:[%s7742 + $0xb0] sm:$0xf]
    %v7788 = vld [vmem:[%s7742 + $0xb4] sm:$0xf]
    %v7789 = vld [vmem:[%s7742 + $0xb8] sm:$0xf]
    %v7790 = vld [vmem:[%s7742 + $0xbc] sm:$0xf]
    %v7791 = vld [vmem:[%s7742 + $0xc0] sm:$0xf]
    %v7792 = vld [vmem:[%s7742 + $0xc4] sm:$0xf]
    %v7793 = vld [vmem:[%s7742 + $0xc8] sm:$0xf]
    %v7794 = vld [vmem:[%s7742 + $0xcc] sm:$0xf]
    %v7795 = vld [vmem:[%s7742 + $0xd0] sm:$0xf]
    %v7796 = vld [vmem:[%s7742 + $0xd4] sm:$0xf]
    %v7797 = vld [vmem:[%s7742 + $0xd8] sm:$0xf]
    %v7798 = vld [vmem:[%s7742 + $0xdc] sm:$0xf]
    %v7799 = vld [vmem:[%s7742 + $0xe0] sm:$0xf]
    %v7800 = vld [vmem:[%s7742 + $0xe4] sm:$0xf]
    %v7801 = vld [vmem:[%s7742 + $0xe8] sm:$0xf]
    %v7802 = vld [vmem:[%s7742 + $0xec] sm:$0xf]
    %v7803 = vld [vmem:[%s7742 + $0xf0] sm:$0xf]
    %v7804 = vld [vmem:[%s7742 + $0xf4] sm:$0xf]
    %v7805 = vld [vmem:[%s7742 + $0xf8] sm:$0xf]
    %v7806 = vld [vmem:[%s7742 + $0xfc] sm:$0xf]
    %v7871 = vunpack.c.l.b16 %v7743
    %v7872 = vunpack.c.l.b16 %v7744
    %v7873 = vunpack.c.l.b16 %v7745
    %v7874 = vunpack.c.l.b16 %v7746
    %v7875 = vunpack.c.l.b16 %v7747
    %v7876 = vunpack.c.l.b16 %v7748
    %v7877 = vunpack.c.l.b16 %v7749
    %v7878 = vunpack.c.l.b16 %v7750
    %v7879 = vunpack.c.l.b16 %v7751
    %v7880 = vunpack.c.l.b16 %v7752
    %v7881 = vunpack.c.l.b16 %v7753
    %v7882 = vunpack.c.l.b16 %v7754
    %v7883 = vunpack.c.l.b16 %v7755
    %v7884 = vunpack.c.l.b16 %v7756
    %v7885 = vunpack.c.l.b16 %v7757
    %v7886 = vunpack.c.l.b16 %v7758
    %v7887 = vunpack.c.l.b16 %v7759
    %v7888 = vunpack.c.l.b16 %v7760
    %v7889 = vunpack.c.l.b16 %v7761
    %v7890 = vunpack.c.l.b16 %v7762
    %v7891 = vunpack.c.l.b16 %v7763
    %v7892 = vunpack.c.l.b16 %v7764
    %v7893 = vunpack.c.l.b16 %v7765
    %v7894 = vunpack.c.l.b16 %v7766
    %v7895 = vunpack.c.l.b16 %v7767
    %v7896 = vunpack.c.l.b16 %v7768
    %v7897 = vunpack.c.l.b16 %v7769
    %v7898 = vunpack.c.l.b16 %v7770
    %v7899 = vunpack.c.l.b16 %v7771
    %v7900 = vunpack.c.l.b16 %v7772
    %v7901 = vunpack.c.l.b16 %v7773
    %v7902 = vunpack.c.l.b16 %v7774
    %v7903 = vunpack.c.l.b16 %v7775
    %v7904 = vunpack.c.l.b16 %v7776
    %v7905 = vunpack.c.l.b16 %v7777
    %v7906 = vunpack.c.l.b16 %v7778
    %v7907 = vunpack.c.l.b16 %v7779
    %v7908 = vunpack.c.l.b16 %v7780
    %v7909 = vunpack.c.l.b16 %v7781
    %v7910 = vunpack.c.l.b16 %v7782
    %v7911 = vunpack.c.l.b16 %v7783
    %v7912 = vunpack.c.l.b16 %v7784
    %v7913 = vunpack.c.l.b16 %v7785
    %v7914 = vunpack.c.l.b16 %v7786
    %v7915 = vunpack.c.l.b16 %v7787
    %v7916 = vunpack.c.l.b16 %v7788
    %v7917 = vunpack.c.l.b16 %v7789
    %v7918 = vunpack.c.l.b16 %v7790
    %v7919 = vunpack.c.l.b16 %v7791
    %v7920 = vunpack.c.l.b16 %v7792
    %v7921 = vunpack.c.l.b16 %v7793
    %v7922 = vunpack.c.l.b16 %v7794
    %v7923 = vunpack.c.l.b16 %v7795
    %v7924 = vunpack.c.l.b16 %v7796
    %v7925 = vunpack.c.l.b16 %v7797
    %v7926 = vunpack.c.l.b16 %v7798
    %v7927 = vunpack.c.l.b16 %v7799
    %v7928 = vunpack.c.l.b16 %v7800
    %v7929 = vunpack.c.l.b16 %v7801
    %v7930 = vunpack.c.l.b16 %v7802
    %v7931 = vunpack.c.l.b16 %v7803
    %v7932 = vunpack.c.l.b16 %v7804
    %v7933 = vunpack.c.l.b16 %v7805
    %v7934 = vunpack.c.l.b16 %v7806
    %v7935 = vpack.c.b16 %v7872, %v7871
    %v7936 = vpack.c.b16 %v7874, %v7873
    %v7937 = vpack.c.b16 %v7876, %v7875
    %v7938 = vpack.c.b16 %v7878, %v7877
    %v7939 = vpack.c.b16 %v7880, %v7879
    %v7940 = vpack.c.b16 %v7882, %v7881
    %v7941 = vpack.c.b16 %v7884, %v7883
    %v7942 = vpack.c.b16 %v7886, %v7885
    %v7943 = vpack.c.b16 %v7888, %v7887
    %v7944 = vpack.c.b16 %v7890, %v7889
    %v7945 = vpack.c.b16 %v7892, %v7891
    %v7946 = vpack.c.b16 %v7894, %v7893
    %v7947 = vpack.c.b16 %v7896, %v7895
    %v7948 = vpack.c.b16 %v7898, %v7897
    %v7949 = vpack.c.b16 %v7900, %v7899
    %v7950 = vpack.c.b16 %v7902, %v7901
    %v7951 = vpack.c.b16 %v7904, %v7903
    %v7952 = vpack.c.b16 %v7906, %v7905
    %v7953 = vpack.c.b16 %v7908, %v7907
    %v7954 = vpack.c.b16 %v7910, %v7909
    %v7955 = vpack.c.b16 %v7912, %v7911
    %v7956 = vpack.c.b16 %v7914, %v7913
    %v7957 = vpack.c.b16 %v7916, %v7915
    %v7958 = vpack.c.b16 %v7918, %v7917
    %v7959 = vpack.c.b16 %v7920, %v7919
    %v7960 = vpack.c.b16 %v7922, %v7921
    %v7961 = vpack.c.b16 %v7924, %v7923
    %v7962 = vpack.c.b16 %v7926, %v7925
    %v7963 = vpack.c.b16 %v7928, %v7927
    %v7964 = vpack.c.b16 %v7930, %v7929
    %v7965 = vpack.c.b16 %v7932, %v7931
    %v7966 = vpack.c.b16 %v7934, %v7933
    %7999 = vmatprep.subr.bf16.mxu0 0
    %8000 = vmatpush1.bf16.msra.mxu0 %v7942
    %8001 = vmatprep.subr.bf16.mxu0 0
    %8002 = vmatpush1.bf16.msra.mxu0 %v7941
    %8003 = vmatprep.subr.bf16.mxu0 0
    %8004 = vmatpush1.bf16.msra.mxu0 %v7940
    %8005 = vmatprep.subr.bf16.mxu0 0
    %8006 = vmatpush1.bf16.msra.mxu0 %v7939
    %8007 = vmatprep.subr.bf16.mxu0 0
    %8008 = vmatpush1.bf16.msra.mxu0 %v7938
    %8009 = vmatprep.subr.bf16.mxu0 0
    %8010 = vmatpush1.bf16.msra.mxu0 %v7937
    %8011 = vmatprep.subr.bf16.mxu0 0
    %8012 = vmatpush1.bf16.msra.mxu0 %v7936
    %8013 = vmatprep.subr.bf16.mxu0 0
    %8014 = vmatpush1.bf16.msra.mxu0 %v7935
    %8015 = vmatprep.subr.bf16.mxu0 0
    %8016 = vmatpush2.bf16.msra.mxu0 %v7950
    %8017 = vmatprep.subr.bf16.mxu0 0
    %8018 = vmatpush2.bf16.msra.mxu0 %v7949
    %8019 = vmatprep.subr.bf16.mxu0 0
    %8020 = vmatpush2.bf16.msra.mxu0 %v7948
    %8021 = vmatprep.subr.bf16.mxu0 0
    %8022 = vmatpush2.bf16.msra.mxu0 %v7947
    %8023 = vmatprep.subr.bf16.mxu0 0
    %8024 = vmatpush2.bf16.msra.mxu0 %v7946
    %8025 = vmatprep.subr.bf16.mxu0 0
    %8026 = vmatpush2.bf16.msra.mxu0 %v7945
    %8027 = vmatprep.subr.bf16.mxu0 0
    %8028 = vmatpush2.bf16.msra.mxu0 %v7944
    %8029 = vmatprep.subr.bf16.mxu0 0
    %8030 = vmatpush2.bf16.msra.mxu0 %v7943
    %8031 = vmatprep.mubr.bf16.mxu0 %v7739
    %8032 = vmatmul.mubr.bf16.gmra.mxu0 %v7738
    %v8033 = vpop.f32.mrf.mxu0
    %v8034 = vadd.f32 0.0, %v8033
    %v8035 = vpop.f32.mrf.mxu0
    %v8036 = vpop.f32.mrf.mxu0
    %v8037 = vadd.f32 0.0, %v8036
    %v8038 = vpop.f32.mrf.mxu0
    %8039 = vdwg.mxu0
    %8040 = vmatprep.subr.bf16.mxu0 0
    %8041 = vmatpush1.bf16.msra.mxu0 %v7958
    %8042 = vmatprep.subr.bf16.mxu0 0
    %8043 = vmatpush1.bf16.msra.mxu0 %v7957
    %8044 = vmatprep.subr.bf16.mxu0 0
    %8045 = vmatpush1.bf16.msra.mxu0 %v7956
    %8046 = vmatprep.subr.bf16.mxu0 0
    %8047 = vmatpush1.bf16.msra.mxu0 %v7955
    %8048 = vmatprep.subr.bf16.mxu0 0
    %8049 = vmatpush1.bf16.msra.mxu0 %v7954
    %8050 = vmatprep.subr.bf16.mxu0 0
    %8051 = vmatpush1.bf16.msra.mxu0 %v7953
    %8052 = vmatprep.subr.bf16.mxu0 0
    %8053 = vmatpush1.bf16.msra.mxu0 %v7952
    %8054 = vmatprep.subr.bf16.mxu0 0
    %8055 = vmatpush1.bf16.msra.mxu0 %v7951
    %8056 = vmatprep.subr.bf16.mxu0 0
    %8057 = vmatpush2.bf16.msra.mxu0 %v7966
    %8058 = vmatprep.subr.bf16.mxu0 0
    %8059 = vmatpush2.bf16.msra.mxu0 %v7965
    %8060 = vmatprep.subr.bf16.mxu0 0
    %8061 = vmatpush2.bf16.msra.mxu0 %v7964
    %8062 = vmatprep.subr.bf16.mxu0 0
    %8063 = vmatpush2.bf16.msra.mxu0 %v7963
    %8064 = vmatprep.subr.bf16.mxu0 0
    %8065 = vmatpush2.bf16.msra.mxu0 %v7962
    %8066 = vmatprep.subr.bf16.mxu0 0
    %8067 = vmatpush2.bf16.msra.mxu0 %v7961
    %8068 = vmatprep.subr.bf16.mxu0 0
    %8069 = vmatpush2.bf16.msra.mxu0 %v7960
    %8070 = vmatprep.subr.bf16.mxu0 0
    %8071 = vmatpush2.bf16.msra.mxu0 %v7959
    %8072 = vmatprep.mubr.bf16.mxu0 %v7741
    %8073 = vmatmul.mubr.bf16.gmra.mxu0 %v7740
    %v8074 = vpop.f32.mrf.mxu0
    %v8075 = vadd.f32 %v8034, %v8074
    %v8076 = vpop.f32.mrf.mxu0
    %v8077 = vpop.f32.mrf.mxu0
    %v8078 = vadd.f32 %v8037, %v8077
    %v8079 = vpop.f32.mrf.mxu0
    %8080 = vdwg.mxu0
    %v8081 = vadd.f32 %v7570, %v8075
    %v8082 = vadd.f32 %v7571, %v8078
    %v8083 = vld [vmem:[%s4 + $0x2] sm:$0x1]
    %v8085 = vlaneseq
    %v8086 = vshrl.u32 %v8085, 7
    %v8087 = vsub.s32 0, %v8086
    %v8088 = vrot.slane %v8083, %v8087
    %v8090 = vadd.f32 %v8081, %v8088
    %v8091 = vadd.f32 %v8082, %v8088
    %v8092 = vadd.f32 %v8090, %v6032
    %v8093 = vadd.f32 %v8091, %v6033
    %v8094 = vsel %vm454, %v8092, 0.0
    %8095 = vadd.xlane.f32.xlu0 %v8094
    %v8096 = vpop.xlane.xlu0 %8095
    %v8097 = vsel %vm454, %v8093, 0.0
    %8098 = vadd.xlane.f32.xlu0 %v8097
    %v8099 = vpop.xlane.xlu0 %8098
    %v8100 = vmul.f32 %v8096, %v3172
    %v8101 = vmul.f32 %v8099, %v3172
    %v8102 = vsub.f32 %v8092, %v8100
    %v8103 = vsub.f32 %v8093, %v8101
    %v8104 = vmul.f32 %v8102, %v8102
    %v8105 = vmul.f32 %v8103, %v8103
    %v8106 = vsel %vm454, %v8104, 0.0
    %8107 = vadd.xlane.f32.xlu0 %v8106
    %v8108 = vpop.xlane.xlu0 %8107
    %v8109 = vsel %vm454, %v8105, 0.0
    %8110 = vadd.xlane.f32.xlu0 %v8109
    %v8111 = vpop.xlane.xlu0 %8110
    %v8112 = vmul.f32 %v8108, %v3172
    %v8113 = vmul.f32 %v8111, %v3172
    %v8114 = vadd.f32 %v8112, 1e-05
    %v8115 = vadd.f32 %v8113, 1e-05
    %v8116 = vrsqrt.pop %v8114
    %v8117 = vrsqrt.pop %v8115
    %v8118 = vmul.f32 %v8102, %v8116
    %v8119 = vmul.f32 %v8103, %v8117
    %v8120 = vmul.f32 %v8118, %v3194
    %v8121 = vmul.f32 %v8119, %v3194
    %v8122 = vadd.f32 %v8120, %v3199
    %v8123 = vadd.f32 %v8121, %v3199
    %8124 = vst.msk [vmem:[#allocation5] sm:$0xff] %vm454, %v8122
    %8125 = vst.msk [vmem:[#allocation5 + $0x8] sm:$0xff] %vm454, %v8123
    // Predicated region
    $region94: #{tpu_custom_call.1} parent=1 // pred_check
      _
    $region95: #{tpu_custom_call.1} parent=1 // pred_check_branch
      %8127 = sbr.rel (0) target = $region97
    $region96: #{tpu_custom_call.1} parent=1 // pred_region
      %s8129 = ssub.s32 256, 256
      %8130 = vsyncadd [#allocation6], %s8129
      %s8131 = sshll.u32 [#allocation5], 4
      %s8132 = int_to_ptr.vmem [resolvable:$true] %s8131
      %8137 = dma.vmem_to_hbm [thread:$0]  %s8132, 256, %s8, [#allocation6], 128, 128, 8
    $region97: #{tpu_custom_call.1} parent=1 // pred_fallthru
      _
    // Predicated region
    $region98: #{tpu_custom_call.1} parent=1 // pred_check
      _
    $region99: #{tpu_custom_call.1} parent=1 // pred_check_branch
      %8139 = sbr.rel (0) target = $region101
    $region100: #{tpu_custom_call.1} parent=1 // pred_region
      %8140 = dma.done [#allocation6], 256
    $region101: #{tpu_custom_call.1} parent=1 // pred_fallthru
      _
    %8141 = vsyncpa [#allocation6], 1
  %8142 = vsyncmov [#allocation4]
  %s8143 = vpop.sfrf %8142
  %p8144 = scmp.eq.s32.totalorder %s8143, 0
  %p8145 = pneg %p8144
  %8147 = shalt.err (%p8145)
  %s8148 = scalar_lea.sflag [#allocation4], 1
  %8149 = vsyncmov %s8148
  %s8150 = vpop.sfrf %8149
  %p8151 = scmp.eq.s32.totalorder %s8150, 0
  %p8152 = pneg %p8151
  %8154 = shalt.err (%p8152)

</llo_original>
